<compile_context>
chip_gen: v7x
topology: tpu7x:2x2x1
jax: 0.10.0
libtpu: 0.0.40
codegen_flags: <defaults>
</compile_context>

<pallas_src>
import math
import functools

import jax
import jax.numpy as jnp
from jax.experimental import pallas as pl
from jax.experimental.pallas import tpu as pltpu

# Make wrapper / reference XLA matmuls full f32 so they agree with the
# in-kernel f32 MXU dot within tight tolerance.
jax.config.update("jax_default_matmul_precision", "highest")


def _pointnet2_kernel(cpost_ref, cbatch_ref, cwt_ref, pos_ref, batch_ref,
                      base_ref, w2t_ref, b2_ref, out_ref, acc_ref, *,
                      radius, sub):
    """One (centroid tile i, point chunk k) grid step.

    Layout convention in the hot loop: points on sublanes, centroids on lanes.
      cpost_ref : [D,  TM]   centroid coords (transposed)
      cbatch_ref: [1,  TM]   centroid batch ids
      cwt_ref   : [H,  TM]   centroid-side linear term (cpos @ W1p)^T
      pos_ref   : [TN, D]    point coords chunk
      batch_ref : [TN, 1]    point batch ids chunk
      base_ref  : [TN, H]    point-side linear term (x@W1x + pos@W1p + b1)
      w2t_ref   : [H2p, H]   set_filter weight, transposed + output-padded
      b2_ref    : [H2p, 1]   set_filter bias
      out_ref   : [H2p, TM]  transposed output tile (lane-dense store)
      acc_ref   : [H,  TM]   running masked max of base over point chunks
    """
    k = pl.program_id(1)

    @pl.when(k == 0)
    def _():
        acc_ref[...] = jnp.full(acc_ref.shape, -jnp.inf, acc_ref.dtype)

    r2 = jnp.float32(radius * radius)
    neg_inf = jnp.float32(-jnp.inf)
    cbatch = cbatch_ref[...]                       # [1, TM] int32
    tn, ddim = pos_ref.shape
    hdim = base_ref.shape[1]

    # Static loop over point sub-chunks keeps every live tensor 2-D and small.
    for s in range(tn // sub):
        j0 = s * sub
        pos_s = pos_ref[j0:j0 + sub, :]            # [SUB, D]

        # Squared distance, direct (p_j - c_i)^2 formula (same as reference).
        d2 = jnp.zeros((sub, cbatch.shape[1]), jnp.float32)
        for d in range(ddim):                      # D == 3, static unroll
            delta = pos_s[:, d:d + 1] - cpost_ref[d:d + 1, :]      # [SUB, TM]
            d2 = d2 + delta * delta

        mask = jnp.logical_and(
            d2 <= r2, batch_ref[j0:j0 + sub, :] == cbatch)          # [SUB, TM]
        # TODO(synk): torch_cluster.radius caps neighbors at
        # max_num_neighbors=64; not enforced (test keeps <=64 pts per batch).

        # Masked running max of base, one hidden channel at a time:
        # select + vreg-fold max + one cross-sublane reduce per h.  The mask
        # is consumed in exactly the layout it was produced in (no relayout),
        # and no 3-D tensor is ever materialized.
        for h in range(hdim):                      # static, H small (32)
            bcol = base_ref[j0:j0 + sub, h:h + 1]                   # [SUB, 1]
            sel = jnp.where(mask, bcol, neg_inf)                    # [SUB, TM]
            cmax = jnp.max(sel, axis=0, keepdims=True)              # [1,  TM]
            acc_ref[h:h + 1, :] = jnp.maximum(acc_ref[h:h + 1, :], cmax)

    @pl.when(k == pl.num_programs(1) - 1)
    def _():
        # relu(max_base - cw) == max_j relu(base_j - cw_i) by monotonicity;
        # empty neighborhoods (-inf) collapse to 0, matching PyG's zero-fill.
        agg_t = jnp.maximum(acc_ref[...] - cwt_ref[...], 0.0)       # [H, TM]
        # Plain NN matmul on the MXU: W2^T [H2p,H] @ agg^T [H,TM] -> [H2p,TM].
        out_t = jnp.dot(w2t_ref[...], agg_t,
                        preferred_element_type=jnp.float32)
        out_ref[...] = jnp.maximum(out_t + b2_ref[...], 0.0)        # [H2p, TM]


def _round_up(v, m):
    return (v + m - 1) // m * m


def pointnet_conv_pallas(pos, x, batch, cpos, cbatch, params, radius,
                         *, tm=128, tn=512, sub=128):
    """Fused radius-mask + PointNetConv(max) + set_filter forward."""
    N, D = pos.shape
    M = cpos.shape[0]
    F = x.shape[1]
    H = params["w1"].shape[1]
    H2 = params["w2"].shape[1]

    assert tm % 128 == 0, "centroid tile is a lane dimension -> multiple of 128"
    sub = max(8, min(sub, tn))
    assert sub % 8 == 0
    tn = min(tn, _round_up(N, sub))
    assert tn % sub == 0

    Mp = _round_up(M, tm)                 # pad centroids to the lane tile
    Np = _round_up(N, tn)                 # pad points to the chunk size
    H2p = _round_up(H2, 128)              # lane-dense output store only

    f32 = jnp.float32
    w1 = params["w1"].astype(f32)
    w1x, w1p = w1[:F], w1[F:]

    # Grid-invariant precompute (runs once, outside the kernel):
    #   msg_ij = relu(x_j@W1x + (pos_j - cpos_i)@W1p + b1) = relu(base_j - cw_i)
    base = (x.astype(f32) @ w1x + pos.astype(f32) @ w1p
            + params["b1"].astype(f32)[None, :])                     # [N, H]
    cw = cpos.astype(f32) @ w1p                                      # [M, H]

    # Padding: padded centroids get batch -1, padded points batch -2, so they
    # never pass the same-batch test; padded outputs are sliced off below.
    base = jnp.pad(base, ((0, Np - N), (0, 0)))                      # [Np, H]
    posc = jnp.pad(pos.astype(f32), ((0, Np - N), (0, 0)))           # [Np, D]
    batchc = jnp.pad(batch.astype(jnp.int32), (0, Np - N),
                     constant_values=-2).reshape(Np, 1)
    cpost = jnp.pad(cpos.astype(f32), ((0, Mp - M), (0, 0))).T       # [D, Mp]
    cbrow = jnp.pad(cbatch.astype(jnp.int32), (0, Mp - M),
                    constant_values=-1).reshape(1, Mp)
    cwt = jnp.pad(cw, ((0, Mp - M), (0, 0))).T                       # [H, Mp]
    w2t = jnp.pad(params["w2"].astype(f32).T,
                  ((0, H2p - H2), (0, 0)))                           # [H2p, H]
    b2c = jnp.pad(params["b2"].astype(f32), (0, H2p - H2)).reshape(H2p, 1)

    kernel = functools.partial(_pointnet2_kernel, radius=float(radius), sub=sub)

    # NOTE: cpost/cbrow/cwt/w2t/b2c are grid- (or k-)invariant; on v7x a
    # pipeline_mode=pl.Buffered(1) on those specs plus an explicit
    # vmem_limit_bytes would trim their double-buffering -- blocks are tiny
    # here so it is left at the default.
    out_t = pl.pallas_call(
        kernel,
        out_shape=jax.ShapeDtypeStruct((H2p, Mp), f32),
        grid_spec=pltpu.PrefetchScalarGridSpec(
            num_scalar_prefetch=0,
            grid=(Mp // tm, Np // tn),
            in_specs=[
                pl.BlockSpec((D, tm), lambda i, k: (0, i)),    # centroid pos^T
                pl.BlockSpec((1, tm), lambda i, k: (0, i)),    # centroid batch
                pl.BlockSpec((H, tm), lambda i, k: (0, i)),    # cw^T tile
                pl.BlockSpec((tn, D), lambda i, k: (k, 0)),    # point pos chunk
                pl.BlockSpec((tn, 1), lambda i, k: (k, 0)),    # point batch chunk
                pl.BlockSpec((tn, H), lambda i, k: (k, 0)),    # base chunk
                pl.BlockSpec((H2p, H), lambda i, k: (0, 0)),   # set_filter W^T
                pl.BlockSpec((H2p, 1), lambda i, k: (0, 0)),   # set_filter b
            ],
            out_specs=pl.BlockSpec((H2p, tm), lambda i, k: (0, i)),
            scratch_shapes=[pltpu.VMEM((H, tm), f32)],          # running max
        ),
        compiler_params=pltpu.CompilerParams(
            dimension_semantics=("parallel", "arbitrary")),
    )(cpost, cbrow, cwt, posc, batchc, base, w2t, b2c)

    return out_t[:H2, :M].T                                        # [M, H2]


def fps_per_batch(pos_b, m):
    """Deterministic farthest-point sampling within one batch element.

    gnn.fps uses a random start point; here we start at index 0 for
    determinism (glue code, not the kernel hot path).
    """
    d0 = jnp.sum((pos_b - pos_b[0]) ** 2, axis=-1)
    idx0 = jnp.zeros((m,), jnp.int32)

    def body(i, carry):
        d, idx = carry
        nxt = jnp.argmax(d).astype(jnp.int32)
        idx = idx.at[i].set(nxt)
        d = jnp.minimum(d, jnp.sum((pos_b - pos_b[nxt]) ** 2, axis=-1))
        return d, idx

    _, idx = jax.lax.fori_loop(1, m, body, (d0, idx0))
    return idx


def reference_conv(pos, x, batch, cpos, cbatch, params, radius):
    """Pure-JAX reference of the PointNetConv(max) forward."""
    diff = pos[None, :, :] - cpos[:, None, :]                   # [M, N, D]
    d2 = jnp.sum(diff ** 2, axis=-1)
    mask = (d2 <= radius ** 2) & (cbatch[:, None] == batch[None, :])
    xb = jnp.broadcast_to(x[None], (cpos.shape[0],) + x.shape)
    feat = jnp.concatenate([xb, diff], axis=-1)                 # [M, N, F+D]
    msg = jax.nn.relu(feat @ params["w1"] + params["b1"])
    msg = jnp.where(mask[..., None], msg, -jnp.inf)
    agg = jnp.max(msg, axis=1)
    agg = jnp.where(jnp.any(mask, axis=1, keepdims=True), agg, 0.0)
    return jax.nn.relu(agg @ params["w2"] + params["b2"])


if __name__ == "__main__":
    # Small shapes consistent with the forward: N points, D=3 coords, F feats.
    # n_per_batch <= 64 keeps torch_cluster's max_num_neighbors=64 cap inert.
    B, n_per_batch, D, F = 4, 64, 3, 4
    H, H2 = 32, 32
    radius, density = 0.6, 0.25
    N = B * n_per_batch                                   # 256
    m_per_batch = math.ceil(density * n_per_batch)        # 16 pivots / element

    key = jax.random.PRNGKey(0)
    k_pos, k_x, k_w1, k_b1, k_w2, k_b2 = jax.random.split(key, 6)
    pos = jax.random.uniform(k_pos, (N, D), dtype=jnp.float32)
    x = jax.random.normal(k_x, (N, F), dtype=jnp.float32)
    batch = jnp.repeat(jnp.arange(B, dtype=jnp.int32), n_per_batch)

    # point_filter = Linear(F + D, H) + ReLU ; set_filter = Linear(H, H2) + ReLU
    params = {
        "w1": 0.2 * jax.random.normal(k_w1, (F + D, H), dtype=jnp.float32),
        "b1": 0.05 * jax.random.normal(k_b1, (H,), dtype=jnp.float32),
        "w2": 0.2 * jax.random.normal(k_w2, (H, H2), dtype=jnp.float32),
        "b2": 0.05 * jax.random.normal(k_b2, (H2,), dtype=jnp.float32),
    }

    # --- forward pass of PointNet2Layer ---
    # 1) farthest point sampling (glue)
    centr_idx = jnp.concatenate([
        fps_per_batch(pos[b * n_per_batch:(b + 1) * n_per_batch], m_per_batch)
        + b * n_per_batch
        for b in range(B)
    ])
    centroids = pos[centr_idx]
    centr_batch = batch[centr_idx]

    # 2) radius neighborhood + PointNetConv (Pallas kernel).
    # tn=128 (vs. the production default 512) so the tiny test still exercises
    # the multi-chunk accumulator path; tm=128 pads M=64 up to one lane tile.
    out = pointnet_conv_pallas(pos, x, batch, centroids, centr_batch,
                               params, radius, tm=128, tn=128, sub=128)
    out = jax.block_until_ready(out)
    result = (centroids, out, centr_batch)   # matches module's return tuple

    # correctness check vs pure-JAX reference
    ref = reference_conv(pos, x, batch, centroids, centr_batch, params, radius)
    assert out.shape == (B * m_per_batch, H2)
    assert jnp.allclose(out, ref, atol=1e-4, rtol=1e-4), "mismatch vs reference"

    print("KERNEL_OK")
</pallas_src>

<mosaic_0001>
module attributes {stable_mosaic.version = 11 : i64} {
  func.func @_pointnet2_kernel(%arg0: i32, %arg1: i32, %arg2: memref<3x128xf32, #tpu.memory_space<vmem>>, %arg3: memref<1x128xi32, #tpu.memory_space<vmem>>, %arg4: memref<32x128xf32, #tpu.memory_space<vmem>>, %arg5: memref<128x3xf32, #tpu.memory_space<vmem>>, %arg6: memref<128x1xi32, #tpu.memory_space<vmem>>, %arg7: memref<128x32xf32, #tpu.memory_space<vmem>>, %arg8: memref<128x32xf32, #tpu.memory_space<vmem>>, %arg9: memref<128x1xf32, #tpu.memory_space<vmem>>, %arg10: memref<128x128xf32, #tpu.memory_space<vmem>>, %arg11: memref<32x128xf32, #tpu.memory_space<vmem>>) attributes {dimension_semantics = [#tpu.dimension_semantics<parallel>, #tpu.dimension_semantics<arbitrary>], iteration_bounds = array<i64: 1, 2>, scalar_prefetch = 0 : i64, scratch_operands = 1 : i64, tpu.core_type = #tpu.core_type<tc>, window_params = [{transform_indices = @transform_0, window_bounds = array<i64: 3, 128>}, {transform_indices = @transform_1, window_bounds = array<i64: 1, 128>}, {transform_indices = @transform_2, window_bounds = array<i64: 32, 128>}, {transform_indices = @transform_3, window_bounds = array<i64: 128, 3>}, {transform_indices = @transform_4, window_bounds = array<i64: 128, 1>}, {transform_indices = @transform_5, window_bounds = array<i64: 128, 32>}, {pipeline_mode = #tpu.pipeline_mode<synchronous>, transform_indices = @transform_6, window_bounds = array<i64: 128, 32>}, {pipeline_mode = #tpu.pipeline_mode<synchronous>, transform_indices = @transform_7, window_bounds = array<i64: 128, 1>}, {transform_indices = @transform_8, window_bounds = array<i64: 128, 128>}]} {
    %c0_i32 = arith.constant 0 : i32
    %0 = arith.cmpi eq, %arg1, %c0_i32 : i32
    %1 = arith.extui %0 : i1 to i32
    %c0_i32_0 = arith.constant 0 : i32
    %2 = arith.cmpi ne, %1, %c0_i32_0 : i32
    scf.if %2 {
      %cst_239 = arith.constant 0xFF800000 : f32
      %357 = vector.broadcast %cst_239 : f32 to vector<32x128xf32>
      %c0_240 = arith.constant 0 : index
      %c0_241 = arith.constant 0 : index
      %358 = vector.load %arg11[%c0_240, %c0_241] : memref<32x128xf32, #tpu.memory_space<vmem>>, vector<32x128xf32>
      tpu.vector_store %arg11[%c0_240, %c0_241], %357 {strides = array<i32>} : memref<32x128xf32, #tpu.memory_space<vmem>>, vector<32x128xf32>,
    } else {
    }
    %c0 = arith.constant 0 : index
    %c0_1 = arith.constant 0 : index
    %3 = vector.load %arg3[%c0, %c0_1] : memref<1x128xi32, #tpu.memory_space<vmem>>, vector<1x128xi32>
    %c0_2 = arith.constant 0 : index
    %c0_3 = arith.constant 0 : index
    %4 = vector.load %arg5[%c0_2, %c0_3] : memref<128x3xf32, #tpu.memory_space<vmem>>, vector<128x3xf32>
    %cst = arith.constant 0.000000e+00 : f32
    %5 = vector.broadcast %cst : f32 to vector<128x128xf32>
    %6 = vector.extract_strided_slice %4 {offsets = [0, 0], sizes = [128, 1], strides = [1, 1]} : vector<128x3xf32> to vector<128x1xf32>
    %c0_4 = arith.constant 0 : index
    %c0_5 = arith.constant 0 : index
    %7 = vector.load %arg2[%c0_4, %c0_5] : memref<3x128xf32, #tpu.memory_space<vmem>>, vector<1x128xf32>
    %8 = vector.broadcast %6 : vector<128x1xf32> to vector<128x128xf32>
    %9 = vector.broadcast %7 : vector<1x128xf32> to vector<128x128xf32>
    %10 = arith.subf %8, %9 : vector<128x128xf32>
    %11 = arith.mulf %10, %10 : vector<128x128xf32>
    %12 = arith.addf %5, %11 : vector<128x128xf32>
    %13 = vector.extract_strided_slice %4 {offsets = [0, 1], sizes = [128, 1], strides = [1, 1]} : vector<128x3xf32> to vector<128x1xf32>
    %c1 = arith.constant 1 : index
    %c0_6 = arith.constant 0 : index
    %14 = vector.load %arg2[%c1, %c0_6] : memref<3x128xf32, #tpu.memory_space<vmem>>, vector<1x128xf32>
    %15 = vector.broadcast %13 : vector<128x1xf32> to vector<128x128xf32>
    %16 = vector.broadcast %14 : vector<1x128xf32> to vector<128x128xf32>
    %17 = arith.subf %15, %16 : vector<128x128xf32>
    %18 = arith.mulf %17, %17 : vector<128x128xf32>
    %19 = arith.addf %12, %18 : vector<128x128xf32>
    %20 = vector.extract_strided_slice %4 {offsets = [0, 2], sizes = [128, 1], strides = [1, 1]} : vector<128x3xf32> to vector<128x1xf32>
    %c2 = arith.constant 2 : index
    %c0_7 = arith.constant 0 : index
    %21 = vector.load %arg2[%c2, %c0_7] : memref<3x128xf32, #tpu.memory_space<vmem>>, vector<1x128xf32>
    %22 = vector.broadcast %20 : vector<128x1xf32> to vector<128x128xf32>
    %23 = vector.broadcast %21 : vector<1x128xf32> to vector<128x128xf32>
    %24 = arith.subf %22, %23 : vector<128x128xf32>
    %25 = arith.mulf %24, %24 : vector<128x128xf32>
    %26 = arith.addf %19, %25 : vector<128x128xf32>
    %cst_8 = arith.constant 3.600000e-01 : f32
    %27 = vector.broadcast %cst_8 : f32 to vector<128x128xf32>
    %28 = arith.cmpf ole, %26, %27 : vector<128x128xf32>
    %c0_9 = arith.constant 0 : index
    %c0_10 = arith.constant 0 : index
    %29 = vector.load %arg6[%c0_9, %c0_10] : memref<128x1xi32, #tpu.memory_space<vmem>>, vector<128x1xi32>
    %30 = vector.broadcast %29 : vector<128x1xi32> to vector<128x128xi32>
    %31 = vector.broadcast %3 : vector<1x128xi32> to vector<128x128xi32>
    %32 = arith.cmpi eq, %30, %31 : vector<128x128xi32>
    %33 = arith.andi %28, %32 : vector<128x128xi1>
    %c0_11 = arith.constant 0 : index
    %c0_12 = arith.constant 0 : index
    %34 = vector.load %arg7[%c0_11, %c0_12] : memref<128x32xf32, #tpu.memory_space<vmem>>, vector<128x1xf32>
    %cst_13 = arith.constant 0xFF800000 : f32
    %35 = vector.shape_cast %34 : vector<128x1xf32> to vector<128x1xf32>
    %36 = vector.broadcast %35 : vector<128x1xf32> to vector<128x128xf32>
    %37 = vector.broadcast %cst_13 : f32 to vector<128x128xf32>
    %38 = arith.select %33, %36, %37 : vector<128x128xi1>, vector<128x128xf32>
    %cst_14 = arith.constant dense<0xFF800000> : vector<128xf32>
    %39 = vector.multi_reduction <maximumf>, %38, %cst_14 [0] : vector<128x128xf32> to vector<128xf32>
    %40 = vector.shape_cast %39 : vector<128xf32> to vector<1x128xf32>
    %c0_15 = arith.constant 0 : index
    %c0_16 = arith.constant 0 : index
    %41 = vector.load %arg11[%c0_15, %c0_16] : memref<32x128xf32, #tpu.memory_space<vmem>>, vector<1x128xf32>
    %42 = arith.maximumf %41, %40 : vector<1x128xf32>
    %c0_17 = arith.constant 0 : index
    %c0_18 = arith.constant 0 : index
    %43 = vector.load %arg11[%c0_17, %c0_18] : memref<32x128xf32, #tpu.memory_space<vmem>>, vector<1x128xf32>
    tpu.vector_store %arg11[%c0_17, %c0_18], %42 {strides = array<i32>} : memref<32x128xf32, #tpu.memory_space<vmem>>, vector<1x128xf32>,
    %c0_19 = arith.constant 0 : index
    %c1_20 = arith.constant 1 : index
    %44 = vector.load %arg7[%c0_19, %c1_20] : memref<128x32xf32, #tpu.memory_space<vmem>>, vector<128x1xf32>
    %cst_21 = arith.constant 0xFF800000 : f32
    %45 = vector.shape_cast %44 : vector<128x1xf32> to vector<128x1xf32>
    %46 = vector.broadcast %45 : vector<128x1xf32> to vector<128x128xf32>
    %47 = vector.broadcast %cst_21 : f32 to vector<128x128xf32>
    %48 = arith.select %33, %46, %47 : vector<128x128xi1>, vector<128x128xf32>
    %cst_22 = arith.constant dense<0xFF800000> : vector<128xf32>
    %49 = vector.multi_reduction <maximumf>, %48, %cst_22 [0] : vector<128x128xf32> to vector<128xf32>
    %50 = vector.shape_cast %49 : vector<128xf32> to vector<1x128xf32>
    %c1_23 = arith.constant 1 : index
    %c0_24 = arith.constant 0 : index
    %51 = vector.load %arg11[%c1_23, %c0_24] : memref<32x128xf32, #tpu.memory_space<vmem>>, vector<1x128xf32>
    %52 = arith.maximumf %51, %50 : vector<1x128xf32>
    %c1_25 = arith.constant 1 : index
    %c0_26 = arith.constant 0 : index
    %53 = vector.load %arg11[%c1_25, %c0_26] : memref<32x128xf32, #tpu.memory_space<vmem>>, vector<1x128xf32>
    tpu.vector_store %arg11[%c1_25, %c0_26], %52 {strides = array<i32>} : memref<32x128xf32, #tpu.memory_space<vmem>>, vector<1x128xf32>,
    %c0_27 = arith.constant 0 : index
    %c2_28 = arith.constant 2 : index
    %54 = vector.load %arg7[%c0_27, %c2_28] : memref<128x32xf32, #tpu.memory_space<vmem>>, vector<128x1xf32>
    %cst_29 = arith.constant 0xFF800000 : f32
    %55 = vector.shape_cast %54 : vector<128x1xf32> to vector<128x1xf32>
    %56 = vector.broadcast %55 : vector<128x1xf32> to vector<128x128xf32>
    %57 = vector.broadcast %cst_29 : f32 to vector<128x128xf32>
    %58 = arith.select %33, %56, %57 : vector<128x128xi1>, vector<128x128xf32>
    %cst_30 = arith.constant dense<0xFF800000> : vector<128xf32>
    %59 = vector.multi_reduction <maximumf>, %58, %cst_30 [0] : vector<128x128xf32> to vector<128xf32>
    %60 = vector.shape_cast %59 : vector<128xf32> to vector<1x128xf32>
    %c2_31 = arith.constant 2 : index
    %c0_32 = arith.constant 0 : index
    %61 = vector.load %arg11[%c2_31, %c0_32] : memref<32x128xf32, #tpu.memory_space<vmem>>, vector<1x128xf32>
    %62 = arith.maximumf %61, %60 : vector<1x128xf32>
    %c2_33 = arith.constant 2 : index
    %c0_34 = arith.constant 0 : index
    %63 = vector.load %arg11[%c2_33, %c0_34] : memref<32x128xf32, #tpu.memory_space<vmem>>, vector<1x128xf32>
    tpu.vector_store %arg11[%c2_33, %c0_34], %62 {strides = array<i32>} : memref<32x128xf32, #tpu.memory_space<vmem>>, vector<1x128xf32>,
    %c0_35 = arith.constant 0 : index
    %c3 = arith.constant 3 : index
    %64 = vector.load %arg7[%c0_35, %c3] : memref<128x32xf32, #tpu.memory_space<vmem>>, vector<128x1xf32>
    %cst_36 = arith.constant 0xFF800000 : f32
    %65 = vector.shape_cast %64 : vector<128x1xf32> to vector<128x1xf32>
    %66 = vector.broadcast %65 : vector<128x1xf32> to vector<128x128xf32>
    %67 = vector.broadcast %cst_36 : f32 to vector<128x128xf32>
    %68 = arith.select %33, %66, %67 : vector<128x128xi1>, vector<128x128xf32>
    %cst_37 = arith.constant dense<0xFF800000> : vector<128xf32>
    %69 = vector.multi_reduction <maximumf>, %68, %cst_37 [0] : vector<128x128xf32> to vector<128xf32>
    %70 = vector.shape_cast %69 : vector<128xf32> to vector<1x128xf32>
    %c3_38 = arith.constant 3 : index
    %c0_39 = arith.constant 0 : index
    %71 = vector.load %arg11[%c3_38, %c0_39] : memref<32x128xf32, #tpu.memory_space<vmem>>, vector<1x128xf32>
    %72 = arith.maximumf %71, %70 : vector<1x128xf32>
    %c3_40 = arith.constant 3 : index
    %c0_41 = arith.constant 0 : index
    %73 = vector.load %arg11[%c3_40, %c0_41] : memref<32x128xf32, #tpu.memory_space<vmem>>, vector<1x128xf32>
    tpu.vector_store %arg11[%c3_40, %c0_41], %72 {strides = array<i32>} : memref<32x128xf32, #tpu.memory_space<vmem>>, vector<1x128xf32>,
    %c0_42 = arith.constant 0 : index
    %c4 = arith.constant 4 : index
    %74 = vector.load %arg7[%c0_42, %c4] : memref<128x32xf32, #tpu.memory_space<vmem>>, vector<128x1xf32>
    %cst_43 = arith.constant 0xFF800000 : f32
    %75 = vector.shape_cast %74 : vector<128x1xf32> to vector<128x1xf32>
    %76 = vector.broadcast %75 : vector<128x1xf32> to vector<128x128xf32>
    %77 = vector.broadcast %cst_43 : f32 to vector<128x128xf32>
    %78 = arith.select %33, %76, %77 : vector<128x128xi1>, vector<128x128xf32>
    %cst_44 = arith.constant dense<0xFF800000> : vector<128xf32>
    %79 = vector.multi_reduction <maximumf>, %78, %cst_44 [0] : vector<128x128xf32> to vector<128xf32>
    %80 = vector.shape_cast %79 : vector<128xf32> to vector<1x128xf32>
    %c4_45 = arith.constant 4 : index
    %c0_46 = arith.constant 0 : index
    %81 = vector.load %arg11[%c4_45, %c0_46] : memref<32x128xf32, #tpu.memory_space<vmem>>, vector<1x128xf32>
    %82 = arith.maximumf %81, %80 : vector<1x128xf32>
    %c4_47 = arith.constant 4 : index
    %c0_48 = arith.constant 0 : index
    %83 = vector.load %arg11[%c4_47, %c0_48] : memref<32x128xf32, #tpu.memory_space<vmem>>, vector<1x128xf32>
    tpu.vector_store %arg11[%c4_47, %c0_48], %82 {strides = array<i32>} : memref<32x128xf32, #tpu.memory_space<vmem>>, vector<1x128xf32>,
    %c0_49 = arith.constant 0 : index
    %c5 = arith.constant 5 : index
    %84 = vector.load %arg7[%c0_49, %c5] : memref<128x32xf32, #tpu.memory_space<vmem>>, vector<128x1xf32>
    %cst_50 = arith.constant 0xFF800000 : f32
    %85 = vector.shape_cast %84 : vector<128x1xf32> to vector<128x1xf32>
    %86 = vector.broadcast %85 : vector<128x1xf32> to vector<128x128xf32>
    %87 = vector.broadcast %cst_50 : f32 to vector<128x128xf32>
    %88 = arith.select %33, %86, %87 : vector<128x128xi1>, vector<128x128xf32>
    %cst_51 = arith.constant dense<0xFF800000> : vector<128xf32>
    %89 = vector.multi_reduction <maximumf>, %88, %cst_51 [0] : vector<128x128xf32> to vector<128xf32>
    %90 = vector.shape_cast %89 : vector<128xf32> to vector<1x128xf32>
    %c5_52 = arith.constant 5 : index
    %c0_53 = arith.constant 0 : index
    %91 = vector.load %arg11[%c5_52, %c0_53] : memref<32x128xf32, #tpu.memory_space<vmem>>, vector<1x128xf32>
    %92 = arith.maximumf %91, %90 : vector<1x128xf32>
    %c5_54 = arith.constant 5 : index
    %c0_55 = arith.constant 0 : index
    %93 = vector.load %arg11[%c5_54, %c0_55] : memref<32x128xf32, #tpu.memory_space<vmem>>, vector<1x128xf32>
    tpu.vector_store %arg11[%c5_54, %c0_55], %92 {strides = array<i32>} : memref<32x128xf32, #tpu.memory_space<vmem>>, vector<1x128xf32>,
    %c0_56 = arith.constant 0 : index
    %c6 = arith.constant 6 : index
    %94 = vector.load %arg7[%c0_56, %c6] : memref<128x32xf32, #tpu.memory_space<vmem>>, vector<128x1xf32>
    %cst_57 = arith.constant 0xFF800000 : f32
    %95 = vector.shape_cast %94 : vector<128x1xf32> to vector<128x1xf32>
    %96 = vector.broadcast %95 : vector<128x1xf32> to vector<128x128xf32>
    %97 = vector.broadcast %cst_57 : f32 to vector<128x128xf32>
    %98 = arith.select %33, %96, %97 : vector<128x128xi1>, vector<128x128xf32>
    %cst_58 = arith.constant dense<0xFF800000> : vector<128xf32>
    %99 = vector.multi_reduction <maximumf>, %98, %cst_58 [0] : vector<128x128xf32> to vector<128xf32>
    %100 = vector.shape_cast %99 : vector<128xf32> to vector<1x128xf32>
    %c6_59 = arith.constant 6 : index
    %c0_60 = arith.constant 0 : index
    %101 = vector.load %arg11[%c6_59, %c0_60] : memref<32x128xf32, #tpu.memory_space<vmem>>, vector<1x128xf32>
    %102 = arith.maximumf %101, %100 : vector<1x128xf32>
    %c6_61 = arith.constant 6 : index
    %c0_62 = arith.constant 0 : index
    %103 = vector.load %arg11[%c6_61, %c0_62] : memref<32x128xf32, #tpu.memory_space<vmem>>, vector<1x128xf32>
    tpu.vector_store %arg11[%c6_61, %c0_62], %102 {strides = array<i32>} : memref<32x128xf32, #tpu.memory_space<vmem>>, vector<1x128xf32>,
    %c0_63 = arith.constant 0 : index
    %c7 = arith.constant 7 : index
    %104 = vector.load %arg7[%c0_63, %c7] : memref<128x32xf32, #tpu.memory_space<vmem>>, vector<128x1xf32>
    %cst_64 = arith.constant 0xFF800000 : f32
    %105 = vector.shape_cast %104 : vector<128x1xf32> to vector<128x1xf32>
    %106 = vector.broadcast %105 : vector<128x1xf32> to vector<128x128xf32>
    %107 = vector.broadcast %cst_64 : f32 to vector<128x128xf32>
    %108 = arith.select %33, %106, %107 : vector<128x128xi1>, vector<128x128xf32>
    %cst_65 = arith.constant dense<0xFF800000> : vector<128xf32>
    %109 = vector.multi_reduction <maximumf>, %108, %cst_65 [0] : vector<128x128xf32> to vector<128xf32>
    %110 = vector.shape_cast %109 : vector<128xf32> to vector<1x128xf32>
    %c7_66 = arith.constant 7 : index
    %c0_67 = arith.constant 0 : index
    %111 = vector.load %arg11[%c7_66, %c0_67] : memref<32x128xf32, #tpu.memory_space<vmem>>, vector<1x128xf32>
    %112 = arith.maximumf %111, %110 : vector<1x128xf32>
    %c7_68 = arith.constant 7 : index
    %c0_69 = arith.constant 0 : index
    %113 = vector.load %arg11[%c7_68, %c0_69] : memref<32x128xf32, #tpu.memory_space<vmem>>, vector<1x128xf32>
    tpu.vector_store %arg11[%c7_68, %c0_69], %112 {strides = array<i32>} : memref<32x128xf32, #tpu.memory_space<vmem>>, vector<1x128xf32>,
    %c0_70 = arith.constant 0 : index
    %c8 = arith.constant 8 : index
    %114 = vector.load %arg7[%c0_70, %c8] : memref<128x32xf32, #tpu.memory_space<vmem>>, vector<128x1xf32>
    %cst_71 = arith.constant 0xFF800000 : f32
    %115 = vector.shape_cast %114 : vector<128x1xf32> to vector<128x1xf32>
    %116 = vector.broadcast %115 : vector<128x1xf32> to vector<128x128xf32>
    %117 = vector.broadcast %cst_71 : f32 to vector<128x128xf32>
    %118 = arith.select %33, %116, %117 : vector<128x128xi1>, vector<128x128xf32>
    %cst_72 = arith.constant dense<0xFF800000> : vector<128xf32>
    %119 = vector.multi_reduction <maximumf>, %118, %cst_72 [0] : vector<128x128xf32> to vector<128xf32>
    %120 = vector.shape_cast %119 : vector<128xf32> to vector<1x128xf32>
    %c8_73 = arith.constant 8 : index
    %c0_74 = arith.constant 0 : index
    %121 = vector.load %arg11[%c8_73, %c0_74] : memref<32x128xf32, #tpu.memory_space<vmem>>, vector<1x128xf32>
    %122 = arith.maximumf %121, %120 : vector<1x128xf32>
    %c8_75 = arith.constant 8 : index
    %c0_76 = arith.constant 0 : index
    %123 = vector.load %arg11[%c8_75, %c0_76] : memref<32x128xf32, #tpu.memory_space<vmem>>, vector<1x128xf32>
    tpu.vector_store %arg11[%c8_75, %c0_76], %122 {strides = array<i32>} : memref<32x128xf32, #tpu.memory_space<vmem>>, vector<1x128xf32>,
    %c0_77 = arith.constant 0 : index
    %c9 = arith.constant 9 : index
    %124 = vector.load %arg7[%c0_77, %c9] : memref<128x32xf32, #tpu.memory_space<vmem>>, vector<128x1xf32>
    %cst_78 = arith.constant 0xFF800000 : f32
    %125 = vector.shape_cast %124 : vector<128x1xf32> to vector<128x1xf32>
    %126 = vector.broadcast %125 : vector<128x1xf32> to vector<128x128xf32>
    %127 = vector.broadcast %cst_78 : f32 to vector<128x128xf32>
    %128 = arith.select %33, %126, %127 : vector<128x128xi1>, vector<128x128xf32>
    %cst_79 = arith.constant dense<0xFF800000> : vector<128xf32>
    %129 = vector.multi_reduction <maximumf>, %128, %cst_79 [0] : vector<128x128xf32> to vector<128xf32>
    %130 = vector.shape_cast %129 : vector<128xf32> to vector<1x128xf32>
    %c9_80 = arith.constant 9 : index
    %c0_81 = arith.constant 0 : index
    %131 = vector.load %arg11[%c9_80, %c0_81] : memref<32x128xf32, #tpu.memory_space<vmem>>, vector<1x128xf32>
    %132 = arith.maximumf %131, %130 : vector<1x128xf32>
    %c9_82 = arith.constant 9 : index
    %c0_83 = arith.constant 0 : index
    %133 = vector.load %arg11[%c9_82, %c0_83] : memref<32x128xf32, #tpu.memory_space<vmem>>, vector<1x128xf32>
    tpu.vector_store %arg11[%c9_82, %c0_83], %132 {strides = array<i32>} : memref<32x128xf32, #tpu.memory_space<vmem>>, vector<1x128xf32>,
    %c0_84 = arith.constant 0 : index
    %c10 = arith.constant 10 : index
    %134 = vector.load %arg7[%c0_84, %c10] : memref<128x32xf32, #tpu.memory_space<vmem>>, vector<128x1xf32>
    %cst_85 = arith.constant 0xFF800000 : f32
    %135 = vector.shape_cast %134 : vector<128x1xf32> to vector<128x1xf32>
    %136 = vector.broadcast %135 : vector<128x1xf32> to vector<128x128xf32>
    %137 = vector.broadcast %cst_85 : f32 to vector<128x128xf32>
    %138 = arith.select %33, %136, %137 : vector<128x128xi1>, vector<128x128xf32>
    %cst_86 = arith.constant dense<0xFF800000> : vector<128xf32>
    %139 = vector.multi_reduction <maximumf>, %138, %cst_86 [0] : vector<128x128xf32> to vector<128xf32>
    %140 = vector.shape_cast %139 : vector<128xf32> to vector<1x128xf32>
    %c10_87 = arith.constant 10 : index
    %c0_88 = arith.constant 0 : index
    %141 = vector.load %arg11[%c10_87, %c0_88] : memref<32x128xf32, #tpu.memory_space<vmem>>, vector<1x128xf32>
    %142 = arith.maximumf %141, %140 : vector<1x128xf32>
    %c10_89 = arith.constant 10 : index
    %c0_90 = arith.constant 0 : index
    %143 = vector.load %arg11[%c10_89, %c0_90] : memref<32x128xf32, #tpu.memory_space<vmem>>, vector<1x128xf32>
    tpu.vector_store %arg11[%c10_89, %c0_90], %142 {strides = array<i32>} : memref<32x128xf32, #tpu.memory_space<vmem>>, vector<1x128xf32>,
    %c0_91 = arith.constant 0 : index
    %c11 = arith.constant 11 : index
    %144 = vector.load %arg7[%c0_91, %c11] : memref<128x32xf32, #tpu.memory_space<vmem>>, vector<128x1xf32>
    %cst_92 = arith.constant 0xFF800000 : f32
    %145 = vector.shape_cast %144 : vector<128x1xf32> to vector<128x1xf32>
    %146 = vector.broadcast %145 : vector<128x1xf32> to vector<128x128xf32>
    %147 = vector.broadcast %cst_92 : f32 to vector<128x128xf32>
    %148 = arith.select %33, %146, %147 : vector<128x128xi1>, vector<128x128xf32>
    %cst_93 = arith.constant dense<0xFF800000> : vector<128xf32>
    %149 = vector.multi_reduction <maximumf>, %148, %cst_93 [0] : vector<128x128xf32> to vector<128xf32>
    %150 = vector.shape_cast %149 : vector<128xf32> to vector<1x128xf32>
    %c11_94 = arith.constant 11 : index
    %c0_95 = arith.constant 0 : index
    %151 = vector.load %arg11[%c11_94, %c0_95] : memref<32x128xf32, #tpu.memory_space<vmem>>, vector<1x128xf32>
    %152 = arith.maximumf %151, %150 : vector<1x128xf32>
    %c11_96 = arith.constant 11 : index
    %c0_97 = arith.constant 0 : index
    %153 = vector.load %arg11[%c11_96, %c0_97] : memref<32x128xf32, #tpu.memory_space<vmem>>, vector<1x128xf32>
    tpu.vector_store %arg11[%c11_96, %c0_97], %152 {strides = array<i32>} : memref<32x128xf32, #tpu.memory_space<vmem>>, vector<1x128xf32>,
    %c0_98 = arith.constant 0 : index
    %c12 = arith.constant 12 : index
    %154 = vector.load %arg7[%c0_98, %c12] : memref<128x32xf32, #tpu.memory_space<vmem>>, vector<128x1xf32>
    %cst_99 = arith.constant 0xFF800000 : f32
    %155 = vector.shape_cast %154 : vector<128x1xf32> to vector<128x1xf32>
    %156 = vector.broadcast %155 : vector<128x1xf32> to vector<128x128xf32>
    %157 = vector.broadcast %cst_99 : f32 to vector<128x128xf32>
    %158 = arith.select %33, %156, %157 : vector<128x128xi1>, vector<128x128xf32>
    %cst_100 = arith.constant dense<0xFF800000> : vector<128xf32>
    %159 = vector.multi_reduction <maximumf>, %158, %cst_100 [0] : vector<128x128xf32> to vector<128xf32>
    %160 = vector.shape_cast %159 : vector<128xf32> to vector<1x128xf32>
    %c12_101 = arith.constant 12 : index
    %c0_102 = arith.constant 0 : index
    %161 = vector.load %arg11[%c12_101, %c0_102] : memref<32x128xf32, #tpu.memory_space<vmem>>, vector<1x128xf32>
    %162 = arith.maximumf %161, %160 : vector<1x128xf32>
    %c12_103 = arith.constant 12 : index
    %c0_104 = arith.constant 0 : index
    %163 = vector.load %arg11[%c12_103, %c0_104] : memref<32x128xf32, #tpu.memory_space<vmem>>, vector<1x128xf32>
    tpu.vector_store %arg11[%c12_103, %c0_104], %162 {strides = array<i32>} : memref<32x128xf32, #tpu.memory_space<vmem>>, vector<1x128xf32>,
    %c0_105 = arith.constant 0 : index
    %c13 = arith.constant 13 : index
    %164 = vector.load %arg7[%c0_105, %c13] : memref<128x32xf32, #tpu.memory_space<vmem>>, vector<128x1xf32>
    %cst_106 = arith.constant 0xFF800000 : f32
    %165 = vector.shape_cast %164 : vector<128x1xf32> to vector<128x1xf32>
    %166 = vector.broadcast %165 : vector<128x1xf32> to vector<128x128xf32>
    %167 = vector.broadcast %cst_106 : f32 to vector<128x128xf32>
    %168 = arith.select %33, %166, %167 : vector<128x128xi1>, vector<128x128xf32>
    %cst_107 = arith.constant dense<0xFF800000> : vector<128xf32>
    %169 = vector.multi_reduction <maximumf>, %168, %cst_107 [0] : vector<128x128xf32> to vector<128xf32>
    %170 = vector.shape_cast %169 : vector<128xf32> to vector<1x128xf32>
    %c13_108 = arith.constant 13 : index
    %c0_109 = arith.constant 0 : index
    %171 = vector.load %arg11[%c13_108, %c0_109] : memref<32x128xf32, #tpu.memory_space<vmem>>, vector<1x128xf32>
    %172 = arith.maximumf %171, %170 : vector<1x128xf32>
    %c13_110 = arith.constant 13 : index
    %c0_111 = arith.constant 0 : index
    %173 = vector.load %arg11[%c13_110, %c0_111] : memref<32x128xf32, #tpu.memory_space<vmem>>, vector<1x128xf32>
    tpu.vector_store %arg11[%c13_110, %c0_111], %172 {strides = array<i32>} : memref<32x128xf32, #tpu.memory_space<vmem>>, vector<1x128xf32>,
    %c0_112 = arith.constant 0 : index
    %c14 = arith.constant 14 : index
    %174 = vector.load %arg7[%c0_112, %c14] : memref<128x32xf32, #tpu.memory_space<vmem>>, vector<128x1xf32>
    %cst_113 = arith.constant 0xFF800000 : f32
    %175 = vector.shape_cast %174 : vector<128x1xf32> to vector<128x1xf32>
    %176 = vector.broadcast %175 : vector<128x1xf32> to vector<128x128xf32>
    %177 = vector.broadcast %cst_113 : f32 to vector<128x128xf32>
    %178 = arith.select %33, %176, %177 : vector<128x128xi1>, vector<128x128xf32>
    %cst_114 = arith.constant dense<0xFF800000> : vector<128xf32>
    %179 = vector.multi_reduction <maximumf>, %178, %cst_114 [0] : vector<128x128xf32> to vector<128xf32>
    %180 = vector.shape_cast %179 : vector<128xf32> to vector<1x128xf32>
    %c14_115 = arith.constant 14 : index
    %c0_116 = arith.constant 0 : index
    %181 = vector.load %arg11[%c14_115, %c0_116] : memref<32x128xf32, #tpu.memory_space<vmem>>, vector<1x128xf32>
    %182 = arith.maximumf %181, %180 : vector<1x128xf32>
    %c14_117 = arith.constant 14 : index
    %c0_118 = arith.constant 0 : index
    %183 = vector.load %arg11[%c14_117, %c0_118] : memref<32x128xf32, #tpu.memory_space<vmem>>, vector<1x128xf32>
    tpu.vector_store %arg11[%c14_117, %c0_118], %182 {strides = array<i32>} : memref<32x128xf32, #tpu.memory_space<vmem>>, vector<1x128xf32>,
    %c0_119 = arith.constant 0 : index
    %c15 = arith.constant 15 : index
    %184 = vector.load %arg7[%c0_119, %c15] : memref<128x32xf32, #tpu.memory_space<vmem>>, vector<128x1xf32>
    %cst_120 = arith.constant 0xFF800000 : f32
    %185 = vector.shape_cast %184 : vector<128x1xf32> to vector<128x1xf32>
    %186 = vector.broadcast %185 : vector<128x1xf32> to vector<128x128xf32>
    %187 = vector.broadcast %cst_120 : f32 to vector<128x128xf32>
    %188 = arith.select %33, %186, %187 : vector<128x128xi1>, vector<128x128xf32>
    %cst_121 = arith.constant dense<0xFF800000> : vector<128xf32>
    %189 = vector.multi_reduction <maximumf>, %188, %cst_121 [0] : vector<128x128xf32> to vector<128xf32>
    %190 = vector.shape_cast %189 : vector<128xf32> to vector<1x128xf32>
    %c15_122 = arith.constant 15 : index
    %c0_123 = arith.constant 0 : index
    %191 = vector.load %arg11[%c15_122, %c0_123] : memref<32x128xf32, #tpu.memory_space<vmem>>, vector<1x128xf32>
    %192 = arith.maximumf %191, %190 : vector<1x128xf32>
    %c15_124 = arith.constant 15 : index
    %c0_125 = arith.constant 0 : index
    %193 = vector.load %arg11[%c15_124, %c0_125] : memref<32x128xf32, #tpu.memory_space<vmem>>, vector<1x128xf32>
    tpu.vector_store %arg11[%c15_124, %c0_125], %192 {strides = array<i32>} : memref<32x128xf32, #tpu.memory_space<vmem>>, vector<1x128xf32>,
    %c0_126 = arith.constant 0 : index
    %c16 = arith.constant 16 : index
    %194 = vector.load %arg7[%c0_126, %c16] : memref<128x32xf32, #tpu.memory_space<vmem>>, vector<128x1xf32>
    %cst_127 = arith.constant 0xFF800000 : f32
    %195 = vector.shape_cast %194 : vector<128x1xf32> to vector<128x1xf32>
    %196 = vector.broadcast %195 : vector<128x1xf32> to vector<128x128xf32>
    %197 = vector.broadcast %cst_127 : f32 to vector<128x128xf32>
    %198 = arith.select %33, %196, %197 : vector<128x128xi1>, vector<128x128xf32>
    %cst_128 = arith.constant dense<0xFF800000> : vector<128xf32>
    %199 = vector.multi_reduction <maximumf>, %198, %cst_128 [0] : vector<128x128xf32> to vector<128xf32>
    %200 = vector.shape_cast %199 : vector<128xf32> to vector<1x128xf32>
    %c16_129 = arith.constant 16 : index
    %c0_130 = arith.constant 0 : index
    %201 = vector.load %arg11[%c16_129, %c0_130] : memref<32x128xf32, #tpu.memory_space<vmem>>, vector<1x128xf32>
    %202 = arith.maximumf %201, %200 : vector<1x128xf32>
    %c16_131 = arith.constant 16 : index
    %c0_132 = arith.constant 0 : index
    %203 = vector.load %arg11[%c16_131, %c0_132] : memref<32x128xf32, #tpu.memory_space<vmem>>, vector<1x128xf32>
    tpu.vector_store %arg11[%c16_131, %c0_132], %202 {strides = array<i32>} : memref<32x128xf32, #tpu.memory_space<vmem>>, vector<1x128xf32>,
    %c0_133 = arith.constant 0 : index
    %c17 = arith.constant 17 : index
    %204 = vector.load %arg7[%c0_133, %c17] : memref<128x32xf32, #tpu.memory_space<vmem>>, vector<128x1xf32>
    %cst_134 = arith.constant 0xFF800000 : f32
    %205 = vector.shape_cast %204 : vector<128x1xf32> to vector<128x1xf32>
    %206 = vector.broadcast %205 : vector<128x1xf32> to vector<128x128xf32>
    %207 = vector.broadcast %cst_134 : f32 to vector<128x128xf32>
    %208 = arith.select %33, %206, %207 : vector<128x128xi1>, vector<128x128xf32>
    %cst_135 = arith.constant dense<0xFF800000> : vector<128xf32>
    %209 = vector.multi_reduction <maximumf>, %208, %cst_135 [0] : vector<128x128xf32> to vector<128xf32>
    %210 = vector.shape_cast %209 : vector<128xf32> to vector<1x128xf32>
    %c17_136 = arith.constant 17 : index
    %c0_137 = arith.constant 0 : index
    %211 = vector.load %arg11[%c17_136, %c0_137] : memref<32x128xf32, #tpu.memory_space<vmem>>, vector<1x128xf32>
    %212 = arith.maximumf %211, %210 : vector<1x128xf32>
    %c17_138 = arith.constant 17 : index
    %c0_139 = arith.constant 0 : index
    %213 = vector.load %arg11[%c17_138, %c0_139] : memref<32x128xf32, #tpu.memory_space<vmem>>, vector<1x128xf32>
    tpu.vector_store %arg11[%c17_138, %c0_139], %212 {strides = array<i32>} : memref<32x128xf32, #tpu.memory_space<vmem>>, vector<1x128xf32>,
    %c0_140 = arith.constant 0 : index
    %c18 = arith.constant 18 : index
    %214 = vector.load %arg7[%c0_140, %c18] : memref<128x32xf32, #tpu.memory_space<vmem>>, vector<128x1xf32>
    %cst_141 = arith.constant 0xFF800000 : f32
    %215 = vector.shape_cast %214 : vector<128x1xf32> to vector<128x1xf32>
    %216 = vector.broadcast %215 : vector<128x1xf32> to vector<128x128xf32>
    %217 = vector.broadcast %cst_141 : f32 to vector<128x128xf32>
    %218 = arith.select %33, %216, %217 : vector<128x128xi1>, vector<128x128xf32>
    %cst_142 = arith.constant dense<0xFF800000> : vector<128xf32>
    %219 = vector.multi_reduction <maximumf>, %218, %cst_142 [0] : vector<128x128xf32> to vector<128xf32>
    %220 = vector.shape_cast %219 : vector<128xf32> to vector<1x128xf32>
    %c18_143 = arith.constant 18 : index
    %c0_144 = arith.constant 0 : index
    %221 = vector.load %arg11[%c18_143, %c0_144] : memref<32x128xf32, #tpu.memory_space<vmem>>, vector<1x128xf32>
    %222 = arith.maximumf %221, %220 : vector<1x128xf32>
    %c18_145 = arith.constant 18 : index
    %c0_146 = arith.constant 0 : index
    %223 = vector.load %arg11[%c18_145, %c0_146] : memref<32x128xf32, #tpu.memory_space<vmem>>, vector<1x128xf32>
    tpu.vector_store %arg11[%c18_145, %c0_146], %222 {strides = array<i32>} : memref<32x128xf32, #tpu.memory_space<vmem>>, vector<1x128xf32>,
    %c0_147 = arith.constant 0 : index
    %c19 = arith.constant 19 : index
    %224 = vector.load %arg7[%c0_147, %c19] : memref<128x32xf32, #tpu.memory_space<vmem>>, vector<128x1xf32>
    %cst_148 = arith.constant 0xFF800000 : f32
    %225 = vector.shape_cast %224 : vector<128x1xf32> to vector<128x1xf32>
    %226 = vector.broadcast %225 : vector<128x1xf32> to vector<128x128xf32>
    %227 = vector.broadcast %cst_148 : f32 to vector<128x128xf32>
    %228 = arith.select %33, %226, %227 : vector<128x128xi1>, vector<128x128xf32>
    %cst_149 = arith.constant dense<0xFF800000> : vector<128xf32>
    %229 = vector.multi_reduction <maximumf>, %228, %cst_149 [0] : vector<128x128xf32> to vector<128xf32>
    %230 = vector.shape_cast %229 : vector<128xf32> to vector<1x128xf32>
    %c19_150 = arith.constant 19 : index
    %c0_151 = arith.constant 0 : index
    %231 = vector.load %arg11[%c19_150, %c0_151] : memref<32x128xf32, #tpu.memory_space<vmem>>, vector<1x128xf32>
    %232 = arith.maximumf %231, %230 : vector<1x128xf32>
    %c19_152 = arith.constant 19 : index
    %c0_153 = arith.constant 0 : index
    %233 = vector.load %arg11[%c19_152, %c0_153] : memref<32x128xf32, #tpu.memory_space<vmem>>, vector<1x128xf32>
    tpu.vector_store %arg11[%c19_152, %c0_153], %232 {strides = array<i32>} : memref<32x128xf32, #tpu.memory_space<vmem>>, vector<1x128xf32>,
    %c0_154 = arith.constant 0 : index
    %c20 = arith.constant 20 : index
    %234 = vector.load %arg7[%c0_154, %c20] : memref<128x32xf32, #tpu.memory_space<vmem>>, vector<128x1xf32>
    %cst_155 = arith.constant 0xFF800000 : f32
    %235 = vector.shape_cast %234 : vector<128x1xf32> to vector<128x1xf32>
    %236 = vector.broadcast %235 : vector<128x1xf32> to vector<128x128xf32>
    %237 = vector.broadcast %cst_155 : f32 to vector<128x128xf32>
    %238 = arith.select %33, %236, %237 : vector<128x128xi1>, vector<128x128xf32>
    %cst_156 = arith.constant dense<0xFF800000> : vector<128xf32>
    %239 = vector.multi_reduction <maximumf>, %238, %cst_156 [0] : vector<128x128xf32> to vector<128xf32>
    %240 = vector.shape_cast %239 : vector<128xf32> to vector<1x128xf32>
    %c20_157 = arith.constant 20 : index
    %c0_158 = arith.constant 0 : index
    %241 = vector.load %arg11[%c20_157, %c0_158] : memref<32x128xf32, #tpu.memory_space<vmem>>, vector<1x128xf32>
    %242 = arith.maximumf %241, %240 : vector<1x128xf32>
    %c20_159 = arith.constant 20 : index
    %c0_160 = arith.constant 0 : index
    %243 = vector.load %arg11[%c20_159, %c0_160] : memref<32x128xf32, #tpu.memory_space<vmem>>, vector<1x128xf32>
    tpu.vector_store %arg11[%c20_159, %c0_160], %242 {strides = array<i32>} : memref<32x128xf32, #tpu.memory_space<vmem>>, vector<1x128xf32>,
    %c0_161 = arith.constant 0 : index
    %c21 = arith.constant 21 : index
    %244 = vector.load %arg7[%c0_161, %c21] : memref<128x32xf32, #tpu.memory_space<vmem>>, vector<128x1xf32>
    %cst_162 = arith.constant 0xFF800000 : f32
    %245 = vector.shape_cast %244 : vector<128x1xf32> to vector<128x1xf32>
    %246 = vector.broadcast %245 : vector<128x1xf32> to vector<128x128xf32>
    %247 = vector.broadcast %cst_162 : f32 to vector<128x128xf32>
    %248 = arith.select %33, %246, %247 : vector<128x128xi1>, vector<128x128xf32>
    %cst_163 = arith.constant dense<0xFF800000> : vector<128xf32>
    %249 = vector.multi_reduction <maximumf>, %248, %cst_163 [0] : vector<128x128xf32> to vector<128xf32>
    %250 = vector.shape_cast %249 : vector<128xf32> to vector<1x128xf32>
    %c21_164 = arith.constant 21 : index
    %c0_165 = arith.constant 0 : index
    %251 = vector.load %arg11[%c21_164, %c0_165] : memref<32x128xf32, #tpu.memory_space<vmem>>, vector<1x128xf32>
    %252 = arith.maximumf %251, %250 : vector<1x128xf32>
    %c21_166 = arith.constant 21 : index
    %c0_167 = arith.constant 0 : index
    %253 = vector.load %arg11[%c21_166, %c0_167] : memref<32x128xf32, #tpu.memory_space<vmem>>, vector<1x128xf32>
    tpu.vector_store %arg11[%c21_166, %c0_167], %252 {strides = array<i32>} : memref<32x128xf32, #tpu.memory_space<vmem>>, vector<1x128xf32>,
    %c0_168 = arith.constant 0 : index
    %c22 = arith.constant 22 : index
    %254 = vector.load %arg7[%c0_168, %c22] : memref<128x32xf32, #tpu.memory_space<vmem>>, vector<128x1xf32>
    %cst_169 = arith.constant 0xFF800000 : f32
    %255 = vector.shape_cast %254 : vector<128x1xf32> to vector<128x1xf32>
    %256 = vector.broadcast %255 : vector<128x1xf32> to vector<128x128xf32>
    %257 = vector.broadcast %cst_169 : f32 to vector<128x128xf32>
    %258 = arith.select %33, %256, %257 : vector<128x128xi1>, vector<128x128xf32>
    %cst_170 = arith.constant dense<0xFF800000> : vector<128xf32>
    %259 = vector.multi_reduction <maximumf>, %258, %cst_170 [0] : vector<128x128xf32> to vector<128xf32>
    %260 = vector.shape_cast %259 : vector<128xf32> to vector<1x128xf32>
    %c22_171 = arith.constant 22 : index
    %c0_172 = arith.constant 0 : index
    %261 = vector.load %arg11[%c22_171, %c0_172] : memref<32x128xf32, #tpu.memory_space<vmem>>, vector<1x128xf32>
    %262 = arith.maximumf %261, %260 : vector<1x128xf32>
    %c22_173 = arith.constant 22 : index
    %c0_174 = arith.constant 0 : index
    %263 = vector.load %arg11[%c22_173, %c0_174] : memref<32x128xf32, #tpu.memory_space<vmem>>, vector<1x128xf32>
    tpu.vector_store %arg11[%c22_173, %c0_174], %262 {strides = array<i32>} : memref<32x128xf32, #tpu.memory_space<vmem>>, vector<1x128xf32>,
    %c0_175 = arith.constant 0 : index
    %c23 = arith.constant 23 : index
    %264 = vector.load %arg7[%c0_175, %c23] : memref<128x32xf32, #tpu.memory_space<vmem>>, vector<128x1xf32>
    %cst_176 = arith.constant 0xFF800000 : f32
    %265 = vector.shape_cast %264 : vector<128x1xf32> to vector<128x1xf32>
    %266 = vector.broadcast %265 : vector<128x1xf32> to vector<128x128xf32>
    %267 = vector.broadcast %cst_176 : f32 to vector<128x128xf32>
    %268 = arith.select %33, %266, %267 : vector<128x128xi1>, vector<128x128xf32>
    %cst_177 = arith.constant dense<0xFF800000> : vector<128xf32>
    %269 = vector.multi_reduction <maximumf>, %268, %cst_177 [0] : vector<128x128xf32> to vector<128xf32>
    %270 = vector.shape_cast %269 : vector<128xf32> to vector<1x128xf32>
    %c23_178 = arith.constant 23 : index
    %c0_179 = arith.constant 0 : index
    %271 = vector.load %arg11[%c23_178, %c0_179] : memref<32x128xf32, #tpu.memory_space<vmem>>, vector<1x128xf32>
    %272 = arith.maximumf %271, %270 : vector<1x128xf32>
    %c23_180 = arith.constant 23 : index
    %c0_181 = arith.constant 0 : index
    %273 = vector.load %arg11[%c23_180, %c0_181] : memref<32x128xf32, #tpu.memory_space<vmem>>, vector<1x128xf32>
    tpu.vector_store %arg11[%c23_180, %c0_181], %272 {strides = array<i32>} : memref<32x128xf32, #tpu.memory_space<vmem>>, vector<1x128xf32>,
    %c0_182 = arith.constant 0 : index
    %c24 = arith.constant 24 : index
    %274 = vector.load %arg7[%c0_182, %c24] : memref<128x32xf32, #tpu.memory_space<vmem>>, vector<128x1xf32>
    %cst_183 = arith.constant 0xFF800000 : f32
    %275 = vector.shape_cast %274 : vector<128x1xf32> to vector<128x1xf32>
    %276 = vector.broadcast %275 : vector<128x1xf32> to vector<128x128xf32>
    %277 = vector.broadcast %cst_183 : f32 to vector<128x128xf32>
    %278 = arith.select %33, %276, %277 : vector<128x128xi1>, vector<128x128xf32>
    %cst_184 = arith.constant dense<0xFF800000> : vector<128xf32>
    %279 = vector.multi_reduction <maximumf>, %278, %cst_184 [0] : vector<128x128xf32> to vector<128xf32>
    %280 = vector.shape_cast %279 : vector<128xf32> to vector<1x128xf32>
    %c24_185 = arith.constant 24 : index
    %c0_186 = arith.constant 0 : index
    %281 = vector.load %arg11[%c24_185, %c0_186] : memref<32x128xf32, #tpu.memory_space<vmem>>, vector<1x128xf32>
    %282 = arith.maximumf %281, %280 : vector<1x128xf32>
    %c24_187 = arith.constant 24 : index
    %c0_188 = arith.constant 0 : index
    %283 = vector.load %arg11[%c24_187, %c0_188] : memref<32x128xf32, #tpu.memory_space<vmem>>, vector<1x128xf32>
    tpu.vector_store %arg11[%c24_187, %c0_188], %282 {strides = array<i32>} : memref<32x128xf32, #tpu.memory_space<vmem>>, vector<1x128xf32>,
    %c0_189 = arith.constant 0 : index
    %c25 = arith.constant 25 : index
    %284 = vector.load %arg7[%c0_189, %c25] : memref<128x32xf32, #tpu.memory_space<vmem>>, vector<128x1xf32>
    %cst_190 = arith.constant 0xFF800000 : f32
    %285 = vector.shape_cast %284 : vector<128x1xf32> to vector<128x1xf32>
    %286 = vector.broadcast %285 : vector<128x1xf32> to vector<128x128xf32>
    %287 = vector.broadcast %cst_190 : f32 to vector<128x128xf32>
    %288 = arith.select %33, %286, %287 : vector<128x128xi1>, vector<128x128xf32>
    %cst_191 = arith.constant dense<0xFF800000> : vector<128xf32>
    %289 = vector.multi_reduction <maximumf>, %288, %cst_191 [0] : vector<128x128xf32> to vector<128xf32>
    %290 = vector.shape_cast %289 : vector<128xf32> to vector<1x128xf32>
    %c25_192 = arith.constant 25 : index
    %c0_193 = arith.constant 0 : index
    %291 = vector.load %arg11[%c25_192, %c0_193] : memref<32x128xf32, #tpu.memory_space<vmem>>, vector<1x128xf32>
    %292 = arith.maximumf %291, %290 : vector<1x128xf32>
    %c25_194 = arith.constant 25 : index
    %c0_195 = arith.constant 0 : index
    %293 = vector.load %arg11[%c25_194, %c0_195] : memref<32x128xf32, #tpu.memory_space<vmem>>, vector<1x128xf32>
    tpu.vector_store %arg11[%c25_194, %c0_195], %292 {strides = array<i32>} : memref<32x128xf32, #tpu.memory_space<vmem>>, vector<1x128xf32>,
    %c0_196 = arith.constant 0 : index
    %c26 = arith.constant 26 : index
    %294 = vector.load %arg7[%c0_196, %c26] : memref<128x32xf32, #tpu.memory_space<vmem>>, vector<128x1xf32>
    %cst_197 = arith.constant 0xFF800000 : f32
    %295 = vector.shape_cast %294 : vector<128x1xf32> to vector<128x1xf32>
    %296 = vector.broadcast %295 : vector<128x1xf32> to vector<128x128xf32>
    %297 = vector.broadcast %cst_197 : f32 to vector<128x128xf32>
    %298 = arith.select %33, %296, %297 : vector<128x128xi1>, vector<128x128xf32>
    %cst_198 = arith.constant dense<0xFF800000> : vector<128xf32>
    %299 = vector.multi_reduction <maximumf>, %298, %cst_198 [0] : vector<128x128xf32> to vector<128xf32>
    %300 = vector.shape_cast %299 : vector<128xf32> to vector<1x128xf32>
    %c26_199 = arith.constant 26 : index
    %c0_200 = arith.constant 0 : index
    %301 = vector.load %arg11[%c26_199, %c0_200] : memref<32x128xf32, #tpu.memory_space<vmem>>, vector<1x128xf32>
    %302 = arith.maximumf %301, %300 : vector<1x128xf32>
    %c26_201 = arith.constant 26 : index
    %c0_202 = arith.constant 0 : index
    %303 = vector.load %arg11[%c26_201, %c0_202] : memref<32x128xf32, #tpu.memory_space<vmem>>, vector<1x128xf32>
    tpu.vector_store %arg11[%c26_201, %c0_202], %302 {strides = array<i32>} : memref<32x128xf32, #tpu.memory_space<vmem>>, vector<1x128xf32>,
    %c0_203 = arith.constant 0 : index
    %c27 = arith.constant 27 : index
    %304 = vector.load %arg7[%c0_203, %c27] : memref<128x32xf32, #tpu.memory_space<vmem>>, vector<128x1xf32>
    %cst_204 = arith.constant 0xFF800000 : f32
    %305 = vector.shape_cast %304 : vector<128x1xf32> to vector<128x1xf32>
    %306 = vector.broadcast %305 : vector<128x1xf32> to vector<128x128xf32>
    %307 = vector.broadcast %cst_204 : f32 to vector<128x128xf32>
    %308 = arith.select %33, %306, %307 : vector<128x128xi1>, vector<128x128xf32>
    %cst_205 = arith.constant dense<0xFF800000> : vector<128xf32>
    %309 = vector.multi_reduction <maximumf>, %308, %cst_205 [0] : vector<128x128xf32> to vector<128xf32>
    %310 = vector.shape_cast %309 : vector<128xf32> to vector<1x128xf32>
    %c27_206 = arith.constant 27 : index
    %c0_207 = arith.constant 0 : index
    %311 = vector.load %arg11[%c27_206, %c0_207] : memref<32x128xf32, #tpu.memory_space<vmem>>, vector<1x128xf32>
    %312 = arith.maximumf %311, %310 : vector<1x128xf32>
    %c27_208 = arith.constant 27 : index
    %c0_209 = arith.constant 0 : index
    %313 = vector.load %arg11[%c27_208, %c0_209] : memref<32x128xf32, #tpu.memory_space<vmem>>, vector<1x128xf32>
    tpu.vector_store %arg11[%c27_208, %c0_209], %312 {strides = array<i32>} : memref<32x128xf32, #tpu.memory_space<vmem>>, vector<1x128xf32>,
    %c0_210 = arith.constant 0 : index
    %c28 = arith.constant 28 : index
    %314 = vector.load %arg7[%c0_210, %c28] : memref<128x32xf32, #tpu.memory_space<vmem>>, vector<128x1xf32>
    %cst_211 = arith.constant 0xFF800000 : f32
    %315 = vector.shape_cast %314 : vector<128x1xf32> to vector<128x1xf32>
    %316 = vector.broadcast %315 : vector<128x1xf32> to vector<128x128xf32>
    %317 = vector.broadcast %cst_211 : f32 to vector<128x128xf32>
    %318 = arith.select %33, %316, %317 : vector<128x128xi1>, vector<128x128xf32>
    %cst_212 = arith.constant dense<0xFF800000> : vector<128xf32>
    %319 = vector.multi_reduction <maximumf>, %318, %cst_212 [0] : vector<128x128xf32> to vector<128xf32>
    %320 = vector.shape_cast %319 : vector<128xf32> to vector<1x128xf32>
    %c28_213 = arith.constant 28 : index
    %c0_214 = arith.constant 0 : index
    %321 = vector.load %arg11[%c28_213, %c0_214] : memref<32x128xf32, #tpu.memory_space<vmem>>, vector<1x128xf32>
    %322 = arith.maximumf %321, %320 : vector<1x128xf32>
    %c28_215 = arith.constant 28 : index
    %c0_216 = arith.constant 0 : index
    %323 = vector.load %arg11[%c28_215, %c0_216] : memref<32x128xf32, #tpu.memory_space<vmem>>, vector<1x128xf32>
    tpu.vector_store %arg11[%c28_215, %c0_216], %322 {strides = array<i32>} : memref<32x128xf32, #tpu.memory_space<vmem>>, vector<1x128xf32>,
    %c0_217 = arith.constant 0 : index
    %c29 = arith.constant 29 : index
    %324 = vector.load %arg7[%c0_217, %c29] : memref<128x32xf32, #tpu.memory_space<vmem>>, vector<128x1xf32>
    %cst_218 = arith.constant 0xFF800000 : f32
    %325 = vector.shape_cast %324 : vector<128x1xf32> to vector<128x1xf32>
    %326 = vector.broadcast %325 : vector<128x1xf32> to vector<128x128xf32>
    %327 = vector.broadcast %cst_218 : f32 to vector<128x128xf32>
    %328 = arith.select %33, %326, %327 : vector<128x128xi1>, vector<128x128xf32>
    %cst_219 = arith.constant dense<0xFF800000> : vector<128xf32>
    %329 = vector.multi_reduction <maximumf>, %328, %cst_219 [0] : vector<128x128xf32> to vector<128xf32>
    %330 = vector.shape_cast %329 : vector<128xf32> to vector<1x128xf32>
    %c29_220 = arith.constant 29 : index
    %c0_221 = arith.constant 0 : index
    %331 = vector.load %arg11[%c29_220, %c0_221] : memref<32x128xf32, #tpu.memory_space<vmem>>, vector<1x128xf32>
    %332 = arith.maximumf %331, %330 : vector<1x128xf32>
    %c29_222 = arith.constant 29 : index
    %c0_223 = arith.constant 0 : index
    %333 = vector.load %arg11[%c29_222, %c0_223] : memref<32x128xf32, #tpu.memory_space<vmem>>, vector<1x128xf32>
    tpu.vector_store %arg11[%c29_222, %c0_223], %332 {strides = array<i32>} : memref<32x128xf32, #tpu.memory_space<vmem>>, vector<1x128xf32>,
    %c0_224 = arith.constant 0 : index
    %c30 = arith.constant 30 : index
    %334 = vector.load %arg7[%c0_224, %c30] : memref<128x32xf32, #tpu.memory_space<vmem>>, vector<128x1xf32>
    %cst_225 = arith.constant 0xFF800000 : f32
    %335 = vector.shape_cast %334 : vector<128x1xf32> to vector<128x1xf32>
    %336 = vector.broadcast %335 : vector<128x1xf32> to vector<128x128xf32>
    %337 = vector.broadcast %cst_225 : f32 to vector<128x128xf32>
    %338 = arith.select %33, %336, %337 : vector<128x128xi1>, vector<128x128xf32>
    %cst_226 = arith.constant dense<0xFF800000> : vector<128xf32>
    %339 = vector.multi_reduction <maximumf>, %338, %cst_226 [0] : vector<128x128xf32> to vector<128xf32>
    %340 = vector.shape_cast %339 : vector<128xf32> to vector<1x128xf32>
    %c30_227 = arith.constant 30 : index
    %c0_228 = arith.constant 0 : index
    %341 = vector.load %arg11[%c30_227, %c0_228] : memref<32x128xf32, #tpu.memory_space<vmem>>, vector<1x128xf32>
    %342 = arith.maximumf %341, %340 : vector<1x128xf32>
    %c30_229 = arith.constant 30 : index
    %c0_230 = arith.constant 0 : index
    %343 = vector.load %arg11[%c30_229, %c0_230] : memref<32x128xf32, #tpu.memory_space<vmem>>, vector<1x128xf32>
    tpu.vector_store %arg11[%c30_229, %c0_230], %342 {strides = array<i32>} : memref<32x128xf32, #tpu.memory_space<vmem>>, vector<1x128xf32>,
    %c0_231 = arith.constant 0 : index
    %c31 = arith.constant 31 : index
    %344 = vector.load %arg7[%c0_231, %c31] : memref<128x32xf32, #tpu.memory_space<vmem>>, vector<128x1xf32>
    %cst_232 = arith.constant 0xFF800000 : f32
    %345 = vector.shape_cast %344 : vector<128x1xf32> to vector<128x1xf32>
    %346 = vector.broadcast %345 : vector<128x1xf32> to vector<128x128xf32>
    %347 = vector.broadcast %cst_232 : f32 to vector<128x128xf32>
    %348 = arith.select %33, %346, %347 : vector<128x128xi1>, vector<128x128xf32>
    %cst_233 = arith.constant dense<0xFF800000> : vector<128xf32>
    %349 = vector.multi_reduction <maximumf>, %348, %cst_233 [0] : vector<128x128xf32> to vector<128xf32>
    %350 = vector.shape_cast %349 : vector<128xf32> to vector<1x128xf32>
    %c31_234 = arith.constant 31 : index
    %c0_235 = arith.constant 0 : index
    %351 = vector.load %arg11[%c31_234, %c0_235] : memref<32x128xf32, #tpu.memory_space<vmem>>, vector<1x128xf32>
    %352 = arith.maximumf %351, %350 : vector<1x128xf32>
    %c31_236 = arith.constant 31 : index
    %c0_237 = arith.constant 0 : index
    %353 = vector.load %arg11[%c31_236, %c0_237] : memref<32x128xf32, #tpu.memory_space<vmem>>, vector<1x128xf32>
    tpu.vector_store %arg11[%c31_236, %c0_237], %352 {strides = array<i32>} : memref<32x128xf32, #tpu.memory_space<vmem>>, vector<1x128xf32>,
    %c1_i32 = arith.constant 1 : i32
    %354 = arith.cmpi eq, %arg1, %c1_i32 : i32
    %355 = arith.extui %354 : i1 to i32
    %c0_i32_238 = arith.constant 0 : i32
    %356 = arith.cmpi ne, %355, %c0_i32_238 : i32
    scf.if %356 {
      %c0_239 = arith.constant 0 : index
      %c0_240 = arith.constant 0 : index
      %357 = vector.load %arg11[%c0_239, %c0_240] : memref<32x128xf32, #tpu.memory_space<vmem>>, vector<32x128xf32>
      %c0_241 = arith.constant 0 : index
      %c0_242 = arith.constant 0 : index
      %358 = vector.load %arg4[%c0_241, %c0_242] : memref<32x128xf32, #tpu.memory_space<vmem>>, vector<32x128xf32>
      %359 = arith.subf %357, %358 : vector<32x128xf32>
      %cst_243 = arith.constant 0.000000e+00 : f32
      %360 = vector.broadcast %cst_243 : f32 to vector<32x128xf32>
      %361 = arith.maximumf %359, %360 : vector<32x128xf32>
      %c0_244 = arith.constant 0 : index
      %c0_245 = arith.constant 0 : index
      %362 = vector.load %arg8[%c0_244, %c0_245] : memref<128x32xf32, #tpu.memory_space<vmem>>, vector<128x32xf32>
      %cst_246 = arith.constant dense<0.000000e+00> : vector<128x128xf32>
      %363 = tpu.matmul %362, %361, %cst_246 {dimension_numbers = #tpu.dot_dimension_numbers<[1], [0], [0], [1], [0, 0, 1, 1], [], []>, precision = #tpu.contract_precision<fp32>} : vector<128x32xf32>, vector<32x128xf32>, vector<128x128xf32> -> vector<128x128xf32>
      %c0_247 = arith.constant 0 : index
      %c0_248 = arith.constant 0 : index
      %364 = vector.load %arg9[%c0_247, %c0_248] : memref<128x1xf32, #tpu.memory_space<vmem>>, vector<128x1xf32>
      %365 = vector.broadcast %364 : vector<128x1xf32> to vector<128x128xf32>
      %366 = arith.addf %363, %365 : vector<128x128xf32>
      %cst_249 = arith.constant 0.000000e+00 : f32
      %367 = vector.broadcast %cst_249 : f32 to vector<128x128xf32>
      %368 = arith.maximumf %366, %367 : vector<128x128xf32>
      %c0_250 = arith.constant 0 : index
      %c0_251 = arith.constant 0 : index
      %369 = vector.load %arg10[%c0_250, %c0_251] : memref<128x128xf32, #tpu.memory_space<vmem>>, vector<128x128xf32>
      tpu.vector_store %arg10[%c0_250, %c0_251], %368 {strides = array<i32>} : memref<128x128xf32, #tpu.memory_space<vmem>>, vector<128x128xf32>,
    } else {
    }
    return
  }
  func.func @transform_0(%arg0: i32, %arg1: i32) -> (i32, i32) {
    %c0_i32 = arith.constant 0 : i32
    %c0_i32_0 = arith.constant 0 : i32
    return %c0_i32, %arg0 : i32, i32
  }
  func.func @transform_1(%arg0: i32, %arg1: i32) -> (i32, i32) {
    %c0_i32 = arith.constant 0 : i32
    %c0_i32_0 = arith.constant 0 : i32
    return %c0_i32, %arg0 : i32, i32
  }
  func.func @transform_2(%arg0: i32, %arg1: i32) -> (i32, i32) {
    %c0_i32 = arith.constant 0 : i32
    %c0_i32_0 = arith.constant 0 : i32
    return %c0_i32, %arg0 : i32, i32
  }
  func.func @transform_3(%arg0: i32, %arg1: i32) -> (i32, i32) {
    %c0_i32 = arith.constant 0 : i32
    %c0_i32_0 = arith.constant 0 : i32
    return %arg1, %c0_i32 : i32, i32
  }
  func.func @transform_4(%arg0: i32, %arg1: i32) -> (i32, i32) {
    %c0_i32 = arith.constant 0 : i32
    %c0_i32_0 = arith.constant 0 : i32
    return %arg1, %c0_i32 : i32, i32
  }
  func.func @transform_5(%arg0: i32, %arg1: i32) -> (i32, i32) {
    %c0_i32 = arith.constant 0 : i32
    %c0_i32_0 = arith.constant 0 : i32
    return %arg1, %c0_i32 : i32, i32
  }
  func.func @transform_6(%arg0: i32, %arg1: i32) -> (i32, i32) {
    %c0_i32 = arith.constant 0 : i32
    %c0_i32_0 = arith.constant 0 : i32
    %c0_i32_1 = arith.constant 0 : i32
    return %c0_i32, %c0_i32_0 : i32, i32
  }
  func.func @transform_7(%arg0: i32, %arg1: i32) -> (i32, i32) {
    %c0_i32 = arith.constant 0 : i32
    %c0_i32_0 = arith.constant 0 : i32
    %c0_i32_1 = arith.constant 0 : i32
    return %c0_i32, %c0_i32_0 : i32, i32
  }
  func.func @transform_8(%arg0: i32, %arg1: i32) -> (i32, i32) {
    %c0_i32 = arith.constant 0 : i32
    %c0_i32_0 = arith.constant 0 : i32
    return %c0_i32, %arg0 : i32, i32
  }
}

</mosaic_0001>

<llo_original>
// kernel: tpu_custom_call.1
$region0: #{tpu_custom_call.1}
  #allocation0 [shape = 'u32[]', space=smem, size = 0x4, offset = 0x4, fixed_abs, tag = 'smem constant byte address 0x4 - core index']
  #allocation1 [shape = 'u32[144,128]{1,0:T(1,128)}', space=vmem, size = 0x12000, scoped, tag = 'internal scratch']
  #allocation2 [shape = 'f32[32,128]{1,0:T(8,128)}', space=vmem, size = 0x4000, scoped, tag = 'scratch operand']
  %s0 = inlined_call_operand.vmem [shape: f32[3,128], index: 0, kind: input, shape index: {}]
  %s1 = inlined_call_operand.vmem [shape: s32[1,128], index: 1, kind: input, shape index: {}]
  %s2 = inlined_call_operand.vmem [shape: f32[32,128], index: 2, kind: input, shape index: {}]
  %s3 = inlined_call_operand.vmem [shape: f32[256,3], index: 3, kind: input, shape index: {}]
  %s4 = inlined_call_operand.vmem [shape: s32[256,1], index: 4, kind: input, shape index: {}]
  %s5 = inlined_call_operand.vmem [shape: f32[256,32], index: 5, kind: input, shape index: {}]
  %s6 = inlined_call_operand.vmem [shape: f32[128,32], index: 6, kind: input, shape index: {}]
  %s7 = inlined_call_operand.vmem [shape: f32[128,1], index: 7, kind: input, shape index: {}]
  %s8 = inlined_call_operand.hbm [shape: f32[128,128], index: 8, kind: output, shape index: {}]
  %s9 = sld [smem:[#allocation0]]
  $region73: #{tpu_custom_call.1} parent=0
    _
  %s11 = ssub.s32 1, %s9
  %s12 = scalar_select 0, %s11, %s9
  $region1: #{tpu_custom_call.1} parent=0
    #allocation3 [shape = 'u8[65536]{0}', space=vmem, size = 0x10000, scoped, tag = 'output window, operand 0, single buffered']
    #allocation4 [shape = 's32[2]{0}', space=sflag, size = 0x8, scoped, tag = 'scoped memory for tpu_custom_call.1']
    %13 = vsyncpa [#allocation4], 0
    loop: start=0, step=1, limit=4
    $region2: #{tpu_custom_call.1} parent=1 // loop_pre_header
      _
    $region3: #{tpu_custom_call.1} parent=1 // loop_header
      %s15 = sphi 0, %s19
      %p16 = scmp.ge.s32.totalorder %s15, 4
      %s22 = sphi 0, %s34
      %s23 = sphi 0, %s30
      %s24 = sphi 0, %s22
      %s25 = sphi 0, %s23
      %s26 = sphi 0, %s24
      %s27 = sphi 0, %s25
      %s37 = sphi 0, %s39
      %s40 = sphi 0, %s37
      %s41 = sphi 0, %s40
      %s57 = sphi 0, %s41
      %s63 = sphi 0, %s65
      %s66 = sphi 0, %s63
      %s67 = sphi 0, %s66
      %s83 = sphi 0, %s67
      %s89 = sphi 0, %s91
      %s92 = sphi 0, %s89
      %s93 = sphi 0, %s92
      %s109 = sphi 0, %s93
      %s115 = sphi 0, %s117
      %s118 = sphi 0, %s115
      %s119 = sphi 0, %s118
      %s135 = sphi 0, %s119
      %s141 = sphi 0, %s143
      %s144 = sphi 0, %s141
      %s145 = sphi 0, %s144
      %s161 = sphi 0, %s145
      %s167 = sphi 0, %s169
      %s170 = sphi 0, %s167
      %s171 = sphi 0, %s170
      %s187 = sphi 0, %s171
      %s191 = sphi 0, %s191
      %s193 = sphi 0, %s191
      %s194 = sphi 0, %s193
      %s208 = sphi 0, %s194
      %s212 = sphi 0, %s212
      %s214 = sphi 0, %s212
      %s215 = sphi 0, %s214
      %s229 = sphi 0, %s215
      %s235 = sphi 0, %s237
      %s238 = sphi 0, %s235
      %s239 = sphi 0, %s238
      %s255 = sphi 0, %s239
    $region4: #{tpu_custom_call.1} parent=1 // loop_header_branch
      %18 = sbr.rel (%p16) target = $region8
    $region5: #{tpu_custom_call.1} parent=1 // loop_body
      %s20 = ssub.s32 %s15, 1
      %s21 = ssub.s32 %s15, 2
      %s28 = sadd.s32 1, %s23
      %p29 = scmp.ge.s32.totalorder %s28, 2
      %s30 = scalar_select %p29, 0, %s28
      %s31 = sadd.s32 1, %s22
      %s32 = scalar_select %p29, %s31, %s22
      %p33 = scmp.ge.s32.totalorder %s32, 1
      %s34 = scalar_select %p33, 0, %s32
      %s35 = ssub.s32 %s22, %s34
      %p36 = scmp.eq.s32.totalorder %s35, 0
      %s38 = sadd.s32 %s37, 1
      %s39 = scalar_select %p36, %s37, %s38
      %p42 = pneg %p36
      %p43 = scmp.eq.s32.totalorder %s15, 1
      %p44 = por %p42, %p43
      %p45 = scmp.ne.s32.totalorder %s37, %s40
      %p46 = scmp.eq.s32.totalorder %s15, 0
      %p47 = por %p45, %p46
      %p48 = scmp.ne.s32.totalorder %s37, %s40
      %p49 = scmp.eq.s32.totalorder %s20, 1
      %p50 = por %p48, %p49
      %p51 = scmp.ne.s32.totalorder %s40, %s41
      %p52 = scmp.eq.s32.totalorder %s20, 0
      %p53 = por %p51, %p52
      %p54 = scmp.ne.s32.totalorder %s40, %s41
      %p55 = scmp.eq.s32.totalorder %s21, 1
      %p56 = por %p54, %p55
      %p58 = scmp.ne.s32.totalorder %s41, %s57
      %p59 = scmp.eq.s32.totalorder %s21, 0
      %p60 = por %p58, %p59
      %s61 = ssub.s32 %s22, %s34
      %p62 = scmp.eq.s32.totalorder %s61, 0
      %s64 = sadd.s32 %s63, 1
      %s65 = scalar_select %p62, %s63, %s64
      %p68 = pneg %p62
      %p69 = scmp.eq.s32.totalorder %s15, 1
      %p70 = por %p68, %p69
      %p71 = scmp.ne.s32.totalorder %s63, %s66
      %p72 = scmp.eq.s32.totalorder %s15, 0
      %p73 = por %p71, %p72
      %p74 = scmp.ne.s32.totalorder %s63, %s66
      %p75 = scmp.eq.s32.totalorder %s20, 1
      %p76 = por %p74, %p75
      %p77 = scmp.ne.s32.totalorder %s66, %s67
      %p78 = scmp.eq.s32.totalorder %s20, 0
      %p79 = por %p77, %p78
      %p80 = scmp.ne.s32.totalorder %s66, %s67
      %p81 = scmp.eq.s32.totalorder %s21, 1
      %p82 = por %p80, %p81
      %p84 = scmp.ne.s32.totalorder %s67, %s83
      %p85 = scmp.eq.s32.totalorder %s21, 0
      %p86 = por %p84, %p85
      %s87 = ssub.s32 %s22, %s34
      %p88 = scmp.eq.s32.totalorder %s87, 0
      %s90 = sadd.s32 %s89, 1
      %s91 = scalar_select %p88, %s89, %s90
      %p94 = pneg %p88
      %p95 = scmp.eq.s32.totalorder %s15, 1
      %p96 = por %p94, %p95
      %p97 = scmp.ne.s32.totalorder %s89, %s92
      %p98 = scmp.eq.s32.totalorder %s15, 0
      %p99 = por %p97, %p98
      %p100 = scmp.ne.s32.totalorder %s89, %s92
      %p101 = scmp.eq.s32.totalorder %s20, 1
      %p102 = por %p100, %p101
      %p103 = scmp.ne.s32.totalorder %s92, %s93
      %p104 = scmp.eq.s32.totalorder %s20, 0
      %p105 = por %p103, %p104
      %p106 = scmp.ne.s32.totalorder %s92, %s93
      %p107 = scmp.eq.s32.totalorder %s21, 1
      %p108 = por %p106, %p107
      %p110 = scmp.ne.s32.totalorder %s93, %s109
      %p111 = scmp.eq.s32.totalorder %s21, 0
      %p112 = por %p110, %p111
      %s113 = ssub.s32 %s23, %s30
      %p114 = scmp.eq.s32.totalorder %s113, 0
      %s116 = sadd.s32 %s115, 1
      %s117 = scalar_select %p114, %s115, %s116
      %p120 = pneg %p114
      %p121 = scmp.eq.s32.totalorder %s15, 1
      %p122 = por %p120, %p121
      %p123 = scmp.ne.s32.totalorder %s115, %s118
      %p124 = scmp.eq.s32.totalorder %s15, 0
      %p125 = por %p123, %p124
      %p126 = scmp.ne.s32.totalorder %s115, %s118
      %p127 = scmp.eq.s32.totalorder %s20, 1
      %p128 = por %p126, %p127
      %p129 = scmp.ne.s32.totalorder %s118, %s119
      %p130 = scmp.eq.s32.totalorder %s20, 0
      %p131 = por %p129, %p130
      %p132 = scmp.ne.s32.totalorder %s118, %s119
      %p133 = scmp.eq.s32.totalorder %s21, 1
      %p134 = por %p132, %p133
      %p136 = scmp.ne.s32.totalorder %s119, %s135
      %p137 = scmp.eq.s32.totalorder %s21, 0
      %p138 = por %p136, %p137
      %s139 = ssub.s32 %s23, %s30
      %p140 = scmp.eq.s32.totalorder %s139, 0
      %s142 = sadd.s32 %s141, 1
      %s143 = scalar_select %p140, %s141, %s142
      %p146 = pneg %p140
      %p147 = scmp.eq.s32.totalorder %s15, 1
      %p148 = por %p146, %p147
      %p149 = scmp.ne.s32.totalorder %s141, %s144
      %p150 = scmp.eq.s32.totalorder %s15, 0
      %p151 = por %p149, %p150
      %p152 = scmp.ne.s32.totalorder %s141, %s144
      %p153 = scmp.eq.s32.totalorder %s20, 1
      %p154 = por %p152, %p153
      %p155 = scmp.ne.s32.totalorder %s144, %s145
      %p156 = scmp.eq.s32.totalorder %s20, 0
      %p157 = por %p155, %p156
      %p158 = scmp.ne.s32.totalorder %s144, %s145
      %p159 = scmp.eq.s32.totalorder %s21, 1
      %p160 = por %p158, %p159
      %p162 = scmp.ne.s32.totalorder %s145, %s161
      %p163 = scmp.eq.s32.totalorder %s21, 0
      %p164 = por %p162, %p163
      %s165 = ssub.s32 %s23, %s30
      %p166 = scmp.eq.s32.totalorder %s165, 0
      %s168 = sadd.s32 %s167, 1
      %s169 = scalar_select %p166, %s167, %s168
      %p172 = pneg %p166
      %p173 = scmp.eq.s32.totalorder %s15, 1
      %p174 = por %p172, %p173
      %p175 = scmp.ne.s32.totalorder %s167, %s170
      %p176 = scmp.eq.s32.totalorder %s15, 0
      %p177 = por %p175, %p176
      %p178 = scmp.ne.s32.totalorder %s167, %s170
      %p179 = scmp.eq.s32.totalorder %s20, 1
      %p180 = por %p178, %p179
      %p181 = scmp.ne.s32.totalorder %s170, %s171
      %p182 = scmp.eq.s32.totalorder %s20, 0
      %p183 = por %p181, %p182
      %p184 = scmp.ne.s32.totalorder %s170, %s171
      %p185 = scmp.eq.s32.totalorder %s21, 1
      %p186 = por %p184, %p185
      %p188 = scmp.ne.s32.totalorder %s171, %s187
      %p189 = scmp.eq.s32.totalorder %s21, 0
      %p190 = por %p188, %p189
      %s192 = sadd.s32 %s191, 1
      %p195 = scmp.eq.s32.totalorder %s15, 1
      %p196 = scmp.ne.s32.totalorder %s191, %s193
      %p197 = scmp.eq.s32.totalorder %s15, 0
      %p198 = por %p196, %p197
      %p199 = scmp.ne.s32.totalorder %s191, %s193
      %p200 = scmp.eq.s32.totalorder %s20, 1
      %p201 = por %p199, %p200
      %p202 = scmp.ne.s32.totalorder %s193, %s194
      %p203 = scmp.eq.s32.totalorder %s20, 0
      %p204 = por %p202, %p203
      %p205 = scmp.ne.s32.totalorder %s193, %s194
      %p206 = scmp.eq.s32.totalorder %s21, 1
      %p207 = por %p205, %p206
      %p209 = scmp.ne.s32.totalorder %s194, %s208
      %p210 = scmp.eq.s32.totalorder %s21, 0
      %p211 = por %p209, %p210
      %s213 = sadd.s32 %s212, 1
      %p216 = scmp.eq.s32.totalorder %s15, 1
      %p217 = scmp.ne.s32.totalorder %s212, %s214
      %p218 = scmp.eq.s32.totalorder %s15, 0
      %p219 = por %p217, %p218
      %p220 = scmp.ne.s32.totalorder %s212, %s214
      %p221 = scmp.eq.s32.totalorder %s20, 1
      %p222 = por %p220, %p221
      %p223 = scmp.ne.s32.totalorder %s214, %s215
      %p224 = scmp.eq.s32.totalorder %s20, 0
      %p225 = por %p223, %p224
      %p226 = scmp.ne.s32.totalorder %s214, %s215
      %p227 = scmp.eq.s32.totalorder %s21, 1
      %p228 = por %p226, %p227
      %p230 = scmp.ne.s32.totalorder %s215, %s229
      %p231 = scmp.eq.s32.totalorder %s21, 0
      %p232 = por %p230, %p231
      %s233 = ssub.s32 %s22, %s34
      %p234 = scmp.eq.s32.totalorder %s233, 0
      %s236 = sadd.s32 %s235, 1
      %s237 = scalar_select %p234, %s235, %s236
      %p240 = pneg %p234
      %p241 = scmp.eq.s32.totalorder %s15, 1
      %p242 = por %p240, %p241
      %p243 = scmp.ne.s32.totalorder %s235, %s238
      %p244 = scmp.eq.s32.totalorder %s15, 0
      %p245 = por %p243, %p244
      %p246 = scmp.ne.s32.totalorder %s235, %s238
      %p247 = scmp.eq.s32.totalorder %s20, 1
      %p248 = por %p246, %p247
      %p249 = scmp.ne.s32.totalorder %s238, %s239
      %p250 = scmp.eq.s32.totalorder %s20, 0
      %p251 = por %p249, %p250
      %p252 = scmp.ne.s32.totalorder %s238, %s239
      %p253 = scmp.eq.s32.totalorder %s21, 1
      %p254 = por %p252, %p253
      %p256 = scmp.ne.s32.totalorder %s239, %s255
      %p257 = scmp.eq.s32.totalorder %s21, 0
      %p258 = por %p256, %p257
      %p259 = scmp.le.s32.totalorder 1, %s15
      %p260 = scmp.lt.s32.totalorder %s15, 3
      %p261 = pnand %p259, %p260
      %p262 = pneg %p261
      // Predicated region
      $region9: #{tpu_custom_call.1} parent=5 // pred_check
        _
      $region10: #{tpu_custom_call.1} parent=5 // pred_check_branch
        %264 = sbr.rel (%p261) target = $region12
      $region11: #{tpu_custom_call.1} parent=5 // pred_region
        %s265 = ssub.s32 %s15, 1
        // Predicated region
        $region13: #{tpu_custom_call.1} parent=11 // pred_check
          %p266 = pneg %p53
        $region14: #{tpu_custom_call.1} parent=11 // pred_check_branch
          %268 = sbr.rel (%p266) target = $region16
        $region15: #{tpu_custom_call.1} parent=11 // pred_region
          %p269 = scmp.lt.s32.totalorder %s24, 0
          %s270 = scalar_select %p269, %s24, 0
          %s271 = smul.addr %s270, 4
          %s272 = scalar_lea.vmem %s0, %s271
        $region16: #{tpu_custom_call.1} parent=11 // pred_fallthru
          _
        // Predicated region
        $region17: #{tpu_custom_call.1} parent=11 // pred_check
          %p273 = pneg %p79
        $region18: #{tpu_custom_call.1} parent=11 // pred_check_branch
          %275 = sbr.rel (%p273) target = $region20
        $region19: #{tpu_custom_call.1} parent=11 // pred_region
          %p276 = scmp.lt.s32.totalorder %s24, 0
          %s277 = scalar_select %p276, %s24, 0
          %s278 = scalar_lea.vmem %s1, %s277
        $region20: #{tpu_custom_call.1} parent=11 // pred_fallthru
          _
        // Predicated region
        $region21: #{tpu_custom_call.1} parent=11 // pred_check
          %p279 = pneg %p105
        $region22: #{tpu_custom_call.1} parent=11 // pred_check_branch
          %281 = sbr.rel (%p279) target = $region24
        $region23: #{tpu_custom_call.1} parent=11 // pred_region
          %p282 = scmp.lt.s32.totalorder %s24, 0
          %s283 = scalar_select %p282, %s24, 0
          %s284 = smul.addr %s283, 8
          %s285 = scalar_lea.vmem %s2, %s284
        $region24: #{tpu_custom_call.1} parent=11 // pred_fallthru
          _
        // Predicated region
        $region25: #{tpu_custom_call.1} parent=11 // pred_check
          %p286 = pneg %p204
        $region26: #{tpu_custom_call.1} parent=11 // pred_check_branch
          %288 = sbr.rel (%p286) target = $region28
        $region27: #{tpu_custom_call.1} parent=11 // pred_region
          _
        $region28: #{tpu_custom_call.1} parent=11 // pred_fallthru
          _
        // Predicated region
        $region29: #{tpu_custom_call.1} parent=11 // pred_check
          %p289 = pneg %p225
        $region30: #{tpu_custom_call.1} parent=11 // pred_check_branch
          %291 = sbr.rel (%p289) target = $region32
        $region31: #{tpu_custom_call.1} parent=11 // pred_region
          _
        $region32: #{tpu_custom_call.1} parent=11 // pred_fallthru
          _
      $region12: #{tpu_custom_call.1} parent=5 // pred_fallthru
        _
      %p292 = scmp.lt.s32.totalorder %s15, 2
      // Predicated region
      $region33: #{tpu_custom_call.1} parent=5 // pred_check
        %p293 = pneg %p292
      $region34: #{tpu_custom_call.1} parent=5 // pred_check_branch
        %295 = sbr.rel (%p293) target = $region36
      $region35: #{tpu_custom_call.1} parent=5 // pred_region
        // Predicated region
        $region37: #{tpu_custom_call.1} parent=35 // pred_check
          %p296 = pneg %p125
        $region38: #{tpu_custom_call.1} parent=35 // pred_check_branch
          %298 = sbr.rel (%p296) target = $region40
        $region39: #{tpu_custom_call.1} parent=35 // pred_region
          %s299 = smul.u32 16, %s23
          %p300 = scmp.lt.s32.totalorder %s299, 31
          %s301 = scalar_select %p300, %s299, 31
          %s302 = smul.addr %s301, 8
          %s303 = scalar_lea.vmem %s3, %s302
          %s304 = smul.u32 16, %s23
        $region40: #{tpu_custom_call.1} parent=35 // pred_fallthru
          _
        // Predicated region
        $region41: #{tpu_custom_call.1} parent=35 // pred_check
          %p305 = pneg %p151
        $region42: #{tpu_custom_call.1} parent=35 // pred_check_branch
          %307 = sbr.rel (%p305) target = $region44
        $region43: #{tpu_custom_call.1} parent=35 // pred_region
          %s308 = smul.u32 16, %s23
          %p309 = scmp.lt.s32.totalorder %s308, 31
          %s310 = scalar_select %p309, %s308, 31
          %s311 = smul.addr %s310, 8
          %s312 = scalar_lea.vmem %s4, %s311
          %s313 = smul.u32 16, %s23
        $region44: #{tpu_custom_call.1} parent=35 // pred_fallthru
          _
        // Predicated region
        $region45: #{tpu_custom_call.1} parent=35 // pred_check
          %p314 = pneg %p177
        $region46: #{tpu_custom_call.1} parent=35 // pred_check_branch
          %316 = sbr.rel (%p314) target = $region48
        $region47: #{tpu_custom_call.1} parent=35 // pred_region
          %s317 = smul.u32 16, %s23
          %p318 = scmp.lt.s32.totalorder %s317, 31
          %s319 = scalar_select %p318, %s317, 31
          %s320 = smul.addr %s319, 8
          %s321 = scalar_lea.vmem %s5, %s320
          %s322 = smul.u32 16, %s23
        $region48: #{tpu_custom_call.1} parent=35 // pred_fallthru
          _
      $region36: #{tpu_custom_call.1} parent=5 // pred_fallthru
        _
      %p323 = scmp.le.s32.totalorder 1, %s15
      %p324 = scmp.lt.s32.totalorder %s15, 3
      %p325 = pnand %p323, %p324
      %p326 = pneg %p325
      // Predicated region
      $region49: #{tpu_custom_call.1} parent=5 // pred_check
        _
      $region50: #{tpu_custom_call.1} parent=5 // pred_check_branch
        %328 = sbr.rel (%p325) target = $region52
      $region51: #{tpu_custom_call.1} parent=5 // pred_region
        %s329 = ssub.s32 %s15, 1
        %p330 = scmp.lt.s32.totalorder %s24, 0
        %s331 = scalar_select %p330, %s24, 0
        %s332 = smul.addr %s331, 4
        %s333 = scalar_lea.vmem %s0, %s332
        %p334 = pneg %p53
        %p335 = pneg %p50
        %p336 = scmp.lt.s32.totalorder %s24, 0
        %s337 = scalar_select %p336, %s24, 0
        %s338 = scalar_lea.vmem %s1, %s337
        %p339 = pneg %p79
        %p340 = pneg %p76
        %p341 = scmp.lt.s32.totalorder %s24, 0
        %s342 = scalar_select %p341, %s24, 0
        %s343 = smul.addr %s342, 8
        %s344 = scalar_lea.vmem %s2, %s343
        %p345 = pneg %p105
        %p346 = pneg %p102
        %s347 = smul.u32 16, %s25
        %p348 = scmp.lt.s32.totalorder %s347, 31
        %s349 = scalar_select %p348, %s347, 31
        %s350 = smul.addr %s349, 8
        %s351 = scalar_lea.vmem %s3, %s350
        %p352 = pneg %p131
        %p353 = pneg %p128
        %s354 = smul.u32 16, %s25
        %p355 = scmp.lt.s32.totalorder %s354, 31
        %s356 = scalar_select %p355, %s354, 31
        %s357 = smul.addr %s356, 8
        %s358 = scalar_lea.vmem %s4, %s357
        %p359 = pneg %p157
        %p360 = pneg %p154
        %s361 = smul.u32 16, %s25
        %p362 = scmp.lt.s32.totalorder %s361, 31
        %s363 = scalar_select %p362, %s361, 31
        %s364 = smul.addr %s363, 8
        %s365 = scalar_lea.vmem %s5, %s364
        %p366 = pneg %p183
        %p367 = pneg %p180
        %p368 = pneg %p204
        %p369 = pneg %p201
        %p370 = pneg %p225
        %p371 = pneg %p222
        %p372 = pneg %p251
        %p373 = pneg %p248
        %p374 = scmp.lt.s32.totalorder %s24, 0
        %s375 = scalar_select %p374, %s24, 0
        %s376 = smul.addr %s375, 4
        %s377 = scalar_lea.vmem %s0, %s376
        %p378 = scmp.lt.s32.totalorder %s24, 0
        %s379 = scalar_select %p378, %s24, 0
        %s380 = scalar_lea.vmem %s1, %s379
        %p381 = scmp.lt.s32.totalorder %s24, 0
        %s382 = scalar_select %p381, %s24, 0
        %s383 = smul.addr %s382, 8
        %s384 = scalar_lea.vmem %s2, %s383
        %s385 = smul.u32 16, %s25
        %p386 = scmp.lt.s32.totalorder %s385, 31
        %s387 = scalar_select %p386, %s385, 31
        %s388 = smul.addr %s387, 8
        %s389 = scalar_lea.vmem %s3, %s388
        %s390 = smul.u32 16, %s25
        %s391 = smul.u32 16, %s25
        %p392 = scmp.lt.s32.totalorder %s391, 31
        %s393 = scalar_select %p392, %s391, 31
        %s394 = smul.addr %s393, 8
        %s395 = scalar_lea.vmem %s4, %s394
        %s396 = smul.u32 16, %s25
        %s397 = smul.u32 16, %s25
        %p398 = scmp.lt.s32.totalorder %s397, 31
        %s399 = scalar_select %p398, %s397, 31
        %s400 = smul.addr %s399, 8
        %s401 = scalar_lea.vmem %s5, %s400
        %s402 = smul.u32 16, %s25
        %p403 = scmp.eq.s32.totalorder %s25, 0
        // Predicated region
        $region53: #{tpu_custom_call.1} parent=51 // pred_check
          %p404 = pneg %p403
        $region54: #{tpu_custom_call.1} parent=51 // pred_check_branch
          %406 = sbr.rel (%p404) target = $region56
        $region55: #{tpu_custom_call.1} parent=51 // pred_region
          %407 = vst [vmem:[#allocation2] sm:$0xff] -inf
          %408 = vst [vmem:[#allocation2 + $0x8] sm:$0xff] -inf
          %409 = vst [vmem:[#allocation2 + $0x10] sm:$0xff] -inf
          %410 = vst [vmem:[#allocation2 + $0x18] sm:$0xff] -inf
        $region56: #{tpu_custom_call.1} parent=51 // pred_fallthru
          _
        %v411 = vld [vmem:[%s380] sm:$0x1]
        %v412 = vld [vmem:[%s389] sm:$0xff]
        %v413 = vld [vmem:[%s389 + $0x8] sm:$0xff]
        %v414 = vld [vmem:[%s389 + $0x10] sm:$0xff]
        %v415 = vld [vmem:[%s389 + $0x18] sm:$0xff]
        %v416 = vld [vmem:[%s389 + $0x20] sm:$0xff]
        %v417 = vld [vmem:[%s389 + $0x28] sm:$0xff]
        %v418 = vld [vmem:[%s389 + $0x30] sm:$0xff]
        %v419 = vld [vmem:[%s389 + $0x38] sm:$0xff]
        %v420 = vld [vmem:[%s389 + $0x40] sm:$0xff]
        %v421 = vld [vmem:[%s389 + $0x48] sm:$0xff]
        %v422 = vld [vmem:[%s389 + $0x50] sm:$0xff]
        %v423 = vld [vmem:[%s389 + $0x58] sm:$0xff]
        %v424 = vld [vmem:[%s389 + $0x60] sm:$0xff]
        %v425 = vld [vmem:[%s389 + $0x68] sm:$0xff]
        %v426 = vld [vmem:[%s389 + $0x70] sm:$0xff]
        %v427 = vld [vmem:[%s389 + $0x78] sm:$0xff]
        %v428 = vld [vmem:[%s377] sm:$0x1]
        %430 = vset.pattern.permute.xlu0 0
        %431 = vperm.xlu0 %430, %v412
        %v432 = vpop.permute.xlu0 %431
        %435 = vset.pattern.permute.xlu0 0
        %436 = vperm.xlu0 %435, %v413
        %v437 = vpop.permute.xlu0 %436
        %440 = vset.pattern.permute.xlu0 0
        %441 = vperm.xlu0 %440, %v414
        %v442 = vpop.permute.xlu0 %441
        %445 = vset.pattern.permute.xlu0 0
        %446 = vperm.xlu0 %445, %v415
        %v447 = vpop.permute.xlu0 %446
        %450 = vset.pattern.permute.xlu0 0
        %451 = vperm.xlu0 %450, %v416
        %v452 = vpop.permute.xlu0 %451
        %455 = vset.pattern.permute.xlu0 0
        %456 = vperm.xlu0 %455, %v417
        %v457 = vpop.permute.xlu0 %456
        %460 = vset.pattern.permute.xlu0 0
        %461 = vperm.xlu0 %460, %v418
        %v462 = vpop.permute.xlu0 %461
        %465 = vset.pattern.permute.xlu0 0
        %466 = vperm.xlu0 %465, %v419
        %v467 = vpop.permute.xlu0 %466
        %470 = vset.pattern.permute.xlu0 0
        %471 = vperm.xlu0 %470, %v420
        %v472 = vpop.permute.xlu0 %471
        %475 = vset.pattern.permute.xlu0 0
        %476 = vperm.xlu0 %475, %v421
        %v477 = vpop.permute.xlu0 %476
        %480 = vset.pattern.permute.xlu0 0
        %481 = vperm.xlu0 %480, %v422
        %v482 = vpop.permute.xlu0 %481
        %485 = vset.pattern.permute.xlu0 0
        %486 = vperm.xlu0 %485, %v423
        %v487 = vpop.permute.xlu0 %486
        %490 = vset.pattern.permute.xlu0 0
        %491 = vperm.xlu0 %490, %v424
        %v492 = vpop.permute.xlu0 %491
        %495 = vset.pattern.permute.xlu0 0
        %496 = vperm.xlu0 %495, %v425
        %v497 = vpop.permute.xlu0 %496
        %500 = vset.pattern.permute.xlu0 0
        %501 = vperm.xlu0 %500, %v426
        %v502 = vpop.permute.xlu0 %501
        %505 = vset.pattern.permute.xlu0 0
        %506 = vperm.xlu0 %505, %v427
        %v507 = vpop.permute.xlu0 %506
        %v509 = vlaneseq
        %v510 = vshrl.u32 %v509, 7
        %v511 = vsub.s32 0, %v510
        %v512 = vrot.slane %v428, %v511
        %v513 = vsub.f32 %v432, %v512
        %v514 = vsub.f32 %v437, %v512
        %v515 = vsub.f32 %v442, %v512
        %v516 = vsub.f32 %v447, %v512
        %v517 = vsub.f32 %v452, %v512
        %v518 = vsub.f32 %v457, %v512
        %v519 = vsub.f32 %v462, %v512
        %v520 = vsub.f32 %v467, %v512
        %v521 = vsub.f32 %v472, %v512
        %v522 = vsub.f32 %v477, %v512
        %v523 = vsub.f32 %v482, %v512
        %v524 = vsub.f32 %v487, %v512
        %v525 = vsub.f32 %v492, %v512
        %v526 = vsub.f32 %v497, %v512
        %v527 = vsub.f32 %v502, %v512
        %v528 = vsub.f32 %v507, %v512
        %v529 = vmul.f32 %v513, %v513
        %v530 = vmul.f32 %v514, %v514
        %v531 = vmul.f32 %v515, %v515
        %v532 = vmul.f32 %v516, %v516
        %v533 = vmul.f32 %v517, %v517
        %v534 = vmul.f32 %v518, %v518
        %v535 = vmul.f32 %v519, %v519
        %v536 = vmul.f32 %v520, %v520
        %v537 = vmul.f32 %v521, %v521
        %v538 = vmul.f32 %v522, %v522
        %v539 = vmul.f32 %v523, %v523
        %v540 = vmul.f32 %v524, %v524
        %v541 = vmul.f32 %v525, %v525
        %v542 = vmul.f32 %v526, %v526
        %v543 = vmul.f32 %v527, %v527
        %v544 = vmul.f32 %v528, %v528
        %v545 = vadd.f32 %v529, 0.0
        %v546 = vadd.f32 %v530, 0.0
        %v547 = vadd.f32 %v531, 0.0
        %v548 = vadd.f32 %v532, 0.0
        %v549 = vadd.f32 %v533, 0.0
        %v550 = vadd.f32 %v534, 0.0
        %v551 = vadd.f32 %v535, 0.0
        %v552 = vadd.f32 %v536, 0.0
        %v553 = vadd.f32 %v537, 0.0
        %v554 = vadd.f32 %v538, 0.0
        %v555 = vadd.f32 %v539, 0.0
        %v556 = vadd.f32 %v540, 0.0
        %v557 = vadd.f32 %v541, 0.0
        %v558 = vadd.f32 %v542, 0.0
        %v559 = vadd.f32 %v543, 0.0
        %v560 = vadd.f32 %v544, 0.0
        %v561 = vld [vmem:[%s377 + $0x1] sm:$0x1]
        %562 = vset.pattern.permute.xlu0 1
        %563 = vperm.xlu0 %562, %v412
        %v564 = vpop.permute.xlu0 %563
        %566 = vset.pattern.permute.xlu0 1
        %567 = vperm.xlu0 %566, %v413
        %v568 = vpop.permute.xlu0 %567
        %570 = vset.pattern.permute.xlu0 1
        %571 = vperm.xlu0 %570, %v414
        %v572 = vpop.permute.xlu0 %571
        %574 = vset.pattern.permute.xlu0 1
        %575 = vperm.xlu0 %574, %v415
        %v576 = vpop.permute.xlu0 %575
        %578 = vset.pattern.permute.xlu0 1
        %579 = vperm.xlu0 %578, %v416
        %v580 = vpop.permute.xlu0 %579
        %582 = vset.pattern.permute.xlu0 1
        %583 = vperm.xlu0 %582, %v417
        %v584 = vpop.permute.xlu0 %583
        %586 = vset.pattern.permute.xlu0 1
        %587 = vperm.xlu0 %586, %v418
        %v588 = vpop.permute.xlu0 %587
        %590 = vset.pattern.permute.xlu0 1
        %591 = vperm.xlu0 %590, %v419
        %v592 = vpop.permute.xlu0 %591
        %594 = vset.pattern.permute.xlu0 1
        %595 = vperm.xlu0 %594, %v420
        %v596 = vpop.permute.xlu0 %595
        %598 = vset.pattern.permute.xlu0 1
        %599 = vperm.xlu0 %598, %v421
        %v600 = vpop.permute.xlu0 %599
        %602 = vset.pattern.permute.xlu0 1
        %603 = vperm.xlu0 %602, %v422
        %v604 = vpop.permute.xlu0 %603
        %606 = vset.pattern.permute.xlu0 1
        %607 = vperm.xlu0 %606, %v423
        %v608 = vpop.permute.xlu0 %607
        %610 = vset.pattern.permute.xlu0 1
        %611 = vperm.xlu0 %610, %v424
        %v612 = vpop.permute.xlu0 %611
        %614 = vset.pattern.permute.xlu0 1
        %615 = vperm.xlu0 %614, %v425
        %v616 = vpop.permute.xlu0 %615
        %618 = vset.pattern.permute.xlu0 1
        %619 = vperm.xlu0 %618, %v426
        %v620 = vpop.permute.xlu0 %619
        %622 = vset.pattern.permute.xlu0 1
        %623 = vperm.xlu0 %622, %v427
        %v624 = vpop.permute.xlu0 %623
        %v626 = vlaneseq
        %v627 = vshrl.u32 %v626, 7
        %v628 = vsub.s32 0, %v627
        %v629 = vrot.slane %v561, %v628
        %v630 = vsub.f32 %v564, %v629
        %v631 = vsub.f32 %v568, %v629
        %v632 = vsub.f32 %v572, %v629
        %v633 = vsub.f32 %v576, %v629
        %v634 = vsub.f32 %v580, %v629
        %v635 = vsub.f32 %v584, %v629
        %v636 = vsub.f32 %v588, %v629
        %v637 = vsub.f32 %v592, %v629
        %v638 = vsub.f32 %v596, %v629
        %v639 = vsub.f32 %v600, %v629
        %v640 = vsub.f32 %v604, %v629
        %v641 = vsub.f32 %v608, %v629
        %v642 = vsub.f32 %v612, %v629
        %v643 = vsub.f32 %v616, %v629
        %v644 = vsub.f32 %v620, %v629
        %v645 = vsub.f32 %v624, %v629
        %v646 = vmul.f32 %v630, %v630
        %v647 = vmul.f32 %v631, %v631
        %v648 = vmul.f32 %v632, %v632
        %v649 = vmul.f32 %v633, %v633
        %v650 = vmul.f32 %v634, %v634
        %v651 = vmul.f32 %v635, %v635
        %v652 = vmul.f32 %v636, %v636
        %v653 = vmul.f32 %v637, %v637
        %v654 = vmul.f32 %v638, %v638
        %v655 = vmul.f32 %v639, %v639
        %v656 = vmul.f32 %v640, %v640
        %v657 = vmul.f32 %v641, %v641
        %v658 = vmul.f32 %v642, %v642
        %v659 = vmul.f32 %v643, %v643
        %v660 = vmul.f32 %v644, %v644
        %v661 = vmul.f32 %v645, %v645
        %v662 = vadd.f32 %v545, %v646
        %v663 = vadd.f32 %v546, %v647
        %v664 = vadd.f32 %v547, %v648
        %v665 = vadd.f32 %v548, %v649
        %v666 = vadd.f32 %v549, %v650
        %v667 = vadd.f32 %v550, %v651
        %v668 = vadd.f32 %v551, %v652
        %v669 = vadd.f32 %v552, %v653
        %v670 = vadd.f32 %v553, %v654
        %v671 = vadd.f32 %v554, %v655
        %v672 = vadd.f32 %v555, %v656
        %v673 = vadd.f32 %v556, %v657
        %v674 = vadd.f32 %v557, %v658
        %v675 = vadd.f32 %v558, %v659
        %v676 = vadd.f32 %v559, %v660
        %v677 = vadd.f32 %v560, %v661
        %v678 = vld [vmem:[%s377 + $0x2] sm:$0x1]
        %679 = vset.pattern.permute.xlu0 2
        %680 = vperm.xlu0 %679, %v412
        %v681 = vpop.permute.xlu0 %680
        %683 = vset.pattern.permute.xlu0 2
        %684 = vperm.xlu0 %683, %v413
        %v685 = vpop.permute.xlu0 %684
        %687 = vset.pattern.permute.xlu0 2
        %688 = vperm.xlu0 %687, %v414
        %v689 = vpop.permute.xlu0 %688
        %691 = vset.pattern.permute.xlu0 2
        %692 = vperm.xlu0 %691, %v415
        %v693 = vpop.permute.xlu0 %692
        %695 = vset.pattern.permute.xlu0 2
        %696 = vperm.xlu0 %695, %v416
        %v697 = vpop.permute.xlu0 %696
        %699 = vset.pattern.permute.xlu0 2
        %700 = vperm.xlu0 %699, %v417
        %v701 = vpop.permute.xlu0 %700
        %703 = vset.pattern.permute.xlu0 2
        %704 = vperm.xlu0 %703, %v418
        %v705 = vpop.permute.xlu0 %704
        %707 = vset.pattern.permute.xlu0 2
        %708 = vperm.xlu0 %707, %v419
        %v709 = vpop.permute.xlu0 %708
        %711 = vset.pattern.permute.xlu0 2
        %712 = vperm.xlu0 %711, %v420
        %v713 = vpop.permute.xlu0 %712
        %715 = vset.pattern.permute.xlu0 2
        %716 = vperm.xlu0 %715, %v421
        %v717 = vpop.permute.xlu0 %716
        %719 = vset.pattern.permute.xlu0 2
        %720 = vperm.xlu0 %719, %v422
        %v721 = vpop.permute.xlu0 %720
        %723 = vset.pattern.permute.xlu0 2
        %724 = vperm.xlu0 %723, %v423
        %v725 = vpop.permute.xlu0 %724
        %727 = vset.pattern.permute.xlu0 2
        %728 = vperm.xlu0 %727, %v424
        %v729 = vpop.permute.xlu0 %728
        %731 = vset.pattern.permute.xlu0 2
        %732 = vperm.xlu0 %731, %v425
        %v733 = vpop.permute.xlu0 %732
        %735 = vset.pattern.permute.xlu0 2
        %736 = vperm.xlu0 %735, %v426
        %v737 = vpop.permute.xlu0 %736
        %739 = vset.pattern.permute.xlu0 2
        %740 = vperm.xlu0 %739, %v427
        %v741 = vpop.permute.xlu0 %740
        %v743 = vlaneseq
        %v744 = vshrl.u32 %v743, 7
        %v745 = vsub.s32 0, %v744
        %v746 = vrot.slane %v678, %v745
        %v747 = vsub.f32 %v681, %v746
        %v748 = vsub.f32 %v685, %v746
        %v749 = vsub.f32 %v689, %v746
        %v750 = vsub.f32 %v693, %v746
        %v751 = vsub.f32 %v697, %v746
        %v752 = vsub.f32 %v701, %v746
        %v753 = vsub.f32 %v705, %v746
        %v754 = vsub.f32 %v709, %v746
        %v755 = vsub.f32 %v713, %v746
        %v756 = vsub.f32 %v717, %v746
        %v757 = vsub.f32 %v721, %v746
        %v758 = vsub.f32 %v725, %v746
        %v759 = vsub.f32 %v729, %v746
        %v760 = vsub.f32 %v733, %v746
        %v761 = vsub.f32 %v737, %v746
        %v762 = vsub.f32 %v741, %v746
        %v763 = vmul.f32 %v747, %v747
        %v764 = vmul.f32 %v748, %v748
        %v765 = vmul.f32 %v749, %v749
        %v766 = vmul.f32 %v750, %v750
        %v767 = vmul.f32 %v751, %v751
        %v768 = vmul.f32 %v752, %v752
        %v769 = vmul.f32 %v753, %v753
        %v770 = vmul.f32 %v754, %v754
        %v771 = vmul.f32 %v755, %v755
        %v772 = vmul.f32 %v756, %v756
        %v773 = vmul.f32 %v757, %v757
        %v774 = vmul.f32 %v758, %v758
        %v775 = vmul.f32 %v759, %v759
        %v776 = vmul.f32 %v760, %v760
        %v777 = vmul.f32 %v761, %v761
        %v778 = vmul.f32 %v762, %v762
        %v779 = vadd.f32 %v662, %v763
        %v780 = vadd.f32 %v663, %v764
        %v781 = vadd.f32 %v664, %v765
        %v782 = vadd.f32 %v665, %v766
        %v783 = vadd.f32 %v666, %v767
        %v784 = vadd.f32 %v667, %v768
        %v785 = vadd.f32 %v668, %v769
        %v786 = vadd.f32 %v669, %v770
        %v787 = vadd.f32 %v670, %v771
        %v788 = vadd.f32 %v671, %v772
        %v789 = vadd.f32 %v672, %v773
        %v790 = vadd.f32 %v673, %v774
        %v791 = vadd.f32 %v674, %v775
        %v792 = vadd.f32 %v675, %v776
        %v793 = vadd.f32 %v676, %v777
        %v794 = vadd.f32 %v677, %v778
        %vm795 = vcmp.le.f32.partialorder %v779, 0.36
        %vm796 = vcmp.le.f32.partialorder %v780, 0.36
        %vm797 = vcmp.le.f32.partialorder %v781, 0.36
        %vm798 = vcmp.le.f32.partialorder %v782, 0.36
        %vm799 = vcmp.le.f32.partialorder %v783, 0.36
        %vm800 = vcmp.le.f32.partialorder %v784, 0.36
        %vm801 = vcmp.le.f32.partialorder %v785, 0.36
        %vm802 = vcmp.le.f32.partialorder %v786, 0.36
        %vm803 = vcmp.le.f32.partialorder %v787, 0.36
        %vm804 = vcmp.le.f32.partialorder %v788, 0.36
        %vm805 = vcmp.le.f32.partialorder %v789, 0.36
        %vm806 = vcmp.le.f32.partialorder %v790, 0.36
        %vm807 = vcmp.le.f32.partialorder %v791, 0.36
        %vm808 = vcmp.le.f32.partialorder %v792, 0.36
        %vm809 = vcmp.le.f32.partialorder %v793, 0.36
        %vm810 = vcmp.le.f32.partialorder %v794, 0.36
        %v811 = vld [vmem:[%s395] sm:$0xff]
        %v812 = vld [vmem:[%s395 + $0x8] sm:$0xff]
        %v813 = vld [vmem:[%s395 + $0x10] sm:$0xff]
        %v814 = vld [vmem:[%s395 + $0x18] sm:$0xff]
        %v815 = vld [vmem:[%s395 + $0x20] sm:$0xff]
        %v816 = vld [vmem:[%s395 + $0x28] sm:$0xff]
        %v817 = vld [vmem:[%s395 + $0x30] sm:$0xff]
        %v818 = vld [vmem:[%s395 + $0x38] sm:$0xff]
        %v819 = vld [vmem:[%s395 + $0x40] sm:$0xff]
        %v820 = vld [vmem:[%s395 + $0x48] sm:$0xff]
        %v821 = vld [vmem:[%s395 + $0x50] sm:$0xff]
        %v822 = vld [vmem:[%s395 + $0x58] sm:$0xff]
        %v823 = vld [vmem:[%s395 + $0x60] sm:$0xff]
        %v824 = vld [vmem:[%s395 + $0x68] sm:$0xff]
        %v825 = vld [vmem:[%s395 + $0x70] sm:$0xff]
        %v826 = vld [vmem:[%s395 + $0x78] sm:$0xff]
        %827 = vset.pattern.permute.xlu0 0
        %828 = vperm.xlu0 %827, %v811
        %v829 = vpop.permute.xlu0 %828
        %830 = vset.pattern.permute.xlu0 0
        %831 = vperm.xlu0 %830, %v812
        %v832 = vpop.permute.xlu0 %831
        %833 = vset.pattern.permute.xlu0 0
        %834 = vperm.xlu0 %833, %v813
        %v835 = vpop.permute.xlu0 %834
        %836 = vset.pattern.permute.xlu0 0
        %837 = vperm.xlu0 %836, %v814
        %v838 = vpop.permute.xlu0 %837
        %839 = vset.pattern.permute.xlu0 0
        %840 = vperm.xlu0 %839, %v815
        %v841 = vpop.permute.xlu0 %840
        %842 = vset.pattern.permute.xlu0 0
        %843 = vperm.xlu0 %842, %v816
        %v844 = vpop.permute.xlu0 %843
        %845 = vset.pattern.permute.xlu0 0
        %846 = vperm.xlu0 %845, %v817
        %v847 = vpop.permute.xlu0 %846
        %848 = vset.pattern.permute.xlu0 0
        %849 = vperm.xlu0 %848, %v818
        %v850 = vpop.permute.xlu0 %849
        %851 = vset.pattern.permute.xlu0 0
        %852 = vperm.xlu0 %851, %v819
        %v853 = vpop.permute.xlu0 %852
        %854 = vset.pattern.permute.xlu0 0
        %855 = vperm.xlu0 %854, %v820
        %v856 = vpop.permute.xlu0 %855
        %857 = vset.pattern.permute.xlu0 0
        %858 = vperm.xlu0 %857, %v821
        %v859 = vpop.permute.xlu0 %858
        %860 = vset.pattern.permute.xlu0 0
        %861 = vperm.xlu0 %860, %v822
        %v862 = vpop.permute.xlu0 %861
        %863 = vset.pattern.permute.xlu0 0
        %864 = vperm.xlu0 %863, %v823
        %v865 = vpop.permute.xlu0 %864
        %866 = vset.pattern.permute.xlu0 0
        %867 = vperm.xlu0 %866, %v824
        %v868 = vpop.permute.xlu0 %867
        %869 = vset.pattern.permute.xlu0 0
        %870 = vperm.xlu0 %869, %v825
        %v871 = vpop.permute.xlu0 %870
        %872 = vset.pattern.permute.xlu0 0
        %873 = vperm.xlu0 %872, %v826
        %v874 = vpop.permute.xlu0 %873
        %v875 = vlaneseq
        %v876 = vshrl.u32 %v875, 7
        %v877 = vsub.s32 0, %v876
        %v878 = vrot.slane %v411, %v877
        %vm879 = vcmp.eq.s32.totalorder %v829, %v878
        %vm880 = vcmp.eq.s32.totalorder %v832, %v878
        %vm881 = vcmp.eq.s32.totalorder %v835, %v878
        %vm882 = vcmp.eq.s32.totalorder %v838, %v878
        %vm883 = vcmp.eq.s32.totalorder %v841, %v878
        %vm884 = vcmp.eq.s32.totalorder %v844, %v878
        %vm885 = vcmp.eq.s32.totalorder %v847, %v878
        %vm886 = vcmp.eq.s32.totalorder %v850, %v878
        %vm887 = vcmp.eq.s32.totalorder %v853, %v878
        %vm888 = vcmp.eq.s32.totalorder %v856, %v878
        %vm889 = vcmp.eq.s32.totalorder %v859, %v878
        %vm890 = vcmp.eq.s32.totalorder %v862, %v878
        %vm891 = vcmp.eq.s32.totalorder %v865, %v878
        %vm892 = vcmp.eq.s32.totalorder %v868, %v878
        %vm893 = vcmp.eq.s32.totalorder %v871, %v878
        %vm894 = vcmp.eq.s32.totalorder %v874, %v878
        %vm895 = vmand %vm795, %vm879
        %vm896 = vmand %vm796, %vm880
        %vm897 = vmand %vm797, %vm881
        %vm898 = vmand %vm798, %vm882
        %vm899 = vmand %vm799, %vm883
        %vm900 = vmand %vm800, %vm884
        %vm901 = vmand %vm801, %vm885
        %vm902 = vmand %vm802, %vm886
        %vm903 = vmand %vm803, %vm887
        %vm904 = vmand %vm804, %vm888
        %vm905 = vmand %vm805, %vm889
        %vm906 = vmand %vm806, %vm890
        %vm907 = vmand %vm807, %vm891
        %vm908 = vmand %vm808, %vm892
        %vm909 = vmand %vm809, %vm893
        %vm910 = vmand %vm810, %vm894
        %v911 = vld [vmem:[%s401] sm:$0xff]
        %v912 = vld [vmem:[%s401 + $0x8] sm:$0xff]
        %v913 = vld [vmem:[%s401 + $0x10] sm:$0xff]
        %v914 = vld [vmem:[%s401 + $0x18] sm:$0xff]
        %v915 = vld [vmem:[%s401 + $0x20] sm:$0xff]
        %v916 = vld [vmem:[%s401 + $0x28] sm:$0xff]
        %v917 = vld [vmem:[%s401 + $0x30] sm:$0xff]
        %v918 = vld [vmem:[%s401 + $0x38] sm:$0xff]
        %v919 = vld [vmem:[%s401 + $0x40] sm:$0xff]
        %v920 = vld [vmem:[%s401 + $0x48] sm:$0xff]
        %v921 = vld [vmem:[%s401 + $0x50] sm:$0xff]
        %v922 = vld [vmem:[%s401 + $0x58] sm:$0xff]
        %v923 = vld [vmem:[%s401 + $0x60] sm:$0xff]
        %v924 = vld [vmem:[%s401 + $0x68] sm:$0xff]
        %v925 = vld [vmem:[%s401 + $0x70] sm:$0xff]
        %v926 = vld [vmem:[%s401 + $0x78] sm:$0xff]
        %928 = vset.pattern.permute.xlu0 0
        %929 = vperm.xlu0 %928, %v911
        %v930 = vpop.permute.xlu0 %929
        %933 = vset.pattern.permute.xlu0 0
        %934 = vperm.xlu0 %933, %v912
        %v935 = vpop.permute.xlu0 %934
        %938 = vset.pattern.permute.xlu0 0
        %939 = vperm.xlu0 %938, %v913
        %v940 = vpop.permute.xlu0 %939
        %943 = vset.pattern.permute.xlu0 0
        %944 = vperm.xlu0 %943, %v914
        %v945 = vpop.permute.xlu0 %944
        %948 = vset.pattern.permute.xlu0 0
        %949 = vperm.xlu0 %948, %v915
        %v950 = vpop.permute.xlu0 %949
        %953 = vset.pattern.permute.xlu0 0
        %954 = vperm.xlu0 %953, %v916
        %v955 = vpop.permute.xlu0 %954
        %958 = vset.pattern.permute.xlu0 0
        %959 = vperm.xlu0 %958, %v917
        %v960 = vpop.permute.xlu0 %959
        %963 = vset.pattern.permute.xlu0 0
        %964 = vperm.xlu0 %963, %v918
        %v965 = vpop.permute.xlu0 %964
        %968 = vset.pattern.permute.xlu0 0
        %969 = vperm.xlu0 %968, %v919
        %v970 = vpop.permute.xlu0 %969
        %973 = vset.pattern.permute.xlu0 0
        %974 = vperm.xlu0 %973, %v920
        %v975 = vpop.permute.xlu0 %974
        %978 = vset.pattern.permute.xlu0 0
        %979 = vperm.xlu0 %978, %v921
        %v980 = vpop.permute.xlu0 %979
        %983 = vset.pattern.permute.xlu0 0
        %984 = vperm.xlu0 %983, %v922
        %v985 = vpop.permute.xlu0 %984
        %988 = vset.pattern.permute.xlu0 0
        %989 = vperm.xlu0 %988, %v923
        %v990 = vpop.permute.xlu0 %989
        %993 = vset.pattern.permute.xlu0 0
        %994 = vperm.xlu0 %993, %v924
        %v995 = vpop.permute.xlu0 %994
        %998 = vset.pattern.permute.xlu0 0
        %999 = vperm.xlu0 %998, %v925
        %v1000 = vpop.permute.xlu0 %999
        %1003 = vset.pattern.permute.xlu0 0
        %1004 = vperm.xlu0 %1003, %v926
        %v1005 = vpop.permute.xlu0 %1004
        %v1007 = vsel %vm895, %v930, -inf
        %v1008 = vsel %vm896, %v935, -inf
        %v1009 = vsel %vm897, %v940, -inf
        %v1010 = vsel %vm898, %v945, -inf
        %v1011 = vsel %vm899, %v950, -inf
        %v1012 = vsel %vm900, %v955, -inf
        %v1013 = vsel %vm901, %v960, -inf
        %v1014 = vsel %vm902, %v965, -inf
        %v1015 = vsel %vm903, %v970, -inf
        %v1016 = vsel %vm904, %v975, -inf
        %v1017 = vsel %vm905, %v980, -inf
        %v1018 = vsel %vm906, %v985, -inf
        %v1019 = vsel %vm907, %v990, -inf
        %v1020 = vsel %vm908, %v995, -inf
        %v1021 = vsel %vm909, %v1000, -inf
        %v1022 = vsel %vm910, %v1005, -inf
        %v1023 = vmax.f32 %v1007, %v1011
        %v1024 = vmax.f32 %v1008, %v1012
        %v1025 = vmax.f32 %v1009, %v1013
        %v1026 = vmax.f32 %v1010, %v1014
        %v1027 = vmax.f32 %v1023, %v1015
        %v1028 = vmax.f32 %v1024, %v1016
        %v1029 = vmax.f32 %v1025, %v1017
        %v1030 = vmax.f32 %v1026, %v1018
        %v1031 = vmax.f32 %v1027, %v1019
        %v1032 = vmax.f32 %v1028, %v1020
        %v1033 = vmax.f32 %v1029, %v1021
        %v1034 = vmax.f32 %v1030, %v1022
        %v1035 = vmax.f32 %v1031, %v1032
        %v1036 = vmax.f32 %v1033, %v1034
        %v1037 = vmax.f32 %v1035, %v1036
        %v1038 = vrot.slane %v1037, 4
        %v1039 = vmax.f32 %v1037, %v1038
        %v1040 = vrot.slane %v1039, 2
        %v1041 = vmax.f32 %v1039, %v1040
        %v1042 = vrot.slane %v1041, 1
        %v1043 = vmax.f32 %v1041, %v1042
        %v1044 = vld [vmem:[#allocation2] sm:$0x1]
        %v1045 = vmax.f32 %v1044, %v1043
        %1046 = vst [vmem:[#allocation2] sm:$0x1] %v1045
        %v1047 = vld [vmem:[%s401] sm:$0xff]
        %v1048 = vld [vmem:[%s401 + $0x8] sm:$0xff]
        %v1049 = vld [vmem:[%s401 + $0x10] sm:$0xff]
        %v1050 = vld [vmem:[%s401 + $0x18] sm:$0xff]
        %v1051 = vld [vmem:[%s401 + $0x20] sm:$0xff]
        %v1052 = vld [vmem:[%s401 + $0x28] sm:$0xff]
        %v1053 = vld [vmem:[%s401 + $0x30] sm:$0xff]
        %v1054 = vld [vmem:[%s401 + $0x38] sm:$0xff]
        %v1055 = vld [vmem:[%s401 + $0x40] sm:$0xff]
        %v1056 = vld [vmem:[%s401 + $0x48] sm:$0xff]
        %v1057 = vld [vmem:[%s401 + $0x50] sm:$0xff]
        %v1058 = vld [vmem:[%s401 + $0x58] sm:$0xff]
        %v1059 = vld [vmem:[%s401 + $0x60] sm:$0xff]
        %v1060 = vld [vmem:[%s401 + $0x68] sm:$0xff]
        %v1061 = vld [vmem:[%s401 + $0x70] sm:$0xff]
        %v1062 = vld [vmem:[%s401 + $0x78] sm:$0xff]
        %1064 = vset.pattern.permute.xlu0 1
        %1065 = vperm.xlu0 %1064, %v1047
        %v1066 = vpop.permute.xlu0 %1065
        %1069 = vset.pattern.permute.xlu0 1
        %1070 = vperm.xlu0 %1069, %v1048
        %v1071 = vpop.permute.xlu0 %1070
        %1074 = vset.pattern.permute.xlu0 1
        %1075 = vperm.xlu0 %1074, %v1049
        %v1076 = vpop.permute.xlu0 %1075
        %1079 = vset.pattern.permute.xlu0 1
        %1080 = vperm.xlu0 %1079, %v1050
        %v1081 = vpop.permute.xlu0 %1080
        %1084 = vset.pattern.permute.xlu0 1
        %1085 = vperm.xlu0 %1084, %v1051
        %v1086 = vpop.permute.xlu0 %1085
        %1089 = vset.pattern.permute.xlu0 1
        %1090 = vperm.xlu0 %1089, %v1052
        %v1091 = vpop.permute.xlu0 %1090
        %1094 = vset.pattern.permute.xlu0 1
        %1095 = vperm.xlu0 %1094, %v1053
        %v1096 = vpop.permute.xlu0 %1095
        %1099 = vset.pattern.permute.xlu0 1
        %1100 = vperm.xlu0 %1099, %v1054
        %v1101 = vpop.permute.xlu0 %1100
        %1104 = vset.pattern.permute.xlu0 1
        %1105 = vperm.xlu0 %1104, %v1055
        %v1106 = vpop.permute.xlu0 %1105
        %1109 = vset.pattern.permute.xlu0 1
        %1110 = vperm.xlu0 %1109, %v1056
        %v1111 = vpop.permute.xlu0 %1110
        %1114 = vset.pattern.permute.xlu0 1
        %1115 = vperm.xlu0 %1114, %v1057
        %v1116 = vpop.permute.xlu0 %1115
        %1119 = vset.pattern.permute.xlu0 1
        %1120 = vperm.xlu0 %1119, %v1058
        %v1121 = vpop.permute.xlu0 %1120
        %1124 = vset.pattern.permute.xlu0 1
        %1125 = vperm.xlu0 %1124, %v1059
        %v1126 = vpop.permute.xlu0 %1125
        %1129 = vset.pattern.permute.xlu0 1
        %1130 = vperm.xlu0 %1129, %v1060
        %v1131 = vpop.permute.xlu0 %1130
        %1134 = vset.pattern.permute.xlu0 1
        %1135 = vperm.xlu0 %1134, %v1061
        %v1136 = vpop.permute.xlu0 %1135
        %1139 = vset.pattern.permute.xlu0 1
        %1140 = vperm.xlu0 %1139, %v1062
        %v1141 = vpop.permute.xlu0 %1140
        %v1143 = vsel %vm895, %v1066, -inf
        %v1144 = vsel %vm896, %v1071, -inf
        %v1145 = vsel %vm897, %v1076, -inf
        %v1146 = vsel %vm898, %v1081, -inf
        %v1147 = vsel %vm899, %v1086, -inf
        %v1148 = vsel %vm900, %v1091, -inf
        %v1149 = vsel %vm901, %v1096, -inf
        %v1150 = vsel %vm902, %v1101, -inf
        %v1151 = vsel %vm903, %v1106, -inf
        %v1152 = vsel %vm904, %v1111, -inf
        %v1153 = vsel %vm905, %v1116, -inf
        %v1154 = vsel %vm906, %v1121, -inf
        %v1155 = vsel %vm907, %v1126, -inf
        %v1156 = vsel %vm908, %v1131, -inf
        %v1157 = vsel %vm909, %v1136, -inf
        %v1158 = vsel %vm910, %v1141, -inf
        %v1159 = vmax.f32 %v1143, %v1147
        %v1160 = vmax.f32 %v1144, %v1148
        %v1161 = vmax.f32 %v1145, %v1149
        %v1162 = vmax.f32 %v1146, %v1150
        %v1163 = vmax.f32 %v1159, %v1151
        %v1164 = vmax.f32 %v1160, %v1152
        %v1165 = vmax.f32 %v1161, %v1153
        %v1166 = vmax.f32 %v1162, %v1154
        %v1167 = vmax.f32 %v1163, %v1155
        %v1168 = vmax.f32 %v1164, %v1156
        %v1169 = vmax.f32 %v1165, %v1157
        %v1170 = vmax.f32 %v1166, %v1158
        %v1171 = vmax.f32 %v1167, %v1168
        %v1172 = vmax.f32 %v1169, %v1170
        %v1173 = vmax.f32 %v1171, %v1172
        %v1174 = vrot.slane %v1173, 4
        %v1175 = vmax.f32 %v1173, %v1174
        %v1176 = vrot.slane %v1175, 2
        %v1177 = vmax.f32 %v1175, %v1176
        %v1178 = vrot.slane %v1177, 1
        %v1179 = vmax.f32 %v1177, %v1178
        %v1180 = vld [vmem:[#allocation2 + $0x1] sm:$0x1]
        %v1181 = vmax.f32 %v1180, %v1179
        %1182 = vst [vmem:[#allocation2 + $0x1] sm:$0x1] %v1181
        %v1183 = vld [vmem:[%s401] sm:$0xff]
        %v1184 = vld [vmem:[%s401 + $0x8] sm:$0xff]
        %v1185 = vld [vmem:[%s401 + $0x10] sm:$0xff]
        %v1186 = vld [vmem:[%s401 + $0x18] sm:$0xff]
        %v1187 = vld [vmem:[%s401 + $0x20] sm:$0xff]
        %v1188 = vld [vmem:[%s401 + $0x28] sm:$0xff]
        %v1189 = vld [vmem:[%s401 + $0x30] sm:$0xff]
        %v1190 = vld [vmem:[%s401 + $0x38] sm:$0xff]
        %v1191 = vld [vmem:[%s401 + $0x40] sm:$0xff]
        %v1192 = vld [vmem:[%s401 + $0x48] sm:$0xff]
        %v1193 = vld [vmem:[%s401 + $0x50] sm:$0xff]
        %v1194 = vld [vmem:[%s401 + $0x58] sm:$0xff]
        %v1195 = vld [vmem:[%s401 + $0x60] sm:$0xff]
        %v1196 = vld [vmem:[%s401 + $0x68] sm:$0xff]
        %v1197 = vld [vmem:[%s401 + $0x70] sm:$0xff]
        %v1198 = vld [vmem:[%s401 + $0x78] sm:$0xff]
        %1200 = vset.pattern.permute.xlu0 2
        %1201 = vperm.xlu0 %1200, %v1183
        %v1202 = vpop.permute.xlu0 %1201
        %1205 = vset.pattern.permute.xlu0 2
        %1206 = vperm.xlu0 %1205, %v1184
        %v1207 = vpop.permute.xlu0 %1206
        %1210 = vset.pattern.permute.xlu0 2
        %1211 = vperm.xlu0 %1210, %v1185
        %v1212 = vpop.permute.xlu0 %1211
        %1215 = vset.pattern.permute.xlu0 2
        %1216 = vperm.xlu0 %1215, %v1186
        %v1217 = vpop.permute.xlu0 %1216
        %1220 = vset.pattern.permute.xlu0 2
        %1221 = vperm.xlu0 %1220, %v1187
        %v1222 = vpop.permute.xlu0 %1221
        %1225 = vset.pattern.permute.xlu0 2
        %1226 = vperm.xlu0 %1225, %v1188
        %v1227 = vpop.permute.xlu0 %1226
        %1230 = vset.pattern.permute.xlu0 2
        %1231 = vperm.xlu0 %1230, %v1189
        %v1232 = vpop.permute.xlu0 %1231
        %1235 = vset.pattern.permute.xlu0 2
        %1236 = vperm.xlu0 %1235, %v1190
        %v1237 = vpop.permute.xlu0 %1236
        %1240 = vset.pattern.permute.xlu0 2
        %1241 = vperm.xlu0 %1240, %v1191
        %v1242 = vpop.permute.xlu0 %1241
        %1245 = vset.pattern.permute.xlu0 2
        %1246 = vperm.xlu0 %1245, %v1192
        %v1247 = vpop.permute.xlu0 %1246
        %1250 = vset.pattern.permute.xlu0 2
        %1251 = vperm.xlu0 %1250, %v1193
        %v1252 = vpop.permute.xlu0 %1251
        %1255 = vset.pattern.permute.xlu0 2
        %1256 = vperm.xlu0 %1255, %v1194
        %v1257 = vpop.permute.xlu0 %1256
        %1260 = vset.pattern.permute.xlu0 2
        %1261 = vperm.xlu0 %1260, %v1195
        %v1262 = vpop.permute.xlu0 %1261
        %1265 = vset.pattern.permute.xlu0 2
        %1266 = vperm.xlu0 %1265, %v1196
        %v1267 = vpop.permute.xlu0 %1266
        %1270 = vset.pattern.permute.xlu0 2
        %1271 = vperm.xlu0 %1270, %v1197
        %v1272 = vpop.permute.xlu0 %1271
        %1275 = vset.pattern.permute.xlu0 2
        %1276 = vperm.xlu0 %1275, %v1198
        %v1277 = vpop.permute.xlu0 %1276
        %v1279 = vsel %vm895, %v1202, -inf
        %v1280 = vsel %vm896, %v1207, -inf
        %v1281 = vsel %vm897, %v1212, -inf
        %v1282 = vsel %vm898, %v1217, -inf
        %v1283 = vsel %vm899, %v1222, -inf
        %v1284 = vsel %vm900, %v1227, -inf
        %v1285 = vsel %vm901, %v1232, -inf
        %v1286 = vsel %vm902, %v1237, -inf
        %v1287 = vsel %vm903, %v1242, -inf
        %v1288 = vsel %vm904, %v1247, -inf
        %v1289 = vsel %vm905, %v1252, -inf
        %v1290 = vsel %vm906, %v1257, -inf
        %v1291 = vsel %vm907, %v1262, -inf
        %v1292 = vsel %vm908, %v1267, -inf
        %v1293 = vsel %vm909, %v1272, -inf
        %v1294 = vsel %vm910, %v1277, -inf
        %v1295 = vmax.f32 %v1279, %v1283
        %v1296 = vmax.f32 %v1280, %v1284
        %v1297 = vmax.f32 %v1281, %v1285
        %v1298 = vmax.f32 %v1282, %v1286
        %v1299 = vmax.f32 %v1295, %v1287
        %v1300 = vmax.f32 %v1296, %v1288
        %v1301 = vmax.f32 %v1297, %v1289
        %v1302 = vmax.f32 %v1298, %v1290
        %v1303 = vmax.f32 %v1299, %v1291
        %v1304 = vmax.f32 %v1300, %v1292
        %v1305 = vmax.f32 %v1301, %v1293
        %v1306 = vmax.f32 %v1302, %v1294
        %v1307 = vmax.f32 %v1303, %v1304
        %v1308 = vmax.f32 %v1305, %v1306
        %v1309 = vmax.f32 %v1307, %v1308
        %v1310 = vrot.slane %v1309, 4
        %v1311 = vmax.f32 %v1309, %v1310
        %v1312 = vrot.slane %v1311, 2
        %v1313 = vmax.f32 %v1311, %v1312
        %v1314 = vrot.slane %v1313, 1
        %v1315 = vmax.f32 %v1313, %v1314
        %v1316 = vld [vmem:[#allocation2 + $0x2] sm:$0x1]
        %v1317 = vmax.f32 %v1316, %v1315
        %1318 = vst [vmem:[#allocation2 + $0x2] sm:$0x1] %v1317
        %v1319 = vld [vmem:[%s401] sm:$0xff]
        %v1320 = vld [vmem:[%s401 + $0x8] sm:$0xff]
        %v1321 = vld [vmem:[%s401 + $0x10] sm:$0xff]
        %v1322 = vld [vmem:[%s401 + $0x18] sm:$0xff]
        %v1323 = vld [vmem:[%s401 + $0x20] sm:$0xff]
        %v1324 = vld [vmem:[%s401 + $0x28] sm:$0xff]
        %v1325 = vld [vmem:[%s401 + $0x30] sm:$0xff]
        %v1326 = vld [vmem:[%s401 + $0x38] sm:$0xff]
        %v1327 = vld [vmem:[%s401 + $0x40] sm:$0xff]
        %v1328 = vld [vmem:[%s401 + $0x48] sm:$0xff]
        %v1329 = vld [vmem:[%s401 + $0x50] sm:$0xff]
        %v1330 = vld [vmem:[%s401 + $0x58] sm:$0xff]
        %v1331 = vld [vmem:[%s401 + $0x60] sm:$0xff]
        %v1332 = vld [vmem:[%s401 + $0x68] sm:$0xff]
        %v1333 = vld [vmem:[%s401 + $0x70] sm:$0xff]
        %v1334 = vld [vmem:[%s401 + $0x78] sm:$0xff]
        %1336 = vset.pattern.permute.xlu0 3
        %1337 = vperm.xlu0 %1336, %v1319
        %v1338 = vpop.permute.xlu0 %1337
        %1341 = vset.pattern.permute.xlu0 3
        %1342 = vperm.xlu0 %1341, %v1320
        %v1343 = vpop.permute.xlu0 %1342
        %1346 = vset.pattern.permute.xlu0 3
        %1347 = vperm.xlu0 %1346, %v1321
        %v1348 = vpop.permute.xlu0 %1347
        %1351 = vset.pattern.permute.xlu0 3
        %1352 = vperm.xlu0 %1351, %v1322
        %v1353 = vpop.permute.xlu0 %1352
        %1356 = vset.pattern.permute.xlu0 3
        %1357 = vperm.xlu0 %1356, %v1323
        %v1358 = vpop.permute.xlu0 %1357
        %1361 = vset.pattern.permute.xlu0 3
        %1362 = vperm.xlu0 %1361, %v1324
        %v1363 = vpop.permute.xlu0 %1362
        %1366 = vset.pattern.permute.xlu0 3
        %1367 = vperm.xlu0 %1366, %v1325
        %v1368 = vpop.permute.xlu0 %1367
        %1371 = vset.pattern.permute.xlu0 3
        %1372 = vperm.xlu0 %1371, %v1326
        %v1373 = vpop.permute.xlu0 %1372
        %1376 = vset.pattern.permute.xlu0 3
        %1377 = vperm.xlu0 %1376, %v1327
        %v1378 = vpop.permute.xlu0 %1377
        %1381 = vset.pattern.permute.xlu0 3
        %1382 = vperm.xlu0 %1381, %v1328
        %v1383 = vpop.permute.xlu0 %1382
        %1386 = vset.pattern.permute.xlu0 3
        %1387 = vperm.xlu0 %1386, %v1329
        %v1388 = vpop.permute.xlu0 %1387
        %1391 = vset.pattern.permute.xlu0 3
        %1392 = vperm.xlu0 %1391, %v1330
        %v1393 = vpop.permute.xlu0 %1392
        %1396 = vset.pattern.permute.xlu0 3
        %1397 = vperm.xlu0 %1396, %v1331
        %v1398 = vpop.permute.xlu0 %1397
        %1401 = vset.pattern.permute.xlu0 3
        %1402 = vperm.xlu0 %1401, %v1332
        %v1403 = vpop.permute.xlu0 %1402
        %1406 = vset.pattern.permute.xlu0 3
        %1407 = vperm.xlu0 %1406, %v1333
        %v1408 = vpop.permute.xlu0 %1407
        %1411 = vset.pattern.permute.xlu0 3
        %1412 = vperm.xlu0 %1411, %v1334
        %v1413 = vpop.permute.xlu0 %1412
        %v1415 = vsel %vm895, %v1338, -inf
        %v1416 = vsel %vm896, %v1343, -inf
        %v1417 = vsel %vm897, %v1348, -inf
        %v1418 = vsel %vm898, %v1353, -inf
        %v1419 = vsel %vm899, %v1358, -inf
        %v1420 = vsel %vm900, %v1363, -inf
        %v1421 = vsel %vm901, %v1368, -inf
        %v1422 = vsel %vm902, %v1373, -inf
        %v1423 = vsel %vm903, %v1378, -inf
        %v1424 = vsel %vm904, %v1383, -inf
        %v1425 = vsel %vm905, %v1388, -inf
        %v1426 = vsel %vm906, %v1393, -inf
        %v1427 = vsel %vm907, %v1398, -inf
        %v1428 = vsel %vm908, %v1403, -inf
        %v1429 = vsel %vm909, %v1408, -inf
        %v1430 = vsel %vm910, %v1413, -inf
        %v1431 = vmax.f32 %v1415, %v1419
        %v1432 = vmax.f32 %v1416, %v1420
        %v1433 = vmax.f32 %v1417, %v1421
        %v1434 = vmax.f32 %v1418, %v1422
        %v1435 = vmax.f32 %v1431, %v1423
        %v1436 = vmax.f32 %v1432, %v1424
        %v1437 = vmax.f32 %v1433, %v1425
        %v1438 = vmax.f32 %v1434, %v1426
        %v1439 = vmax.f32 %v1435, %v1427
        %v1440 = vmax.f32 %v1436, %v1428
        %v1441 = vmax.f32 %v1437, %v1429
        %v1442 = vmax.f32 %v1438, %v1430
        %v1443 = vmax.f32 %v1439, %v1440
        %v1444 = vmax.f32 %v1441, %v1442
        %v1445 = vmax.f32 %v1443, %v1444
        %v1446 = vrot.slane %v1445, 4
        %v1447 = vmax.f32 %v1445, %v1446
        %v1448 = vrot.slane %v1447, 2
        %v1449 = vmax.f32 %v1447, %v1448
        %v1450 = vrot.slane %v1449, 1
        %v1451 = vmax.f32 %v1449, %v1450
        %v1452 = vld [vmem:[#allocation2 + $0x3] sm:$0x1]
        %v1453 = vmax.f32 %v1452, %v1451
        %1454 = vst [vmem:[#allocation2 + $0x3] sm:$0x1] %v1453
        %v1455 = vld [vmem:[%s401] sm:$0xff]
        %v1456 = vld [vmem:[%s401 + $0x8] sm:$0xff]
        %v1457 = vld [vmem:[%s401 + $0x10] sm:$0xff]
        %v1458 = vld [vmem:[%s401 + $0x18] sm:$0xff]
        %v1459 = vld [vmem:[%s401 + $0x20] sm:$0xff]
        %v1460 = vld [vmem:[%s401 + $0x28] sm:$0xff]
        %v1461 = vld [vmem:[%s401 + $0x30] sm:$0xff]
        %v1462 = vld [vmem:[%s401 + $0x38] sm:$0xff]
        %v1463 = vld [vmem:[%s401 + $0x40] sm:$0xff]
        %v1464 = vld [vmem:[%s401 + $0x48] sm:$0xff]
        %v1465 = vld [vmem:[%s401 + $0x50] sm:$0xff]
        %v1466 = vld [vmem:[%s401 + $0x58] sm:$0xff]
        %v1467 = vld [vmem:[%s401 + $0x60] sm:$0xff]
        %v1468 = vld [vmem:[%s401 + $0x68] sm:$0xff]
        %v1469 = vld [vmem:[%s401 + $0x70] sm:$0xff]
        %v1470 = vld [vmem:[%s401 + $0x78] sm:$0xff]
        %1472 = vset.pattern.permute.xlu0 4
        %1473 = vperm.xlu0 %1472, %v1455
        %v1474 = vpop.permute.xlu0 %1473
        %1477 = vset.pattern.permute.xlu0 4
        %1478 = vperm.xlu0 %1477, %v1456
        %v1479 = vpop.permute.xlu0 %1478
        %1482 = vset.pattern.permute.xlu0 4
        %1483 = vperm.xlu0 %1482, %v1457
        %v1484 = vpop.permute.xlu0 %1483
        %1487 = vset.pattern.permute.xlu0 4
        %1488 = vperm.xlu0 %1487, %v1458
        %v1489 = vpop.permute.xlu0 %1488
        %1492 = vset.pattern.permute.xlu0 4
        %1493 = vperm.xlu0 %1492, %v1459
        %v1494 = vpop.permute.xlu0 %1493
        %1497 = vset.pattern.permute.xlu0 4
        %1498 = vperm.xlu0 %1497, %v1460
        %v1499 = vpop.permute.xlu0 %1498
        %1502 = vset.pattern.permute.xlu0 4
        %1503 = vperm.xlu0 %1502, %v1461
        %v1504 = vpop.permute.xlu0 %1503
        %1507 = vset.pattern.permute.xlu0 4
        %1508 = vperm.xlu0 %1507, %v1462
        %v1509 = vpop.permute.xlu0 %1508
        %1512 = vset.pattern.permute.xlu0 4
        %1513 = vperm.xlu0 %1512, %v1463
        %v1514 = vpop.permute.xlu0 %1513
        %1517 = vset.pattern.permute.xlu0 4
        %1518 = vperm.xlu0 %1517, %v1464
        %v1519 = vpop.permute.xlu0 %1518
        %1522 = vset.pattern.permute.xlu0 4
        %1523 = vperm.xlu0 %1522, %v1465
        %v1524 = vpop.permute.xlu0 %1523
        %1527 = vset.pattern.permute.xlu0 4
        %1528 = vperm.xlu0 %1527, %v1466
        %v1529 = vpop.permute.xlu0 %1528
        %1532 = vset.pattern.permute.xlu0 4
        %1533 = vperm.xlu0 %1532, %v1467
        %v1534 = vpop.permute.xlu0 %1533
        %1537 = vset.pattern.permute.xlu0 4
        %1538 = vperm.xlu0 %1537, %v1468
        %v1539 = vpop.permute.xlu0 %1538
        %1542 = vset.pattern.permute.xlu0 4
        %1543 = vperm.xlu0 %1542, %v1469
        %v1544 = vpop.permute.xlu0 %1543
        %1547 = vset.pattern.permute.xlu0 4
        %1548 = vperm.xlu0 %1547, %v1470
        %v1549 = vpop.permute.xlu0 %1548
        %v1551 = vsel %vm895, %v1474, -inf
        %v1552 = vsel %vm896, %v1479, -inf
        %v1553 = vsel %vm897, %v1484, -inf
        %v1554 = vsel %vm898, %v1489, -inf
        %v1555 = vsel %vm899, %v1494, -inf
        %v1556 = vsel %vm900, %v1499, -inf
        %v1557 = vsel %vm901, %v1504, -inf
        %v1558 = vsel %vm902, %v1509, -inf
        %v1559 = vsel %vm903, %v1514, -inf
        %v1560 = vsel %vm904, %v1519, -inf
        %v1561 = vsel %vm905, %v1524, -inf
        %v1562 = vsel %vm906, %v1529, -inf
        %v1563 = vsel %vm907, %v1534, -inf
        %v1564 = vsel %vm908, %v1539, -inf
        %v1565 = vsel %vm909, %v1544, -inf
        %v1566 = vsel %vm910, %v1549, -inf
        %v1567 = vmax.f32 %v1551, %v1555
        %v1568 = vmax.f32 %v1552, %v1556
        %v1569 = vmax.f32 %v1553, %v1557
        %v1570 = vmax.f32 %v1554, %v1558
        %v1571 = vmax.f32 %v1567, %v1559
        %v1572 = vmax.f32 %v1568, %v1560
        %v1573 = vmax.f32 %v1569, %v1561
        %v1574 = vmax.f32 %v1570, %v1562
        %v1575 = vmax.f32 %v1571, %v1563
        %v1576 = vmax.f32 %v1572, %v1564
        %v1577 = vmax.f32 %v1573, %v1565
        %v1578 = vmax.f32 %v1574, %v1566
        %v1579 = vmax.f32 %v1575, %v1576
        %v1580 = vmax.f32 %v1577, %v1578
        %v1581 = vmax.f32 %v1579, %v1580
        %v1582 = vrot.slane %v1581, 4
        %v1583 = vmax.f32 %v1581, %v1582
        %v1584 = vrot.slane %v1583, 2
        %v1585 = vmax.f32 %v1583, %v1584
        %v1586 = vrot.slane %v1585, 1
        %v1587 = vmax.f32 %v1585, %v1586
        %v1588 = vld [vmem:[#allocation2 + $0x4] sm:$0x1]
        %v1589 = vmax.f32 %v1588, %v1587
        %1590 = vst [vmem:[#allocation2 + $0x4] sm:$0x1] %v1589
        %v1591 = vld [vmem:[%s401] sm:$0xff]
        %v1592 = vld [vmem:[%s401 + $0x8] sm:$0xff]
        %v1593 = vld [vmem:[%s401 + $0x10] sm:$0xff]
        %v1594 = vld [vmem:[%s401 + $0x18] sm:$0xff]
        %v1595 = vld [vmem:[%s401 + $0x20] sm:$0xff]
        %v1596 = vld [vmem:[%s401 + $0x28] sm:$0xff]
        %v1597 = vld [vmem:[%s401 + $0x30] sm:$0xff]
        %v1598 = vld [vmem:[%s401 + $0x38] sm:$0xff]
        %v1599 = vld [vmem:[%s401 + $0x40] sm:$0xff]
        %v1600 = vld [vmem:[%s401 + $0x48] sm:$0xff]
        %v1601 = vld [vmem:[%s401 + $0x50] sm:$0xff]
        %v1602 = vld [vmem:[%s401 + $0x58] sm:$0xff]
        %v1603 = vld [vmem:[%s401 + $0x60] sm:$0xff]
        %v1604 = vld [vmem:[%s401 + $0x68] sm:$0xff]
        %v1605 = vld [vmem:[%s401 + $0x70] sm:$0xff]
        %v1606 = vld [vmem:[%s401 + $0x78] sm:$0xff]
        %1608 = vset.pattern.permute.xlu0 5
        %1609 = vperm.xlu0 %1608, %v1591
        %v1610 = vpop.permute.xlu0 %1609
        %1613 = vset.pattern.permute.xlu0 5
        %1614 = vperm.xlu0 %1613, %v1592
        %v1615 = vpop.permute.xlu0 %1614
        %1618 = vset.pattern.permute.xlu0 5
        %1619 = vperm.xlu0 %1618, %v1593
        %v1620 = vpop.permute.xlu0 %1619
        %1623 = vset.pattern.permute.xlu0 5
        %1624 = vperm.xlu0 %1623, %v1594
        %v1625 = vpop.permute.xlu0 %1624
        %1628 = vset.pattern.permute.xlu0 5
        %1629 = vperm.xlu0 %1628, %v1595
        %v1630 = vpop.permute.xlu0 %1629
        %1633 = vset.pattern.permute.xlu0 5
        %1634 = vperm.xlu0 %1633, %v1596
        %v1635 = vpop.permute.xlu0 %1634
        %1638 = vset.pattern.permute.xlu0 5
        %1639 = vperm.xlu0 %1638, %v1597
        %v1640 = vpop.permute.xlu0 %1639
        %1643 = vset.pattern.permute.xlu0 5
        %1644 = vperm.xlu0 %1643, %v1598
        %v1645 = vpop.permute.xlu0 %1644
        %1648 = vset.pattern.permute.xlu0 5
        %1649 = vperm.xlu0 %1648, %v1599
        %v1650 = vpop.permute.xlu0 %1649
        %1653 = vset.pattern.permute.xlu0 5
        %1654 = vperm.xlu0 %1653, %v1600
        %v1655 = vpop.permute.xlu0 %1654
        %1658 = vset.pattern.permute.xlu0 5
        %1659 = vperm.xlu0 %1658, %v1601
        %v1660 = vpop.permute.xlu0 %1659
        %1663 = vset.pattern.permute.xlu0 5
        %1664 = vperm.xlu0 %1663, %v1602
        %v1665 = vpop.permute.xlu0 %1664
        %1668 = vset.pattern.permute.xlu0 5
        %1669 = vperm.xlu0 %1668, %v1603
        %v1670 = vpop.permute.xlu0 %1669
        %1673 = vset.pattern.permute.xlu0 5
        %1674 = vperm.xlu0 %1673, %v1604
        %v1675 = vpop.permute.xlu0 %1674
        %1678 = vset.pattern.permute.xlu0 5
        %1679 = vperm.xlu0 %1678, %v1605
        %v1680 = vpop.permute.xlu0 %1679
        %1683 = vset.pattern.permute.xlu0 5
        %1684 = vperm.xlu0 %1683, %v1606
        %v1685 = vpop.permute.xlu0 %1684
        %v1687 = vsel %vm895, %v1610, -inf
        %v1688 = vsel %vm896, %v1615, -inf
        %v1689 = vsel %vm897, %v1620, -inf
        %v1690 = vsel %vm898, %v1625, -inf
        %v1691 = vsel %vm899, %v1630, -inf
        %v1692 = vsel %vm900, %v1635, -inf
        %v1693 = vsel %vm901, %v1640, -inf
        %v1694 = vsel %vm902, %v1645, -inf
        %v1695 = vsel %vm903, %v1650, -inf
        %v1696 = vsel %vm904, %v1655, -inf
        %v1697 = vsel %vm905, %v1660, -inf
        %v1698 = vsel %vm906, %v1665, -inf
        %v1699 = vsel %vm907, %v1670, -inf
        %v1700 = vsel %vm908, %v1675, -inf
        %v1701 = vsel %vm909, %v1680, -inf
        %v1702 = vsel %vm910, %v1685, -inf
        %v1703 = vmax.f32 %v1687, %v1691
        %v1704 = vmax.f32 %v1688, %v1692
        %v1705 = vmax.f32 %v1689, %v1693
        %v1706 = vmax.f32 %v1690, %v1694
        %v1707 = vmax.f32 %v1703, %v1695
        %v1708 = vmax.f32 %v1704, %v1696
        %v1709 = vmax.f32 %v1705, %v1697
        %v1710 = vmax.f32 %v1706, %v1698
        %v1711 = vmax.f32 %v1707, %v1699
        %v1712 = vmax.f32 %v1708, %v1700
        %v1713 = vmax.f32 %v1709, %v1701
        %v1714 = vmax.f32 %v1710, %v1702
        %v1715 = vmax.f32 %v1711, %v1712
        %v1716 = vmax.f32 %v1713, %v1714
        %v1717 = vmax.f32 %v1715, %v1716
        %v1718 = vrot.slane %v1717, 4
        %v1719 = vmax.f32 %v1717, %v1718
        %v1720 = vrot.slane %v1719, 2
        %v1721 = vmax.f32 %v1719, %v1720
        %v1722 = vrot.slane %v1721, 1
        %v1723 = vmax.f32 %v1721, %v1722
        %v1724 = vld [vmem:[#allocation2 + $0x5] sm:$0x1]
        %v1725 = vmax.f32 %v1724, %v1723
        %1726 = vst [vmem:[#allocation2 + $0x5] sm:$0x1] %v1725
        %v1727 = vld [vmem:[%s401] sm:$0xff]
        %v1728 = vld [vmem:[%s401 + $0x8] sm:$0xff]
        %v1729 = vld [vmem:[%s401 + $0x10] sm:$0xff]
        %v1730 = vld [vmem:[%s401 + $0x18] sm:$0xff]
        %v1731 = vld [vmem:[%s401 + $0x20] sm:$0xff]
        %v1732 = vld [vmem:[%s401 + $0x28] sm:$0xff]
        %v1733 = vld [vmem:[%s401 + $0x30] sm:$0xff]
        %v1734 = vld [vmem:[%s401 + $0x38] sm:$0xff]
        %v1735 = vld [vmem:[%s401 + $0x40] sm:$0xff]
        %v1736 = vld [vmem:[%s401 + $0x48] sm:$0xff]
        %v1737 = vld [vmem:[%s401 + $0x50] sm:$0xff]
        %v1738 = vld [vmem:[%s401 + $0x58] sm:$0xff]
        %v1739 = vld [vmem:[%s401 + $0x60] sm:$0xff]
        %v1740 = vld [vmem:[%s401 + $0x68] sm:$0xff]
        %v1741 = vld [vmem:[%s401 + $0x70] sm:$0xff]
        %v1742 = vld [vmem:[%s401 + $0x78] sm:$0xff]
        %1744 = vset.pattern.permute.xlu0 6
        %1745 = vperm.xlu0 %1744, %v1727
        %v1746 = vpop.permute.xlu0 %1745
        %1749 = vset.pattern.permute.xlu0 6
        %1750 = vperm.xlu0 %1749, %v1728
        %v1751 = vpop.permute.xlu0 %1750
        %1754 = vset.pattern.permute.xlu0 6
        %1755 = vperm.xlu0 %1754, %v1729
        %v1756 = vpop.permute.xlu0 %1755
        %1759 = vset.pattern.permute.xlu0 6
        %1760 = vperm.xlu0 %1759, %v1730
        %v1761 = vpop.permute.xlu0 %1760
        %1764 = vset.pattern.permute.xlu0 6
        %1765 = vperm.xlu0 %1764, %v1731
        %v1766 = vpop.permute.xlu0 %1765
        %1769 = vset.pattern.permute.xlu0 6
        %1770 = vperm.xlu0 %1769, %v1732
        %v1771 = vpop.permute.xlu0 %1770
        %1774 = vset.pattern.permute.xlu0 6
        %1775 = vperm.xlu0 %1774, %v1733
        %v1776 = vpop.permute.xlu0 %1775
        %1779 = vset.pattern.permute.xlu0 6
        %1780 = vperm.xlu0 %1779, %v1734
        %v1781 = vpop.permute.xlu0 %1780
        %1784 = vset.pattern.permute.xlu0 6
        %1785 = vperm.xlu0 %1784, %v1735
        %v1786 = vpop.permute.xlu0 %1785
        %1789 = vset.pattern.permute.xlu0 6
        %1790 = vperm.xlu0 %1789, %v1736
        %v1791 = vpop.permute.xlu0 %1790
        %1794 = vset.pattern.permute.xlu0 6
        %1795 = vperm.xlu0 %1794, %v1737
        %v1796 = vpop.permute.xlu0 %1795
        %1799 = vset.pattern.permute.xlu0 6
        %1800 = vperm.xlu0 %1799, %v1738
        %v1801 = vpop.permute.xlu0 %1800
        %1804 = vset.pattern.permute.xlu0 6
        %1805 = vperm.xlu0 %1804, %v1739
        %v1806 = vpop.permute.xlu0 %1805
        %1809 = vset.pattern.permute.xlu0 6
        %1810 = vperm.xlu0 %1809, %v1740
        %v1811 = vpop.permute.xlu0 %1810
        %1814 = vset.pattern.permute.xlu0 6
        %1815 = vperm.xlu0 %1814, %v1741
        %v1816 = vpop.permute.xlu0 %1815
        %1819 = vset.pattern.permute.xlu0 6
        %1820 = vperm.xlu0 %1819, %v1742
        %v1821 = vpop.permute.xlu0 %1820
        %v1823 = vsel %vm895, %v1746, -inf
        %v1824 = vsel %vm896, %v1751, -inf
        %v1825 = vsel %vm897, %v1756, -inf
        %v1826 = vsel %vm898, %v1761, -inf
        %v1827 = vsel %vm899, %v1766, -inf
        %v1828 = vsel %vm900, %v1771, -inf
        %v1829 = vsel %vm901, %v1776, -inf
        %v1830 = vsel %vm902, %v1781, -inf
        %v1831 = vsel %vm903, %v1786, -inf
        %v1832 = vsel %vm904, %v1791, -inf
        %v1833 = vsel %vm905, %v1796, -inf
        %v1834 = vsel %vm906, %v1801, -inf
        %v1835 = vsel %vm907, %v1806, -inf
        %v1836 = vsel %vm908, %v1811, -inf
        %v1837 = vsel %vm909, %v1816, -inf
        %v1838 = vsel %vm910, %v1821, -inf
        %v1839 = vmax.f32 %v1823, %v1827
        %v1840 = vmax.f32 %v1824, %v1828
        %v1841 = vmax.f32 %v1825, %v1829
        %v1842 = vmax.f32 %v1826, %v1830
        %v1843 = vmax.f32 %v1839, %v1831
        %v1844 = vmax.f32 %v1840, %v1832
        %v1845 = vmax.f32 %v1841, %v1833
        %v1846 = vmax.f32 %v1842, %v1834
        %v1847 = vmax.f32 %v1843, %v1835
        %v1848 = vmax.f32 %v1844, %v1836
        %v1849 = vmax.f32 %v1845, %v1837
        %v1850 = vmax.f32 %v1846, %v1838
        %v1851 = vmax.f32 %v1847, %v1848
        %v1852 = vmax.f32 %v1849, %v1850
        %v1853 = vmax.f32 %v1851, %v1852
        %v1854 = vrot.slane %v1853, 4
        %v1855 = vmax.f32 %v1853, %v1854
        %v1856 = vrot.slane %v1855, 2
        %v1857 = vmax.f32 %v1855, %v1856
        %v1858 = vrot.slane %v1857, 1
        %v1859 = vmax.f32 %v1857, %v1858
        %v1860 = vld [vmem:[#allocation2 + $0x6] sm:$0x1]
        %v1861 = vmax.f32 %v1860, %v1859
        %1862 = vst [vmem:[#allocation2 + $0x6] sm:$0x1] %v1861
        %v1863 = vld [vmem:[%s401] sm:$0xff]
        %v1864 = vld [vmem:[%s401 + $0x8] sm:$0xff]
        %v1865 = vld [vmem:[%s401 + $0x10] sm:$0xff]
        %v1866 = vld [vmem:[%s401 + $0x18] sm:$0xff]
        %v1867 = vld [vmem:[%s401 + $0x20] sm:$0xff]
        %v1868 = vld [vmem:[%s401 + $0x28] sm:$0xff]
        %v1869 = vld [vmem:[%s401 + $0x30] sm:$0xff]
        %v1870 = vld [vmem:[%s401 + $0x38] sm:$0xff]
        %v1871 = vld [vmem:[%s401 + $0x40] sm:$0xff]
        %v1872 = vld [vmem:[%s401 + $0x48] sm:$0xff]
        %v1873 = vld [vmem:[%s401 + $0x50] sm:$0xff]
        %v1874 = vld [vmem:[%s401 + $0x58] sm:$0xff]
        %v1875 = vld [vmem:[%s401 + $0x60] sm:$0xff]
        %v1876 = vld [vmem:[%s401 + $0x68] sm:$0xff]
        %v1877 = vld [vmem:[%s401 + $0x70] sm:$0xff]
        %v1878 = vld [vmem:[%s401 + $0x78] sm:$0xff]
        %1880 = vset.pattern.permute.xlu0 7
        %1881 = vperm.xlu0 %1880, %v1863
        %v1882 = vpop.permute.xlu0 %1881
        %1885 = vset.pattern.permute.xlu0 7
        %1886 = vperm.xlu0 %1885, %v1864
        %v1887 = vpop.permute.xlu0 %1886
        %1890 = vset.pattern.permute.xlu0 7
        %1891 = vperm.xlu0 %1890, %v1865
        %v1892 = vpop.permute.xlu0 %1891
        %1895 = vset.pattern.permute.xlu0 7
        %1896 = vperm.xlu0 %1895, %v1866
        %v1897 = vpop.permute.xlu0 %1896
        %1900 = vset.pattern.permute.xlu0 7
        %1901 = vperm.xlu0 %1900, %v1867
        %v1902 = vpop.permute.xlu0 %1901
        %1905 = vset.pattern.permute.xlu0 7
        %1906 = vperm.xlu0 %1905, %v1868
        %v1907 = vpop.permute.xlu0 %1906
        %1910 = vset.pattern.permute.xlu0 7
        %1911 = vperm.xlu0 %1910, %v1869
        %v1912 = vpop.permute.xlu0 %1911
        %1915 = vset.pattern.permute.xlu0 7
        %1916 = vperm.xlu0 %1915, %v1870
        %v1917 = vpop.permute.xlu0 %1916
        %1920 = vset.pattern.permute.xlu0 7
        %1921 = vperm.xlu0 %1920, %v1871
        %v1922 = vpop.permute.xlu0 %1921
        %1925 = vset.pattern.permute.xlu0 7
        %1926 = vperm.xlu0 %1925, %v1872
        %v1927 = vpop.permute.xlu0 %1926
        %1930 = vset.pattern.permute.xlu0 7
        %1931 = vperm.xlu0 %1930, %v1873
        %v1932 = vpop.permute.xlu0 %1931
        %1935 = vset.pattern.permute.xlu0 7
        %1936 = vperm.xlu0 %1935, %v1874
        %v1937 = vpop.permute.xlu0 %1936
        %1940 = vset.pattern.permute.xlu0 7
        %1941 = vperm.xlu0 %1940, %v1875
        %v1942 = vpop.permute.xlu0 %1941
        %1945 = vset.pattern.permute.xlu0 7
        %1946 = vperm.xlu0 %1945, %v1876
        %v1947 = vpop.permute.xlu0 %1946
        %1950 = vset.pattern.permute.xlu0 7
        %1951 = vperm.xlu0 %1950, %v1877
        %v1952 = vpop.permute.xlu0 %1951
        %1955 = vset.pattern.permute.xlu0 7
        %1956 = vperm.xlu0 %1955, %v1878
        %v1957 = vpop.permute.xlu0 %1956
        %v1959 = vsel %vm895, %v1882, -inf
        %v1960 = vsel %vm896, %v1887, -inf
        %v1961 = vsel %vm897, %v1892, -inf
        %v1962 = vsel %vm898, %v1897, -inf
        %v1963 = vsel %vm899, %v1902, -inf
        %v1964 = vsel %vm900, %v1907, -inf
        %v1965 = vsel %vm901, %v1912, -inf
        %v1966 = vsel %vm902, %v1917, -inf
        %v1967 = vsel %vm903, %v1922, -inf
        %v1968 = vsel %vm904, %v1927, -inf
        %v1969 = vsel %vm905, %v1932, -inf
        %v1970 = vsel %vm906, %v1937, -inf
        %v1971 = vsel %vm907, %v1942, -inf
        %v1972 = vsel %vm908, %v1947, -inf
        %v1973 = vsel %vm909, %v1952, -inf
        %v1974 = vsel %vm910, %v1957, -inf
        %v1975 = vmax.f32 %v1959, %v1963
        %v1976 = vmax.f32 %v1960, %v1964
        %v1977 = vmax.f32 %v1961, %v1965
        %v1978 = vmax.f32 %v1962, %v1966
        %v1979 = vmax.f32 %v1975, %v1967
        %v1980 = vmax.f32 %v1976, %v1968
        %v1981 = vmax.f32 %v1977, %v1969
        %v1982 = vmax.f32 %v1978, %v1970
        %v1983 = vmax.f32 %v1979, %v1971
        %v1984 = vmax.f32 %v1980, %v1972
        %v1985 = vmax.f32 %v1981, %v1973
        %v1986 = vmax.f32 %v1982, %v1974
        %v1987 = vmax.f32 %v1983, %v1984
        %v1988 = vmax.f32 %v1985, %v1986
        %v1989 = vmax.f32 %v1987, %v1988
        %v1990 = vrot.slane %v1989, 4
        %v1991 = vmax.f32 %v1989, %v1990
        %v1992 = vrot.slane %v1991, 2
        %v1993 = vmax.f32 %v1991, %v1992
        %v1994 = vrot.slane %v1993, 1
        %v1995 = vmax.f32 %v1993, %v1994
        %v1996 = vld [vmem:[#allocation2 + $0x7] sm:$0x1]
        %v1997 = vmax.f32 %v1996, %v1995
        %1998 = vst [vmem:[#allocation2 + $0x7] sm:$0x1] %v1997
        %v1999 = vld [vmem:[%s401] sm:$0xff]
        %v2000 = vld [vmem:[%s401 + $0x8] sm:$0xff]
        %v2001 = vld [vmem:[%s401 + $0x10] sm:$0xff]
        %v2002 = vld [vmem:[%s401 + $0x18] sm:$0xff]
        %v2003 = vld [vmem:[%s401 + $0x20] sm:$0xff]
        %v2004 = vld [vmem:[%s401 + $0x28] sm:$0xff]
        %v2005 = vld [vmem:[%s401 + $0x30] sm:$0xff]
        %v2006 = vld [vmem:[%s401 + $0x38] sm:$0xff]
        %v2007 = vld [vmem:[%s401 + $0x40] sm:$0xff]
        %v2008 = vld [vmem:[%s401 + $0x48] sm:$0xff]
        %v2009 = vld [vmem:[%s401 + $0x50] sm:$0xff]
        %v2010 = vld [vmem:[%s401 + $0x58] sm:$0xff]
        %v2011 = vld [vmem:[%s401 + $0x60] sm:$0xff]
        %v2012 = vld [vmem:[%s401 + $0x68] sm:$0xff]
        %v2013 = vld [vmem:[%s401 + $0x70] sm:$0xff]
        %v2014 = vld [vmem:[%s401 + $0x78] sm:$0xff]
        %2016 = vset.pattern.permute.xlu0 8
        %2017 = vperm.xlu0 %2016, %v1999
        %v2018 = vpop.permute.xlu0 %2017
        %2021 = vset.pattern.permute.xlu0 8
        %2022 = vperm.xlu0 %2021, %v2000
        %v2023 = vpop.permute.xlu0 %2022
        %2026 = vset.pattern.permute.xlu0 8
        %2027 = vperm.xlu0 %2026, %v2001
        %v2028 = vpop.permute.xlu0 %2027
        %2031 = vset.pattern.permute.xlu0 8
        %2032 = vperm.xlu0 %2031, %v2002
        %v2033 = vpop.permute.xlu0 %2032
        %2036 = vset.pattern.permute.xlu0 8
        %2037 = vperm.xlu0 %2036, %v2003
        %v2038 = vpop.permute.xlu0 %2037
        %2041 = vset.pattern.permute.xlu0 8
        %2042 = vperm.xlu0 %2041, %v2004
        %v2043 = vpop.permute.xlu0 %2042
        %2046 = vset.pattern.permute.xlu0 8
        %2047 = vperm.xlu0 %2046, %v2005
        %v2048 = vpop.permute.xlu0 %2047
        %2051 = vset.pattern.permute.xlu0 8
        %2052 = vperm.xlu0 %2051, %v2006
        %v2053 = vpop.permute.xlu0 %2052
        %2056 = vset.pattern.permute.xlu0 8
        %2057 = vperm.xlu0 %2056, %v2007
        %v2058 = vpop.permute.xlu0 %2057
        %2061 = vset.pattern.permute.xlu0 8
        %2062 = vperm.xlu0 %2061, %v2008
        %v2063 = vpop.permute.xlu0 %2062
        %2066 = vset.pattern.permute.xlu0 8
        %2067 = vperm.xlu0 %2066, %v2009
        %v2068 = vpop.permute.xlu0 %2067
        %2071 = vset.pattern.permute.xlu0 8
        %2072 = vperm.xlu0 %2071, %v2010
        %v2073 = vpop.permute.xlu0 %2072
        %2076 = vset.pattern.permute.xlu0 8
        %2077 = vperm.xlu0 %2076, %v2011
        %v2078 = vpop.permute.xlu0 %2077
        %2081 = vset.pattern.permute.xlu0 8
        %2082 = vperm.xlu0 %2081, %v2012
        %v2083 = vpop.permute.xlu0 %2082
        %2086 = vset.pattern.permute.xlu0 8
        %2087 = vperm.xlu0 %2086, %v2013
        %v2088 = vpop.permute.xlu0 %2087
        %2091 = vset.pattern.permute.xlu0 8
        %2092 = vperm.xlu0 %2091, %v2014
        %v2093 = vpop.permute.xlu0 %2092
        %v2095 = vsel %vm895, %v2018, -inf
        %v2096 = vsel %vm896, %v2023, -inf
        %v2097 = vsel %vm897, %v2028, -inf
        %v2098 = vsel %vm898, %v2033, -inf
        %v2099 = vsel %vm899, %v2038, -inf
        %v2100 = vsel %vm900, %v2043, -inf
        %v2101 = vsel %vm901, %v2048, -inf
        %v2102 = vsel %vm902, %v2053, -inf
        %v2103 = vsel %vm903, %v2058, -inf
        %v2104 = vsel %vm904, %v2063, -inf
        %v2105 = vsel %vm905, %v2068, -inf
        %v2106 = vsel %vm906, %v2073, -inf
        %v2107 = vsel %vm907, %v2078, -inf
        %v2108 = vsel %vm908, %v2083, -inf
        %v2109 = vsel %vm909, %v2088, -inf
        %v2110 = vsel %vm910, %v2093, -inf
        %v2111 = vmax.f32 %v2095, %v2099
        %v2112 = vmax.f32 %v2096, %v2100
        %v2113 = vmax.f32 %v2097, %v2101
        %v2114 = vmax.f32 %v2098, %v2102
        %v2115 = vmax.f32 %v2111, %v2103
        %v2116 = vmax.f32 %v2112, %v2104
        %v2117 = vmax.f32 %v2113, %v2105
        %v2118 = vmax.f32 %v2114, %v2106
        %v2119 = vmax.f32 %v2115, %v2107
        %v2120 = vmax.f32 %v2116, %v2108
        %v2121 = vmax.f32 %v2117, %v2109
        %v2122 = vmax.f32 %v2118, %v2110
        %v2123 = vmax.f32 %v2119, %v2120
        %v2124 = vmax.f32 %v2121, %v2122
        %v2125 = vmax.f32 %v2123, %v2124
        %v2126 = vrot.slane %v2125, 4
        %v2127 = vmax.f32 %v2125, %v2126
        %v2128 = vrot.slane %v2127, 2
        %v2129 = vmax.f32 %v2127, %v2128
        %v2130 = vrot.slane %v2129, 1
        %v2131 = vmax.f32 %v2129, %v2130
        %v2132 = vld [vmem:[#allocation2 + $0x8] sm:$0x1]
        %v2133 = vmax.f32 %v2132, %v2131
        %2134 = vst [vmem:[#allocation2 + $0x8] sm:$0x1] %v2133
        %v2135 = vld [vmem:[%s401] sm:$0xff]
        %v2136 = vld [vmem:[%s401 + $0x8] sm:$0xff]
        %v2137 = vld [vmem:[%s401 + $0x10] sm:$0xff]
        %v2138 = vld [vmem:[%s401 + $0x18] sm:$0xff]
        %v2139 = vld [vmem:[%s401 + $0x20] sm:$0xff]
        %v2140 = vld [vmem:[%s401 + $0x28] sm:$0xff]
        %v2141 = vld [vmem:[%s401 + $0x30] sm:$0xff]
        %v2142 = vld [vmem:[%s401 + $0x38] sm:$0xff]
        %v2143 = vld [vmem:[%s401 + $0x40] sm:$0xff]
        %v2144 = vld [vmem:[%s401 + $0x48] sm:$0xff]
        %v2145 = vld [vmem:[%s401 + $0x50] sm:$0xff]
        %v2146 = vld [vmem:[%s401 + $0x58] sm:$0xff]
        %v2147 = vld [vmem:[%s401 + $0x60] sm:$0xff]
        %v2148 = vld [vmem:[%s401 + $0x68] sm:$0xff]
        %v2149 = vld [vmem:[%s401 + $0x70] sm:$0xff]
        %v2150 = vld [vmem:[%s401 + $0x78] sm:$0xff]
        %2152 = vset.pattern.permute.xlu0 9
        %2153 = vperm.xlu0 %2152, %v2135
        %v2154 = vpop.permute.xlu0 %2153
        %2157 = vset.pattern.permute.xlu0 9
        %2158 = vperm.xlu0 %2157, %v2136
        %v2159 = vpop.permute.xlu0 %2158
        %2162 = vset.pattern.permute.xlu0 9
        %2163 = vperm.xlu0 %2162, %v2137
        %v2164 = vpop.permute.xlu0 %2163
        %2167 = vset.pattern.permute.xlu0 9
        %2168 = vperm.xlu0 %2167, %v2138
        %v2169 = vpop.permute.xlu0 %2168
        %2172 = vset.pattern.permute.xlu0 9
        %2173 = vperm.xlu0 %2172, %v2139
        %v2174 = vpop.permute.xlu0 %2173
        %2177 = vset.pattern.permute.xlu0 9
        %2178 = vperm.xlu0 %2177, %v2140
        %v2179 = vpop.permute.xlu0 %2178
        %2182 = vset.pattern.permute.xlu0 9
        %2183 = vperm.xlu0 %2182, %v2141
        %v2184 = vpop.permute.xlu0 %2183
        %2187 = vset.pattern.permute.xlu0 9
        %2188 = vperm.xlu0 %2187, %v2142
        %v2189 = vpop.permute.xlu0 %2188
        %2192 = vset.pattern.permute.xlu0 9
        %2193 = vperm.xlu0 %2192, %v2143
        %v2194 = vpop.permute.xlu0 %2193
        %2197 = vset.pattern.permute.xlu0 9
        %2198 = vperm.xlu0 %2197, %v2144
        %v2199 = vpop.permute.xlu0 %2198
        %2202 = vset.pattern.permute.xlu0 9
        %2203 = vperm.xlu0 %2202, %v2145
        %v2204 = vpop.permute.xlu0 %2203
        %2207 = vset.pattern.permute.xlu0 9
        %2208 = vperm.xlu0 %2207, %v2146
        %v2209 = vpop.permute.xlu0 %2208
        %2212 = vset.pattern.permute.xlu0 9
        %2213 = vperm.xlu0 %2212, %v2147
        %v2214 = vpop.permute.xlu0 %2213
        %2217 = vset.pattern.permute.xlu0 9
        %2218 = vperm.xlu0 %2217, %v2148
        %v2219 = vpop.permute.xlu0 %2218
        %2222 = vset.pattern.permute.xlu0 9
        %2223 = vperm.xlu0 %2222, %v2149
        %v2224 = vpop.permute.xlu0 %2223
        %2227 = vset.pattern.permute.xlu0 9
        %2228 = vperm.xlu0 %2227, %v2150
        %v2229 = vpop.permute.xlu0 %2228
        %v2231 = vsel %vm895, %v2154, -inf
        %v2232 = vsel %vm896, %v2159, -inf
        %v2233 = vsel %vm897, %v2164, -inf
        %v2234 = vsel %vm898, %v2169, -inf
        %v2235 = vsel %vm899, %v2174, -inf
        %v2236 = vsel %vm900, %v2179, -inf
        %v2237 = vsel %vm901, %v2184, -inf
        %v2238 = vsel %vm902, %v2189, -inf
        %v2239 = vsel %vm903, %v2194, -inf
        %v2240 = vsel %vm904, %v2199, -inf
        %v2241 = vsel %vm905, %v2204, -inf
        %v2242 = vsel %vm906, %v2209, -inf
        %v2243 = vsel %vm907, %v2214, -inf
        %v2244 = vsel %vm908, %v2219, -inf
        %v2245 = vsel %vm909, %v2224, -inf
        %v2246 = vsel %vm910, %v2229, -inf
        %v2247 = vmax.f32 %v2231, %v2235
        %v2248 = vmax.f32 %v2232, %v2236
        %v2249 = vmax.f32 %v2233, %v2237
        %v2250 = vmax.f32 %v2234, %v2238
        %v2251 = vmax.f32 %v2247, %v2239
        %v2252 = vmax.f32 %v2248, %v2240
        %v2253 = vmax.f32 %v2249, %v2241
        %v2254 = vmax.f32 %v2250, %v2242
        %v2255 = vmax.f32 %v2251, %v2243
        %v2256 = vmax.f32 %v2252, %v2244
        %v2257 = vmax.f32 %v2253, %v2245
        %v2258 = vmax.f32 %v2254, %v2246
        %v2259 = vmax.f32 %v2255, %v2256
        %v2260 = vmax.f32 %v2257, %v2258
        %v2261 = vmax.f32 %v2259, %v2260
        %v2262 = vrot.slane %v2261, 4
        %v2263 = vmax.f32 %v2261, %v2262
        %v2264 = vrot.slane %v2263, 2
        %v2265 = vmax.f32 %v2263, %v2264
        %v2266 = vrot.slane %v2265, 1
        %v2267 = vmax.f32 %v2265, %v2266
        %v2268 = vld [vmem:[#allocation2 + $0x9] sm:$0x1]
        %v2269 = vmax.f32 %v2268, %v2267
        %2270 = vst [vmem:[#allocation2 + $0x9] sm:$0x1] %v2269
        %v2271 = vld [vmem:[%s401] sm:$0xff]
        %v2272 = vld [vmem:[%s401 + $0x8] sm:$0xff]
        %v2273 = vld [vmem:[%s401 + $0x10] sm:$0xff]
        %v2274 = vld [vmem:[%s401 + $0x18] sm:$0xff]
        %v2275 = vld [vmem:[%s401 + $0x20] sm:$0xff]
        %v2276 = vld [vmem:[%s401 + $0x28] sm:$0xff]
        %v2277 = vld [vmem:[%s401 + $0x30] sm:$0xff]
        %v2278 = vld [vmem:[%s401 + $0x38] sm:$0xff]
        %v2279 = vld [vmem:[%s401 + $0x40] sm:$0xff]
        %v2280 = vld [vmem:[%s401 + $0x48] sm:$0xff]
        %v2281 = vld [vmem:[%s401 + $0x50] sm:$0xff]
        %v2282 = vld [vmem:[%s401 + $0x58] sm:$0xff]
        %v2283 = vld [vmem:[%s401 + $0x60] sm:$0xff]
        %v2284 = vld [vmem:[%s401 + $0x68] sm:$0xff]
        %v2285 = vld [vmem:[%s401 + $0x70] sm:$0xff]
        %v2286 = vld [vmem:[%s401 + $0x78] sm:$0xff]
        %2288 = vset.pattern.permute.xlu0 10
        %2289 = vperm.xlu0 %2288, %v2271
        %v2290 = vpop.permute.xlu0 %2289
        %2293 = vset.pattern.permute.xlu0 10
        %2294 = vperm.xlu0 %2293, %v2272
        %v2295 = vpop.permute.xlu0 %2294
        %2298 = vset.pattern.permute.xlu0 10
        %2299 = vperm.xlu0 %2298, %v2273
        %v2300 = vpop.permute.xlu0 %2299
        %2303 = vset.pattern.permute.xlu0 10
        %2304 = vperm.xlu0 %2303, %v2274
        %v2305 = vpop.permute.xlu0 %2304
        %2308 = vset.pattern.permute.xlu0 10
        %2309 = vperm.xlu0 %2308, %v2275
        %v2310 = vpop.permute.xlu0 %2309
        %2313 = vset.pattern.permute.xlu0 10
        %2314 = vperm.xlu0 %2313, %v2276
        %v2315 = vpop.permute.xlu0 %2314
        %2318 = vset.pattern.permute.xlu0 10
        %2319 = vperm.xlu0 %2318, %v2277
        %v2320 = vpop.permute.xlu0 %2319
        %2323 = vset.pattern.permute.xlu0 10
        %2324 = vperm.xlu0 %2323, %v2278
        %v2325 = vpop.permute.xlu0 %2324
        %2328 = vset.pattern.permute.xlu0 10
        %2329 = vperm.xlu0 %2328, %v2279
        %v2330 = vpop.permute.xlu0 %2329
        %2333 = vset.pattern.permute.xlu0 10
        %2334 = vperm.xlu0 %2333, %v2280
        %v2335 = vpop.permute.xlu0 %2334
        %2338 = vset.pattern.permute.xlu0 10
        %2339 = vperm.xlu0 %2338, %v2281
        %v2340 = vpop.permute.xlu0 %2339
        %2343 = vset.pattern.permute.xlu0 10
        %2344 = vperm.xlu0 %2343, %v2282
        %v2345 = vpop.permute.xlu0 %2344
        %2348 = vset.pattern.permute.xlu0 10
        %2349 = vperm.xlu0 %2348, %v2283
        %v2350 = vpop.permute.xlu0 %2349
        %2353 = vset.pattern.permute.xlu0 10
        %2354 = vperm.xlu0 %2353, %v2284
        %v2355 = vpop.permute.xlu0 %2354
        %2358 = vset.pattern.permute.xlu0 10
        %2359 = vperm.xlu0 %2358, %v2285
        %v2360 = vpop.permute.xlu0 %2359
        %2363 = vset.pattern.permute.xlu0 10
        %2364 = vperm.xlu0 %2363, %v2286
        %v2365 = vpop.permute.xlu0 %2364
        %v2367 = vsel %vm895, %v2290, -inf
        %v2368 = vsel %vm896, %v2295, -inf
        %v2369 = vsel %vm897, %v2300, -inf
        %v2370 = vsel %vm898, %v2305, -inf
        %v2371 = vsel %vm899, %v2310, -inf
        %v2372 = vsel %vm900, %v2315, -inf
        %v2373 = vsel %vm901, %v2320, -inf
        %v2374 = vsel %vm902, %v2325, -inf
        %v2375 = vsel %vm903, %v2330, -inf
        %v2376 = vsel %vm904, %v2335, -inf
        %v2377 = vsel %vm905, %v2340, -inf
        %v2378 = vsel %vm906, %v2345, -inf
        %v2379 = vsel %vm907, %v2350, -inf
        %v2380 = vsel %vm908, %v2355, -inf
        %v2381 = vsel %vm909, %v2360, -inf
        %v2382 = vsel %vm910, %v2365, -inf
        %v2383 = vmax.f32 %v2367, %v2371
        %v2384 = vmax.f32 %v2368, %v2372
        %v2385 = vmax.f32 %v2369, %v2373
        %v2386 = vmax.f32 %v2370, %v2374
        %v2387 = vmax.f32 %v2383, %v2375
        %v2388 = vmax.f32 %v2384, %v2376
        %v2389 = vmax.f32 %v2385, %v2377
        %v2390 = vmax.f32 %v2386, %v2378
        %v2391 = vmax.f32 %v2387, %v2379
        %v2392 = vmax.f32 %v2388, %v2380
        %v2393 = vmax.f32 %v2389, %v2381
        %v2394 = vmax.f32 %v2390, %v2382
        %v2395 = vmax.f32 %v2391, %v2392
        %v2396 = vmax.f32 %v2393, %v2394
        %v2397 = vmax.f32 %v2395, %v2396
        %v2398 = vrot.slane %v2397, 4
        %v2399 = vmax.f32 %v2397, %v2398
        %v2400 = vrot.slane %v2399, 2
        %v2401 = vmax.f32 %v2399, %v2400
        %v2402 = vrot.slane %v2401, 1
        %v2403 = vmax.f32 %v2401, %v2402
        %v2404 = vld [vmem:[#allocation2 + $0xa] sm:$0x1]
        %v2405 = vmax.f32 %v2404, %v2403
        %2406 = vst [vmem:[#allocation2 + $0xa] sm:$0x1] %v2405
        %v2407 = vld [vmem:[%s401] sm:$0xff]
        %v2408 = vld [vmem:[%s401 + $0x8] sm:$0xff]
        %v2409 = vld [vmem:[%s401 + $0x10] sm:$0xff]
        %v2410 = vld [vmem:[%s401 + $0x18] sm:$0xff]
        %v2411 = vld [vmem:[%s401 + $0x20] sm:$0xff]
        %v2412 = vld [vmem:[%s401 + $0x28] sm:$0xff]
        %v2413 = vld [vmem:[%s401 + $0x30] sm:$0xff]
        %v2414 = vld [vmem:[%s401 + $0x38] sm:$0xff]
        %v2415 = vld [vmem:[%s401 + $0x40] sm:$0xff]
        %v2416 = vld [vmem:[%s401 + $0x48] sm:$0xff]
        %v2417 = vld [vmem:[%s401 + $0x50] sm:$0xff]
        %v2418 = vld [vmem:[%s401 + $0x58] sm:$0xff]
        %v2419 = vld [vmem:[%s401 + $0x60] sm:$0xff]
        %v2420 = vld [vmem:[%s401 + $0x68] sm:$0xff]
        %v2421 = vld [vmem:[%s401 + $0x70] sm:$0xff]
        %v2422 = vld [vmem:[%s401 + $0x78] sm:$0xff]
        %2424 = vset.pattern.permute.xlu0 11
        %2425 = vperm.xlu0 %2424, %v2407
        %v2426 = vpop.permute.xlu0 %2425
        %2429 = vset.pattern.permute.xlu0 11
        %2430 = vperm.xlu0 %2429, %v2408
        %v2431 = vpop.permute.xlu0 %2430
        %2434 = vset.pattern.permute.xlu0 11
        %2435 = vperm.xlu0 %2434, %v2409
        %v2436 = vpop.permute.xlu0 %2435
        %2439 = vset.pattern.permute.xlu0 11
        %2440 = vperm.xlu0 %2439, %v2410
        %v2441 = vpop.permute.xlu0 %2440
        %2444 = vset.pattern.permute.xlu0 11
        %2445 = vperm.xlu0 %2444, %v2411
        %v2446 = vpop.permute.xlu0 %2445
        %2449 = vset.pattern.permute.xlu0 11
        %2450 = vperm.xlu0 %2449, %v2412
        %v2451 = vpop.permute.xlu0 %2450
        %2454 = vset.pattern.permute.xlu0 11
        %2455 = vperm.xlu0 %2454, %v2413
        %v2456 = vpop.permute.xlu0 %2455
        %2459 = vset.pattern.permute.xlu0 11
        %2460 = vperm.xlu0 %2459, %v2414
        %v2461 = vpop.permute.xlu0 %2460
        %2464 = vset.pattern.permute.xlu0 11
        %2465 = vperm.xlu0 %2464, %v2415
        %v2466 = vpop.permute.xlu0 %2465
        %2469 = vset.pattern.permute.xlu0 11
        %2470 = vperm.xlu0 %2469, %v2416
        %v2471 = vpop.permute.xlu0 %2470
        %2474 = vset.pattern.permute.xlu0 11
        %2475 = vperm.xlu0 %2474, %v2417
        %v2476 = vpop.permute.xlu0 %2475
        %2479 = vset.pattern.permute.xlu0 11
        %2480 = vperm.xlu0 %2479, %v2418
        %v2481 = vpop.permute.xlu0 %2480
        %2484 = vset.pattern.permute.xlu0 11
        %2485 = vperm.xlu0 %2484, %v2419
        %v2486 = vpop.permute.xlu0 %2485
        %2489 = vset.pattern.permute.xlu0 11
        %2490 = vperm.xlu0 %2489, %v2420
        %v2491 = vpop.permute.xlu0 %2490
        %2494 = vset.pattern.permute.xlu0 11
        %2495 = vperm.xlu0 %2494, %v2421
        %v2496 = vpop.permute.xlu0 %2495
        %2499 = vset.pattern.permute.xlu0 11
        %2500 = vperm.xlu0 %2499, %v2422
        %v2501 = vpop.permute.xlu0 %2500
        %v2503 = vsel %vm895, %v2426, -inf
        %v2504 = vsel %vm896, %v2431, -inf
        %v2505 = vsel %vm897, %v2436, -inf
        %v2506 = vsel %vm898, %v2441, -inf
        %v2507 = vsel %vm899, %v2446, -inf
        %v2508 = vsel %vm900, %v2451, -inf
        %v2509 = vsel %vm901, %v2456, -inf
        %v2510 = vsel %vm902, %v2461, -inf
        %v2511 = vsel %vm903, %v2466, -inf
        %v2512 = vsel %vm904, %v2471, -inf
        %v2513 = vsel %vm905, %v2476, -inf
        %v2514 = vsel %vm906, %v2481, -inf
        %v2515 = vsel %vm907, %v2486, -inf
        %v2516 = vsel %vm908, %v2491, -inf
        %v2517 = vsel %vm909, %v2496, -inf
        %v2518 = vsel %vm910, %v2501, -inf
        %v2519 = vmax.f32 %v2503, %v2507
        %v2520 = vmax.f32 %v2504, %v2508
        %v2521 = vmax.f32 %v2505, %v2509
        %v2522 = vmax.f32 %v2506, %v2510
        %v2523 = vmax.f32 %v2519, %v2511
        %v2524 = vmax.f32 %v2520, %v2512
        %v2525 = vmax.f32 %v2521, %v2513
        %v2526 = vmax.f32 %v2522, %v2514
        %v2527 = vmax.f32 %v2523, %v2515
        %v2528 = vmax.f32 %v2524, %v2516
        %v2529 = vmax.f32 %v2525, %v2517
        %v2530 = vmax.f32 %v2526, %v2518
        %v2531 = vmax.f32 %v2527, %v2528
        %v2532 = vmax.f32 %v2529, %v2530
        %v2533 = vmax.f32 %v2531, %v2532
        %v2534 = vrot.slane %v2533, 4
        %v2535 = vmax.f32 %v2533, %v2534
        %v2536 = vrot.slane %v2535, 2
        %v2537 = vmax.f32 %v2535, %v2536
        %v2538 = vrot.slane %v2537, 1
        %v2539 = vmax.f32 %v2537, %v2538
        %v2540 = vld [vmem:[#allocation2 + $0xb] sm:$0x1]
        %v2541 = vmax.f32 %v2540, %v2539
        %2542 = vst [vmem:[#allocation2 + $0xb] sm:$0x1] %v2541
        %v2543 = vld [vmem:[%s401] sm:$0xff]
        %v2544 = vld [vmem:[%s401 + $0x8] sm:$0xff]
        %v2545 = vld [vmem:[%s401 + $0x10] sm:$0xff]
        %v2546 = vld [vmem:[%s401 + $0x18] sm:$0xff]
        %v2547 = vld [vmem:[%s401 + $0x20] sm:$0xff]
        %v2548 = vld [vmem:[%s401 + $0x28] sm:$0xff]
        %v2549 = vld [vmem:[%s401 + $0x30] sm:$0xff]
        %v2550 = vld [vmem:[%s401 + $0x38] sm:$0xff]
        %v2551 = vld [vmem:[%s401 + $0x40] sm:$0xff]
        %v2552 = vld [vmem:[%s401 + $0x48] sm:$0xff]
        %v2553 = vld [vmem:[%s401 + $0x50] sm:$0xff]
        %v2554 = vld [vmem:[%s401 + $0x58] sm:$0xff]
        %v2555 = vld [vmem:[%s401 + $0x60] sm:$0xff]
        %v2556 = vld [vmem:[%s401 + $0x68] sm:$0xff]
        %v2557 = vld [vmem:[%s401 + $0x70] sm:$0xff]
        %v2558 = vld [vmem:[%s401 + $0x78] sm:$0xff]
        %2560 = vset.pattern.permute.xlu0 12
        %2561 = vperm.xlu0 %2560, %v2543
        %v2562 = vpop.permute.xlu0 %2561
        %2565 = vset.pattern.permute.xlu0 12
        %2566 = vperm.xlu0 %2565, %v2544
        %v2567 = vpop.permute.xlu0 %2566
        %2570 = vset.pattern.permute.xlu0 12
        %2571 = vperm.xlu0 %2570, %v2545
        %v2572 = vpop.permute.xlu0 %2571
        %2575 = vset.pattern.permute.xlu0 12
        %2576 = vperm.xlu0 %2575, %v2546
        %v2577 = vpop.permute.xlu0 %2576
        %2580 = vset.pattern.permute.xlu0 12
        %2581 = vperm.xlu0 %2580, %v2547
        %v2582 = vpop.permute.xlu0 %2581
        %2585 = vset.pattern.permute.xlu0 12
        %2586 = vperm.xlu0 %2585, %v2548
        %v2587 = vpop.permute.xlu0 %2586
        %2590 = vset.pattern.permute.xlu0 12
        %2591 = vperm.xlu0 %2590, %v2549
        %v2592 = vpop.permute.xlu0 %2591
        %2595 = vset.pattern.permute.xlu0 12
        %2596 = vperm.xlu0 %2595, %v2550
        %v2597 = vpop.permute.xlu0 %2596
        %2600 = vset.pattern.permute.xlu0 12
        %2601 = vperm.xlu0 %2600, %v2551
        %v2602 = vpop.permute.xlu0 %2601
        %2605 = vset.pattern.permute.xlu0 12
        %2606 = vperm.xlu0 %2605, %v2552
        %v2607 = vpop.permute.xlu0 %2606
        %2610 = vset.pattern.permute.xlu0 12
        %2611 = vperm.xlu0 %2610, %v2553
        %v2612 = vpop.permute.xlu0 %2611
        %2615 = vset.pattern.permute.xlu0 12
        %2616 = vperm.xlu0 %2615, %v2554
        %v2617 = vpop.permute.xlu0 %2616
        %2620 = vset.pattern.permute.xlu0 12
        %2621 = vperm.xlu0 %2620, %v2555
        %v2622 = vpop.permute.xlu0 %2621
        %2625 = vset.pattern.permute.xlu0 12
        %2626 = vperm.xlu0 %2625, %v2556
        %v2627 = vpop.permute.xlu0 %2626
        %2630 = vset.pattern.permute.xlu0 12
        %2631 = vperm.xlu0 %2630, %v2557
        %v2632 = vpop.permute.xlu0 %2631
        %2635 = vset.pattern.permute.xlu0 12
        %2636 = vperm.xlu0 %2635, %v2558
        %v2637 = vpop.permute.xlu0 %2636
        %v2639 = vsel %vm895, %v2562, -inf
        %v2640 = vsel %vm896, %v2567, -inf
        %v2641 = vsel %vm897, %v2572, -inf
        %v2642 = vsel %vm898, %v2577, -inf
        %v2643 = vsel %vm899, %v2582, -inf
        %v2644 = vsel %vm900, %v2587, -inf
        %v2645 = vsel %vm901, %v2592, -inf
        %v2646 = vsel %vm902, %v2597, -inf
        %v2647 = vsel %vm903, %v2602, -inf
        %v2648 = vsel %vm904, %v2607, -inf
        %v2649 = vsel %vm905, %v2612, -inf
        %v2650 = vsel %vm906, %v2617, -inf
        %v2651 = vsel %vm907, %v2622, -inf
        %v2652 = vsel %vm908, %v2627, -inf
        %v2653 = vsel %vm909, %v2632, -inf
        %v2654 = vsel %vm910, %v2637, -inf
        %v2655 = vmax.f32 %v2639, %v2643
        %v2656 = vmax.f32 %v2640, %v2644
        %v2657 = vmax.f32 %v2641, %v2645
        %v2658 = vmax.f32 %v2642, %v2646
        %v2659 = vmax.f32 %v2655, %v2647
        %v2660 = vmax.f32 %v2656, %v2648
        %v2661 = vmax.f32 %v2657, %v2649
        %v2662 = vmax.f32 %v2658, %v2650
        %v2663 = vmax.f32 %v2659, %v2651
        %v2664 = vmax.f32 %v2660, %v2652
        %v2665 = vmax.f32 %v2661, %v2653
        %v2666 = vmax.f32 %v2662, %v2654
        %v2667 = vmax.f32 %v2663, %v2664
        %v2668 = vmax.f32 %v2665, %v2666
        %v2669 = vmax.f32 %v2667, %v2668
        %v2670 = vrot.slane %v2669, 4
        %v2671 = vmax.f32 %v2669, %v2670
        %v2672 = vrot.slane %v2671, 2
        %v2673 = vmax.f32 %v2671, %v2672
        %v2674 = vrot.slane %v2673, 1
        %v2675 = vmax.f32 %v2673, %v2674
        %v2676 = vld [vmem:[#allocation2 + $0xc] sm:$0x1]
        %v2677 = vmax.f32 %v2676, %v2675
        %2678 = vst [vmem:[#allocation2 + $0xc] sm:$0x1] %v2677
        %v2679 = vld [vmem:[%s401] sm:$0xff]
        %v2680 = vld [vmem:[%s401 + $0x8] sm:$0xff]
        %v2681 = vld [vmem:[%s401 + $0x10] sm:$0xff]
        %v2682 = vld [vmem:[%s401 + $0x18] sm:$0xff]
        %v2683 = vld [vmem:[%s401 + $0x20] sm:$0xff]
        %v2684 = vld [vmem:[%s401 + $0x28] sm:$0xff]
        %v2685 = vld [vmem:[%s401 + $0x30] sm:$0xff]
        %v2686 = vld [vmem:[%s401 + $0x38] sm:$0xff]
        %v2687 = vld [vmem:[%s401 + $0x40] sm:$0xff]
        %v2688 = vld [vmem:[%s401 + $0x48] sm:$0xff]
        %v2689 = vld [vmem:[%s401 + $0x50] sm:$0xff]
        %v2690 = vld [vmem:[%s401 + $0x58] sm:$0xff]
        %v2691 = vld [vmem:[%s401 + $0x60] sm:$0xff]
        %v2692 = vld [vmem:[%s401 + $0x68] sm:$0xff]
        %v2693 = vld [vmem:[%s401 + $0x70] sm:$0xff]
        %v2694 = vld [vmem:[%s401 + $0x78] sm:$0xff]
        %2696 = vset.pattern.permute.xlu0 13
        %2697 = vperm.xlu0 %2696, %v2679
        %v2698 = vpop.permute.xlu0 %2697
        %2701 = vset.pattern.permute.xlu0 13
        %2702 = vperm.xlu0 %2701, %v2680
        %v2703 = vpop.permute.xlu0 %2702
        %2706 = vset.pattern.permute.xlu0 13
        %2707 = vperm.xlu0 %2706, %v2681
        %v2708 = vpop.permute.xlu0 %2707
        %2711 = vset.pattern.permute.xlu0 13
        %2712 = vperm.xlu0 %2711, %v2682
        %v2713 = vpop.permute.xlu0 %2712
        %2716 = vset.pattern.permute.xlu0 13
        %2717 = vperm.xlu0 %2716, %v2683
        %v2718 = vpop.permute.xlu0 %2717
        %2721 = vset.pattern.permute.xlu0 13
        %2722 = vperm.xlu0 %2721, %v2684
        %v2723 = vpop.permute.xlu0 %2722
        %2726 = vset.pattern.permute.xlu0 13
        %2727 = vperm.xlu0 %2726, %v2685
        %v2728 = vpop.permute.xlu0 %2727
        %2731 = vset.pattern.permute.xlu0 13
        %2732 = vperm.xlu0 %2731, %v2686
        %v2733 = vpop.permute.xlu0 %2732
        %2736 = vset.pattern.permute.xlu0 13
        %2737 = vperm.xlu0 %2736, %v2687
        %v2738 = vpop.permute.xlu0 %2737
        %2741 = vset.pattern.permute.xlu0 13
        %2742 = vperm.xlu0 %2741, %v2688
        %v2743 = vpop.permute.xlu0 %2742
        %2746 = vset.pattern.permute.xlu0 13
        %2747 = vperm.xlu0 %2746, %v2689
        %v2748 = vpop.permute.xlu0 %2747
        %2751 = vset.pattern.permute.xlu0 13
        %2752 = vperm.xlu0 %2751, %v2690
        %v2753 = vpop.permute.xlu0 %2752
        %2756 = vset.pattern.permute.xlu0 13
        %2757 = vperm.xlu0 %2756, %v2691
        %v2758 = vpop.permute.xlu0 %2757
        %2761 = vset.pattern.permute.xlu0 13
        %2762 = vperm.xlu0 %2761, %v2692
        %v2763 = vpop.permute.xlu0 %2762
        %2766 = vset.pattern.permute.xlu0 13
        %2767 = vperm.xlu0 %2766, %v2693
        %v2768 = vpop.permute.xlu0 %2767
        %2771 = vset.pattern.permute.xlu0 13
        %2772 = vperm.xlu0 %2771, %v2694
        %v2773 = vpop.permute.xlu0 %2772
        %v2775 = vsel %vm895, %v2698, -inf
        %v2776 = vsel %vm896, %v2703, -inf
        %v2777 = vsel %vm897, %v2708, -inf
        %v2778 = vsel %vm898, %v2713, -inf
        %v2779 = vsel %vm899, %v2718, -inf
        %v2780 = vsel %vm900, %v2723, -inf
        %v2781 = vsel %vm901, %v2728, -inf
        %v2782 = vsel %vm902, %v2733, -inf
        %v2783 = vsel %vm903, %v2738, -inf
        %v2784 = vsel %vm904, %v2743, -inf
        %v2785 = vsel %vm905, %v2748, -inf
        %v2786 = vsel %vm906, %v2753, -inf
        %v2787 = vsel %vm907, %v2758, -inf
        %v2788 = vsel %vm908, %v2763, -inf
        %v2789 = vsel %vm909, %v2768, -inf
        %v2790 = vsel %vm910, %v2773, -inf
        %v2791 = vmax.f32 %v2775, %v2779
        %v2792 = vmax.f32 %v2776, %v2780
        %v2793 = vmax.f32 %v2777, %v2781
        %v2794 = vmax.f32 %v2778, %v2782
        %v2795 = vmax.f32 %v2791, %v2783
        %v2796 = vmax.f32 %v2792, %v2784
        %v2797 = vmax.f32 %v2793, %v2785
        %v2798 = vmax.f32 %v2794, %v2786
        %v2799 = vmax.f32 %v2795, %v2787
        %v2800 = vmax.f32 %v2796, %v2788
        %v2801 = vmax.f32 %v2797, %v2789
        %v2802 = vmax.f32 %v2798, %v2790
        %v2803 = vmax.f32 %v2799, %v2800
        %v2804 = vmax.f32 %v2801, %v2802
        %v2805 = vmax.f32 %v2803, %v2804
        %v2806 = vrot.slane %v2805, 4
        %v2807 = vmax.f32 %v2805, %v2806
        %v2808 = vrot.slane %v2807, 2
        %v2809 = vmax.f32 %v2807, %v2808
        %v2810 = vrot.slane %v2809, 1
        %v2811 = vmax.f32 %v2809, %v2810
        %v2812 = vld [vmem:[#allocation2 + $0xd] sm:$0x1]
        %v2813 = vmax.f32 %v2812, %v2811
        %2814 = vst [vmem:[#allocation2 + $0xd] sm:$0x1] %v2813
        %v2815 = vld [vmem:[%s401] sm:$0xff]
        %v2816 = vld [vmem:[%s401 + $0x8] sm:$0xff]
        %v2817 = vld [vmem:[%s401 + $0x10] sm:$0xff]
        %v2818 = vld [vmem:[%s401 + $0x18] sm:$0xff]
        %v2819 = vld [vmem:[%s401 + $0x20] sm:$0xff]
        %v2820 = vld [vmem:[%s401 + $0x28] sm:$0xff]
        %v2821 = vld [vmem:[%s401 + $0x30] sm:$0xff]
        %v2822 = vld [vmem:[%s401 + $0x38] sm:$0xff]
        %v2823 = vld [vmem:[%s401 + $0x40] sm:$0xff]
        %v2824 = vld [vmem:[%s401 + $0x48] sm:$0xff]
        %v2825 = vld [vmem:[%s401 + $0x50] sm:$0xff]
        %v2826 = vld [vmem:[%s401 + $0x58] sm:$0xff]
        %v2827 = vld [vmem:[%s401 + $0x60] sm:$0xff]
        %v2828 = vld [vmem:[%s401 + $0x68] sm:$0xff]
        %v2829 = vld [vmem:[%s401 + $0x70] sm:$0xff]
        %v2830 = vld [vmem:[%s401 + $0x78] sm:$0xff]
        %2832 = vset.pattern.permute.xlu0 14
        %2833 = vperm.xlu0 %2832, %v2815
        %v2834 = vpop.permute.xlu0 %2833
        %2837 = vset.pattern.permute.xlu0 14
        %2838 = vperm.xlu0 %2837, %v2816
        %v2839 = vpop.permute.xlu0 %2838
        %2842 = vset.pattern.permute.xlu0 14
        %2843 = vperm.xlu0 %2842, %v2817
        %v2844 = vpop.permute.xlu0 %2843
        %2847 = vset.pattern.permute.xlu0 14
        %2848 = vperm.xlu0 %2847, %v2818
        %v2849 = vpop.permute.xlu0 %2848
        %2852 = vset.pattern.permute.xlu0 14
        %2853 = vperm.xlu0 %2852, %v2819
        %v2854 = vpop.permute.xlu0 %2853
        %2857 = vset.pattern.permute.xlu0 14
        %2858 = vperm.xlu0 %2857, %v2820
        %v2859 = vpop.permute.xlu0 %2858
        %2862 = vset.pattern.permute.xlu0 14
        %2863 = vperm.xlu0 %2862, %v2821
        %v2864 = vpop.permute.xlu0 %2863
        %2867 = vset.pattern.permute.xlu0 14
        %2868 = vperm.xlu0 %2867, %v2822
        %v2869 = vpop.permute.xlu0 %2868
        %2872 = vset.pattern.permute.xlu0 14
        %2873 = vperm.xlu0 %2872, %v2823
        %v2874 = vpop.permute.xlu0 %2873
        %2877 = vset.pattern.permute.xlu0 14
        %2878 = vperm.xlu0 %2877, %v2824
        %v2879 = vpop.permute.xlu0 %2878
        %2882 = vset.pattern.permute.xlu0 14
        %2883 = vperm.xlu0 %2882, %v2825
        %v2884 = vpop.permute.xlu0 %2883
        %2887 = vset.pattern.permute.xlu0 14
        %2888 = vperm.xlu0 %2887, %v2826
        %v2889 = vpop.permute.xlu0 %2888
        %2892 = vset.pattern.permute.xlu0 14
        %2893 = vperm.xlu0 %2892, %v2827
        %v2894 = vpop.permute.xlu0 %2893
        %2897 = vset.pattern.permute.xlu0 14
        %2898 = vperm.xlu0 %2897, %v2828
        %v2899 = vpop.permute.xlu0 %2898
        %2902 = vset.pattern.permute.xlu0 14
        %2903 = vperm.xlu0 %2902, %v2829
        %v2904 = vpop.permute.xlu0 %2903
        %2907 = vset.pattern.permute.xlu0 14
        %2908 = vperm.xlu0 %2907, %v2830
        %v2909 = vpop.permute.xlu0 %2908
        %v2911 = vsel %vm895, %v2834, -inf
        %v2912 = vsel %vm896, %v2839, -inf
        %v2913 = vsel %vm897, %v2844, -inf
        %v2914 = vsel %vm898, %v2849, -inf
        %v2915 = vsel %vm899, %v2854, -inf
        %v2916 = vsel %vm900, %v2859, -inf
        %v2917 = vsel %vm901, %v2864, -inf
        %v2918 = vsel %vm902, %v2869, -inf
        %v2919 = vsel %vm903, %v2874, -inf
        %v2920 = vsel %vm904, %v2879, -inf
        %v2921 = vsel %vm905, %v2884, -inf
        %v2922 = vsel %vm906, %v2889, -inf
        %v2923 = vsel %vm907, %v2894, -inf
        %v2924 = vsel %vm908, %v2899, -inf
        %v2925 = vsel %vm909, %v2904, -inf
        %v2926 = vsel %vm910, %v2909, -inf
        %v2927 = vmax.f32 %v2911, %v2915
        %v2928 = vmax.f32 %v2912, %v2916
        %v2929 = vmax.f32 %v2913, %v2917
        %v2930 = vmax.f32 %v2914, %v2918
        %v2931 = vmax.f32 %v2927, %v2919
        %v2932 = vmax.f32 %v2928, %v2920
        %v2933 = vmax.f32 %v2929, %v2921
        %v2934 = vmax.f32 %v2930, %v2922
        %v2935 = vmax.f32 %v2931, %v2923
        %v2936 = vmax.f32 %v2932, %v2924
        %v2937 = vmax.f32 %v2933, %v2925
        %v2938 = vmax.f32 %v2934, %v2926
        %v2939 = vmax.f32 %v2935, %v2936
        %v2940 = vmax.f32 %v2937, %v2938
        %v2941 = vmax.f32 %v2939, %v2940
        %v2942 = vrot.slane %v2941, 4
        %v2943 = vmax.f32 %v2941, %v2942
        %v2944 = vrot.slane %v2943, 2
        %v2945 = vmax.f32 %v2943, %v2944
        %v2946 = vrot.slane %v2945, 1
        %v2947 = vmax.f32 %v2945, %v2946
        %v2948 = vld [vmem:[#allocation2 + $0xe] sm:$0x1]
        %v2949 = vmax.f32 %v2948, %v2947
        %2950 = vst [vmem:[#allocation2 + $0xe] sm:$0x1] %v2949
        %v2951 = vld [vmem:[%s401] sm:$0xff]
        %v2952 = vld [vmem:[%s401 + $0x8] sm:$0xff]
        %v2953 = vld [vmem:[%s401 + $0x10] sm:$0xff]
        %v2954 = vld [vmem:[%s401 + $0x18] sm:$0xff]
        %v2955 = vld [vmem:[%s401 + $0x20] sm:$0xff]
        %v2956 = vld [vmem:[%s401 + $0x28] sm:$0xff]
        %v2957 = vld [vmem:[%s401 + $0x30] sm:$0xff]
        %v2958 = vld [vmem:[%s401 + $0x38] sm:$0xff]
        %v2959 = vld [vmem:[%s401 + $0x40] sm:$0xff]
        %v2960 = vld [vmem:[%s401 + $0x48] sm:$0xff]
        %v2961 = vld [vmem:[%s401 + $0x50] sm:$0xff]
        %v2962 = vld [vmem:[%s401 + $0x58] sm:$0xff]
        %v2963 = vld [vmem:[%s401 + $0x60] sm:$0xff]
        %v2964 = vld [vmem:[%s401 + $0x68] sm:$0xff]
        %v2965 = vld [vmem:[%s401 + $0x70] sm:$0xff]
        %v2966 = vld [vmem:[%s401 + $0x78] sm:$0xff]
        %2968 = vset.pattern.permute.xlu0 15
        %2969 = vperm.xlu0 %2968, %v2951
        %v2970 = vpop.permute.xlu0 %2969
        %2973 = vset.pattern.permute.xlu0 15
        %2974 = vperm.xlu0 %2973, %v2952
        %v2975 = vpop.permute.xlu0 %2974
        %2978 = vset.pattern.permute.xlu0 15
        %2979 = vperm.xlu0 %2978, %v2953
        %v2980 = vpop.permute.xlu0 %2979
        %2983 = vset.pattern.permute.xlu0 15
        %2984 = vperm.xlu0 %2983, %v2954
        %v2985 = vpop.permute.xlu0 %2984
        %2988 = vset.pattern.permute.xlu0 15
        %2989 = vperm.xlu0 %2988, %v2955
        %v2990 = vpop.permute.xlu0 %2989
        %2993 = vset.pattern.permute.xlu0 15
        %2994 = vperm.xlu0 %2993, %v2956
        %v2995 = vpop.permute.xlu0 %2994
        %2998 = vset.pattern.permute.xlu0 15
        %2999 = vperm.xlu0 %2998, %v2957
        %v3000 = vpop.permute.xlu0 %2999
        %3003 = vset.pattern.permute.xlu0 15
        %3004 = vperm.xlu0 %3003, %v2958
        %v3005 = vpop.permute.xlu0 %3004
        %3008 = vset.pattern.permute.xlu0 15
        %3009 = vperm.xlu0 %3008, %v2959
        %v3010 = vpop.permute.xlu0 %3009
        %3013 = vset.pattern.permute.xlu0 15
        %3014 = vperm.xlu0 %3013, %v2960
        %v3015 = vpop.permute.xlu0 %3014
        %3018 = vset.pattern.permute.xlu0 15
        %3019 = vperm.xlu0 %3018, %v2961
        %v3020 = vpop.permute.xlu0 %3019
        %3023 = vset.pattern.permute.xlu0 15
        %3024 = vperm.xlu0 %3023, %v2962
        %v3025 = vpop.permute.xlu0 %3024
        %3028 = vset.pattern.permute.xlu0 15
        %3029 = vperm.xlu0 %3028, %v2963
        %v3030 = vpop.permute.xlu0 %3029
        %3033 = vset.pattern.permute.xlu0 15
        %3034 = vperm.xlu0 %3033, %v2964
        %v3035 = vpop.permute.xlu0 %3034
        %3038 = vset.pattern.permute.xlu0 15
        %3039 = vperm.xlu0 %3038, %v2965
        %v3040 = vpop.permute.xlu0 %3039
        %3043 = vset.pattern.permute.xlu0 15
        %3044 = vperm.xlu0 %3043, %v2966
        %v3045 = vpop.permute.xlu0 %3044
        %v3047 = vsel %vm895, %v2970, -inf
        %v3048 = vsel %vm896, %v2975, -inf
        %v3049 = vsel %vm897, %v2980, -inf
        %v3050 = vsel %vm898, %v2985, -inf
        %v3051 = vsel %vm899, %v2990, -inf
        %v3052 = vsel %vm900, %v2995, -inf
        %v3053 = vsel %vm901, %v3000, -inf
        %v3054 = vsel %vm902, %v3005, -inf
        %v3055 = vsel %vm903, %v3010, -inf
        %v3056 = vsel %vm904, %v3015, -inf
        %v3057 = vsel %vm905, %v3020, -inf
        %v3058 = vsel %vm906, %v3025, -inf
        %v3059 = vsel %vm907, %v3030, -inf
        %v3060 = vsel %vm908, %v3035, -inf
        %v3061 = vsel %vm909, %v3040, -inf
        %v3062 = vsel %vm910, %v3045, -inf
        %v3063 = vmax.f32 %v3047, %v3051
        %v3064 = vmax.f32 %v3048, %v3052
        %v3065 = vmax.f32 %v3049, %v3053
        %v3066 = vmax.f32 %v3050, %v3054
        %v3067 = vmax.f32 %v3063, %v3055
        %v3068 = vmax.f32 %v3064, %v3056
        %v3069 = vmax.f32 %v3065, %v3057
        %v3070 = vmax.f32 %v3066, %v3058
        %v3071 = vmax.f32 %v3067, %v3059
        %v3072 = vmax.f32 %v3068, %v3060
        %v3073 = vmax.f32 %v3069, %v3061
        %v3074 = vmax.f32 %v3070, %v3062
        %v3075 = vmax.f32 %v3071, %v3072
        %v3076 = vmax.f32 %v3073, %v3074
        %v3077 = vmax.f32 %v3075, %v3076
        %v3078 = vrot.slane %v3077, 4
        %v3079 = vmax.f32 %v3077, %v3078
        %v3080 = vrot.slane %v3079, 2
        %v3081 = vmax.f32 %v3079, %v3080
        %v3082 = vrot.slane %v3081, 1
        %v3083 = vmax.f32 %v3081, %v3082
        %v3084 = vld [vmem:[#allocation2 + $0xf] sm:$0x1]
        %v3085 = vmax.f32 %v3084, %v3083
        %3086 = vst [vmem:[#allocation2 + $0xf] sm:$0x1] %v3085
        %v3087 = vld [vmem:[%s401] sm:$0xff]
        %v3088 = vld [vmem:[%s401 + $0x8] sm:$0xff]
        %v3089 = vld [vmem:[%s401 + $0x10] sm:$0xff]
        %v3090 = vld [vmem:[%s401 + $0x18] sm:$0xff]
        %v3091 = vld [vmem:[%s401 + $0x20] sm:$0xff]
        %v3092 = vld [vmem:[%s401 + $0x28] sm:$0xff]
        %v3093 = vld [vmem:[%s401 + $0x30] sm:$0xff]
        %v3094 = vld [vmem:[%s401 + $0x38] sm:$0xff]
        %v3095 = vld [vmem:[%s401 + $0x40] sm:$0xff]
        %v3096 = vld [vmem:[%s401 + $0x48] sm:$0xff]
        %v3097 = vld [vmem:[%s401 + $0x50] sm:$0xff]
        %v3098 = vld [vmem:[%s401 + $0x58] sm:$0xff]
        %v3099 = vld [vmem:[%s401 + $0x60] sm:$0xff]
        %v3100 = vld [vmem:[%s401 + $0x68] sm:$0xff]
        %v3101 = vld [vmem:[%s401 + $0x70] sm:$0xff]
        %v3102 = vld [vmem:[%s401 + $0x78] sm:$0xff]
        %3104 = vset.pattern.permute.xlu0 16
        %3105 = vperm.xlu0 %3104, %v3087
        %v3106 = vpop.permute.xlu0 %3105
        %3109 = vset.pattern.permute.xlu0 16
        %3110 = vperm.xlu0 %3109, %v3088
        %v3111 = vpop.permute.xlu0 %3110
        %3114 = vset.pattern.permute.xlu0 16
        %3115 = vperm.xlu0 %3114, %v3089
        %v3116 = vpop.permute.xlu0 %3115
        %3119 = vset.pattern.permute.xlu0 16
        %3120 = vperm.xlu0 %3119, %v3090
        %v3121 = vpop.permute.xlu0 %3120
        %3124 = vset.pattern.permute.xlu0 16
        %3125 = vperm.xlu0 %3124, %v3091
        %v3126 = vpop.permute.xlu0 %3125
        %3129 = vset.pattern.permute.xlu0 16
        %3130 = vperm.xlu0 %3129, %v3092
        %v3131 = vpop.permute.xlu0 %3130
        %3134 = vset.pattern.permute.xlu0 16
        %3135 = vperm.xlu0 %3134, %v3093
        %v3136 = vpop.permute.xlu0 %3135
        %3139 = vset.pattern.permute.xlu0 16
        %3140 = vperm.xlu0 %3139, %v3094
        %v3141 = vpop.permute.xlu0 %3140
        %3144 = vset.pattern.permute.xlu0 16
        %3145 = vperm.xlu0 %3144, %v3095
        %v3146 = vpop.permute.xlu0 %3145
        %3149 = vset.pattern.permute.xlu0 16
        %3150 = vperm.xlu0 %3149, %v3096
        %v3151 = vpop.permute.xlu0 %3150
        %3154 = vset.pattern.permute.xlu0 16
        %3155 = vperm.xlu0 %3154, %v3097
        %v3156 = vpop.permute.xlu0 %3155
        %3159 = vset.pattern.permute.xlu0 16
        %3160 = vperm.xlu0 %3159, %v3098
        %v3161 = vpop.permute.xlu0 %3160
        %3164 = vset.pattern.permute.xlu0 16
        %3165 = vperm.xlu0 %3164, %v3099
        %v3166 = vpop.permute.xlu0 %3165
        %3169 = vset.pattern.permute.xlu0 16
        %3170 = vperm.xlu0 %3169, %v3100
        %v3171 = vpop.permute.xlu0 %3170
        %3174 = vset.pattern.permute.xlu0 16
        %3175 = vperm.xlu0 %3174, %v3101
        %v3176 = vpop.permute.xlu0 %3175
        %3179 = vset.pattern.permute.xlu0 16
        %3180 = vperm.xlu0 %3179, %v3102
        %v3181 = vpop.permute.xlu0 %3180
        %v3183 = vsel %vm895, %v3106, -inf
        %v3184 = vsel %vm896, %v3111, -inf
        %v3185 = vsel %vm897, %v3116, -inf
        %v3186 = vsel %vm898, %v3121, -inf
        %v3187 = vsel %vm899, %v3126, -inf
        %v3188 = vsel %vm900, %v3131, -inf
        %v3189 = vsel %vm901, %v3136, -inf
        %v3190 = vsel %vm902, %v3141, -inf
        %v3191 = vsel %vm903, %v3146, -inf
        %v3192 = vsel %vm904, %v3151, -inf
        %v3193 = vsel %vm905, %v3156, -inf
        %v3194 = vsel %vm906, %v3161, -inf
        %v3195 = vsel %vm907, %v3166, -inf
        %v3196 = vsel %vm908, %v3171, -inf
        %v3197 = vsel %vm909, %v3176, -inf
        %v3198 = vsel %vm910, %v3181, -inf
        %v3199 = vmax.f32 %v3183, %v3187
        %v3200 = vmax.f32 %v3184, %v3188
        %v3201 = vmax.f32 %v3185, %v3189
        %v3202 = vmax.f32 %v3186, %v3190
        %v3203 = vmax.f32 %v3199, %v3191
        %v3204 = vmax.f32 %v3200, %v3192
        %v3205 = vmax.f32 %v3201, %v3193
        %v3206 = vmax.f32 %v3202, %v3194
        %v3207 = vmax.f32 %v3203, %v3195
        %v3208 = vmax.f32 %v3204, %v3196
        %v3209 = vmax.f32 %v3205, %v3197
        %v3210 = vmax.f32 %v3206, %v3198
        %v3211 = vmax.f32 %v3207, %v3208
        %v3212 = vmax.f32 %v3209, %v3210
        %v3213 = vmax.f32 %v3211, %v3212
        %v3214 = vrot.slane %v3213, 4
        %v3215 = vmax.f32 %v3213, %v3214
        %v3216 = vrot.slane %v3215, 2
        %v3217 = vmax.f32 %v3215, %v3216
        %v3218 = vrot.slane %v3217, 1
        %v3219 = vmax.f32 %v3217, %v3218
        %v3220 = vld [vmem:[#allocation2 + $0x10] sm:$0x1]
        %v3221 = vmax.f32 %v3220, %v3219
        %3222 = vst [vmem:[#allocation2 + $0x10] sm:$0x1] %v3221
        %v3223 = vld [vmem:[%s401] sm:$0xff]
        %v3224 = vld [vmem:[%s401 + $0x8] sm:$0xff]
        %v3225 = vld [vmem:[%s401 + $0x10] sm:$0xff]
        %v3226 = vld [vmem:[%s401 + $0x18] sm:$0xff]
        %v3227 = vld [vmem:[%s401 + $0x20] sm:$0xff]
        %v3228 = vld [vmem:[%s401 + $0x28] sm:$0xff]
        %v3229 = vld [vmem:[%s401 + $0x30] sm:$0xff]
        %v3230 = vld [vmem:[%s401 + $0x38] sm:$0xff]
        %v3231 = vld [vmem:[%s401 + $0x40] sm:$0xff]
        %v3232 = vld [vmem:[%s401 + $0x48] sm:$0xff]
        %v3233 = vld [vmem:[%s401 + $0x50] sm:$0xff]
        %v3234 = vld [vmem:[%s401 + $0x58] sm:$0xff]
        %v3235 = vld [vmem:[%s401 + $0x60] sm:$0xff]
        %v3236 = vld [vmem:[%s401 + $0x68] sm:$0xff]
        %v3237 = vld [vmem:[%s401 + $0x70] sm:$0xff]
        %v3238 = vld [vmem:[%s401 + $0x78] sm:$0xff]
        %3240 = vset.pattern.permute.xlu0 17
        %3241 = vperm.xlu0 %3240, %v3223
        %v3242 = vpop.permute.xlu0 %3241
        %3245 = vset.pattern.permute.xlu0 17
        %3246 = vperm.xlu0 %3245, %v3224
        %v3247 = vpop.permute.xlu0 %3246
        %3250 = vset.pattern.permute.xlu0 17
        %3251 = vperm.xlu0 %3250, %v3225
        %v3252 = vpop.permute.xlu0 %3251
        %3255 = vset.pattern.permute.xlu0 17
        %3256 = vperm.xlu0 %3255, %v3226
        %v3257 = vpop.permute.xlu0 %3256
        %3260 = vset.pattern.permute.xlu0 17
        %3261 = vperm.xlu0 %3260, %v3227
        %v3262 = vpop.permute.xlu0 %3261
        %3265 = vset.pattern.permute.xlu0 17
        %3266 = vperm.xlu0 %3265, %v3228
        %v3267 = vpop.permute.xlu0 %3266
        %3270 = vset.pattern.permute.xlu0 17
        %3271 = vperm.xlu0 %3270, %v3229
        %v3272 = vpop.permute.xlu0 %3271
        %3275 = vset.pattern.permute.xlu0 17
        %3276 = vperm.xlu0 %3275, %v3230
        %v3277 = vpop.permute.xlu0 %3276
        %3280 = vset.pattern.permute.xlu0 17
        %3281 = vperm.xlu0 %3280, %v3231
        %v3282 = vpop.permute.xlu0 %3281
        %3285 = vset.pattern.permute.xlu0 17
        %3286 = vperm.xlu0 %3285, %v3232
        %v3287 = vpop.permute.xlu0 %3286
        %3290 = vset.pattern.permute.xlu0 17
        %3291 = vperm.xlu0 %3290, %v3233
        %v3292 = vpop.permute.xlu0 %3291
        %3295 = vset.pattern.permute.xlu0 17
        %3296 = vperm.xlu0 %3295, %v3234
        %v3297 = vpop.permute.xlu0 %3296
        %3300 = vset.pattern.permute.xlu0 17
        %3301 = vperm.xlu0 %3300, %v3235
        %v3302 = vpop.permute.xlu0 %3301
        %3305 = vset.pattern.permute.xlu0 17
        %3306 = vperm.xlu0 %3305, %v3236
        %v3307 = vpop.permute.xlu0 %3306
        %3310 = vset.pattern.permute.xlu0 17
        %3311 = vperm.xlu0 %3310, %v3237
        %v3312 = vpop.permute.xlu0 %3311
        %3315 = vset.pattern.permute.xlu0 17
        %3316 = vperm.xlu0 %3315, %v3238
        %v3317 = vpop.permute.xlu0 %3316
        %v3319 = vsel %vm895, %v3242, -inf
        %v3320 = vsel %vm896, %v3247, -inf
        %v3321 = vsel %vm897, %v3252, -inf
        %v3322 = vsel %vm898, %v3257, -inf
        %v3323 = vsel %vm899, %v3262, -inf
        %v3324 = vsel %vm900, %v3267, -inf
        %v3325 = vsel %vm901, %v3272, -inf
        %v3326 = vsel %vm902, %v3277, -inf
        %v3327 = vsel %vm903, %v3282, -inf
        %v3328 = vsel %vm904, %v3287, -inf
        %v3329 = vsel %vm905, %v3292, -inf
        %v3330 = vsel %vm906, %v3297, -inf
        %v3331 = vsel %vm907, %v3302, -inf
        %v3332 = vsel %vm908, %v3307, -inf
        %v3333 = vsel %vm909, %v3312, -inf
        %v3334 = vsel %vm910, %v3317, -inf
        %v3335 = vmax.f32 %v3319, %v3323
        %v3336 = vmax.f32 %v3320, %v3324
        %v3337 = vmax.f32 %v3321, %v3325
        %v3338 = vmax.f32 %v3322, %v3326
        %v3339 = vmax.f32 %v3335, %v3327
        %v3340 = vmax.f32 %v3336, %v3328
        %v3341 = vmax.f32 %v3337, %v3329
        %v3342 = vmax.f32 %v3338, %v3330
        %v3343 = vmax.f32 %v3339, %v3331
        %v3344 = vmax.f32 %v3340, %v3332
        %v3345 = vmax.f32 %v3341, %v3333
        %v3346 = vmax.f32 %v3342, %v3334
        %v3347 = vmax.f32 %v3343, %v3344
        %v3348 = vmax.f32 %v3345, %v3346
        %v3349 = vmax.f32 %v3347, %v3348
        %v3350 = vrot.slane %v3349, 4
        %v3351 = vmax.f32 %v3349, %v3350
        %v3352 = vrot.slane %v3351, 2
        %v3353 = vmax.f32 %v3351, %v3352
        %v3354 = vrot.slane %v3353, 1
        %v3355 = vmax.f32 %v3353, %v3354
        %v3356 = vld [vmem:[#allocation2 + $0x11] sm:$0x1]
        %v3357 = vmax.f32 %v3356, %v3355
        %3358 = vst [vmem:[#allocation2 + $0x11] sm:$0x1] %v3357
        %v3359 = vld [vmem:[%s401] sm:$0xff]
        %v3360 = vld [vmem:[%s401 + $0x8] sm:$0xff]
        %v3361 = vld [vmem:[%s401 + $0x10] sm:$0xff]
        %v3362 = vld [vmem:[%s401 + $0x18] sm:$0xff]
        %v3363 = vld [vmem:[%s401 + $0x20] sm:$0xff]
        %v3364 = vld [vmem:[%s401 + $0x28] sm:$0xff]
        %v3365 = vld [vmem:[%s401 + $0x30] sm:$0xff]
        %v3366 = vld [vmem:[%s401 + $0x38] sm:$0xff]
        %v3367 = vld [vmem:[%s401 + $0x40] sm:$0xff]
        %v3368 = vld [vmem:[%s401 + $0x48] sm:$0xff]
        %v3369 = vld [vmem:[%s401 + $0x50] sm:$0xff]
        %v3370 = vld [vmem:[%s401 + $0x58] sm:$0xff]
        %v3371 = vld [vmem:[%s401 + $0x60] sm:$0xff]
        %v3372 = vld [vmem:[%s401 + $0x68] sm:$0xff]
        %v3373 = vld [vmem:[%s401 + $0x70] sm:$0xff]
        %v3374 = vld [vmem:[%s401 + $0x78] sm:$0xff]
        %3376 = vset.pattern.permute.xlu0 18
        %3377 = vperm.xlu0 %3376, %v3359
        %v3378 = vpop.permute.xlu0 %3377
        %3381 = vset.pattern.permute.xlu0 18
        %3382 = vperm.xlu0 %3381, %v3360
        %v3383 = vpop.permute.xlu0 %3382
        %3386 = vset.pattern.permute.xlu0 18
        %3387 = vperm.xlu0 %3386, %v3361
        %v3388 = vpop.permute.xlu0 %3387
        %3391 = vset.pattern.permute.xlu0 18
        %3392 = vperm.xlu0 %3391, %v3362
        %v3393 = vpop.permute.xlu0 %3392
        %3396 = vset.pattern.permute.xlu0 18
        %3397 = vperm.xlu0 %3396, %v3363
        %v3398 = vpop.permute.xlu0 %3397
        %3401 = vset.pattern.permute.xlu0 18
        %3402 = vperm.xlu0 %3401, %v3364
        %v3403 = vpop.permute.xlu0 %3402
        %3406 = vset.pattern.permute.xlu0 18
        %3407 = vperm.xlu0 %3406, %v3365
        %v3408 = vpop.permute.xlu0 %3407
        %3411 = vset.pattern.permute.xlu0 18
        %3412 = vperm.xlu0 %3411, %v3366
        %v3413 = vpop.permute.xlu0 %3412
        %3416 = vset.pattern.permute.xlu0 18
        %3417 = vperm.xlu0 %3416, %v3367
        %v3418 = vpop.permute.xlu0 %3417
        %3421 = vset.pattern.permute.xlu0 18
        %3422 = vperm.xlu0 %3421, %v3368
        %v3423 = vpop.permute.xlu0 %3422
        %3426 = vset.pattern.permute.xlu0 18
        %3427 = vperm.xlu0 %3426, %v3369
        %v3428 = vpop.permute.xlu0 %3427
        %3431 = vset.pattern.permute.xlu0 18
        %3432 = vperm.xlu0 %3431, %v3370
        %v3433 = vpop.permute.xlu0 %3432
        %3436 = vset.pattern.permute.xlu0 18
        %3437 = vperm.xlu0 %3436, %v3371
        %v3438 = vpop.permute.xlu0 %3437
        %3441 = vset.pattern.permute.xlu0 18
        %3442 = vperm.xlu0 %3441, %v3372
        %v3443 = vpop.permute.xlu0 %3442
        %3446 = vset.pattern.permute.xlu0 18
        %3447 = vperm.xlu0 %3446, %v3373
        %v3448 = vpop.permute.xlu0 %3447
        %3451 = vset.pattern.permute.xlu0 18
        %3452 = vperm.xlu0 %3451, %v3374
        %v3453 = vpop.permute.xlu0 %3452
        %v3455 = vsel %vm895, %v3378, -inf
        %v3456 = vsel %vm896, %v3383, -inf
        %v3457 = vsel %vm897, %v3388, -inf
        %v3458 = vsel %vm898, %v3393, -inf
        %v3459 = vsel %vm899, %v3398, -inf
        %v3460 = vsel %vm900, %v3403, -inf
        %v3461 = vsel %vm901, %v3408, -inf
        %v3462 = vsel %vm902, %v3413, -inf
        %v3463 = vsel %vm903, %v3418, -inf
        %v3464 = vsel %vm904, %v3423, -inf
        %v3465 = vsel %vm905, %v3428, -inf
        %v3466 = vsel %vm906, %v3433, -inf
        %v3467 = vsel %vm907, %v3438, -inf
        %v3468 = vsel %vm908, %v3443, -inf
        %v3469 = vsel %vm909, %v3448, -inf
        %v3470 = vsel %vm910, %v3453, -inf
        %v3471 = vmax.f32 %v3455, %v3459
        %v3472 = vmax.f32 %v3456, %v3460
        %v3473 = vmax.f32 %v3457, %v3461
        %v3474 = vmax.f32 %v3458, %v3462
        %v3475 = vmax.f32 %v3471, %v3463
        %v3476 = vmax.f32 %v3472, %v3464
        %v3477 = vmax.f32 %v3473, %v3465
        %v3478 = vmax.f32 %v3474, %v3466
        %v3479 = vmax.f32 %v3475, %v3467
        %v3480 = vmax.f32 %v3476, %v3468
        %v3481 = vmax.f32 %v3477, %v3469
        %v3482 = vmax.f32 %v3478, %v3470
        %v3483 = vmax.f32 %v3479, %v3480
        %v3484 = vmax.f32 %v3481, %v3482
        %v3485 = vmax.f32 %v3483, %v3484
        %v3486 = vrot.slane %v3485, 4
        %v3487 = vmax.f32 %v3485, %v3486
        %v3488 = vrot.slane %v3487, 2
        %v3489 = vmax.f32 %v3487, %v3488
        %v3490 = vrot.slane %v3489, 1
        %v3491 = vmax.f32 %v3489, %v3490
        %v3492 = vld [vmem:[#allocation2 + $0x12] sm:$0x1]
        %v3493 = vmax.f32 %v3492, %v3491
        %3494 = vst [vmem:[#allocation2 + $0x12] sm:$0x1] %v3493
        %v3495 = vld [vmem:[%s401] sm:$0xff]
        %v3496 = vld [vmem:[%s401 + $0x8] sm:$0xff]
        %v3497 = vld [vmem:[%s401 + $0x10] sm:$0xff]
        %v3498 = vld [vmem:[%s401 + $0x18] sm:$0xff]
        %v3499 = vld [vmem:[%s401 + $0x20] sm:$0xff]
        %v3500 = vld [vmem:[%s401 + $0x28] sm:$0xff]
        %v3501 = vld [vmem:[%s401 + $0x30] sm:$0xff]
        %v3502 = vld [vmem:[%s401 + $0x38] sm:$0xff]
        %v3503 = vld [vmem:[%s401 + $0x40] sm:$0xff]
        %v3504 = vld [vmem:[%s401 + $0x48] sm:$0xff]
        %v3505 = vld [vmem:[%s401 + $0x50] sm:$0xff]
        %v3506 = vld [vmem:[%s401 + $0x58] sm:$0xff]
        %v3507 = vld [vmem:[%s401 + $0x60] sm:$0xff]
        %v3508 = vld [vmem:[%s401 + $0x68] sm:$0xff]
        %v3509 = vld [vmem:[%s401 + $0x70] sm:$0xff]
        %v3510 = vld [vmem:[%s401 + $0x78] sm:$0xff]
        %3512 = vset.pattern.permute.xlu0 19
        %3513 = vperm.xlu0 %3512, %v3495
        %v3514 = vpop.permute.xlu0 %3513
        %3517 = vset.pattern.permute.xlu0 19
        %3518 = vperm.xlu0 %3517, %v3496
        %v3519 = vpop.permute.xlu0 %3518
        %3522 = vset.pattern.permute.xlu0 19
        %3523 = vperm.xlu0 %3522, %v3497
        %v3524 = vpop.permute.xlu0 %3523
        %3527 = vset.pattern.permute.xlu0 19
        %3528 = vperm.xlu0 %3527, %v3498
        %v3529 = vpop.permute.xlu0 %3528
        %3532 = vset.pattern.permute.xlu0 19
        %3533 = vperm.xlu0 %3532, %v3499
        %v3534 = vpop.permute.xlu0 %3533
        %3537 = vset.pattern.permute.xlu0 19
        %3538 = vperm.xlu0 %3537, %v3500
        %v3539 = vpop.permute.xlu0 %3538
        %3542 = vset.pattern.permute.xlu0 19
        %3543 = vperm.xlu0 %3542, %v3501
        %v3544 = vpop.permute.xlu0 %3543
        %3547 = vset.pattern.permute.xlu0 19
        %3548 = vperm.xlu0 %3547, %v3502
        %v3549 = vpop.permute.xlu0 %3548
        %3552 = vset.pattern.permute.xlu0 19
        %3553 = vperm.xlu0 %3552, %v3503
        %v3554 = vpop.permute.xlu0 %3553
        %3557 = vset.pattern.permute.xlu0 19
        %3558 = vperm.xlu0 %3557, %v3504
        %v3559 = vpop.permute.xlu0 %3558
        %3562 = vset.pattern.permute.xlu0 19
        %3563 = vperm.xlu0 %3562, %v3505
        %v3564 = vpop.permute.xlu0 %3563
        %3567 = vset.pattern.permute.xlu0 19
        %3568 = vperm.xlu0 %3567, %v3506
        %v3569 = vpop.permute.xlu0 %3568
        %3572 = vset.pattern.permute.xlu0 19
        %3573 = vperm.xlu0 %3572, %v3507
        %v3574 = vpop.permute.xlu0 %3573
        %3577 = vset.pattern.permute.xlu0 19
        %3578 = vperm.xlu0 %3577, %v3508
        %v3579 = vpop.permute.xlu0 %3578
        %3582 = vset.pattern.permute.xlu0 19
        %3583 = vperm.xlu0 %3582, %v3509
        %v3584 = vpop.permute.xlu0 %3583
        %3587 = vset.pattern.permute.xlu0 19
        %3588 = vperm.xlu0 %3587, %v3510
        %v3589 = vpop.permute.xlu0 %3588
        %v3591 = vsel %vm895, %v3514, -inf
        %v3592 = vsel %vm896, %v3519, -inf
        %v3593 = vsel %vm897, %v3524, -inf
        %v3594 = vsel %vm898, %v3529, -inf
        %v3595 = vsel %vm899, %v3534, -inf
        %v3596 = vsel %vm900, %v3539, -inf
        %v3597 = vsel %vm901, %v3544, -inf
        %v3598 = vsel %vm902, %v3549, -inf
        %v3599 = vsel %vm903, %v3554, -inf
        %v3600 = vsel %vm904, %v3559, -inf
        %v3601 = vsel %vm905, %v3564, -inf
        %v3602 = vsel %vm906, %v3569, -inf
        %v3603 = vsel %vm907, %v3574, -inf
        %v3604 = vsel %vm908, %v3579, -inf
        %v3605 = vsel %vm909, %v3584, -inf
        %v3606 = vsel %vm910, %v3589, -inf
        %v3607 = vmax.f32 %v3591, %v3595
        %v3608 = vmax.f32 %v3592, %v3596
        %v3609 = vmax.f32 %v3593, %v3597
        %v3610 = vmax.f32 %v3594, %v3598
        %v3611 = vmax.f32 %v3607, %v3599
        %v3612 = vmax.f32 %v3608, %v3600
        %v3613 = vmax.f32 %v3609, %v3601
        %v3614 = vmax.f32 %v3610, %v3602
        %v3615 = vmax.f32 %v3611, %v3603
        %v3616 = vmax.f32 %v3612, %v3604
        %v3617 = vmax.f32 %v3613, %v3605
        %v3618 = vmax.f32 %v3614, %v3606
        %v3619 = vmax.f32 %v3615, %v3616
        %v3620 = vmax.f32 %v3617, %v3618
        %v3621 = vmax.f32 %v3619, %v3620
        %v3622 = vrot.slane %v3621, 4
        %v3623 = vmax.f32 %v3621, %v3622
        %v3624 = vrot.slane %v3623, 2
        %v3625 = vmax.f32 %v3623, %v3624
        %v3626 = vrot.slane %v3625, 1
        %v3627 = vmax.f32 %v3625, %v3626
        %v3628 = vld [vmem:[#allocation2 + $0x13] sm:$0x1]
        %v3629 = vmax.f32 %v3628, %v3627
        %3630 = vst [vmem:[#allocation2 + $0x13] sm:$0x1] %v3629
        %v3631 = vld [vmem:[%s401] sm:$0xff]
        %v3632 = vld [vmem:[%s401 + $0x8] sm:$0xff]
        %v3633 = vld [vmem:[%s401 + $0x10] sm:$0xff]
        %v3634 = vld [vmem:[%s401 + $0x18] sm:$0xff]
        %v3635 = vld [vmem:[%s401 + $0x20] sm:$0xff]
        %v3636 = vld [vmem:[%s401 + $0x28] sm:$0xff]
        %v3637 = vld [vmem:[%s401 + $0x30] sm:$0xff]
        %v3638 = vld [vmem:[%s401 + $0x38] sm:$0xff]
        %v3639 = vld [vmem:[%s401 + $0x40] sm:$0xff]
        %v3640 = vld [vmem:[%s401 + $0x48] sm:$0xff]
        %v3641 = vld [vmem:[%s401 + $0x50] sm:$0xff]
        %v3642 = vld [vmem:[%s401 + $0x58] sm:$0xff]
        %v3643 = vld [vmem:[%s401 + $0x60] sm:$0xff]
        %v3644 = vld [vmem:[%s401 + $0x68] sm:$0xff]
        %v3645 = vld [vmem:[%s401 + $0x70] sm:$0xff]
        %v3646 = vld [vmem:[%s401 + $0x78] sm:$0xff]
        %3648 = vset.pattern.permute.xlu0 20
        %3649 = vperm.xlu0 %3648, %v3631
        %v3650 = vpop.permute.xlu0 %3649
        %3653 = vset.pattern.permute.xlu0 20
        %3654 = vperm.xlu0 %3653, %v3632
        %v3655 = vpop.permute.xlu0 %3654
        %3658 = vset.pattern.permute.xlu0 20
        %3659 = vperm.xlu0 %3658, %v3633
        %v3660 = vpop.permute.xlu0 %3659
        %3663 = vset.pattern.permute.xlu0 20
        %3664 = vperm.xlu0 %3663, %v3634
        %v3665 = vpop.permute.xlu0 %3664
        %3668 = vset.pattern.permute.xlu0 20
        %3669 = vperm.xlu0 %3668, %v3635
        %v3670 = vpop.permute.xlu0 %3669
        %3673 = vset.pattern.permute.xlu0 20
        %3674 = vperm.xlu0 %3673, %v3636
        %v3675 = vpop.permute.xlu0 %3674
        %3678 = vset.pattern.permute.xlu0 20
        %3679 = vperm.xlu0 %3678, %v3637
        %v3680 = vpop.permute.xlu0 %3679
        %3683 = vset.pattern.permute.xlu0 20
        %3684 = vperm.xlu0 %3683, %v3638
        %v3685 = vpop.permute.xlu0 %3684
        %3688 = vset.pattern.permute.xlu0 20
        %3689 = vperm.xlu0 %3688, %v3639
        %v3690 = vpop.permute.xlu0 %3689
        %3693 = vset.pattern.permute.xlu0 20
        %3694 = vperm.xlu0 %3693, %v3640
        %v3695 = vpop.permute.xlu0 %3694
        %3698 = vset.pattern.permute.xlu0 20
        %3699 = vperm.xlu0 %3698, %v3641
        %v3700 = vpop.permute.xlu0 %3699
        %3703 = vset.pattern.permute.xlu0 20
        %3704 = vperm.xlu0 %3703, %v3642
        %v3705 = vpop.permute.xlu0 %3704
        %3708 = vset.pattern.permute.xlu0 20
        %3709 = vperm.xlu0 %3708, %v3643
        %v3710 = vpop.permute.xlu0 %3709
        %3713 = vset.pattern.permute.xlu0 20
        %3714 = vperm.xlu0 %3713, %v3644
        %v3715 = vpop.permute.xlu0 %3714
        %3718 = vset.pattern.permute.xlu0 20
        %3719 = vperm.xlu0 %3718, %v3645
        %v3720 = vpop.permute.xlu0 %3719
        %3723 = vset.pattern.permute.xlu0 20
        %3724 = vperm.xlu0 %3723, %v3646
        %v3725 = vpop.permute.xlu0 %3724
        %v3727 = vsel %vm895, %v3650, -inf
        %v3728 = vsel %vm896, %v3655, -inf
        %v3729 = vsel %vm897, %v3660, -inf
        %v3730 = vsel %vm898, %v3665, -inf
        %v3731 = vsel %vm899, %v3670, -inf
        %v3732 = vsel %vm900, %v3675, -inf
        %v3733 = vsel %vm901, %v3680, -inf
        %v3734 = vsel %vm902, %v3685, -inf
        %v3735 = vsel %vm903, %v3690, -inf
        %v3736 = vsel %vm904, %v3695, -inf
        %v3737 = vsel %vm905, %v3700, -inf
        %v3738 = vsel %vm906, %v3705, -inf
        %v3739 = vsel %vm907, %v3710, -inf
        %v3740 = vsel %vm908, %v3715, -inf
        %v3741 = vsel %vm909, %v3720, -inf
        %v3742 = vsel %vm910, %v3725, -inf
        %v3743 = vmax.f32 %v3727, %v3731
        %v3744 = vmax.f32 %v3728, %v3732
        %v3745 = vmax.f32 %v3729, %v3733
        %v3746 = vmax.f32 %v3730, %v3734
        %v3747 = vmax.f32 %v3743, %v3735
        %v3748 = vmax.f32 %v3744, %v3736
        %v3749 = vmax.f32 %v3745, %v3737
        %v3750 = vmax.f32 %v3746, %v3738
        %v3751 = vmax.f32 %v3747, %v3739
        %v3752 = vmax.f32 %v3748, %v3740
        %v3753 = vmax.f32 %v3749, %v3741
        %v3754 = vmax.f32 %v3750, %v3742
        %v3755 = vmax.f32 %v3751, %v3752
        %v3756 = vmax.f32 %v3753, %v3754
        %v3757 = vmax.f32 %v3755, %v3756
        %v3758 = vrot.slane %v3757, 4
        %v3759 = vmax.f32 %v3757, %v3758
        %v3760 = vrot.slane %v3759, 2
        %v3761 = vmax.f32 %v3759, %v3760
        %v3762 = vrot.slane %v3761, 1
        %v3763 = vmax.f32 %v3761, %v3762
        %v3764 = vld [vmem:[#allocation2 + $0x14] sm:$0x1]
        %v3765 = vmax.f32 %v3764, %v3763
        %3766 = vst [vmem:[#allocation2 + $0x14] sm:$0x1] %v3765
        %v3767 = vld [vmem:[%s401] sm:$0xff]
        %v3768 = vld [vmem:[%s401 + $0x8] sm:$0xff]
        %v3769 = vld [vmem:[%s401 + $0x10] sm:$0xff]
        %v3770 = vld [vmem:[%s401 + $0x18] sm:$0xff]
        %v3771 = vld [vmem:[%s401 + $0x20] sm:$0xff]
        %v3772 = vld [vmem:[%s401 + $0x28] sm:$0xff]
        %v3773 = vld [vmem:[%s401 + $0x30] sm:$0xff]
        %v3774 = vld [vmem:[%s401 + $0x38] sm:$0xff]
        %v3775 = vld [vmem:[%s401 + $0x40] sm:$0xff]
        %v3776 = vld [vmem:[%s401 + $0x48] sm:$0xff]
        %v3777 = vld [vmem:[%s401 + $0x50] sm:$0xff]
        %v3778 = vld [vmem:[%s401 + $0x58] sm:$0xff]
        %v3779 = vld [vmem:[%s401 + $0x60] sm:$0xff]
        %v3780 = vld [vmem:[%s401 + $0x68] sm:$0xff]
        %v3781 = vld [vmem:[%s401 + $0x70] sm:$0xff]
        %v3782 = vld [vmem:[%s401 + $0x78] sm:$0xff]
        %3784 = vset.pattern.permute.xlu0 21
        %3785 = vperm.xlu0 %3784, %v3767
        %v3786 = vpop.permute.xlu0 %3785
        %3789 = vset.pattern.permute.xlu0 21
        %3790 = vperm.xlu0 %3789, %v3768
        %v3791 = vpop.permute.xlu0 %3790
        %3794 = vset.pattern.permute.xlu0 21
        %3795 = vperm.xlu0 %3794, %v3769
        %v3796 = vpop.permute.xlu0 %3795
        %3799 = vset.pattern.permute.xlu0 21
        %3800 = vperm.xlu0 %3799, %v3770
        %v3801 = vpop.permute.xlu0 %3800
        %3804 = vset.pattern.permute.xlu0 21
        %3805 = vperm.xlu0 %3804, %v3771
        %v3806 = vpop.permute.xlu0 %3805
        %3809 = vset.pattern.permute.xlu0 21
        %3810 = vperm.xlu0 %3809, %v3772
        %v3811 = vpop.permute.xlu0 %3810
        %3814 = vset.pattern.permute.xlu0 21
        %3815 = vperm.xlu0 %3814, %v3773
        %v3816 = vpop.permute.xlu0 %3815
        %3819 = vset.pattern.permute.xlu0 21
        %3820 = vperm.xlu0 %3819, %v3774
        %v3821 = vpop.permute.xlu0 %3820
        %3824 = vset.pattern.permute.xlu0 21
        %3825 = vperm.xlu0 %3824, %v3775
        %v3826 = vpop.permute.xlu0 %3825
        %3829 = vset.pattern.permute.xlu0 21
        %3830 = vperm.xlu0 %3829, %v3776
        %v3831 = vpop.permute.xlu0 %3830
        %3834 = vset.pattern.permute.xlu0 21
        %3835 = vperm.xlu0 %3834, %v3777
        %v3836 = vpop.permute.xlu0 %3835
        %3839 = vset.pattern.permute.xlu0 21
        %3840 = vperm.xlu0 %3839, %v3778
        %v3841 = vpop.permute.xlu0 %3840
        %3844 = vset.pattern.permute.xlu0 21
        %3845 = vperm.xlu0 %3844, %v3779
        %v3846 = vpop.permute.xlu0 %3845
        %3849 = vset.pattern.permute.xlu0 21
        %3850 = vperm.xlu0 %3849, %v3780
        %v3851 = vpop.permute.xlu0 %3850
        %3854 = vset.pattern.permute.xlu0 21
        %3855 = vperm.xlu0 %3854, %v3781
        %v3856 = vpop.permute.xlu0 %3855
        %3859 = vset.pattern.permute.xlu0 21
        %3860 = vperm.xlu0 %3859, %v3782
        %v3861 = vpop.permute.xlu0 %3860
        %v3863 = vsel %vm895, %v3786, -inf
        %v3864 = vsel %vm896, %v3791, -inf
        %v3865 = vsel %vm897, %v3796, -inf
        %v3866 = vsel %vm898, %v3801, -inf
        %v3867 = vsel %vm899, %v3806, -inf
        %v3868 = vsel %vm900, %v3811, -inf
        %v3869 = vsel %vm901, %v3816, -inf
        %v3870 = vsel %vm902, %v3821, -inf
        %v3871 = vsel %vm903, %v3826, -inf
        %v3872 = vsel %vm904, %v3831, -inf
        %v3873 = vsel %vm905, %v3836, -inf
        %v3874 = vsel %vm906, %v3841, -inf
        %v3875 = vsel %vm907, %v3846, -inf
        %v3876 = vsel %vm908, %v3851, -inf
        %v3877 = vsel %vm909, %v3856, -inf
        %v3878 = vsel %vm910, %v3861, -inf
        %v3879 = vmax.f32 %v3863, %v3867
        %v3880 = vmax.f32 %v3864, %v3868
        %v3881 = vmax.f32 %v3865, %v3869
        %v3882 = vmax.f32 %v3866, %v3870
        %v3883 = vmax.f32 %v3879, %v3871
        %v3884 = vmax.f32 %v3880, %v3872
        %v3885 = vmax.f32 %v3881, %v3873
        %v3886 = vmax.f32 %v3882, %v3874
        %v3887 = vmax.f32 %v3883, %v3875
        %v3888 = vmax.f32 %v3884, %v3876
        %v3889 = vmax.f32 %v3885, %v3877
        %v3890 = vmax.f32 %v3886, %v3878
        %v3891 = vmax.f32 %v3887, %v3888
        %v3892 = vmax.f32 %v3889, %v3890
        %v3893 = vmax.f32 %v3891, %v3892
        %v3894 = vrot.slane %v3893, 4
        %v3895 = vmax.f32 %v3893, %v3894
        %v3896 = vrot.slane %v3895, 2
        %v3897 = vmax.f32 %v3895, %v3896
        %v3898 = vrot.slane %v3897, 1
        %v3899 = vmax.f32 %v3897, %v3898
        %v3900 = vld [vmem:[#allocation2 + $0x15] sm:$0x1]
        %v3901 = vmax.f32 %v3900, %v3899
        %3902 = vst [vmem:[#allocation2 + $0x15] sm:$0x1] %v3901
        %v3903 = vld [vmem:[%s401] sm:$0xff]
        %v3904 = vld [vmem:[%s401 + $0x8] sm:$0xff]
        %v3905 = vld [vmem:[%s401 + $0x10] sm:$0xff]
        %v3906 = vld [vmem:[%s401 + $0x18] sm:$0xff]
        %v3907 = vld [vmem:[%s401 + $0x20] sm:$0xff]
        %v3908 = vld [vmem:[%s401 + $0x28] sm:$0xff]
        %v3909 = vld [vmem:[%s401 + $0x30] sm:$0xff]
        %v3910 = vld [vmem:[%s401 + $0x38] sm:$0xff]
        %v3911 = vld [vmem:[%s401 + $0x40] sm:$0xff]
        %v3912 = vld [vmem:[%s401 + $0x48] sm:$0xff]
        %v3913 = vld [vmem:[%s401 + $0x50] sm:$0xff]
        %v3914 = vld [vmem:[%s401 + $0x58] sm:$0xff]
        %v3915 = vld [vmem:[%s401 + $0x60] sm:$0xff]
        %v3916 = vld [vmem:[%s401 + $0x68] sm:$0xff]
        %v3917 = vld [vmem:[%s401 + $0x70] sm:$0xff]
        %v3918 = vld [vmem:[%s401 + $0x78] sm:$0xff]
        %3920 = vset.pattern.permute.xlu0 22
        %3921 = vperm.xlu0 %3920, %v3903
        %v3922 = vpop.permute.xlu0 %3921
        %3925 = vset.pattern.permute.xlu0 22
        %3926 = vperm.xlu0 %3925, %v3904
        %v3927 = vpop.permute.xlu0 %3926
        %3930 = vset.pattern.permute.xlu0 22
        %3931 = vperm.xlu0 %3930, %v3905
        %v3932 = vpop.permute.xlu0 %3931
        %3935 = vset.pattern.permute.xlu0 22
        %3936 = vperm.xlu0 %3935, %v3906
        %v3937 = vpop.permute.xlu0 %3936
        %3940 = vset.pattern.permute.xlu0 22
        %3941 = vperm.xlu0 %3940, %v3907
        %v3942 = vpop.permute.xlu0 %3941
        %3945 = vset.pattern.permute.xlu0 22
        %3946 = vperm.xlu0 %3945, %v3908
        %v3947 = vpop.permute.xlu0 %3946
        %3950 = vset.pattern.permute.xlu0 22
        %3951 = vperm.xlu0 %3950, %v3909
        %v3952 = vpop.permute.xlu0 %3951
        %3955 = vset.pattern.permute.xlu0 22
        %3956 = vperm.xlu0 %3955, %v3910
        %v3957 = vpop.permute.xlu0 %3956
        %3960 = vset.pattern.permute.xlu0 22
        %3961 = vperm.xlu0 %3960, %v3911
        %v3962 = vpop.permute.xlu0 %3961
        %3965 = vset.pattern.permute.xlu0 22
        %3966 = vperm.xlu0 %3965, %v3912
        %v3967 = vpop.permute.xlu0 %3966
        %3970 = vset.pattern.permute.xlu0 22
        %3971 = vperm.xlu0 %3970, %v3913
        %v3972 = vpop.permute.xlu0 %3971
        %3975 = vset.pattern.permute.xlu0 22
        %3976 = vperm.xlu0 %3975, %v3914
        %v3977 = vpop.permute.xlu0 %3976
        %3980 = vset.pattern.permute.xlu0 22
        %3981 = vperm.xlu0 %3980, %v3915
        %v3982 = vpop.permute.xlu0 %3981
        %3985 = vset.pattern.permute.xlu0 22
        %3986 = vperm.xlu0 %3985, %v3916
        %v3987 = vpop.permute.xlu0 %3986
        %3990 = vset.pattern.permute.xlu0 22
        %3991 = vperm.xlu0 %3990, %v3917
        %v3992 = vpop.permute.xlu0 %3991
        %3995 = vset.pattern.permute.xlu0 22
        %3996 = vperm.xlu0 %3995, %v3918
        %v3997 = vpop.permute.xlu0 %3996
        %v3999 = vsel %vm895, %v3922, -inf
        %v4000 = vsel %vm896, %v3927, -inf
        %v4001 = vsel %vm897, %v3932, -inf
        %v4002 = vsel %vm898, %v3937, -inf
        %v4003 = vsel %vm899, %v3942, -inf
        %v4004 = vsel %vm900, %v3947, -inf
        %v4005 = vsel %vm901, %v3952, -inf
        %v4006 = vsel %vm902, %v3957, -inf
        %v4007 = vsel %vm903, %v3962, -inf
        %v4008 = vsel %vm904, %v3967, -inf
        %v4009 = vsel %vm905, %v3972, -inf
        %v4010 = vsel %vm906, %v3977, -inf
        %v4011 = vsel %vm907, %v3982, -inf
        %v4012 = vsel %vm908, %v3987, -inf
        %v4013 = vsel %vm909, %v3992, -inf
        %v4014 = vsel %vm910, %v3997, -inf
        %v4015 = vmax.f32 %v3999, %v4003
        %v4016 = vmax.f32 %v4000, %v4004
        %v4017 = vmax.f32 %v4001, %v4005
        %v4018 = vmax.f32 %v4002, %v4006
        %v4019 = vmax.f32 %v4015, %v4007
        %v4020 = vmax.f32 %v4016, %v4008
        %v4021 = vmax.f32 %v4017, %v4009
        %v4022 = vmax.f32 %v4018, %v4010
        %v4023 = vmax.f32 %v4019, %v4011
        %v4024 = vmax.f32 %v4020, %v4012
        %v4025 = vmax.f32 %v4021, %v4013
        %v4026 = vmax.f32 %v4022, %v4014
        %v4027 = vmax.f32 %v4023, %v4024
        %v4028 = vmax.f32 %v4025, %v4026
        %v4029 = vmax.f32 %v4027, %v4028
        %v4030 = vrot.slane %v4029, 4
        %v4031 = vmax.f32 %v4029, %v4030
        %v4032 = vrot.slane %v4031, 2
        %v4033 = vmax.f32 %v4031, %v4032
        %v4034 = vrot.slane %v4033, 1
        %v4035 = vmax.f32 %v4033, %v4034
        %v4036 = vld [vmem:[#allocation2 + $0x16] sm:$0x1]
        %v4037 = vmax.f32 %v4036, %v4035
        %4038 = vst [vmem:[#allocation2 + $0x16] sm:$0x1] %v4037
        %v4039 = vld [vmem:[%s401] sm:$0xff]
        %v4040 = vld [vmem:[%s401 + $0x8] sm:$0xff]
        %v4041 = vld [vmem:[%s401 + $0x10] sm:$0xff]
        %v4042 = vld [vmem:[%s401 + $0x18] sm:$0xff]
        %v4043 = vld [vmem:[%s401 + $0x20] sm:$0xff]
        %v4044 = vld [vmem:[%s401 + $0x28] sm:$0xff]
        %v4045 = vld [vmem:[%s401 + $0x30] sm:$0xff]
        %v4046 = vld [vmem:[%s401 + $0x38] sm:$0xff]
        %v4047 = vld [vmem:[%s401 + $0x40] sm:$0xff]
        %v4048 = vld [vmem:[%s401 + $0x48] sm:$0xff]
        %v4049 = vld [vmem:[%s401 + $0x50] sm:$0xff]
        %v4050 = vld [vmem:[%s401 + $0x58] sm:$0xff]
        %v4051 = vld [vmem:[%s401 + $0x60] sm:$0xff]
        %v4052 = vld [vmem:[%s401 + $0x68] sm:$0xff]
        %v4053 = vld [vmem:[%s401 + $0x70] sm:$0xff]
        %v4054 = vld [vmem:[%s401 + $0x78] sm:$0xff]
        %4056 = vset.pattern.permute.xlu0 23
        %4057 = vperm.xlu0 %4056, %v4039
        %v4058 = vpop.permute.xlu0 %4057
        %4061 = vset.pattern.permute.xlu0 23
        %4062 = vperm.xlu0 %4061, %v4040
        %v4063 = vpop.permute.xlu0 %4062
        %4066 = vset.pattern.permute.xlu0 23
        %4067 = vperm.xlu0 %4066, %v4041
        %v4068 = vpop.permute.xlu0 %4067
        %4071 = vset.pattern.permute.xlu0 23
        %4072 = vperm.xlu0 %4071, %v4042
        %v4073 = vpop.permute.xlu0 %4072
        %4076 = vset.pattern.permute.xlu0 23
        %4077 = vperm.xlu0 %4076, %v4043
        %v4078 = vpop.permute.xlu0 %4077
        %4081 = vset.pattern.permute.xlu0 23
        %4082 = vperm.xlu0 %4081, %v4044
        %v4083 = vpop.permute.xlu0 %4082
        %4086 = vset.pattern.permute.xlu0 23
        %4087 = vperm.xlu0 %4086, %v4045
        %v4088 = vpop.permute.xlu0 %4087
        %4091 = vset.pattern.permute.xlu0 23
        %4092 = vperm.xlu0 %4091, %v4046
        %v4093 = vpop.permute.xlu0 %4092
        %4096 = vset.pattern.permute.xlu0 23
        %4097 = vperm.xlu0 %4096, %v4047
        %v4098 = vpop.permute.xlu0 %4097
        %4101 = vset.pattern.permute.xlu0 23
        %4102 = vperm.xlu0 %4101, %v4048
        %v4103 = vpop.permute.xlu0 %4102
        %4106 = vset.pattern.permute.xlu0 23
        %4107 = vperm.xlu0 %4106, %v4049
        %v4108 = vpop.permute.xlu0 %4107
        %4111 = vset.pattern.permute.xlu0 23
        %4112 = vperm.xlu0 %4111, %v4050
        %v4113 = vpop.permute.xlu0 %4112
        %4116 = vset.pattern.permute.xlu0 23
        %4117 = vperm.xlu0 %4116, %v4051
        %v4118 = vpop.permute.xlu0 %4117
        %4121 = vset.pattern.permute.xlu0 23
        %4122 = vperm.xlu0 %4121, %v4052
        %v4123 = vpop.permute.xlu0 %4122
        %4126 = vset.pattern.permute.xlu0 23
        %4127 = vperm.xlu0 %4126, %v4053
        %v4128 = vpop.permute.xlu0 %4127
        %4131 = vset.pattern.permute.xlu0 23
        %4132 = vperm.xlu0 %4131, %v4054
        %v4133 = vpop.permute.xlu0 %4132
        %v4135 = vsel %vm895, %v4058, -inf
        %v4136 = vsel %vm896, %v4063, -inf
        %v4137 = vsel %vm897, %v4068, -inf
        %v4138 = vsel %vm898, %v4073, -inf
        %v4139 = vsel %vm899, %v4078, -inf
        %v4140 = vsel %vm900, %v4083, -inf
        %v4141 = vsel %vm901, %v4088, -inf
        %v4142 = vsel %vm902, %v4093, -inf
        %v4143 = vsel %vm903, %v4098, -inf
        %v4144 = vsel %vm904, %v4103, -inf
        %v4145 = vsel %vm905, %v4108, -inf
        %v4146 = vsel %vm906, %v4113, -inf
        %v4147 = vsel %vm907, %v4118, -inf
        %v4148 = vsel %vm908, %v4123, -inf
        %v4149 = vsel %vm909, %v4128, -inf
        %v4150 = vsel %vm910, %v4133, -inf
        %v4151 = vmax.f32 %v4135, %v4139
        %v4152 = vmax.f32 %v4136, %v4140
        %v4153 = vmax.f32 %v4137, %v4141
        %v4154 = vmax.f32 %v4138, %v4142
        %v4155 = vmax.f32 %v4151, %v4143
        %v4156 = vmax.f32 %v4152, %v4144
        %v4157 = vmax.f32 %v4153, %v4145
        %v4158 = vmax.f32 %v4154, %v4146
        %v4159 = vmax.f32 %v4155, %v4147
        %v4160 = vmax.f32 %v4156, %v4148
        %v4161 = vmax.f32 %v4157, %v4149
        %v4162 = vmax.f32 %v4158, %v4150
        %v4163 = vmax.f32 %v4159, %v4160
        %v4164 = vmax.f32 %v4161, %v4162
        %v4165 = vmax.f32 %v4163, %v4164
        %v4166 = vrot.slane %v4165, 4
        %v4167 = vmax.f32 %v4165, %v4166
        %v4168 = vrot.slane %v4167, 2
        %v4169 = vmax.f32 %v4167, %v4168
        %v4170 = vrot.slane %v4169, 1
        %v4171 = vmax.f32 %v4169, %v4170
        %v4172 = vld [vmem:[#allocation2 + $0x17] sm:$0x1]
        %v4173 = vmax.f32 %v4172, %v4171
        %4174 = vst [vmem:[#allocation2 + $0x17] sm:$0x1] %v4173
        %v4175 = vld [vmem:[%s401] sm:$0xff]
        %v4176 = vld [vmem:[%s401 + $0x8] sm:$0xff]
        %v4177 = vld [vmem:[%s401 + $0x10] sm:$0xff]
        %v4178 = vld [vmem:[%s401 + $0x18] sm:$0xff]
        %v4179 = vld [vmem:[%s401 + $0x20] sm:$0xff]
        %v4180 = vld [vmem:[%s401 + $0x28] sm:$0xff]
        %v4181 = vld [vmem:[%s401 + $0x30] sm:$0xff]
        %v4182 = vld [vmem:[%s401 + $0x38] sm:$0xff]
        %v4183 = vld [vmem:[%s401 + $0x40] sm:$0xff]
        %v4184 = vld [vmem:[%s401 + $0x48] sm:$0xff]
        %v4185 = vld [vmem:[%s401 + $0x50] sm:$0xff]
        %v4186 = vld [vmem:[%s401 + $0x58] sm:$0xff]
        %v4187 = vld [vmem:[%s401 + $0x60] sm:$0xff]
        %v4188 = vld [vmem:[%s401 + $0x68] sm:$0xff]
        %v4189 = vld [vmem:[%s401 + $0x70] sm:$0xff]
        %v4190 = vld [vmem:[%s401 + $0x78] sm:$0xff]
        %4192 = vset.pattern.permute.xlu0 24
        %4193 = vperm.xlu0 %4192, %v4175
        %v4194 = vpop.permute.xlu0 %4193
        %4197 = vset.pattern.permute.xlu0 24
        %4198 = vperm.xlu0 %4197, %v4176
        %v4199 = vpop.permute.xlu0 %4198
        %4202 = vset.pattern.permute.xlu0 24
        %4203 = vperm.xlu0 %4202, %v4177
        %v4204 = vpop.permute.xlu0 %4203
        %4207 = vset.pattern.permute.xlu0 24
        %4208 = vperm.xlu0 %4207, %v4178
        %v4209 = vpop.permute.xlu0 %4208
        %4212 = vset.pattern.permute.xlu0 24
        %4213 = vperm.xlu0 %4212, %v4179
        %v4214 = vpop.permute.xlu0 %4213
        %4217 = vset.pattern.permute.xlu0 24
        %4218 = vperm.xlu0 %4217, %v4180
        %v4219 = vpop.permute.xlu0 %4218
        %4222 = vset.pattern.permute.xlu0 24
        %4223 = vperm.xlu0 %4222, %v4181
        %v4224 = vpop.permute.xlu0 %4223
        %4227 = vset.pattern.permute.xlu0 24
        %4228 = vperm.xlu0 %4227, %v4182
        %v4229 = vpop.permute.xlu0 %4228
        %4232 = vset.pattern.permute.xlu0 24
        %4233 = vperm.xlu0 %4232, %v4183
        %v4234 = vpop.permute.xlu0 %4233
        %4237 = vset.pattern.permute.xlu0 24
        %4238 = vperm.xlu0 %4237, %v4184
        %v4239 = vpop.permute.xlu0 %4238
        %4242 = vset.pattern.permute.xlu0 24
        %4243 = vperm.xlu0 %4242, %v4185
        %v4244 = vpop.permute.xlu0 %4243
        %4247 = vset.pattern.permute.xlu0 24
        %4248 = vperm.xlu0 %4247, %v4186
        %v4249 = vpop.permute.xlu0 %4248
        %4252 = vset.pattern.permute.xlu0 24
        %4253 = vperm.xlu0 %4252, %v4187
        %v4254 = vpop.permute.xlu0 %4253
        %4257 = vset.pattern.permute.xlu0 24
        %4258 = vperm.xlu0 %4257, %v4188
        %v4259 = vpop.permute.xlu0 %4258
        %4262 = vset.pattern.permute.xlu0 24
        %4263 = vperm.xlu0 %4262, %v4189
        %v4264 = vpop.permute.xlu0 %4263
        %4267 = vset.pattern.permute.xlu0 24
        %4268 = vperm.xlu0 %4267, %v4190
        %v4269 = vpop.permute.xlu0 %4268
        %v4271 = vsel %vm895, %v4194, -inf
        %v4272 = vsel %vm896, %v4199, -inf
        %v4273 = vsel %vm897, %v4204, -inf
        %v4274 = vsel %vm898, %v4209, -inf
        %v4275 = vsel %vm899, %v4214, -inf
        %v4276 = vsel %vm900, %v4219, -inf
        %v4277 = vsel %vm901, %v4224, -inf
        %v4278 = vsel %vm902, %v4229, -inf
        %v4279 = vsel %vm903, %v4234, -inf
        %v4280 = vsel %vm904, %v4239, -inf
        %v4281 = vsel %vm905, %v4244, -inf
        %v4282 = vsel %vm906, %v4249, -inf
        %v4283 = vsel %vm907, %v4254, -inf
        %v4284 = vsel %vm908, %v4259, -inf
        %v4285 = vsel %vm909, %v4264, -inf
        %v4286 = vsel %vm910, %v4269, -inf
        %v4287 = vmax.f32 %v4271, %v4275
        %v4288 = vmax.f32 %v4272, %v4276
        %v4289 = vmax.f32 %v4273, %v4277
        %v4290 = vmax.f32 %v4274, %v4278
        %v4291 = vmax.f32 %v4287, %v4279
        %v4292 = vmax.f32 %v4288, %v4280
        %v4293 = vmax.f32 %v4289, %v4281
        %v4294 = vmax.f32 %v4290, %v4282
        %v4295 = vmax.f32 %v4291, %v4283
        %v4296 = vmax.f32 %v4292, %v4284
        %v4297 = vmax.f32 %v4293, %v4285
        %v4298 = vmax.f32 %v4294, %v4286
        %v4299 = vmax.f32 %v4295, %v4296
        %v4300 = vmax.f32 %v4297, %v4298
        %v4301 = vmax.f32 %v4299, %v4300
        %v4302 = vrot.slane %v4301, 4
        %v4303 = vmax.f32 %v4301, %v4302
        %v4304 = vrot.slane %v4303, 2
        %v4305 = vmax.f32 %v4303, %v4304
        %v4306 = vrot.slane %v4305, 1
        %v4307 = vmax.f32 %v4305, %v4306
        %v4308 = vld [vmem:[#allocation2 + $0x18] sm:$0x1]
        %v4309 = vmax.f32 %v4308, %v4307
        %4310 = vst [vmem:[#allocation2 + $0x18] sm:$0x1] %v4309
        %v4311 = vld [vmem:[%s401] sm:$0xff]
        %v4312 = vld [vmem:[%s401 + $0x8] sm:$0xff]
        %v4313 = vld [vmem:[%s401 + $0x10] sm:$0xff]
        %v4314 = vld [vmem:[%s401 + $0x18] sm:$0xff]
        %v4315 = vld [vmem:[%s401 + $0x20] sm:$0xff]
        %v4316 = vld [vmem:[%s401 + $0x28] sm:$0xff]
        %v4317 = vld [vmem:[%s401 + $0x30] sm:$0xff]
        %v4318 = vld [vmem:[%s401 + $0x38] sm:$0xff]
        %v4319 = vld [vmem:[%s401 + $0x40] sm:$0xff]
        %v4320 = vld [vmem:[%s401 + $0x48] sm:$0xff]
        %v4321 = vld [vmem:[%s401 + $0x50] sm:$0xff]
        %v4322 = vld [vmem:[%s401 + $0x58] sm:$0xff]
        %v4323 = vld [vmem:[%s401 + $0x60] sm:$0xff]
        %v4324 = vld [vmem:[%s401 + $0x68] sm:$0xff]
        %v4325 = vld [vmem:[%s401 + $0x70] sm:$0xff]
        %v4326 = vld [vmem:[%s401 + $0x78] sm:$0xff]
        %4328 = vset.pattern.permute.xlu0 25
        %4329 = vperm.xlu0 %4328, %v4311
        %v4330 = vpop.permute.xlu0 %4329
        %4333 = vset.pattern.permute.xlu0 25
        %4334 = vperm.xlu0 %4333, %v4312
        %v4335 = vpop.permute.xlu0 %4334
        %4338 = vset.pattern.permute.xlu0 25
        %4339 = vperm.xlu0 %4338, %v4313
        %v4340 = vpop.permute.xlu0 %4339
        %4343 = vset.pattern.permute.xlu0 25
        %4344 = vperm.xlu0 %4343, %v4314
        %v4345 = vpop.permute.xlu0 %4344
        %4348 = vset.pattern.permute.xlu0 25
        %4349 = vperm.xlu0 %4348, %v4315
        %v4350 = vpop.permute.xlu0 %4349
        %4353 = vset.pattern.permute.xlu0 25
        %4354 = vperm.xlu0 %4353, %v4316
        %v4355 = vpop.permute.xlu0 %4354
        %4358 = vset.pattern.permute.xlu0 25
        %4359 = vperm.xlu0 %4358, %v4317
        %v4360 = vpop.permute.xlu0 %4359
        %4363 = vset.pattern.permute.xlu0 25
        %4364 = vperm.xlu0 %4363, %v4318
        %v4365 = vpop.permute.xlu0 %4364
        %4368 = vset.pattern.permute.xlu0 25
        %4369 = vperm.xlu0 %4368, %v4319
        %v4370 = vpop.permute.xlu0 %4369
        %4373 = vset.pattern.permute.xlu0 25
        %4374 = vperm.xlu0 %4373, %v4320
        %v4375 = vpop.permute.xlu0 %4374
        %4378 = vset.pattern.permute.xlu0 25
        %4379 = vperm.xlu0 %4378, %v4321
        %v4380 = vpop.permute.xlu0 %4379
        %4383 = vset.pattern.permute.xlu0 25
        %4384 = vperm.xlu0 %4383, %v4322
        %v4385 = vpop.permute.xlu0 %4384
        %4388 = vset.pattern.permute.xlu0 25
        %4389 = vperm.xlu0 %4388, %v4323
        %v4390 = vpop.permute.xlu0 %4389
        %4393 = vset.pattern.permute.xlu0 25
        %4394 = vperm.xlu0 %4393, %v4324
        %v4395 = vpop.permute.xlu0 %4394
        %4398 = vset.pattern.permute.xlu0 25
        %4399 = vperm.xlu0 %4398, %v4325
        %v4400 = vpop.permute.xlu0 %4399
        %4403 = vset.pattern.permute.xlu0 25
        %4404 = vperm.xlu0 %4403, %v4326
        %v4405 = vpop.permute.xlu0 %4404
        %v4407 = vsel %vm895, %v4330, -inf
        %v4408 = vsel %vm896, %v4335, -inf
        %v4409 = vsel %vm897, %v4340, -inf
        %v4410 = vsel %vm898, %v4345, -inf
        %v4411 = vsel %vm899, %v4350, -inf
        %v4412 = vsel %vm900, %v4355, -inf
        %v4413 = vsel %vm901, %v4360, -inf
        %v4414 = vsel %vm902, %v4365, -inf
        %v4415 = vsel %vm903, %v4370, -inf
        %v4416 = vsel %vm904, %v4375, -inf
        %v4417 = vsel %vm905, %v4380, -inf
        %v4418 = vsel %vm906, %v4385, -inf
        %v4419 = vsel %vm907, %v4390, -inf
        %v4420 = vsel %vm908, %v4395, -inf
        %v4421 = vsel %vm909, %v4400, -inf
        %v4422 = vsel %vm910, %v4405, -inf
        %v4423 = vmax.f32 %v4407, %v4411
        %v4424 = vmax.f32 %v4408, %v4412
        %v4425 = vmax.f32 %v4409, %v4413
        %v4426 = vmax.f32 %v4410, %v4414
        %v4427 = vmax.f32 %v4423, %v4415
        %v4428 = vmax.f32 %v4424, %v4416
        %v4429 = vmax.f32 %v4425, %v4417
        %v4430 = vmax.f32 %v4426, %v4418
        %v4431 = vmax.f32 %v4427, %v4419
        %v4432 = vmax.f32 %v4428, %v4420
        %v4433 = vmax.f32 %v4429, %v4421
        %v4434 = vmax.f32 %v4430, %v4422
        %v4435 = vmax.f32 %v4431, %v4432
        %v4436 = vmax.f32 %v4433, %v4434
        %v4437 = vmax.f32 %v4435, %v4436
        %v4438 = vrot.slane %v4437, 4
        %v4439 = vmax.f32 %v4437, %v4438
        %v4440 = vrot.slane %v4439, 2
        %v4441 = vmax.f32 %v4439, %v4440
        %v4442 = vrot.slane %v4441, 1
        %v4443 = vmax.f32 %v4441, %v4442
        %v4444 = vld [vmem:[#allocation2 + $0x19] sm:$0x1]
        %v4445 = vmax.f32 %v4444, %v4443
        %4446 = vst [vmem:[#allocation2 + $0x19] sm:$0x1] %v4445
        %v4447 = vld [vmem:[%s401] sm:$0xff]
        %v4448 = vld [vmem:[%s401 + $0x8] sm:$0xff]
        %v4449 = vld [vmem:[%s401 + $0x10] sm:$0xff]
        %v4450 = vld [vmem:[%s401 + $0x18] sm:$0xff]
        %v4451 = vld [vmem:[%s401 + $0x20] sm:$0xff]
        %v4452 = vld [vmem:[%s401 + $0x28] sm:$0xff]
        %v4453 = vld [vmem:[%s401 + $0x30] sm:$0xff]
        %v4454 = vld [vmem:[%s401 + $0x38] sm:$0xff]
        %v4455 = vld [vmem:[%s401 + $0x40] sm:$0xff]
        %v4456 = vld [vmem:[%s401 + $0x48] sm:$0xff]
        %v4457 = vld [vmem:[%s401 + $0x50] sm:$0xff]
        %v4458 = vld [vmem:[%s401 + $0x58] sm:$0xff]
        %v4459 = vld [vmem:[%s401 + $0x60] sm:$0xff]
        %v4460 = vld [vmem:[%s401 + $0x68] sm:$0xff]
        %v4461 = vld [vmem:[%s401 + $0x70] sm:$0xff]
        %v4462 = vld [vmem:[%s401 + $0x78] sm:$0xff]
        %4464 = vset.pattern.permute.xlu0 26
        %4465 = vperm.xlu0 %4464, %v4447
        %v4466 = vpop.permute.xlu0 %4465
        %4469 = vset.pattern.permute.xlu0 26
        %4470 = vperm.xlu0 %4469, %v4448
        %v4471 = vpop.permute.xlu0 %4470
        %4474 = vset.pattern.permute.xlu0 26
        %4475 = vperm.xlu0 %4474, %v4449
        %v4476 = vpop.permute.xlu0 %4475
        %4479 = vset.pattern.permute.xlu0 26
        %4480 = vperm.xlu0 %4479, %v4450
        %v4481 = vpop.permute.xlu0 %4480
        %4484 = vset.pattern.permute.xlu0 26
        %4485 = vperm.xlu0 %4484, %v4451
        %v4486 = vpop.permute.xlu0 %4485
        %4489 = vset.pattern.permute.xlu0 26
        %4490 = vperm.xlu0 %4489, %v4452
        %v4491 = vpop.permute.xlu0 %4490
        %4494 = vset.pattern.permute.xlu0 26
        %4495 = vperm.xlu0 %4494, %v4453
        %v4496 = vpop.permute.xlu0 %4495
        %4499 = vset.pattern.permute.xlu0 26
        %4500 = vperm.xlu0 %4499, %v4454
        %v4501 = vpop.permute.xlu0 %4500
        %4504 = vset.pattern.permute.xlu0 26
        %4505 = vperm.xlu0 %4504, %v4455
        %v4506 = vpop.permute.xlu0 %4505
        %4509 = vset.pattern.permute.xlu0 26
        %4510 = vperm.xlu0 %4509, %v4456
        %v4511 = vpop.permute.xlu0 %4510
        %4514 = vset.pattern.permute.xlu0 26
        %4515 = vperm.xlu0 %4514, %v4457
        %v4516 = vpop.permute.xlu0 %4515
        %4519 = vset.pattern.permute.xlu0 26
        %4520 = vperm.xlu0 %4519, %v4458
        %v4521 = vpop.permute.xlu0 %4520
        %4524 = vset.pattern.permute.xlu0 26
        %4525 = vperm.xlu0 %4524, %v4459
        %v4526 = vpop.permute.xlu0 %4525
        %4529 = vset.pattern.permute.xlu0 26
        %4530 = vperm.xlu0 %4529, %v4460
        %v4531 = vpop.permute.xlu0 %4530
        %4534 = vset.pattern.permute.xlu0 26
        %4535 = vperm.xlu0 %4534, %v4461
        %v4536 = vpop.permute.xlu0 %4535
        %4539 = vset.pattern.permute.xlu0 26
        %4540 = vperm.xlu0 %4539, %v4462
        %v4541 = vpop.permute.xlu0 %4540
        %v4543 = vsel %vm895, %v4466, -inf
        %v4544 = vsel %vm896, %v4471, -inf
        %v4545 = vsel %vm897, %v4476, -inf
        %v4546 = vsel %vm898, %v4481, -inf
        %v4547 = vsel %vm899, %v4486, -inf
        %v4548 = vsel %vm900, %v4491, -inf
        %v4549 = vsel %vm901, %v4496, -inf
        %v4550 = vsel %vm902, %v4501, -inf
        %v4551 = vsel %vm903, %v4506, -inf
        %v4552 = vsel %vm904, %v4511, -inf
        %v4553 = vsel %vm905, %v4516, -inf
        %v4554 = vsel %vm906, %v4521, -inf
        %v4555 = vsel %vm907, %v4526, -inf
        %v4556 = vsel %vm908, %v4531, -inf
        %v4557 = vsel %vm909, %v4536, -inf
        %v4558 = vsel %vm910, %v4541, -inf
        %v4559 = vmax.f32 %v4543, %v4547
        %v4560 = vmax.f32 %v4544, %v4548
        %v4561 = vmax.f32 %v4545, %v4549
        %v4562 = vmax.f32 %v4546, %v4550
        %v4563 = vmax.f32 %v4559, %v4551
        %v4564 = vmax.f32 %v4560, %v4552
        %v4565 = vmax.f32 %v4561, %v4553
        %v4566 = vmax.f32 %v4562, %v4554
        %v4567 = vmax.f32 %v4563, %v4555
        %v4568 = vmax.f32 %v4564, %v4556
        %v4569 = vmax.f32 %v4565, %v4557
        %v4570 = vmax.f32 %v4566, %v4558
        %v4571 = vmax.f32 %v4567, %v4568
        %v4572 = vmax.f32 %v4569, %v4570
        %v4573 = vmax.f32 %v4571, %v4572
        %v4574 = vrot.slane %v4573, 4
        %v4575 = vmax.f32 %v4573, %v4574
        %v4576 = vrot.slane %v4575, 2
        %v4577 = vmax.f32 %v4575, %v4576
        %v4578 = vrot.slane %v4577, 1
        %v4579 = vmax.f32 %v4577, %v4578
        %v4580 = vld [vmem:[#allocation2 + $0x1a] sm:$0x1]
        %v4581 = vmax.f32 %v4580, %v4579
        %4582 = vst [vmem:[#allocation2 + $0x1a] sm:$0x1] %v4581
        %v4583 = vld [vmem:[%s401] sm:$0xff]
        %v4584 = vld [vmem:[%s401 + $0x8] sm:$0xff]
        %v4585 = vld [vmem:[%s401 + $0x10] sm:$0xff]
        %v4586 = vld [vmem:[%s401 + $0x18] sm:$0xff]
        %v4587 = vld [vmem:[%s401 + $0x20] sm:$0xff]
        %v4588 = vld [vmem:[%s401 + $0x28] sm:$0xff]
        %v4589 = vld [vmem:[%s401 + $0x30] sm:$0xff]
        %v4590 = vld [vmem:[%s401 + $0x38] sm:$0xff]
        %v4591 = vld [vmem:[%s401 + $0x40] sm:$0xff]
        %v4592 = vld [vmem:[%s401 + $0x48] sm:$0xff]
        %v4593 = vld [vmem:[%s401 + $0x50] sm:$0xff]
        %v4594 = vld [vmem:[%s401 + $0x58] sm:$0xff]
        %v4595 = vld [vmem:[%s401 + $0x60] sm:$0xff]
        %v4596 = vld [vmem:[%s401 + $0x68] sm:$0xff]
        %v4597 = vld [vmem:[%s401 + $0x70] sm:$0xff]
        %v4598 = vld [vmem:[%s401 + $0x78] sm:$0xff]
        %4600 = vset.pattern.permute.xlu0 27
        %4601 = vperm.xlu0 %4600, %v4583
        %v4602 = vpop.permute.xlu0 %4601
        %4605 = vset.pattern.permute.xlu0 27
        %4606 = vperm.xlu0 %4605, %v4584
        %v4607 = vpop.permute.xlu0 %4606
        %4610 = vset.pattern.permute.xlu0 27
        %4611 = vperm.xlu0 %4610, %v4585
        %v4612 = vpop.permute.xlu0 %4611
        %4615 = vset.pattern.permute.xlu0 27
        %4616 = vperm.xlu0 %4615, %v4586
        %v4617 = vpop.permute.xlu0 %4616
        %4620 = vset.pattern.permute.xlu0 27
        %4621 = vperm.xlu0 %4620, %v4587
        %v4622 = vpop.permute.xlu0 %4621
        %4625 = vset.pattern.permute.xlu0 27
        %4626 = vperm.xlu0 %4625, %v4588
        %v4627 = vpop.permute.xlu0 %4626
        %4630 = vset.pattern.permute.xlu0 27
        %4631 = vperm.xlu0 %4630, %v4589
        %v4632 = vpop.permute.xlu0 %4631
        %4635 = vset.pattern.permute.xlu0 27
        %4636 = vperm.xlu0 %4635, %v4590
        %v4637 = vpop.permute.xlu0 %4636
        %4640 = vset.pattern.permute.xlu0 27
        %4641 = vperm.xlu0 %4640, %v4591
        %v4642 = vpop.permute.xlu0 %4641
        %4645 = vset.pattern.permute.xlu0 27
        %4646 = vperm.xlu0 %4645, %v4592
        %v4647 = vpop.permute.xlu0 %4646
        %4650 = vset.pattern.permute.xlu0 27
        %4651 = vperm.xlu0 %4650, %v4593
        %v4652 = vpop.permute.xlu0 %4651
        %4655 = vset.pattern.permute.xlu0 27
        %4656 = vperm.xlu0 %4655, %v4594
        %v4657 = vpop.permute.xlu0 %4656
        %4660 = vset.pattern.permute.xlu0 27
        %4661 = vperm.xlu0 %4660, %v4595
        %v4662 = vpop.permute.xlu0 %4661
        %4665 = vset.pattern.permute.xlu0 27
        %4666 = vperm.xlu0 %4665, %v4596
        %v4667 = vpop.permute.xlu0 %4666
        %4670 = vset.pattern.permute.xlu0 27
        %4671 = vperm.xlu0 %4670, %v4597
        %v4672 = vpop.permute.xlu0 %4671
        %4675 = vset.pattern.permute.xlu0 27
        %4676 = vperm.xlu0 %4675, %v4598
        %v4677 = vpop.permute.xlu0 %4676
        %v4679 = vsel %vm895, %v4602, -inf
        %v4680 = vsel %vm896, %v4607, -inf
        %v4681 = vsel %vm897, %v4612, -inf
        %v4682 = vsel %vm898, %v4617, -inf
        %v4683 = vsel %vm899, %v4622, -inf
        %v4684 = vsel %vm900, %v4627, -inf
        %v4685 = vsel %vm901, %v4632, -inf
        %v4686 = vsel %vm902, %v4637, -inf
        %v4687 = vsel %vm903, %v4642, -inf
        %v4688 = vsel %vm904, %v4647, -inf
        %v4689 = vsel %vm905, %v4652, -inf
        %v4690 = vsel %vm906, %v4657, -inf
        %v4691 = vsel %vm907, %v4662, -inf
        %v4692 = vsel %vm908, %v4667, -inf
        %v4693 = vsel %vm909, %v4672, -inf
        %v4694 = vsel %vm910, %v4677, -inf
        %v4695 = vmax.f32 %v4679, %v4683
        %v4696 = vmax.f32 %v4680, %v4684
        %v4697 = vmax.f32 %v4681, %v4685
        %v4698 = vmax.f32 %v4682, %v4686
        %v4699 = vmax.f32 %v4695, %v4687
        %v4700 = vmax.f32 %v4696, %v4688
        %v4701 = vmax.f32 %v4697, %v4689
        %v4702 = vmax.f32 %v4698, %v4690
        %v4703 = vmax.f32 %v4699, %v4691
        %v4704 = vmax.f32 %v4700, %v4692
        %v4705 = vmax.f32 %v4701, %v4693
        %v4706 = vmax.f32 %v4702, %v4694
        %v4707 = vmax.f32 %v4703, %v4704
        %v4708 = vmax.f32 %v4705, %v4706
        %v4709 = vmax.f32 %v4707, %v4708
        %v4710 = vrot.slane %v4709, 4
        %v4711 = vmax.f32 %v4709, %v4710
        %v4712 = vrot.slane %v4711, 2
        %v4713 = vmax.f32 %v4711, %v4712
        %v4714 = vrot.slane %v4713, 1
        %v4715 = vmax.f32 %v4713, %v4714
        %v4716 = vld [vmem:[#allocation2 + $0x1b] sm:$0x1]
        %v4717 = vmax.f32 %v4716, %v4715
        %4718 = vst [vmem:[#allocation2 + $0x1b] sm:$0x1] %v4717
        %v4719 = vld [vmem:[%s401] sm:$0xff]
        %v4720 = vld [vmem:[%s401 + $0x8] sm:$0xff]
        %v4721 = vld [vmem:[%s401 + $0x10] sm:$0xff]
        %v4722 = vld [vmem:[%s401 + $0x18] sm:$0xff]
        %v4723 = vld [vmem:[%s401 + $0x20] sm:$0xff]
        %v4724 = vld [vmem:[%s401 + $0x28] sm:$0xff]
        %v4725 = vld [vmem:[%s401 + $0x30] sm:$0xff]
        %v4726 = vld [vmem:[%s401 + $0x38] sm:$0xff]
        %v4727 = vld [vmem:[%s401 + $0x40] sm:$0xff]
        %v4728 = vld [vmem:[%s401 + $0x48] sm:$0xff]
        %v4729 = vld [vmem:[%s401 + $0x50] sm:$0xff]
        %v4730 = vld [vmem:[%s401 + $0x58] sm:$0xff]
        %v4731 = vld [vmem:[%s401 + $0x60] sm:$0xff]
        %v4732 = vld [vmem:[%s401 + $0x68] sm:$0xff]
        %v4733 = vld [vmem:[%s401 + $0x70] sm:$0xff]
        %v4734 = vld [vmem:[%s401 + $0x78] sm:$0xff]
        %4736 = vset.pattern.permute.xlu0 28
        %4737 = vperm.xlu0 %4736, %v4719
        %v4738 = vpop.permute.xlu0 %4737
        %4741 = vset.pattern.permute.xlu0 28
        %4742 = vperm.xlu0 %4741, %v4720
        %v4743 = vpop.permute.xlu0 %4742
        %4746 = vset.pattern.permute.xlu0 28
        %4747 = vperm.xlu0 %4746, %v4721
        %v4748 = vpop.permute.xlu0 %4747
        %4751 = vset.pattern.permute.xlu0 28
        %4752 = vperm.xlu0 %4751, %v4722
        %v4753 = vpop.permute.xlu0 %4752
        %4756 = vset.pattern.permute.xlu0 28
        %4757 = vperm.xlu0 %4756, %v4723
        %v4758 = vpop.permute.xlu0 %4757
        %4761 = vset.pattern.permute.xlu0 28
        %4762 = vperm.xlu0 %4761, %v4724
        %v4763 = vpop.permute.xlu0 %4762
        %4766 = vset.pattern.permute.xlu0 28
        %4767 = vperm.xlu0 %4766, %v4725
        %v4768 = vpop.permute.xlu0 %4767
        %4771 = vset.pattern.permute.xlu0 28
        %4772 = vperm.xlu0 %4771, %v4726
        %v4773 = vpop.permute.xlu0 %4772
        %4776 = vset.pattern.permute.xlu0 28
        %4777 = vperm.xlu0 %4776, %v4727
        %v4778 = vpop.permute.xlu0 %4777
        %4781 = vset.pattern.permute.xlu0 28
        %4782 = vperm.xlu0 %4781, %v4728
        %v4783 = vpop.permute.xlu0 %4782
        %4786 = vset.pattern.permute.xlu0 28
        %4787 = vperm.xlu0 %4786, %v4729
        %v4788 = vpop.permute.xlu0 %4787
        %4791 = vset.pattern.permute.xlu0 28
        %4792 = vperm.xlu0 %4791, %v4730
        %v4793 = vpop.permute.xlu0 %4792
        %4796 = vset.pattern.permute.xlu0 28
        %4797 = vperm.xlu0 %4796, %v4731
        %v4798 = vpop.permute.xlu0 %4797
        %4801 = vset.pattern.permute.xlu0 28
        %4802 = vperm.xlu0 %4801, %v4732
        %v4803 = vpop.permute.xlu0 %4802
        %4806 = vset.pattern.permute.xlu0 28
        %4807 = vperm.xlu0 %4806, %v4733
        %v4808 = vpop.permute.xlu0 %4807
        %4811 = vset.pattern.permute.xlu0 28
        %4812 = vperm.xlu0 %4811, %v4734
        %v4813 = vpop.permute.xlu0 %4812
        %v4815 = vsel %vm895, %v4738, -inf
        %v4816 = vsel %vm896, %v4743, -inf
        %v4817 = vsel %vm897, %v4748, -inf
        %v4818 = vsel %vm898, %v4753, -inf
        %v4819 = vsel %vm899, %v4758, -inf
        %v4820 = vsel %vm900, %v4763, -inf
        %v4821 = vsel %vm901, %v4768, -inf
        %v4822 = vsel %vm902, %v4773, -inf
        %v4823 = vsel %vm903, %v4778, -inf
        %v4824 = vsel %vm904, %v4783, -inf
        %v4825 = vsel %vm905, %v4788, -inf
        %v4826 = vsel %vm906, %v4793, -inf
        %v4827 = vsel %vm907, %v4798, -inf
        %v4828 = vsel %vm908, %v4803, -inf
        %v4829 = vsel %vm909, %v4808, -inf
        %v4830 = vsel %vm910, %v4813, -inf
        %v4831 = vmax.f32 %v4815, %v4819
        %v4832 = vmax.f32 %v4816, %v4820
        %v4833 = vmax.f32 %v4817, %v4821
        %v4834 = vmax.f32 %v4818, %v4822
        %v4835 = vmax.f32 %v4831, %v4823
        %v4836 = vmax.f32 %v4832, %v4824
        %v4837 = vmax.f32 %v4833, %v4825
        %v4838 = vmax.f32 %v4834, %v4826
        %v4839 = vmax.f32 %v4835, %v4827
        %v4840 = vmax.f32 %v4836, %v4828
        %v4841 = vmax.f32 %v4837, %v4829
        %v4842 = vmax.f32 %v4838, %v4830
        %v4843 = vmax.f32 %v4839, %v4840
        %v4844 = vmax.f32 %v4841, %v4842
        %v4845 = vmax.f32 %v4843, %v4844
        %v4846 = vrot.slane %v4845, 4
        %v4847 = vmax.f32 %v4845, %v4846
        %v4848 = vrot.slane %v4847, 2
        %v4849 = vmax.f32 %v4847, %v4848
        %v4850 = vrot.slane %v4849, 1
        %v4851 = vmax.f32 %v4849, %v4850
        %v4852 = vld [vmem:[#allocation2 + $0x1c] sm:$0x1]
        %v4853 = vmax.f32 %v4852, %v4851
        %4854 = vst [vmem:[#allocation2 + $0x1c] sm:$0x1] %v4853
        %v4855 = vld [vmem:[%s401] sm:$0xff]
        %v4856 = vld [vmem:[%s401 + $0x8] sm:$0xff]
        %v4857 = vld [vmem:[%s401 + $0x10] sm:$0xff]
        %v4858 = vld [vmem:[%s401 + $0x18] sm:$0xff]
        %v4859 = vld [vmem:[%s401 + $0x20] sm:$0xff]
        %v4860 = vld [vmem:[%s401 + $0x28] sm:$0xff]
        %v4861 = vld [vmem:[%s401 + $0x30] sm:$0xff]
        %v4862 = vld [vmem:[%s401 + $0x38] sm:$0xff]
        %v4863 = vld [vmem:[%s401 + $0x40] sm:$0xff]
        %v4864 = vld [vmem:[%s401 + $0x48] sm:$0xff]
        %v4865 = vld [vmem:[%s401 + $0x50] sm:$0xff]
        %v4866 = vld [vmem:[%s401 + $0x58] sm:$0xff]
        %v4867 = vld [vmem:[%s401 + $0x60] sm:$0xff]
        %v4868 = vld [vmem:[%s401 + $0x68] sm:$0xff]
        %v4869 = vld [vmem:[%s401 + $0x70] sm:$0xff]
        %v4870 = vld [vmem:[%s401 + $0x78] sm:$0xff]
        %4872 = vset.pattern.permute.xlu0 29
        %4873 = vperm.xlu0 %4872, %v4855
        %v4874 = vpop.permute.xlu0 %4873
        %4877 = vset.pattern.permute.xlu0 29
        %4878 = vperm.xlu0 %4877, %v4856
        %v4879 = vpop.permute.xlu0 %4878
        %4882 = vset.pattern.permute.xlu0 29
        %4883 = vperm.xlu0 %4882, %v4857
        %v4884 = vpop.permute.xlu0 %4883
        %4887 = vset.pattern.permute.xlu0 29
        %4888 = vperm.xlu0 %4887, %v4858
        %v4889 = vpop.permute.xlu0 %4888
        %4892 = vset.pattern.permute.xlu0 29
        %4893 = vperm.xlu0 %4892, %v4859
        %v4894 = vpop.permute.xlu0 %4893
        %4897 = vset.pattern.permute.xlu0 29
        %4898 = vperm.xlu0 %4897, %v4860
        %v4899 = vpop.permute.xlu0 %4898
        %4902 = vset.pattern.permute.xlu0 29
        %4903 = vperm.xlu0 %4902, %v4861
        %v4904 = vpop.permute.xlu0 %4903
        %4907 = vset.pattern.permute.xlu0 29
        %4908 = vperm.xlu0 %4907, %v4862
        %v4909 = vpop.permute.xlu0 %4908
        %4912 = vset.pattern.permute.xlu0 29
        %4913 = vperm.xlu0 %4912, %v4863
        %v4914 = vpop.permute.xlu0 %4913
        %4917 = vset.pattern.permute.xlu0 29
        %4918 = vperm.xlu0 %4917, %v4864
        %v4919 = vpop.permute.xlu0 %4918
        %4922 = vset.pattern.permute.xlu0 29
        %4923 = vperm.xlu0 %4922, %v4865
        %v4924 = vpop.permute.xlu0 %4923
        %4927 = vset.pattern.permute.xlu0 29
        %4928 = vperm.xlu0 %4927, %v4866
        %v4929 = vpop.permute.xlu0 %4928
        %4932 = vset.pattern.permute.xlu0 29
        %4933 = vperm.xlu0 %4932, %v4867
        %v4934 = vpop.permute.xlu0 %4933
        %4937 = vset.pattern.permute.xlu0 29
        %4938 = vperm.xlu0 %4937, %v4868
        %v4939 = vpop.permute.xlu0 %4938
        %4942 = vset.pattern.permute.xlu0 29
        %4943 = vperm.xlu0 %4942, %v4869
        %v4944 = vpop.permute.xlu0 %4943
        %4947 = vset.pattern.permute.xlu0 29
        %4948 = vperm.xlu0 %4947, %v4870
        %v4949 = vpop.permute.xlu0 %4948
        %v4951 = vsel %vm895, %v4874, -inf
        %v4952 = vsel %vm896, %v4879, -inf
        %v4953 = vsel %vm897, %v4884, -inf
        %v4954 = vsel %vm898, %v4889, -inf
        %v4955 = vsel %vm899, %v4894, -inf
        %v4956 = vsel %vm900, %v4899, -inf
        %v4957 = vsel %vm901, %v4904, -inf
        %v4958 = vsel %vm902, %v4909, -inf
        %v4959 = vsel %vm903, %v4914, -inf
        %v4960 = vsel %vm904, %v4919, -inf
        %v4961 = vsel %vm905, %v4924, -inf
        %v4962 = vsel %vm906, %v4929, -inf
        %v4963 = vsel %vm907, %v4934, -inf
        %v4964 = vsel %vm908, %v4939, -inf
        %v4965 = vsel %vm909, %v4944, -inf
        %v4966 = vsel %vm910, %v4949, -inf
        %v4967 = vmax.f32 %v4951, %v4955
        %v4968 = vmax.f32 %v4952, %v4956
        %v4969 = vmax.f32 %v4953, %v4957
        %v4970 = vmax.f32 %v4954, %v4958
        %v4971 = vmax.f32 %v4967, %v4959
        %v4972 = vmax.f32 %v4968, %v4960
        %v4973 = vmax.f32 %v4969, %v4961
        %v4974 = vmax.f32 %v4970, %v4962
        %v4975 = vmax.f32 %v4971, %v4963
        %v4976 = vmax.f32 %v4972, %v4964
        %v4977 = vmax.f32 %v4973, %v4965
        %v4978 = vmax.f32 %v4974, %v4966
        %v4979 = vmax.f32 %v4975, %v4976
        %v4980 = vmax.f32 %v4977, %v4978
        %v4981 = vmax.f32 %v4979, %v4980
        %v4982 = vrot.slane %v4981, 4
        %v4983 = vmax.f32 %v4981, %v4982
        %v4984 = vrot.slane %v4983, 2
        %v4985 = vmax.f32 %v4983, %v4984
        %v4986 = vrot.slane %v4985, 1
        %v4987 = vmax.f32 %v4985, %v4986
        %v4988 = vld [vmem:[#allocation2 + $0x1d] sm:$0x1]
        %v4989 = vmax.f32 %v4988, %v4987
        %4990 = vst [vmem:[#allocation2 + $0x1d] sm:$0x1] %v4989
        %v4991 = vld [vmem:[%s401] sm:$0xff]
        %v4992 = vld [vmem:[%s401 + $0x8] sm:$0xff]
        %v4993 = vld [vmem:[%s401 + $0x10] sm:$0xff]
        %v4994 = vld [vmem:[%s401 + $0x18] sm:$0xff]
        %v4995 = vld [vmem:[%s401 + $0x20] sm:$0xff]
        %v4996 = vld [vmem:[%s401 + $0x28] sm:$0xff]
        %v4997 = vld [vmem:[%s401 + $0x30] sm:$0xff]
        %v4998 = vld [vmem:[%s401 + $0x38] sm:$0xff]
        %v4999 = vld [vmem:[%s401 + $0x40] sm:$0xff]
        %v5000 = vld [vmem:[%s401 + $0x48] sm:$0xff]
        %v5001 = vld [vmem:[%s401 + $0x50] sm:$0xff]
        %v5002 = vld [vmem:[%s401 + $0x58] sm:$0xff]
        %v5003 = vld [vmem:[%s401 + $0x60] sm:$0xff]
        %v5004 = vld [vmem:[%s401 + $0x68] sm:$0xff]
        %v5005 = vld [vmem:[%s401 + $0x70] sm:$0xff]
        %v5006 = vld [vmem:[%s401 + $0x78] sm:$0xff]
        %5008 = vset.pattern.permute.xlu0 30
        %5009 = vperm.xlu0 %5008, %v4991
        %v5010 = vpop.permute.xlu0 %5009
        %5013 = vset.pattern.permute.xlu0 30
        %5014 = vperm.xlu0 %5013, %v4992
        %v5015 = vpop.permute.xlu0 %5014
        %5018 = vset.pattern.permute.xlu0 30
        %5019 = vperm.xlu0 %5018, %v4993
        %v5020 = vpop.permute.xlu0 %5019
        %5023 = vset.pattern.permute.xlu0 30
        %5024 = vperm.xlu0 %5023, %v4994
        %v5025 = vpop.permute.xlu0 %5024
        %5028 = vset.pattern.permute.xlu0 30
        %5029 = vperm.xlu0 %5028, %v4995
        %v5030 = vpop.permute.xlu0 %5029
        %5033 = vset.pattern.permute.xlu0 30
        %5034 = vperm.xlu0 %5033, %v4996
        %v5035 = vpop.permute.xlu0 %5034
        %5038 = vset.pattern.permute.xlu0 30
        %5039 = vperm.xlu0 %5038, %v4997
        %v5040 = vpop.permute.xlu0 %5039
        %5043 = vset.pattern.permute.xlu0 30
        %5044 = vperm.xlu0 %5043, %v4998
        %v5045 = vpop.permute.xlu0 %5044
        %5048 = vset.pattern.permute.xlu0 30
        %5049 = vperm.xlu0 %5048, %v4999
        %v5050 = vpop.permute.xlu0 %5049
        %5053 = vset.pattern.permute.xlu0 30
        %5054 = vperm.xlu0 %5053, %v5000
        %v5055 = vpop.permute.xlu0 %5054
        %5058 = vset.pattern.permute.xlu0 30
        %5059 = vperm.xlu0 %5058, %v5001
        %v5060 = vpop.permute.xlu0 %5059
        %5063 = vset.pattern.permute.xlu0 30
        %5064 = vperm.xlu0 %5063, %v5002
        %v5065 = vpop.permute.xlu0 %5064
        %5068 = vset.pattern.permute.xlu0 30
        %5069 = vperm.xlu0 %5068, %v5003
        %v5070 = vpop.permute.xlu0 %5069
        %5073 = vset.pattern.permute.xlu0 30
        %5074 = vperm.xlu0 %5073, %v5004
        %v5075 = vpop.permute.xlu0 %5074
        %5078 = vset.pattern.permute.xlu0 30
        %5079 = vperm.xlu0 %5078, %v5005
        %v5080 = vpop.permute.xlu0 %5079
        %5083 = vset.pattern.permute.xlu0 30
        %5084 = vperm.xlu0 %5083, %v5006
        %v5085 = vpop.permute.xlu0 %5084
        %v5087 = vsel %vm895, %v5010, -inf
        %v5088 = vsel %vm896, %v5015, -inf
        %v5089 = vsel %vm897, %v5020, -inf
        %v5090 = vsel %vm898, %v5025, -inf
        %v5091 = vsel %vm899, %v5030, -inf
        %v5092 = vsel %vm900, %v5035, -inf
        %v5093 = vsel %vm901, %v5040, -inf
        %v5094 = vsel %vm902, %v5045, -inf
        %v5095 = vsel %vm903, %v5050, -inf
        %v5096 = vsel %vm904, %v5055, -inf
        %v5097 = vsel %vm905, %v5060, -inf
        %v5098 = vsel %vm906, %v5065, -inf
        %v5099 = vsel %vm907, %v5070, -inf
        %v5100 = vsel %vm908, %v5075, -inf
        %v5101 = vsel %vm909, %v5080, -inf
        %v5102 = vsel %vm910, %v5085, -inf
        %v5103 = vmax.f32 %v5087, %v5091
        %v5104 = vmax.f32 %v5088, %v5092
        %v5105 = vmax.f32 %v5089, %v5093
        %v5106 = vmax.f32 %v5090, %v5094
        %v5107 = vmax.f32 %v5103, %v5095
        %v5108 = vmax.f32 %v5104, %v5096
        %v5109 = vmax.f32 %v5105, %v5097
        %v5110 = vmax.f32 %v5106, %v5098
        %v5111 = vmax.f32 %v5107, %v5099
        %v5112 = vmax.f32 %v5108, %v5100
        %v5113 = vmax.f32 %v5109, %v5101
        %v5114 = vmax.f32 %v5110, %v5102
        %v5115 = vmax.f32 %v5111, %v5112
        %v5116 = vmax.f32 %v5113, %v5114
        %v5117 = vmax.f32 %v5115, %v5116
        %v5118 = vrot.slane %v5117, 4
        %v5119 = vmax.f32 %v5117, %v5118
        %v5120 = vrot.slane %v5119, 2
        %v5121 = vmax.f32 %v5119, %v5120
        %v5122 = vrot.slane %v5121, 1
        %v5123 = vmax.f32 %v5121, %v5122
        %v5124 = vld [vmem:[#allocation2 + $0x1e] sm:$0x1]
        %v5125 = vmax.f32 %v5124, %v5123
        %5126 = vst [vmem:[#allocation2 + $0x1e] sm:$0x1] %v5125
        %v5127 = vld [vmem:[%s401] sm:$0xff]
        %v5128 = vld [vmem:[%s401 + $0x8] sm:$0xff]
        %v5129 = vld [vmem:[%s401 + $0x10] sm:$0xff]
        %v5130 = vld [vmem:[%s401 + $0x18] sm:$0xff]
        %v5131 = vld [vmem:[%s401 + $0x20] sm:$0xff]
        %v5132 = vld [vmem:[%s401 + $0x28] sm:$0xff]
        %v5133 = vld [vmem:[%s401 + $0x30] sm:$0xff]
        %v5134 = vld [vmem:[%s401 + $0x38] sm:$0xff]
        %v5135 = vld [vmem:[%s401 + $0x40] sm:$0xff]
        %v5136 = vld [vmem:[%s401 + $0x48] sm:$0xff]
        %v5137 = vld [vmem:[%s401 + $0x50] sm:$0xff]
        %v5138 = vld [vmem:[%s401 + $0x58] sm:$0xff]
        %v5139 = vld [vmem:[%s401 + $0x60] sm:$0xff]
        %v5140 = vld [vmem:[%s401 + $0x68] sm:$0xff]
        %v5141 = vld [vmem:[%s401 + $0x70] sm:$0xff]
        %v5142 = vld [vmem:[%s401 + $0x78] sm:$0xff]
        %5144 = vset.pattern.permute.xlu0 31
        %5145 = vperm.xlu0 %5144, %v5127
        %v5146 = vpop.permute.xlu0 %5145
        %5149 = vset.pattern.permute.xlu0 31
        %5150 = vperm.xlu0 %5149, %v5128
        %v5151 = vpop.permute.xlu0 %5150
        %5154 = vset.pattern.permute.xlu0 31
        %5155 = vperm.xlu0 %5154, %v5129
        %v5156 = vpop.permute.xlu0 %5155
        %5159 = vset.pattern.permute.xlu0 31
        %5160 = vperm.xlu0 %5159, %v5130
        %v5161 = vpop.permute.xlu0 %5160
        %5164 = vset.pattern.permute.xlu0 31
        %5165 = vperm.xlu0 %5164, %v5131
        %v5166 = vpop.permute.xlu0 %5165
        %5169 = vset.pattern.permute.xlu0 31
        %5170 = vperm.xlu0 %5169, %v5132
        %v5171 = vpop.permute.xlu0 %5170
        %5174 = vset.pattern.permute.xlu0 31
        %5175 = vperm.xlu0 %5174, %v5133
        %v5176 = vpop.permute.xlu0 %5175
        %5179 = vset.pattern.permute.xlu0 31
        %5180 = vperm.xlu0 %5179, %v5134
        %v5181 = vpop.permute.xlu0 %5180
        %5184 = vset.pattern.permute.xlu0 31
        %5185 = vperm.xlu0 %5184, %v5135
        %v5186 = vpop.permute.xlu0 %5185
        %5189 = vset.pattern.permute.xlu0 31
        %5190 = vperm.xlu0 %5189, %v5136
        %v5191 = vpop.permute.xlu0 %5190
        %5194 = vset.pattern.permute.xlu0 31
        %5195 = vperm.xlu0 %5194, %v5137
        %v5196 = vpop.permute.xlu0 %5195
        %5199 = vset.pattern.permute.xlu0 31
        %5200 = vperm.xlu0 %5199, %v5138
        %v5201 = vpop.permute.xlu0 %5200
        %5204 = vset.pattern.permute.xlu0 31
        %5205 = vperm.xlu0 %5204, %v5139
        %v5206 = vpop.permute.xlu0 %5205
        %5209 = vset.pattern.permute.xlu0 31
        %5210 = vperm.xlu0 %5209, %v5140
        %v5211 = vpop.permute.xlu0 %5210
        %5214 = vset.pattern.permute.xlu0 31
        %5215 = vperm.xlu0 %5214, %v5141
        %v5216 = vpop.permute.xlu0 %5215
        %5219 = vset.pattern.permute.xlu0 31
        %5220 = vperm.xlu0 %5219, %v5142
        %v5221 = vpop.permute.xlu0 %5220
        %v5223 = vsel %vm895, %v5146, -inf
        %v5224 = vsel %vm896, %v5151, -inf
        %v5225 = vsel %vm897, %v5156, -inf
        %v5226 = vsel %vm898, %v5161, -inf
        %v5227 = vsel %vm899, %v5166, -inf
        %v5228 = vsel %vm900, %v5171, -inf
        %v5229 = vsel %vm901, %v5176, -inf
        %v5230 = vsel %vm902, %v5181, -inf
        %v5231 = vsel %vm903, %v5186, -inf
        %v5232 = vsel %vm904, %v5191, -inf
        %v5233 = vsel %vm905, %v5196, -inf
        %v5234 = vsel %vm906, %v5201, -inf
        %v5235 = vsel %vm907, %v5206, -inf
        %v5236 = vsel %vm908, %v5211, -inf
        %v5237 = vsel %vm909, %v5216, -inf
        %v5238 = vsel %vm910, %v5221, -inf
        %v5239 = vmax.f32 %v5223, %v5227
        %v5240 = vmax.f32 %v5224, %v5228
        %v5241 = vmax.f32 %v5225, %v5229
        %v5242 = vmax.f32 %v5226, %v5230
        %v5243 = vmax.f32 %v5239, %v5231
        %v5244 = vmax.f32 %v5240, %v5232
        %v5245 = vmax.f32 %v5241, %v5233
        %v5246 = vmax.f32 %v5242, %v5234
        %v5247 = vmax.f32 %v5243, %v5235
        %v5248 = vmax.f32 %v5244, %v5236
        %v5249 = vmax.f32 %v5245, %v5237
        %v5250 = vmax.f32 %v5246, %v5238
        %v5251 = vmax.f32 %v5247, %v5248
        %v5252 = vmax.f32 %v5249, %v5250
        %v5253 = vmax.f32 %v5251, %v5252
        %v5254 = vrot.slane %v5253, 4
        %v5255 = vmax.f32 %v5253, %v5254
        %v5256 = vrot.slane %v5255, 2
        %v5257 = vmax.f32 %v5255, %v5256
        %v5258 = vrot.slane %v5257, 1
        %v5259 = vmax.f32 %v5257, %v5258
        %v5260 = vld [vmem:[#allocation2 + $0x1f] sm:$0x1]
        %v5261 = vmax.f32 %v5260, %v5259
        %5262 = vst [vmem:[#allocation2 + $0x1f] sm:$0x1] %v5261
        %p5263 = scmp.eq.s32.totalorder %s25, 1
        // Predicated region
        $region57: #{tpu_custom_call.1} parent=51 // pred_check
          %p5264 = pneg %p5263
        $region58: #{tpu_custom_call.1} parent=51 // pred_check_branch
          %5266 = sbr.rel (%p5264) target = $region60
        $region59: #{tpu_custom_call.1} parent=51 // pred_region
          %v5267 = vld [vmem:[#allocation2] sm:$0xff]
          %v5268 = vld [vmem:[#allocation2 + $0x8] sm:$0xff]
          %v5269 = vld [vmem:[#allocation2 + $0x10] sm:$0xff]
          %v5270 = vld [vmem:[#allocation2 + $0x18] sm:$0xff]
          %v5271 = vld [vmem:[%s384] sm:$0xff]
          %v5272 = vld [vmem:[%s384 + $0x8] sm:$0xff]
          %v5273 = vld [vmem:[%s384 + $0x10] sm:$0xff]
          %v5274 = vld [vmem:[%s384 + $0x18] sm:$0xff]
          %v5275 = vsub.f32 %v5267, %v5271
          %v5276 = vsub.f32 %v5268, %v5272
          %v5277 = vsub.f32 %v5269, %v5273
          %v5278 = vsub.f32 %v5270, %v5274
          %v5279 = vmax.f32 %v5275, 0.0
          %v5280 = vmax.f32 %v5276, 0.0
          %v5281 = vmax.f32 %v5277, 0.0
          %v5282 = vmax.f32 %v5278, 0.0
          %v5283 = vld [vmem:[%s6] sm:$0xff]
          %v5284 = vld [vmem:[%s6 + $0x8] sm:$0xff]
          %v5285 = vld [vmem:[%s6 + $0x10] sm:$0xff]
          %v5286 = vld [vmem:[%s6 + $0x18] sm:$0xff]
          %v5287 = vld [vmem:[%s6 + $0x20] sm:$0xff]
          %v5288 = vld [vmem:[%s6 + $0x28] sm:$0xff]
          %v5289 = vld [vmem:[%s6 + $0x30] sm:$0xff]
          %v5290 = vld [vmem:[%s6 + $0x38] sm:$0xff]
          %v5291 = vld [vmem:[%s6 + $0x40] sm:$0xff]
          %v5292 = vld [vmem:[%s6 + $0x48] sm:$0xff]
          %v5293 = vld [vmem:[%s6 + $0x50] sm:$0xff]
          %v5294 = vld [vmem:[%s6 + $0x58] sm:$0xff]
          %v5295 = vld [vmem:[%s6 + $0x60] sm:$0xff]
          %v5296 = vld [vmem:[%s6 + $0x68] sm:$0xff]
          %v5297 = vld [vmem:[%s6 + $0x70] sm:$0xff]
          %v5298 = vld [vmem:[%s6 + $0x78] sm:$0xff]
          %v5299 = vld [vmem:[%s7] sm:$0xff]
          %v5300 = vld [vmem:[%s7 + $0x8] sm:$0xff]
          %v5301 = vld [vmem:[%s7 + $0x10] sm:$0xff]
          %v5302 = vld [vmem:[%s7 + $0x18] sm:$0xff]
          %v5303 = vld [vmem:[%s7 + $0x20] sm:$0xff]
          %v5304 = vld [vmem:[%s7 + $0x28] sm:$0xff]
          %v5305 = vld [vmem:[%s7 + $0x30] sm:$0xff]
          %v5306 = vld [vmem:[%s7 + $0x38] sm:$0xff]
          %v5307 = vld [vmem:[%s7 + $0x40] sm:$0xff]
          %v5308 = vld [vmem:[%s7 + $0x48] sm:$0xff]
          %v5309 = vld [vmem:[%s7 + $0x50] sm:$0xff]
          %v5310 = vld [vmem:[%s7 + $0x58] sm:$0xff]
          %v5311 = vld [vmem:[%s7 + $0x60] sm:$0xff]
          %v5312 = vld [vmem:[%s7 + $0x68] sm:$0xff]
          %v5313 = vld [vmem:[%s7 + $0x70] sm:$0xff]
          %v5314 = vld [vmem:[%s7 + $0x78] sm:$0xff]
          %5316 = vset.pattern.permute.xlu0 0
          %5317 = vperm.xlu0 %5316, %v5299
          %v5318 = vpop.permute.xlu0 %5317
          %5321 = vset.pattern.permute.xlu0 0
          %5322 = vperm.xlu0 %5321, %v5300
          %v5323 = vpop.permute.xlu0 %5322
          %5326 = vset.pattern.permute.xlu0 0
          %5327 = vperm.xlu0 %5326, %v5301
          %v5328 = vpop.permute.xlu0 %5327
          %5331 = vset.pattern.permute.xlu0 0
          %5332 = vperm.xlu0 %5331, %v5302
          %v5333 = vpop.permute.xlu0 %5332
          %5336 = vset.pattern.permute.xlu0 0
          %5337 = vperm.xlu0 %5336, %v5303
          %v5338 = vpop.permute.xlu0 %5337
          %5341 = vset.pattern.permute.xlu0 0
          %5342 = vperm.xlu0 %5341, %v5304
          %v5343 = vpop.permute.xlu0 %5342
          %5346 = vset.pattern.permute.xlu0 0
          %5347 = vperm.xlu0 %5346, %v5305
          %v5348 = vpop.permute.xlu0 %5347
          %5351 = vset.pattern.permute.xlu0 0
          %5352 = vperm.xlu0 %5351, %v5306
          %v5353 = vpop.permute.xlu0 %5352
          %5356 = vset.pattern.permute.xlu0 0
          %5357 = vperm.xlu0 %5356, %v5307
          %v5358 = vpop.permute.xlu0 %5357
          %5361 = vset.pattern.permute.xlu0 0
          %5362 = vperm.xlu0 %5361, %v5308
          %v5363 = vpop.permute.xlu0 %5362
          %5366 = vset.pattern.permute.xlu0 0
          %5367 = vperm.xlu0 %5366, %v5309
          %v5368 = vpop.permute.xlu0 %5367
          %5371 = vset.pattern.permute.xlu0 0
          %5372 = vperm.xlu0 %5371, %v5310
          %v5373 = vpop.permute.xlu0 %5372
          %5376 = vset.pattern.permute.xlu0 0
          %5377 = vperm.xlu0 %5376, %v5311
          %v5378 = vpop.permute.xlu0 %5377
          %5381 = vset.pattern.permute.xlu0 0
          %5382 = vperm.xlu0 %5381, %v5312
          %v5383 = vpop.permute.xlu0 %5382
          %5386 = vset.pattern.permute.xlu0 0
          %5387 = vperm.xlu0 %5386, %v5313
          %v5388 = vpop.permute.xlu0 %5387
          %5391 = vset.pattern.permute.xlu0 0
          %5392 = vperm.xlu0 %5391, %v5314
          %v5393 = vpop.permute.xlu0 %5392
          %vm5395 = vcmask 261120
          %v5397 = vsel %vm5395, %v5283, 0
          %v5400 = vsel %vm5395, %v5284, 0
          %v5403 = vsel %vm5395, %v5285, 0
          %v5406 = vsel %vm5395, %v5286, 0
          %v5409 = vsel %vm5395, %v5287, 0
          %v5412 = vsel %vm5395, %v5288, 0
          %v5415 = vsel %vm5395, %v5289, 0
          %v5418 = vsel %vm5395, %v5290, 0
          %v5421 = vsel %vm5395, %v5291, 0
          %v5424 = vsel %vm5395, %v5292, 0
          %v5427 = vsel %vm5395, %v5293, 0
          %v5430 = vsel %vm5395, %v5294, 0
          %v5433 = vsel %vm5395, %v5295, 0
          %v5436 = vsel %vm5395, %v5296, 0
          %v5439 = vsel %vm5395, %v5297, 0
          %v5442 = vsel %vm5395, %v5298, 0
          %5444 = vmatprep.subr.mxu0 0.0
          %v5445 = vand.u32 %v5279, 4294901760
          %5446 = vmatpush1.msra.mxu0 %v5445
          %5447 = vmatprep.subr.mxu0 0.0
          %v5448 = vand.u32 %v5280, 4294901760
          %5449 = vmatpush1.msra.mxu0 %v5448
          %5450 = vmatprep.subr.mxu0 0.0
          %v5451 = vand.u32 %v5281, 4294901760
          %5452 = vmatpush1.msra.mxu0 %v5451
          %5453 = vmatprep.subr.mxu0 0.0
          %v5454 = vand.u32 %v5282, 4294901760
          %5455 = vmatpush1.msra.mxu0 %v5454
          %5456 = vmatprep.subr.mxu0 0.0
          %5457 = vmatpush1.msra.mxu0 0.0
          %5458 = vmatprep.subr.mxu0 0.0
          %5459 = vmatpush1.msra.mxu0 0.0
          %5460 = vmatprep.subr.mxu0 0.0
          %5461 = vmatpush1.msra.mxu0 0.0
          %5462 = vmatprep.subr.mxu0 0.0
          %5463 = vmatpush1.msra.mxu0 0.0
          %5464 = vmatprep.subr.mxu0 0.0
          %5465 = vmatpush1.msra.mxu0 0.0
          %5466 = vmatprep.subr.mxu0 0.0
          %5467 = vmatpush1.msra.mxu0 0.0
          %5468 = vmatprep.subr.mxu0 0.0
          %5469 = vmatpush1.msra.mxu0 0.0
          %5470 = vmatprep.subr.mxu0 0.0
          %5471 = vmatpush1.msra.mxu0 0.0
          %5472 = vmatprep.subr.mxu0 0.0
          %5473 = vmatpush1.msra.mxu0 0.0
          %5474 = vmatprep.subr.mxu0 0.0
          %5475 = vmatpush1.msra.mxu0 0.0
          %5476 = vmatprep.subr.mxu0 0.0
          %5477 = vmatpush1.msra.mxu0 0.0
          %5478 = vmatprep.subr.mxu0 0.0
          %5479 = vmatpush1.msra.mxu0 0.0
          %5480 = vmatprep.subr.mxu0 0.0
          %5481 = vmatpush1.msra.mxu0 0.0
          %5482 = vmatprep.subr.mxu0 0.0
          %5483 = vmatpush1.msra.mxu0 0.0
          %5484 = vmatprep.subr.mxu0 0.0
          %5485 = vmatpush1.msra.mxu0 0.0
          %5486 = vmatprep.subr.mxu0 0.0
          %5487 = vmatpush1.msra.mxu0 0.0
          %5488 = vmatprep.subr.mxu0 0.0
          %5489 = vmatpush1.msra.mxu0 0.0
          %5490 = vmatprep.subr.mxu0 0.0
          %5491 = vmatpush1.msra.mxu0 0.0
          %5492 = vmatprep.subr.mxu0 0.0
          %5493 = vmatpush1.msra.mxu0 0.0
          %5494 = vmatprep.subr.mxu0 0.0
          %5495 = vmatpush1.msra.mxu0 0.0
          %5496 = vmatprep.subr.mxu0 0.0
          %5497 = vmatpush1.msra.mxu0 0.0
          %5498 = vmatprep.subr.mxu0 0.0
          %5499 = vmatpush1.msra.mxu0 0.0
          %5500 = vmatprep.subr.mxu0 0.0
          %5501 = vmatpush1.msra.mxu0 0.0
          %5502 = vmatprep.subr.mxu0 0.0
          %5503 = vmatpush1.msra.mxu0 0.0
          %5504 = vmatprep.subr.mxu0 0.0
          %5505 = vmatpush1.msra.mxu0 0.0
          %5506 = vmatprep.subr.mxu0 0.0
          %5507 = vmatpush1.msra.mxu0 0.0
          %5508 = vmatprep.subr.mxu0 0.0
          %5509 = vmatpush1.msra.mxu0 0.0
          %5510 = vmatprep.subr.mxu0 0.0
          %5511 = vmatpush1.msra.mxu0 0.0
          %5512 = vmatprep.mubr.f32.mxu0 0.0
          %v5513 = vand.u32 %v5397, 4294901760
          %v5514 = vsub.f32 %v5397, %v5513
          %v5515 = vand.u32 %v5514, 4294901760
          %v5516 = vsub.f32 %v5514, %v5515
          %v5517 = vand.u32 %v5516, 4294901760
          %5518 = vmatmul.mubr.f32.gmra.mrb[0].mxu0 %v5517
          %v5519 = vpop.f32.mrb[0].mxu0
          %v5520 = vadd.f32 %v5318, %v5519
          %v5521 = vpop.f32.mrb[0].mxu0
          %5522 = vmatprep.mubr.f32.mxu0 0.0
          %v5523 = vand.u32 %v5400, 4294901760
          %v5524 = vsub.f32 %v5400, %v5523
          %v5525 = vand.u32 %v5524, 4294901760
          %v5526 = vsub.f32 %v5524, %v5525
          %v5527 = vand.u32 %v5526, 4294901760
          %5528 = vmatmul.mubr.f32.gmra.mrb[0].mxu0 %v5527
          %v5529 = vpop.f32.mrb[0].mxu0
          %v5530 = vadd.f32 %v5323, %v5529
          %v5531 = vpop.f32.mrb[0].mxu0
          %5532 = vmatprep.mubr.f32.mxu0 0.0
          %v5533 = vand.u32 %v5403, 4294901760
          %v5534 = vsub.f32 %v5403, %v5533
          %v5535 = vand.u32 %v5534, 4294901760
          %v5536 = vsub.f32 %v5534, %v5535
          %v5537 = vand.u32 %v5536, 4294901760
          %5538 = vmatmul.mubr.f32.gmra.mrb[0].mxu0 %v5537
          %v5539 = vpop.f32.mrb[0].mxu0
          %v5540 = vadd.f32 %v5328, %v5539
          %v5541 = vpop.f32.mrb[0].mxu0
          %5542 = vmatprep.mubr.f32.mxu0 0.0
          %v5543 = vand.u32 %v5406, 4294901760
          %v5544 = vsub.f32 %v5406, %v5543
          %v5545 = vand.u32 %v5544, 4294901760
          %v5546 = vsub.f32 %v5544, %v5545
          %v5547 = vand.u32 %v5546, 4294901760
          %5548 = vmatmul.mubr.f32.gmra.mrb[0].mxu0 %v5547
          %v5549 = vpop.f32.mrb[0].mxu0
          %v5550 = vadd.f32 %v5333, %v5549
          %v5551 = vpop.f32.mrb[0].mxu0
          %5552 = vmatprep.mubr.f32.mxu0 0.0
          %v5553 = vand.u32 %v5409, 4294901760
          %v5554 = vsub.f32 %v5409, %v5553
          %v5555 = vand.u32 %v5554, 4294901760
          %v5556 = vsub.f32 %v5554, %v5555
          %v5557 = vand.u32 %v5556, 4294901760
          %5558 = vmatmul.mubr.f32.gmra.mrb[0].mxu0 %v5557
          %v5559 = vpop.f32.mrb[0].mxu0
          %v5560 = vadd.f32 %v5338, %v5559
          %v5561 = vpop.f32.mrb[0].mxu0
          %5562 = vmatprep.mubr.f32.mxu0 0.0
          %v5563 = vand.u32 %v5412, 4294901760
          %v5564 = vsub.f32 %v5412, %v5563
          %v5565 = vand.u32 %v5564, 4294901760
          %v5566 = vsub.f32 %v5564, %v5565
          %v5567 = vand.u32 %v5566, 4294901760
          %5568 = vmatmul.mubr.f32.gmra.mrb[0].mxu0 %v5567
          %v5569 = vpop.f32.mrb[0].mxu0
          %v5570 = vadd.f32 %v5343, %v5569
          %v5571 = vpop.f32.mrb[0].mxu0
          %5572 = vmatprep.mubr.f32.mxu0 0.0
          %v5573 = vand.u32 %v5415, 4294901760
          %v5574 = vsub.f32 %v5415, %v5573
          %v5575 = vand.u32 %v5574, 4294901760
          %v5576 = vsub.f32 %v5574, %v5575
          %v5577 = vand.u32 %v5576, 4294901760
          %5578 = vmatmul.mubr.f32.gmra.mrb[0].mxu0 %v5577
          %v5579 = vpop.f32.mrb[0].mxu0
          %v5580 = vadd.f32 %v5348, %v5579
          %v5581 = vpop.f32.mrb[0].mxu0
          %5582 = vmatprep.mubr.f32.mxu0 0.0
          %v5583 = vand.u32 %v5418, 4294901760
          %v5584 = vsub.f32 %v5418, %v5583
          %v5585 = vand.u32 %v5584, 4294901760
          %v5586 = vsub.f32 %v5584, %v5585
          %v5587 = vand.u32 %v5586, 4294901760
          %5588 = vmatmul.mubr.f32.gmra.mrb[0].mxu0 %v5587
          %v5589 = vpop.f32.mrb[0].mxu0
          %v5590 = vadd.f32 %v5353, %v5589
          %v5591 = vpop.f32.mrb[0].mxu0
          %5592 = vmatprep.mubr.f32.mxu0 0.0
          %v5593 = vand.u32 %v5421, 4294901760
          %v5594 = vsub.f32 %v5421, %v5593
          %v5595 = vand.u32 %v5594, 4294901760
          %v5596 = vsub.f32 %v5594, %v5595
          %v5597 = vand.u32 %v5596, 4294901760
          %5598 = vmatmul.mubr.f32.gmra.mrb[0].mxu0 %v5597
          %v5599 = vpop.f32.mrb[0].mxu0
          %v5600 = vadd.f32 %v5358, %v5599
          %v5601 = vpop.f32.mrb[0].mxu0
          %5602 = vmatprep.mubr.f32.mxu0 0.0
          %v5603 = vand.u32 %v5424, 4294901760
          %v5604 = vsub.f32 %v5424, %v5603
          %v5605 = vand.u32 %v5604, 4294901760
          %v5606 = vsub.f32 %v5604, %v5605
          %v5607 = vand.u32 %v5606, 4294901760
          %5608 = vmatmul.mubr.f32.gmra.mrb[0].mxu0 %v5607
          %v5609 = vpop.f32.mrb[0].mxu0
          %v5610 = vadd.f32 %v5363, %v5609
          %v5611 = vpop.f32.mrb[0].mxu0
          %5612 = vmatprep.mubr.f32.mxu0 0.0
          %v5613 = vand.u32 %v5427, 4294901760
          %v5614 = vsub.f32 %v5427, %v5613
          %v5615 = vand.u32 %v5614, 4294901760
          %v5616 = vsub.f32 %v5614, %v5615
          %v5617 = vand.u32 %v5616, 4294901760
          %5618 = vmatmul.mubr.f32.gmra.mrb[0].mxu0 %v5617
          %v5619 = vpop.f32.mrb[0].mxu0
          %v5620 = vadd.f32 %v5368, %v5619
          %v5621 = vpop.f32.mrb[0].mxu0
          %5622 = vmatprep.mubr.f32.mxu0 0.0
          %v5623 = vand.u32 %v5430, 4294901760
          %v5624 = vsub.f32 %v5430, %v5623
          %v5625 = vand.u32 %v5624, 4294901760
          %v5626 = vsub.f32 %v5624, %v5625
          %v5627 = vand.u32 %v5626, 4294901760
          %5628 = vmatmul.mubr.f32.gmra.mrb[0].mxu0 %v5627
          %v5629 = vpop.f32.mrb[0].mxu0
          %v5630 = vadd.f32 %v5373, %v5629
          %v5631 = vpop.f32.mrb[0].mxu0
          %5632 = vmatprep.mubr.f32.mxu0 0.0
          %v5633 = vand.u32 %v5433, 4294901760
          %v5634 = vsub.f32 %v5433, %v5633
          %v5635 = vand.u32 %v5634, 4294901760
          %v5636 = vsub.f32 %v5634, %v5635
          %v5637 = vand.u32 %v5636, 4294901760
          %5638 = vmatmul.mubr.f32.gmra.mrb[0].mxu0 %v5637
          %v5639 = vpop.f32.mrb[0].mxu0
          %v5640 = vadd.f32 %v5378, %v5639
          %v5641 = vpop.f32.mrb[0].mxu0
          %5642 = vmatprep.mubr.f32.mxu0 0.0
          %v5643 = vand.u32 %v5436, 4294901760
          %v5644 = vsub.f32 %v5436, %v5643
          %v5645 = vand.u32 %v5644, 4294901760
          %v5646 = vsub.f32 %v5644, %v5645
          %v5647 = vand.u32 %v5646, 4294901760
          %5648 = vmatmul.mubr.f32.gmra.mrb[0].mxu0 %v5647
          %v5649 = vpop.f32.mrb[0].mxu0
          %v5650 = vadd.f32 %v5383, %v5649
          %v5651 = vpop.f32.mrb[0].mxu0
          %5652 = vmatprep.mubr.f32.mxu0 0.0
          %v5653 = vand.u32 %v5439, 4294901760
          %v5654 = vsub.f32 %v5439, %v5653
          %v5655 = vand.u32 %v5654, 4294901760
          %v5656 = vsub.f32 %v5654, %v5655
          %v5657 = vand.u32 %v5656, 4294901760
          %5658 = vmatmul.mubr.f32.gmra.mrb[0].mxu0 %v5657
          %v5659 = vpop.f32.mrb[0].mxu0
          %v5660 = vadd.f32 %v5388, %v5659
          %v5661 = vpop.f32.mrb[0].mxu0
          %5662 = vmatprep.mubr.f32.mxu0 0.0
          %v5663 = vand.u32 %v5442, 4294901760
          %v5664 = vsub.f32 %v5442, %v5663
          %v5665 = vand.u32 %v5664, 4294901760
          %v5666 = vsub.f32 %v5664, %v5665
          %v5667 = vand.u32 %v5666, 4294901760
          %5668 = vmatmul.mubr.f32.gmra.mrb[0].mxu0 %v5667
          %v5669 = vpop.f32.mrb[0].mxu0
          %v5670 = vadd.f32 %v5393, %v5669
          %v5671 = vpop.f32.mrb[0].mxu0
          %5672 = vdwg.mxu0
          %5673 = vmatprep.subr.mxu0 0.0
          %v5674 = vand.u32 %v5279, 4294901760
          %v5675 = vsub.f32 %v5279, %v5674
          %v5676 = vand.u32 %v5675, 4294901760
          %v5677 = vsub.f32 %v5675, %v5676
          %v5678 = vand.u32 %v5677, 4294901760
          %5679 = vmatpush1.msra.mxu0 %v5678
          %5680 = vmatprep.subr.mxu0 0.0
          %v5681 = vand.u32 %v5280, 4294901760
          %v5682 = vsub.f32 %v5280, %v5681
          %v5683 = vand.u32 %v5682, 4294901760
          %v5684 = vsub.f32 %v5682, %v5683
          %v5685 = vand.u32 %v5684, 4294901760
          %5686 = vmatpush1.msra.mxu0 %v5685
          %5687 = vmatprep.subr.mxu0 0.0
          %v5688 = vand.u32 %v5281, 4294901760
          %v5689 = vsub.f32 %v5281, %v5688
          %v5690 = vand.u32 %v5689, 4294901760
          %v5691 = vsub.f32 %v5689, %v5690
          %v5692 = vand.u32 %v5691, 4294901760
          %5693 = vmatpush1.msra.mxu0 %v5692
          %5694 = vmatprep.subr.mxu0 0.0
          %v5695 = vand.u32 %v5282, 4294901760
          %v5696 = vsub.f32 %v5282, %v5695
          %v5697 = vand.u32 %v5696, 4294901760
          %v5698 = vsub.f32 %v5696, %v5697
          %v5699 = vand.u32 %v5698, 4294901760
          %5700 = vmatpush1.msra.mxu0 %v5699
          %5701 = vmatprep.subr.mxu0 0.0
          %5702 = vmatpush1.msra.mxu0 0.0
          %5703 = vmatprep.subr.mxu0 0.0
          %5704 = vmatpush1.msra.mxu0 0.0
          %5705 = vmatprep.subr.mxu0 0.0
          %5706 = vmatpush1.msra.mxu0 0.0
          %5707 = vmatprep.subr.mxu0 0.0
          %5708 = vmatpush1.msra.mxu0 0.0
          %5709 = vmatprep.subr.mxu0 0.0
          %5710 = vmatpush1.msra.mxu0 0.0
          %5711 = vmatprep.subr.mxu0 0.0
          %5712 = vmatpush1.msra.mxu0 0.0
          %5713 = vmatprep.subr.mxu0 0.0
          %5714 = vmatpush1.msra.mxu0 0.0
          %5715 = vmatprep.subr.mxu0 0.0
          %5716 = vmatpush1.msra.mxu0 0.0
          %5717 = vmatprep.subr.mxu0 0.0
          %5718 = vmatpush1.msra.mxu0 0.0
          %5719 = vmatprep.subr.mxu0 0.0
          %5720 = vmatpush1.msra.mxu0 0.0
          %5721 = vmatprep.subr.mxu0 0.0
          %5722 = vmatpush1.msra.mxu0 0.0
          %5723 = vmatprep.subr.mxu0 0.0
          %5724 = vmatpush1.msra.mxu0 0.0
          %5725 = vmatprep.subr.mxu0 0.0
          %5726 = vmatpush1.msra.mxu0 0.0
          %5727 = vmatprep.subr.mxu0 0.0
          %5728 = vmatpush1.msra.mxu0 0.0
          %5729 = vmatprep.subr.mxu0 0.0
          %5730 = vmatpush1.msra.mxu0 0.0
          %5731 = vmatprep.subr.mxu0 0.0
          %5732 = vmatpush1.msra.mxu0 0.0
          %5733 = vmatprep.subr.mxu0 0.0
          %5734 = vmatpush1.msra.mxu0 0.0
          %5735 = vmatprep.subr.mxu0 0.0
          %5736 = vmatpush1.msra.mxu0 0.0
          %5737 = vmatprep.subr.mxu0 0.0
          %5738 = vmatpush1.msra.mxu0 0.0
          %5739 = vmatprep.subr.mxu0 0.0
          %5740 = vmatpush1.msra.mxu0 0.0
          %5741 = vmatprep.subr.mxu0 0.0
          %5742 = vmatpush1.msra.mxu0 0.0
          %5743 = vmatprep.subr.mxu0 0.0
          %5744 = vmatpush1.msra.mxu0 0.0
          %5745 = vmatprep.subr.mxu0 0.0
          %5746 = vmatpush1.msra.mxu0 0.0
          %5747 = vmatprep.subr.mxu0 0.0
          %5748 = vmatpush1.msra.mxu0 0.0
          %5749 = vmatprep.subr.mxu0 0.0
          %5750 = vmatpush1.msra.mxu0 0.0
          %5751 = vmatprep.subr.mxu0 0.0
          %5752 = vmatpush1.msra.mxu0 0.0
          %5753 = vmatprep.subr.mxu0 0.0
          %5754 = vmatpush1.msra.mxu0 0.0
          %5755 = vmatprep.subr.mxu0 0.0
          %5756 = vmatpush1.msra.mxu0 0.0
          %5757 = vmatprep.mubr.f32.mxu0 0.0
          %v5758 = vand.u32 %v5397, 4294901760
          %5759 = vmatmul.mubr.f32.gmra.mrb[0].mxu0 %v5758
          %v5760 = vpop.f32.mrb[0].mxu0
          %v5761 = vadd.f32 %v5520, %v5760
          %v5762 = vpop.f32.mrb[0].mxu0
          %5763 = vmatprep.mubr.f32.mxu0 0.0
          %v5764 = vand.u32 %v5400, 4294901760
          %5765 = vmatmul.mubr.f32.gmra.mrb[0].mxu0 %v5764
          %v5766 = vpop.f32.mrb[0].mxu0
          %v5767 = vadd.f32 %v5530, %v5766
          %v5768 = vpop.f32.mrb[0].mxu0
          %5769 = vmatprep.mubr.f32.mxu0 0.0
          %v5770 = vand.u32 %v5403, 4294901760
          %5771 = vmatmul.mubr.f32.gmra.mrb[0].mxu0 %v5770
          %v5772 = vpop.f32.mrb[0].mxu0
          %v5773 = vadd.f32 %v5540, %v5772
          %v5774 = vpop.f32.mrb[0].mxu0
          %5775 = vmatprep.mubr.f32.mxu0 0.0
          %v5776 = vand.u32 %v5406, 4294901760
          %5777 = vmatmul.mubr.f32.gmra.mrb[0].mxu0 %v5776
          %v5778 = vpop.f32.mrb[0].mxu0
          %v5779 = vadd.f32 %v5550, %v5778
          %v5780 = vpop.f32.mrb[0].mxu0
          %5781 = vmatprep.mubr.f32.mxu0 0.0
          %v5782 = vand.u32 %v5409, 4294901760
          %5783 = vmatmul.mubr.f32.gmra.mrb[0].mxu0 %v5782
          %v5784 = vpop.f32.mrb[0].mxu0
          %v5785 = vadd.f32 %v5560, %v5784
          %v5786 = vpop.f32.mrb[0].mxu0
          %5787 = vmatprep.mubr.f32.mxu0 0.0
          %v5788 = vand.u32 %v5412, 4294901760
          %5789 = vmatmul.mubr.f32.gmra.mrb[0].mxu0 %v5788
          %v5790 = vpop.f32.mrb[0].mxu0
          %v5791 = vadd.f32 %v5570, %v5790
          %v5792 = vpop.f32.mrb[0].mxu0
          %5793 = vmatprep.mubr.f32.mxu0 0.0
          %v5794 = vand.u32 %v5415, 4294901760
          %5795 = vmatmul.mubr.f32.gmra.mrb[0].mxu0 %v5794
          %v5796 = vpop.f32.mrb[0].mxu0
          %v5797 = vadd.f32 %v5580, %v5796
          %v5798 = vpop.f32.mrb[0].mxu0
          %5799 = vmatprep.mubr.f32.mxu0 0.0
          %v5800 = vand.u32 %v5418, 4294901760
          %5801 = vmatmul.mubr.f32.gmra.mrb[0].mxu0 %v5800
          %v5802 = vpop.f32.mrb[0].mxu0
          %v5803 = vadd.f32 %v5590, %v5802
          %v5804 = vpop.f32.mrb[0].mxu0
          %5805 = vmatprep.mubr.f32.mxu0 0.0
          %v5806 = vand.u32 %v5421, 4294901760
          %5807 = vmatmul.mubr.f32.gmra.mrb[0].mxu0 %v5806
          %v5808 = vpop.f32.mrb[0].mxu0
          %v5809 = vadd.f32 %v5600, %v5808
          %v5810 = vpop.f32.mrb[0].mxu0
          %5811 = vmatprep.mubr.f32.mxu0 0.0
          %v5812 = vand.u32 %v5424, 4294901760
          %5813 = vmatmul.mubr.f32.gmra.mrb[0].mxu0 %v5812
          %v5814 = vpop.f32.mrb[0].mxu0
          %v5815 = vadd.f32 %v5610, %v5814
          %v5816 = vpop.f32.mrb[0].mxu0
          %5817 = vmatprep.mubr.f32.mxu0 0.0
          %v5818 = vand.u32 %v5427, 4294901760
          %5819 = vmatmul.mubr.f32.gmra.mrb[0].mxu0 %v5818
          %v5820 = vpop.f32.mrb[0].mxu0
          %v5821 = vadd.f32 %v5620, %v5820
          %v5822 = vpop.f32.mrb[0].mxu0
          %5823 = vmatprep.mubr.f32.mxu0 0.0
          %v5824 = vand.u32 %v5430, 4294901760
          %5825 = vmatmul.mubr.f32.gmra.mrb[0].mxu0 %v5824
          %v5826 = vpop.f32.mrb[0].mxu0
          %v5827 = vadd.f32 %v5630, %v5826
          %v5828 = vpop.f32.mrb[0].mxu0
          %5829 = vmatprep.mubr.f32.mxu0 0.0
          %v5830 = vand.u32 %v5433, 4294901760
          %5831 = vmatmul.mubr.f32.gmra.mrb[0].mxu0 %v5830
          %v5832 = vpop.f32.mrb[0].mxu0
          %v5833 = vadd.f32 %v5640, %v5832
          %v5834 = vpop.f32.mrb[0].mxu0
          %5835 = vmatprep.mubr.f32.mxu0 0.0
          %v5836 = vand.u32 %v5436, 4294901760
          %5837 = vmatmul.mubr.f32.gmra.mrb[0].mxu0 %v5836
          %v5838 = vpop.f32.mrb[0].mxu0
          %v5839 = vadd.f32 %v5650, %v5838
          %v5840 = vpop.f32.mrb[0].mxu0
          %5841 = vmatprep.mubr.f32.mxu0 0.0
          %v5842 = vand.u32 %v5439, 4294901760
          %5843 = vmatmul.mubr.f32.gmra.mrb[0].mxu0 %v5842
          %v5844 = vpop.f32.mrb[0].mxu0
          %v5845 = vadd.f32 %v5660, %v5844
          %v5846 = vpop.f32.mrb[0].mxu0
          %5847 = vmatprep.mubr.f32.mxu0 0.0
          %v5848 = vand.u32 %v5442, 4294901760
          %5849 = vmatmul.mubr.f32.gmra.mrb[0].mxu0 %v5848
          %v5850 = vpop.f32.mrb[0].mxu0
          %v5851 = vadd.f32 %v5670, %v5850
          %v5852 = vpop.f32.mrb[0].mxu0
          %5853 = vdwg.mxu0
          %5854 = vmatprep.subr.mxu0 0.0
          %v5855 = vand.u32 %v5279, 4294901760
          %v5856 = vsub.f32 %v5279, %v5855
          %5857 = vmatpush1.msra.mxu0 %v5856
          %5858 = vmatprep.subr.mxu0 0.0
          %v5859 = vand.u32 %v5280, 4294901760
          %v5860 = vsub.f32 %v5280, %v5859
          %5861 = vmatpush1.msra.mxu0 %v5860
          %5862 = vmatprep.subr.mxu0 0.0
          %v5863 = vand.u32 %v5281, 4294901760
          %v5864 = vsub.f32 %v5281, %v5863
          %5865 = vmatpush1.msra.mxu0 %v5864
          %5866 = vmatprep.subr.mxu0 0.0
          %v5867 = vand.u32 %v5282, 4294901760
          %v5868 = vsub.f32 %v5282, %v5867
          %5869 = vmatpush1.msra.mxu0 %v5868
          %5870 = vmatprep.subr.mxu0 0.0
          %5871 = vmatpush1.msra.mxu0 0.0
          %5872 = vmatprep.subr.mxu0 0.0
          %5873 = vmatpush1.msra.mxu0 0.0
          %5874 = vmatprep.subr.mxu0 0.0
          %5875 = vmatpush1.msra.mxu0 0.0
          %5876 = vmatprep.subr.mxu0 0.0
          %5877 = vmatpush1.msra.mxu0 0.0
          %5878 = vmatprep.subr.mxu0 0.0
          %5879 = vmatpush1.msra.mxu0 0.0
          %5880 = vmatprep.subr.mxu0 0.0
          %5881 = vmatpush1.msra.mxu0 0.0
          %5882 = vmatprep.subr.mxu0 0.0
          %5883 = vmatpush1.msra.mxu0 0.0
          %5884 = vmatprep.subr.mxu0 0.0
          %5885 = vmatpush1.msra.mxu0 0.0
          %5886 = vmatprep.subr.mxu0 0.0
          %5887 = vmatpush1.msra.mxu0 0.0
          %5888 = vmatprep.subr.mxu0 0.0
          %5889 = vmatpush1.msra.mxu0 0.0
          %5890 = vmatprep.subr.mxu0 0.0
          %5891 = vmatpush1.msra.mxu0 0.0
          %5892 = vmatprep.subr.mxu0 0.0
          %5893 = vmatpush1.msra.mxu0 0.0
          %5894 = vmatprep.subr.mxu0 0.0
          %5895 = vmatpush1.msra.mxu0 0.0
          %5896 = vmatprep.subr.mxu0 0.0
          %5897 = vmatpush1.msra.mxu0 0.0
          %5898 = vmatprep.subr.mxu0 0.0
          %5899 = vmatpush1.msra.mxu0 0.0
          %5900 = vmatprep.subr.mxu0 0.0
          %5901 = vmatpush1.msra.mxu0 0.0
          %5902 = vmatprep.subr.mxu0 0.0
          %5903 = vmatpush1.msra.mxu0 0.0
          %5904 = vmatprep.subr.mxu0 0.0
          %5905 = vmatpush1.msra.mxu0 0.0
          %5906 = vmatprep.subr.mxu0 0.0
          %5907 = vmatpush1.msra.mxu0 0.0
          %5908 = vmatprep.subr.mxu0 0.0
          %5909 = vmatpush1.msra.mxu0 0.0
          %5910 = vmatprep.subr.mxu0 0.0
          %5911 = vmatpush1.msra.mxu0 0.0
          %5912 = vmatprep.subr.mxu0 0.0
          %5913 = vmatpush1.msra.mxu0 0.0
          %5914 = vmatprep.subr.mxu0 0.0
          %5915 = vmatpush1.msra.mxu0 0.0
          %5916 = vmatprep.subr.mxu0 0.0
          %5917 = vmatpush1.msra.mxu0 0.0
          %5918 = vmatprep.subr.mxu0 0.0
          %5919 = vmatpush1.msra.mxu0 0.0
          %5920 = vmatprep.subr.mxu0 0.0
          %5921 = vmatpush1.msra.mxu0 0.0
          %5922 = vmatprep.subr.mxu0 0.0
          %5923 = vmatpush1.msra.mxu0 0.0
          %5924 = vmatprep.subr.mxu0 0.0
          %5925 = vmatpush1.msra.mxu0 0.0
          %5926 = vmatprep.mubr.f32.mxu0 0.0
          %v5927 = vand.u32 %v5397, 4294901760
          %v5928 = vsub.f32 %v5397, %v5927
          %5929 = vmatmul.mubr.f32.gmra.mrb[0].mxu0 %v5928
          %v5930 = vpop.f32.mrb[0].mxu0
          %v5931 = vadd.f32 %v5761, %v5930
          %v5932 = vpop.f32.mrb[0].mxu0
          %5933 = vmatprep.mubr.f32.mxu0 0.0
          %v5934 = vand.u32 %v5400, 4294901760
          %v5935 = vsub.f32 %v5400, %v5934
          %5936 = vmatmul.mubr.f32.gmra.mrb[0].mxu0 %v5935
          %v5937 = vpop.f32.mrb[0].mxu0
          %v5938 = vadd.f32 %v5767, %v5937
          %v5939 = vpop.f32.mrb[0].mxu0
          %5940 = vmatprep.mubr.f32.mxu0 0.0
          %v5941 = vand.u32 %v5403, 4294901760
          %v5942 = vsub.f32 %v5403, %v5941
          %5943 = vmatmul.mubr.f32.gmra.mrb[0].mxu0 %v5942
          %v5944 = vpop.f32.mrb[0].mxu0
          %v5945 = vadd.f32 %v5773, %v5944
          %v5946 = vpop.f32.mrb[0].mxu0
          %5947 = vmatprep.mubr.f32.mxu0 0.0
          %v5948 = vand.u32 %v5406, 4294901760
          %v5949 = vsub.f32 %v5406, %v5948
          %5950 = vmatmul.mubr.f32.gmra.mrb[0].mxu0 %v5949
          %v5951 = vpop.f32.mrb[0].mxu0
          %v5952 = vadd.f32 %v5779, %v5951
          %v5953 = vpop.f32.mrb[0].mxu0
          %5954 = vmatprep.mubr.f32.mxu0 0.0
          %v5955 = vand.u32 %v5409, 4294901760
          %v5956 = vsub.f32 %v5409, %v5955
          %5957 = vmatmul.mubr.f32.gmra.mrb[0].mxu0 %v5956
          %v5958 = vpop.f32.mrb[0].mxu0
          %v5959 = vadd.f32 %v5785, %v5958
          %v5960 = vpop.f32.mrb[0].mxu0
          %5961 = vmatprep.mubr.f32.mxu0 0.0
          %v5962 = vand.u32 %v5412, 4294901760
          %v5963 = vsub.f32 %v5412, %v5962
          %5964 = vmatmul.mubr.f32.gmra.mrb[0].mxu0 %v5963
          %v5965 = vpop.f32.mrb[0].mxu0
          %v5966 = vadd.f32 %v5791, %v5965
          %v5967 = vpop.f32.mrb[0].mxu0
          %5968 = vmatprep.mubr.f32.mxu0 0.0
          %v5969 = vand.u32 %v5415, 4294901760
          %v5970 = vsub.f32 %v5415, %v5969
          %5971 = vmatmul.mubr.f32.gmra.mrb[0].mxu0 %v5970
          %v5972 = vpop.f32.mrb[0].mxu0
          %v5973 = vadd.f32 %v5797, %v5972
          %v5974 = vpop.f32.mrb[0].mxu0
          %5975 = vmatprep.mubr.f32.mxu0 0.0
          %v5976 = vand.u32 %v5418, 4294901760
          %v5977 = vsub.f32 %v5418, %v5976
          %5978 = vmatmul.mubr.f32.gmra.mrb[0].mxu0 %v5977
          %v5979 = vpop.f32.mrb[0].mxu0
          %v5980 = vadd.f32 %v5803, %v5979
          %v5981 = vpop.f32.mrb[0].mxu0
          %5982 = vmatprep.mubr.f32.mxu0 0.0
          %v5983 = vand.u32 %v5421, 4294901760
          %v5984 = vsub.f32 %v5421, %v5983
          %5985 = vmatmul.mubr.f32.gmra.mrb[0].mxu0 %v5984
          %v5986 = vpop.f32.mrb[0].mxu0
          %v5987 = vadd.f32 %v5809, %v5986
          %v5988 = vpop.f32.mrb[0].mxu0
          %5989 = vmatprep.mubr.f32.mxu0 0.0
          %v5990 = vand.u32 %v5424, 4294901760
          %v5991 = vsub.f32 %v5424, %v5990
          %5992 = vmatmul.mubr.f32.gmra.mrb[0].mxu0 %v5991
          %v5993 = vpop.f32.mrb[0].mxu0
          %v5994 = vadd.f32 %v5815, %v5993
          %v5995 = vpop.f32.mrb[0].mxu0
          %5996 = vmatprep.mubr.f32.mxu0 0.0
          %v5997 = vand.u32 %v5427, 4294901760
          %v5998 = vsub.f32 %v5427, %v5997
          %5999 = vmatmul.mubr.f32.gmra.mrb[0].mxu0 %v5998
          %v6000 = vpop.f32.mrb[0].mxu0
          %v6001 = vadd.f32 %v5821, %v6000
          %v6002 = vpop.f32.mrb[0].mxu0
          %6003 = vmatprep.mubr.f32.mxu0 0.0
          %v6004 = vand.u32 %v5430, 4294901760
          %v6005 = vsub.f32 %v5430, %v6004
          %6006 = vmatmul.mubr.f32.gmra.mrb[0].mxu0 %v6005
          %v6007 = vpop.f32.mrb[0].mxu0
          %v6008 = vadd.f32 %v5827, %v6007
          %v6009 = vpop.f32.mrb[0].mxu0
          %6010 = vmatprep.mubr.f32.mxu0 0.0
          %v6011 = vand.u32 %v5433, 4294901760
          %v6012 = vsub.f32 %v5433, %v6011
          %6013 = vmatmul.mubr.f32.gmra.mrb[0].mxu0 %v6012
          %v6014 = vpop.f32.mrb[0].mxu0
          %v6015 = vadd.f32 %v5833, %v6014
          %v6016 = vpop.f32.mrb[0].mxu0
          %6017 = vmatprep.mubr.f32.mxu0 0.0
          %v6018 = vand.u32 %v5436, 4294901760
          %v6019 = vsub.f32 %v5436, %v6018
          %6020 = vmatmul.mubr.f32.gmra.mrb[0].mxu0 %v6019
          %v6021 = vpop.f32.mrb[0].mxu0
          %v6022 = vadd.f32 %v5839, %v6021
          %v6023 = vpop.f32.mrb[0].mxu0
          %6024 = vmatprep.mubr.f32.mxu0 0.0
          %v6025 = vand.u32 %v5439, 4294901760
          %v6026 = vsub.f32 %v5439, %v6025
          %6027 = vmatmul.mubr.f32.gmra.mrb[0].mxu0 %v6026
          %v6028 = vpop.f32.mrb[0].mxu0
          %v6029 = vadd.f32 %v5845, %v6028
          %v6030 = vpop.f32.mrb[0].mxu0
          %6031 = vmatprep.mubr.f32.mxu0 0.0
          %v6032 = vand.u32 %v5442, 4294901760
          %v6033 = vsub.f32 %v5442, %v6032
          %6034 = vmatmul.mubr.f32.gmra.mrb[0].mxu0 %v6033
          %v6035 = vpop.f32.mrb[0].mxu0
          %v6036 = vadd.f32 %v5851, %v6035
          %v6037 = vpop.f32.mrb[0].mxu0
          %6038 = vdwg.mxu0
          %6039 = vmatprep.subr.mxu0 0.0
          %v6040 = vand.u32 %v5279, 4294901760
          %6041 = vmatpush1.msra.mxu0 %v6040
          %6042 = vmatprep.subr.mxu0 0.0
          %v6043 = vand.u32 %v5280, 4294901760
          %6044 = vmatpush1.msra.mxu0 %v6043
          %6045 = vmatprep.subr.mxu0 0.0
          %v6046 = vand.u32 %v5281, 4294901760
          %6047 = vmatpush1.msra.mxu0 %v6046
          %6048 = vmatprep.subr.mxu0 0.0
          %v6049 = vand.u32 %v5282, 4294901760
          %6050 = vmatpush1.msra.mxu0 %v6049
          %6051 = vmatprep.subr.mxu0 0.0
          %6052 = vmatpush1.msra.mxu0 0.0
          %6053 = vmatprep.subr.mxu0 0.0
          %6054 = vmatpush1.msra.mxu0 0.0
          %6055 = vmatprep.subr.mxu0 0.0
          %6056 = vmatpush1.msra.mxu0 0.0
          %6057 = vmatprep.subr.mxu0 0.0
          %6058 = vmatpush1.msra.mxu0 0.0
          %6059 = vmatprep.subr.mxu0 0.0
          %6060 = vmatpush1.msra.mxu0 0.0
          %6061 = vmatprep.subr.mxu0 0.0
          %6062 = vmatpush1.msra.mxu0 0.0
          %6063 = vmatprep.subr.mxu0 0.0
          %6064 = vmatpush1.msra.mxu0 0.0
          %6065 = vmatprep.subr.mxu0 0.0
          %6066 = vmatpush1.msra.mxu0 0.0
          %6067 = vmatprep.subr.mxu0 0.0
          %6068 = vmatpush1.msra.mxu0 0.0
          %6069 = vmatprep.subr.mxu0 0.0
          %6070 = vmatpush1.msra.mxu0 0.0
          %6071 = vmatprep.subr.mxu0 0.0
          %6072 = vmatpush1.msra.mxu0 0.0
          %6073 = vmatprep.subr.mxu0 0.0
          %6074 = vmatpush1.msra.mxu0 0.0
          %6075 = vmatprep.subr.mxu0 0.0
          %6076 = vmatpush1.msra.mxu0 0.0
          %6077 = vmatprep.subr.mxu0 0.0
          %6078 = vmatpush1.msra.mxu0 0.0
          %6079 = vmatprep.subr.mxu0 0.0
          %6080 = vmatpush1.msra.mxu0 0.0
          %6081 = vmatprep.subr.mxu0 0.0
          %6082 = vmatpush1.msra.mxu0 0.0
          %6083 = vmatprep.subr.mxu0 0.0
          %6084 = vmatpush1.msra.mxu0 0.0
          %6085 = vmatprep.subr.mxu0 0.0
          %6086 = vmatpush1.msra.mxu0 0.0
          %6087 = vmatprep.subr.mxu0 0.0
          %6088 = vmatpush1.msra.mxu0 0.0
          %6089 = vmatprep.subr.mxu0 0.0
          %6090 = vmatpush1.msra.mxu0 0.0
          %6091 = vmatprep.subr.mxu0 0.0
          %6092 = vmatpush1.msra.mxu0 0.0
          %6093 = vmatprep.subr.mxu0 0.0
          %6094 = vmatpush1.msra.mxu0 0.0
          %6095 = vmatprep.subr.mxu0 0.0
          %6096 = vmatpush1.msra.mxu0 0.0
          %6097 = vmatprep.subr.mxu0 0.0
          %6098 = vmatpush1.msra.mxu0 0.0
          %6099 = vmatprep.subr.mxu0 0.0
          %6100 = vmatpush1.msra.mxu0 0.0
          %6101 = vmatprep.subr.mxu0 0.0
          %6102 = vmatpush1.msra.mxu0 0.0
          %6103 = vmatprep.subr.mxu0 0.0
          %6104 = vmatpush1.msra.mxu0 0.0
          %6105 = vmatprep.subr.mxu0 0.0
          %6106 = vmatpush1.msra.mxu0 0.0
          %6107 = vmatprep.mubr.f32.mxu0 0.0
          %v6108 = vand.u32 %v5397, 4294901760
          %v6109 = vsub.f32 %v5397, %v6108
          %v6110 = vand.u32 %v6109, 4294901760
          %6111 = vmatmul.mubr.f32.gmra.mrb[0].mxu0 %v6110
          %v6112 = vpop.f32.mrb[0].mxu0
          %v6113 = vadd.f32 %v5931, %v6112
          %v6114 = vpop.f32.mrb[0].mxu0
          %6115 = vmatprep.mubr.f32.mxu0 0.0
          %v6116 = vand.u32 %v5400, 4294901760
          %v6117 = vsub.f32 %v5400, %v6116
          %v6118 = vand.u32 %v6117, 4294901760
          %6119 = vmatmul.mubr.f32.gmra.mrb[0].mxu0 %v6118
          %v6120 = vpop.f32.mrb[0].mxu0
          %v6121 = vadd.f32 %v5938, %v6120
          %v6122 = vpop.f32.mrb[0].mxu0
          %6123 = vmatprep.mubr.f32.mxu0 0.0
          %v6124 = vand.u32 %v5403, 4294901760
          %v6125 = vsub.f32 %v5403, %v6124
          %v6126 = vand.u32 %v6125, 4294901760
          %6127 = vmatmul.mubr.f32.gmra.mrb[0].mxu0 %v6126
          %v6128 = vpop.f32.mrb[0].mxu0
          %v6129 = vadd.f32 %v5945, %v6128
          %v6130 = vpop.f32.mrb[0].mxu0
          %6131 = vmatprep.mubr.f32.mxu0 0.0
          %v6132 = vand.u32 %v5406, 4294901760
          %v6133 = vsub.f32 %v5406, %v6132
          %v6134 = vand.u32 %v6133, 4294901760
          %6135 = vmatmul.mubr.f32.gmra.mrb[0].mxu0 %v6134
          %v6136 = vpop.f32.mrb[0].mxu0
          %v6137 = vadd.f32 %v5952, %v6136
          %v6138 = vpop.f32.mrb[0].mxu0
          %6139 = vmatprep.mubr.f32.mxu0 0.0
          %v6140 = vand.u32 %v5409, 4294901760
          %v6141 = vsub.f32 %v5409, %v6140
          %v6142 = vand.u32 %v6141, 4294901760
          %6143 = vmatmul.mubr.f32.gmra.mrb[0].mxu0 %v6142
          %v6144 = vpop.f32.mrb[0].mxu0
          %v6145 = vadd.f32 %v5959, %v6144
          %v6146 = vpop.f32.mrb[0].mxu0
          %6147 = vmatprep.mubr.f32.mxu0 0.0
          %v6148 = vand.u32 %v5412, 4294901760
          %v6149 = vsub.f32 %v5412, %v6148
          %v6150 = vand.u32 %v6149, 4294901760
          %6151 = vmatmul.mubr.f32.gmra.mrb[0].mxu0 %v6150
          %v6152 = vpop.f32.mrb[0].mxu0
          %v6153 = vadd.f32 %v5966, %v6152
          %v6154 = vpop.f32.mrb[0].mxu0
          %6155 = vmatprep.mubr.f32.mxu0 0.0
          %v6156 = vand.u32 %v5415, 4294901760
          %v6157 = vsub.f32 %v5415, %v6156
          %v6158 = vand.u32 %v6157, 4294901760
          %6159 = vmatmul.mubr.f32.gmra.mrb[0].mxu0 %v6158
          %v6160 = vpop.f32.mrb[0].mxu0
          %v6161 = vadd.f32 %v5973, %v6160
          %v6162 = vpop.f32.mrb[0].mxu0
          %6163 = vmatprep.mubr.f32.mxu0 0.0
          %v6164 = vand.u32 %v5418, 4294901760
          %v6165 = vsub.f32 %v5418, %v6164
          %v6166 = vand.u32 %v6165, 4294901760
          %6167 = vmatmul.mubr.f32.gmra.mrb[0].mxu0 %v6166
          %v6168 = vpop.f32.mrb[0].mxu0
          %v6169 = vadd.f32 %v5980, %v6168
          %v6170 = vpop.f32.mrb[0].mxu0
          %6171 = vmatprep.mubr.f32.mxu0 0.0
          %v6172 = vand.u32 %v5421, 4294901760
          %v6173 = vsub.f32 %v5421, %v6172
          %v6174 = vand.u32 %v6173, 4294901760
          %6175 = vmatmul.mubr.f32.gmra.mrb[0].mxu0 %v6174
          %v6176 = vpop.f32.mrb[0].mxu0
          %v6177 = vadd.f32 %v5987, %v6176
          %v6178 = vpop.f32.mrb[0].mxu0
          %6179 = vmatprep.mubr.f32.mxu0 0.0
          %v6180 = vand.u32 %v5424, 4294901760
          %v6181 = vsub.f32 %v5424, %v6180
          %v6182 = vand.u32 %v6181, 4294901760
          %6183 = vmatmul.mubr.f32.gmra.mrb[0].mxu0 %v6182
          %v6184 = vpop.f32.mrb[0].mxu0
          %v6185 = vadd.f32 %v5994, %v6184
          %v6186 = vpop.f32.mrb[0].mxu0
          %6187 = vmatprep.mubr.f32.mxu0 0.0
          %v6188 = vand.u32 %v5427, 4294901760
          %v6189 = vsub.f32 %v5427, %v6188
          %v6190 = vand.u32 %v6189, 4294901760
          %6191 = vmatmul.mubr.f32.gmra.mrb[0].mxu0 %v6190
          %v6192 = vpop.f32.mrb[0].mxu0
          %v6193 = vadd.f32 %v6001, %v6192
          %v6194 = vpop.f32.mrb[0].mxu0
          %6195 = vmatprep.mubr.f32.mxu0 0.0
          %v6196 = vand.u32 %v5430, 4294901760
          %v6197 = vsub.f32 %v5430, %v6196
          %v6198 = vand.u32 %v6197, 4294901760
          %6199 = vmatmul.mubr.f32.gmra.mrb[0].mxu0 %v6198
          %v6200 = vpop.f32.mrb[0].mxu0
          %v6201 = vadd.f32 %v6008, %v6200
          %v6202 = vpop.f32.mrb[0].mxu0
          %6203 = vmatprep.mubr.f32.mxu0 0.0
          %v6204 = vand.u32 %v5433, 4294901760
          %v6205 = vsub.f32 %v5433, %v6204
          %v6206 = vand.u32 %v6205, 4294901760
          %6207 = vmatmul.mubr.f32.gmra.mrb[0].mxu0 %v6206
          %v6208 = vpop.f32.mrb[0].mxu0
          %v6209 = vadd.f32 %v6015, %v6208
          %v6210 = vpop.f32.mrb[0].mxu0
          %6211 = vmatprep.mubr.f32.mxu0 0.0
          %v6212 = vand.u32 %v5436, 4294901760
          %v6213 = vsub.f32 %v5436, %v6212
          %v6214 = vand.u32 %v6213, 4294901760
          %6215 = vmatmul.mubr.f32.gmra.mrb[0].mxu0 %v6214
          %v6216 = vpop.f32.mrb[0].mxu0
          %v6217 = vadd.f32 %v6022, %v6216
          %v6218 = vpop.f32.mrb[0].mxu0
          %6219 = vmatprep.mubr.f32.mxu0 0.0
          %v6220 = vand.u32 %v5439, 4294901760
          %v6221 = vsub.f32 %v5439, %v6220
          %v6222 = vand.u32 %v6221, 4294901760
          %6223 = vmatmul.mubr.f32.gmra.mrb[0].mxu0 %v6222
          %v6224 = vpop.f32.mrb[0].mxu0
          %v6225 = vadd.f32 %v6029, %v6224
          %v6226 = vpop.f32.mrb[0].mxu0
          %6227 = vmatprep.mubr.f32.mxu0 0.0
          %v6228 = vand.u32 %v5442, 4294901760
          %v6229 = vsub.f32 %v5442, %v6228
          %v6230 = vand.u32 %v6229, 4294901760
          %6231 = vmatmul.mubr.f32.gmra.mrb[0].mxu0 %v6230
          %v6232 = vpop.f32.mrb[0].mxu0
          %v6233 = vadd.f32 %v6036, %v6232
          %v6234 = vpop.f32.mrb[0].mxu0
          %6235 = vdwg.mxu0
          %6236 = vmatprep.subr.mxu0 0.0
          %v6237 = vand.u32 %v5279, 4294901760
          %v6238 = vsub.f32 %v5279, %v6237
          %v6239 = vand.u32 %v6238, 4294901760
          %6240 = vmatpush1.msra.mxu0 %v6239
          %6241 = vmatprep.subr.mxu0 0.0
          %v6242 = vand.u32 %v5280, 4294901760
          %v6243 = vsub.f32 %v5280, %v6242
          %v6244 = vand.u32 %v6243, 4294901760
          %6245 = vmatpush1.msra.mxu0 %v6244
          %6246 = vmatprep.subr.mxu0 0.0
          %v6247 = vand.u32 %v5281, 4294901760
          %v6248 = vsub.f32 %v5281, %v6247
          %v6249 = vand.u32 %v6248, 4294901760
          %6250 = vmatpush1.msra.mxu0 %v6249
          %6251 = vmatprep.subr.mxu0 0.0
          %v6252 = vand.u32 %v5282, 4294901760
          %v6253 = vsub.f32 %v5282, %v6252
          %v6254 = vand.u32 %v6253, 4294901760
          %6255 = vmatpush1.msra.mxu0 %v6254
          %6256 = vmatprep.subr.mxu0 0.0
          %6257 = vmatpush1.msra.mxu0 0.0
          %6258 = vmatprep.subr.mxu0 0.0
          %6259 = vmatpush1.msra.mxu0 0.0
          %6260 = vmatprep.subr.mxu0 0.0
          %6261 = vmatpush1.msra.mxu0 0.0
          %6262 = vmatprep.subr.mxu0 0.0
          %6263 = vmatpush1.msra.mxu0 0.0
          %6264 = vmatprep.subr.mxu0 0.0
          %6265 = vmatpush1.msra.mxu0 0.0
          %6266 = vmatprep.subr.mxu0 0.0
          %6267 = vmatpush1.msra.mxu0 0.0
          %6268 = vmatprep.subr.mxu0 0.0
          %6269 = vmatpush1.msra.mxu0 0.0
          %6270 = vmatprep.subr.mxu0 0.0
          %6271 = vmatpush1.msra.mxu0 0.0
          %6272 = vmatprep.subr.mxu0 0.0
          %6273 = vmatpush1.msra.mxu0 0.0
          %6274 = vmatprep.subr.mxu0 0.0
          %6275 = vmatpush1.msra.mxu0 0.0
          %6276 = vmatprep.subr.mxu0 0.0
          %6277 = vmatpush1.msra.mxu0 0.0
          %6278 = vmatprep.subr.mxu0 0.0
          %6279 = vmatpush1.msra.mxu0 0.0
          %6280 = vmatprep.subr.mxu0 0.0
          %6281 = vmatpush1.msra.mxu0 0.0
          %6282 = vmatprep.subr.mxu0 0.0
          %6283 = vmatpush1.msra.mxu0 0.0
          %6284 = vmatprep.subr.mxu0 0.0
          %6285 = vmatpush1.msra.mxu0 0.0
          %6286 = vmatprep.subr.mxu0 0.0
          %6287 = vmatpush1.msra.mxu0 0.0
          %6288 = vmatprep.subr.mxu0 0.0
          %6289 = vmatpush1.msra.mxu0 0.0
          %6290 = vmatprep.subr.mxu0 0.0
          %6291 = vmatpush1.msra.mxu0 0.0
          %6292 = vmatprep.subr.mxu0 0.0
          %6293 = vmatpush1.msra.mxu0 0.0
          %6294 = vmatprep.subr.mxu0 0.0
          %6295 = vmatpush1.msra.mxu0 0.0
          %6296 = vmatprep.subr.mxu0 0.0
          %6297 = vmatpush1.msra.mxu0 0.0
          %6298 = vmatprep.subr.mxu0 0.0
          %6299 = vmatpush1.msra.mxu0 0.0
          %6300 = vmatprep.subr.mxu0 0.0
          %6301 = vmatpush1.msra.mxu0 0.0
          %6302 = vmatprep.subr.mxu0 0.0
          %6303 = vmatpush1.msra.mxu0 0.0
          %6304 = vmatprep.subr.mxu0 0.0
          %6305 = vmatpush1.msra.mxu0 0.0
          %6306 = vmatprep.subr.mxu0 0.0
          %6307 = vmatpush1.msra.mxu0 0.0
          %6308 = vmatprep.subr.mxu0 0.0
          %6309 = vmatpush1.msra.mxu0 0.0
          %6310 = vmatprep.subr.mxu0 0.0
          %6311 = vmatpush1.msra.mxu0 0.0
          %6312 = vmatprep.mubr.f32.mxu0 0.0
          %v6313 = vand.u32 %v5397, 4294901760
          %6314 = vmatmul.mubr.f32.gmra.mrb[0].mxu0 %v6313
          %v6315 = vpop.f32.mrb[0].mxu0
          %v6316 = vadd.f32 %v6113, %v6315
          %v6317 = vpop.f32.mrb[0].mxu0
          %6318 = vmatprep.mubr.f32.mxu0 0.0
          %v6319 = vand.u32 %v5400, 4294901760
          %6320 = vmatmul.mubr.f32.gmra.mrb[0].mxu0 %v6319
          %v6321 = vpop.f32.mrb[0].mxu0
          %v6322 = vadd.f32 %v6121, %v6321
          %v6323 = vpop.f32.mrb[0].mxu0
          %6324 = vmatprep.mubr.f32.mxu0 0.0
          %v6325 = vand.u32 %v5403, 4294901760
          %6326 = vmatmul.mubr.f32.gmra.mrb[0].mxu0 %v6325
          %v6327 = vpop.f32.mrb[0].mxu0
          %v6328 = vadd.f32 %v6129, %v6327
          %v6329 = vpop.f32.mrb[0].mxu0
          %6330 = vmatprep.mubr.f32.mxu0 0.0
          %v6331 = vand.u32 %v5406, 4294901760
          %6332 = vmatmul.mubr.f32.gmra.mrb[0].mxu0 %v6331
          %v6333 = vpop.f32.mrb[0].mxu0
          %v6334 = vadd.f32 %v6137, %v6333
          %v6335 = vpop.f32.mrb[0].mxu0
          %6336 = vmatprep.mubr.f32.mxu0 0.0
          %v6337 = vand.u32 %v5409, 4294901760
          %6338 = vmatmul.mubr.f32.gmra.mrb[0].mxu0 %v6337
          %v6339 = vpop.f32.mrb[0].mxu0
          %v6340 = vadd.f32 %v6145, %v6339
          %v6341 = vpop.f32.mrb[0].mxu0
          %6342 = vmatprep.mubr.f32.mxu0 0.0
          %v6343 = vand.u32 %v5412, 4294901760
          %6344 = vmatmul.mubr.f32.gmra.mrb[0].mxu0 %v6343
          %v6345 = vpop.f32.mrb[0].mxu0
          %v6346 = vadd.f32 %v6153, %v6345
          %v6347 = vpop.f32.mrb[0].mxu0
          %6348 = vmatprep.mubr.f32.mxu0 0.0
          %v6349 = vand.u32 %v5415, 4294901760
          %6350 = vmatmul.mubr.f32.gmra.mrb[0].mxu0 %v6349
          %v6351 = vpop.f32.mrb[0].mxu0
          %v6352 = vadd.f32 %v6161, %v6351
          %v6353 = vpop.f32.mrb[0].mxu0
          %6354 = vmatprep.mubr.f32.mxu0 0.0
          %v6355 = vand.u32 %v5418, 4294901760
          %6356 = vmatmul.mubr.f32.gmra.mrb[0].mxu0 %v6355
          %v6357 = vpop.f32.mrb[0].mxu0
          %v6358 = vadd.f32 %v6169, %v6357
          %v6359 = vpop.f32.mrb[0].mxu0
          %6360 = vmatprep.mubr.f32.mxu0 0.0
          %v6361 = vand.u32 %v5421, 4294901760
          %6362 = vmatmul.mubr.f32.gmra.mrb[0].mxu0 %v6361
          %v6363 = vpop.f32.mrb[0].mxu0
          %v6364 = vadd.f32 %v6177, %v6363
          %v6365 = vpop.f32.mrb[0].mxu0
          %6366 = vmatprep.mubr.f32.mxu0 0.0
          %v6367 = vand.u32 %v5424, 4294901760
          %6368 = vmatmul.mubr.f32.gmra.mrb[0].mxu0 %v6367
          %v6369 = vpop.f32.mrb[0].mxu0
          %v6370 = vadd.f32 %v6185, %v6369
          %v6371 = vpop.f32.mrb[0].mxu0
          %6372 = vmatprep.mubr.f32.mxu0 0.0
          %v6373 = vand.u32 %v5427, 4294901760
          %6374 = vmatmul.mubr.f32.gmra.mrb[0].mxu0 %v6373
          %v6375 = vpop.f32.mrb[0].mxu0
          %v6376 = vadd.f32 %v6193, %v6375
          %v6377 = vpop.f32.mrb[0].mxu0
          %6378 = vmatprep.mubr.f32.mxu0 0.0
          %v6379 = vand.u32 %v5430, 4294901760
          %6380 = vmatmul.mubr.f32.gmra.mrb[0].mxu0 %v6379
          %v6381 = vpop.f32.mrb[0].mxu0
          %v6382 = vadd.f32 %v6201, %v6381
          %v6383 = vpop.f32.mrb[0].mxu0
          %6384 = vmatprep.mubr.f32.mxu0 0.0
          %v6385 = vand.u32 %v5433, 4294901760
          %6386 = vmatmul.mubr.f32.gmra.mrb[0].mxu0 %v6385
          %v6387 = vpop.f32.mrb[0].mxu0
          %v6388 = vadd.f32 %v6209, %v6387
          %v6389 = vpop.f32.mrb[0].mxu0
          %6390 = vmatprep.mubr.f32.mxu0 0.0
          %v6391 = vand.u32 %v5436, 4294901760
          %6392 = vmatmul.mubr.f32.gmra.mrb[0].mxu0 %v6391
          %v6393 = vpop.f32.mrb[0].mxu0
          %v6394 = vadd.f32 %v6217, %v6393
          %v6395 = vpop.f32.mrb[0].mxu0
          %6396 = vmatprep.mubr.f32.mxu0 0.0
          %v6397 = vand.u32 %v5439, 4294901760
          %6398 = vmatmul.mubr.f32.gmra.mrb[0].mxu0 %v6397
          %v6399 = vpop.f32.mrb[0].mxu0
          %v6400 = vadd.f32 %v6225, %v6399
          %v6401 = vpop.f32.mrb[0].mxu0
          %6402 = vmatprep.mubr.f32.mxu0 0.0
          %v6403 = vand.u32 %v5442, 4294901760
          %6404 = vmatmul.mubr.f32.gmra.mrb[0].mxu0 %v6403
          %v6405 = vpop.f32.mrb[0].mxu0
          %v6406 = vadd.f32 %v6233, %v6405
          %v6407 = vpop.f32.mrb[0].mxu0
          %6408 = vdwg.mxu0
          %6409 = vmatprep.subr.mxu0 0.0
          %v6410 = vand.u32 %v5279, 4294901760
          %6411 = vmatpush1.msra.mxu0 %v6410
          %6412 = vmatprep.subr.mxu0 0.0
          %v6413 = vand.u32 %v5280, 4294901760
          %6414 = vmatpush1.msra.mxu0 %v6413
          %6415 = vmatprep.subr.mxu0 0.0
          %v6416 = vand.u32 %v5281, 4294901760
          %6417 = vmatpush1.msra.mxu0 %v6416
          %6418 = vmatprep.subr.mxu0 0.0
          %v6419 = vand.u32 %v5282, 4294901760
          %6420 = vmatpush1.msra.mxu0 %v6419
          %6421 = vmatprep.subr.mxu0 0.0
          %6422 = vmatpush1.msra.mxu0 0.0
          %6423 = vmatprep.subr.mxu0 0.0
          %6424 = vmatpush1.msra.mxu0 0.0
          %6425 = vmatprep.subr.mxu0 0.0
          %6426 = vmatpush1.msra.mxu0 0.0
          %6427 = vmatprep.subr.mxu0 0.0
          %6428 = vmatpush1.msra.mxu0 0.0
          %6429 = vmatprep.subr.mxu0 0.0
          %6430 = vmatpush1.msra.mxu0 0.0
          %6431 = vmatprep.subr.mxu0 0.0
          %6432 = vmatpush1.msra.mxu0 0.0
          %6433 = vmatprep.subr.mxu0 0.0
          %6434 = vmatpush1.msra.mxu0 0.0
          %6435 = vmatprep.subr.mxu0 0.0
          %6436 = vmatpush1.msra.mxu0 0.0
          %6437 = vmatprep.subr.mxu0 0.0
          %6438 = vmatpush1.msra.mxu0 0.0
          %6439 = vmatprep.subr.mxu0 0.0
          %6440 = vmatpush1.msra.mxu0 0.0
          %6441 = vmatprep.subr.mxu0 0.0
          %6442 = vmatpush1.msra.mxu0 0.0
          %6443 = vmatprep.subr.mxu0 0.0
          %6444 = vmatpush1.msra.mxu0 0.0
          %6445 = vmatprep.subr.mxu0 0.0
          %6446 = vmatpush1.msra.mxu0 0.0
          %6447 = vmatprep.subr.mxu0 0.0
          %6448 = vmatpush1.msra.mxu0 0.0
          %6449 = vmatprep.subr.mxu0 0.0
          %6450 = vmatpush1.msra.mxu0 0.0
          %6451 = vmatprep.subr.mxu0 0.0
          %6452 = vmatpush1.msra.mxu0 0.0
          %6453 = vmatprep.subr.mxu0 0.0
          %6454 = vmatpush1.msra.mxu0 0.0
          %6455 = vmatprep.subr.mxu0 0.0
          %6456 = vmatpush1.msra.mxu0 0.0
          %6457 = vmatprep.subr.mxu0 0.0
          %6458 = vmatpush1.msra.mxu0 0.0
          %6459 = vmatprep.subr.mxu0 0.0
          %6460 = vmatpush1.msra.mxu0 0.0
          %6461 = vmatprep.subr.mxu0 0.0
          %6462 = vmatpush1.msra.mxu0 0.0
          %6463 = vmatprep.subr.mxu0 0.0
          %6464 = vmatpush1.msra.mxu0 0.0
          %6465 = vmatprep.subr.mxu0 0.0
          %6466 = vmatpush1.msra.mxu0 0.0
          %6467 = vmatprep.subr.mxu0 0.0
          %6468 = vmatpush1.msra.mxu0 0.0
          %6469 = vmatprep.subr.mxu0 0.0
          %6470 = vmatpush1.msra.mxu0 0.0
          %6471 = vmatprep.subr.mxu0 0.0
          %6472 = vmatpush1.msra.mxu0 0.0
          %6473 = vmatprep.subr.mxu0 0.0
          %6474 = vmatpush1.msra.mxu0 0.0
          %6475 = vmatprep.subr.mxu0 0.0
          %6476 = vmatpush1.msra.mxu0 0.0
          %6477 = vmatprep.mubr.f32.mxu0 0.0
          %v6478 = vand.u32 %v5397, 4294901760
          %6479 = vmatmul.mubr.f32.gmra.mrb[0].mxu0 %v6478
          %v6480 = vpop.f32.mrb[0].mxu0
          %v6481 = vadd.f32 %v6316, %v6480
          %v6482 = vpop.f32.mrb[0].mxu0
          %6483 = vmatprep.mubr.f32.mxu0 0.0
          %v6484 = vand.u32 %v5400, 4294901760
          %6485 = vmatmul.mubr.f32.gmra.mrb[0].mxu0 %v6484
          %v6486 = vpop.f32.mrb[0].mxu0
          %v6487 = vadd.f32 %v6322, %v6486
          %v6488 = vpop.f32.mrb[0].mxu0
          %6489 = vmatprep.mubr.f32.mxu0 0.0
          %v6490 = vand.u32 %v5403, 4294901760
          %6491 = vmatmul.mubr.f32.gmra.mrb[0].mxu0 %v6490
          %v6492 = vpop.f32.mrb[0].mxu0
          %v6493 = vadd.f32 %v6328, %v6492
          %v6494 = vpop.f32.mrb[0].mxu0
          %6495 = vmatprep.mubr.f32.mxu0 0.0
          %v6496 = vand.u32 %v5406, 4294901760
          %6497 = vmatmul.mubr.f32.gmra.mrb[0].mxu0 %v6496
          %v6498 = vpop.f32.mrb[0].mxu0
          %v6499 = vadd.f32 %v6334, %v6498
          %v6500 = vpop.f32.mrb[0].mxu0
          %6501 = vmatprep.mubr.f32.mxu0 0.0
          %v6502 = vand.u32 %v5409, 4294901760
          %6503 = vmatmul.mubr.f32.gmra.mrb[0].mxu0 %v6502
          %v6504 = vpop.f32.mrb[0].mxu0
          %v6505 = vadd.f32 %v6340, %v6504
          %v6506 = vpop.f32.mrb[0].mxu0
          %6507 = vmatprep.mubr.f32.mxu0 0.0
          %v6508 = vand.u32 %v5412, 4294901760
          %6509 = vmatmul.mubr.f32.gmra.mrb[0].mxu0 %v6508
          %v6510 = vpop.f32.mrb[0].mxu0
          %v6511 = vadd.f32 %v6346, %v6510
          %v6512 = vpop.f32.mrb[0].mxu0
          %6513 = vmatprep.mubr.f32.mxu0 0.0
          %v6514 = vand.u32 %v5415, 4294901760
          %6515 = vmatmul.mubr.f32.gmra.mrb[0].mxu0 %v6514
          %v6516 = vpop.f32.mrb[0].mxu0
          %v6517 = vadd.f32 %v6352, %v6516
          %v6518 = vpop.f32.mrb[0].mxu0
          %6519 = vmatprep.mubr.f32.mxu0 0.0
          %v6520 = vand.u32 %v5418, 4294901760
          %6521 = vmatmul.mubr.f32.gmra.mrb[0].mxu0 %v6520
          %v6522 = vpop.f32.mrb[0].mxu0
          %v6523 = vadd.f32 %v6358, %v6522
          %v6524 = vpop.f32.mrb[0].mxu0
          %6525 = vmatprep.mubr.f32.mxu0 0.0
          %v6526 = vand.u32 %v5421, 4294901760
          %6527 = vmatmul.mubr.f32.gmra.mrb[0].mxu0 %v6526
          %v6528 = vpop.f32.mrb[0].mxu0
          %v6529 = vadd.f32 %v6364, %v6528
          %v6530 = vpop.f32.mrb[0].mxu0
          %6531 = vmatprep.mubr.f32.mxu0 0.0
          %v6532 = vand.u32 %v5424, 4294901760
          %6533 = vmatmul.mubr.f32.gmra.mrb[0].mxu0 %v6532
          %v6534 = vpop.f32.mrb[0].mxu0
          %v6535 = vadd.f32 %v6370, %v6534
          %v6536 = vpop.f32.mrb[0].mxu0
          %6537 = vmatprep.mubr.f32.mxu0 0.0
          %v6538 = vand.u32 %v5427, 4294901760
          %6539 = vmatmul.mubr.f32.gmra.mrb[0].mxu0 %v6538
          %v6540 = vpop.f32.mrb[0].mxu0
          %v6541 = vadd.f32 %v6376, %v6540
          %v6542 = vpop.f32.mrb[0].mxu0
          %6543 = vmatprep.mubr.f32.mxu0 0.0
          %v6544 = vand.u32 %v5430, 4294901760
          %6545 = vmatmul.mubr.f32.gmra.mrb[0].mxu0 %v6544
          %v6546 = vpop.f32.mrb[0].mxu0
          %v6547 = vadd.f32 %v6382, %v6546
          %v6548 = vpop.f32.mrb[0].mxu0
          %6549 = vmatprep.mubr.f32.mxu0 0.0
          %v6550 = vand.u32 %v5433, 4294901760
          %6551 = vmatmul.mubr.f32.gmra.mrb[0].mxu0 %v6550
          %v6552 = vpop.f32.mrb[0].mxu0
          %v6553 = vadd.f32 %v6388, %v6552
          %v6554 = vpop.f32.mrb[0].mxu0
          %6555 = vmatprep.mubr.f32.mxu0 0.0
          %v6556 = vand.u32 %v5436, 4294901760
          %6557 = vmatmul.mubr.f32.gmra.mrb[0].mxu0 %v6556
          %v6558 = vpop.f32.mrb[0].mxu0
          %v6559 = vadd.f32 %v6394, %v6558
          %v6560 = vpop.f32.mrb[0].mxu0
          %6561 = vmatprep.mubr.f32.mxu0 0.0
          %v6562 = vand.u32 %v5439, 4294901760
          %6563 = vmatmul.mubr.f32.gmra.mrb[0].mxu0 %v6562
          %v6564 = vpop.f32.mrb[0].mxu0
          %v6565 = vadd.f32 %v6400, %v6564
          %v6566 = vpop.f32.mrb[0].mxu0
          %6567 = vmatprep.mubr.f32.mxu0 0.0
          %v6568 = vand.u32 %v5442, 4294901760
          %6569 = vmatmul.mubr.f32.gmra.mrb[0].mxu0 %v6568
          %v6570 = vpop.f32.mrb[0].mxu0
          %v6571 = vadd.f32 %v6406, %v6570
          %v6572 = vpop.f32.mrb[0].mxu0
          %6573 = vdwg.mxu0
          %v6574 = vmax.f32 %v6481, 0.0
          %v6575 = vmax.f32 %v6487, 0.0
          %v6576 = vmax.f32 %v6493, 0.0
          %v6577 = vmax.f32 %v6499, 0.0
          %v6578 = vmax.f32 %v6505, 0.0
          %v6579 = vmax.f32 %v6511, 0.0
          %v6580 = vmax.f32 %v6517, 0.0
          %v6581 = vmax.f32 %v6523, 0.0
          %v6582 = vmax.f32 %v6529, 0.0
          %v6583 = vmax.f32 %v6535, 0.0
          %v6584 = vmax.f32 %v6541, 0.0
          %v6585 = vmax.f32 %v6547, 0.0
          %v6586 = vmax.f32 %v6553, 0.0
          %v6587 = vmax.f32 %v6559, 0.0
          %v6588 = vmax.f32 %v6565, 0.0
          %v6589 = vmax.f32 %v6571, 0.0
          %6590 = vst [vmem:[#allocation3] sm:$0xff] %v6574
          %6591 = vst [vmem:[#allocation3 + $0x8] sm:$0xff] %v6575
          %6592 = vst [vmem:[#allocation3 + $0x10] sm:$0xff] %v6576
          %6593 = vst [vmem:[#allocation3 + $0x18] sm:$0xff] %v6577
          %6594 = vst [vmem:[#allocation3 + $0x20] sm:$0xff] %v6578
          %6595 = vst [vmem:[#allocation3 + $0x28] sm:$0xff] %v6579
          %6596 = vst [vmem:[#allocation3 + $0x30] sm:$0xff] %v6580
          %6597 = vst [vmem:[#allocation3 + $0x38] sm:$0xff] %v6581
          %6598 = vst [vmem:[#allocation3 + $0x40] sm:$0xff] %v6582
          %6599 = vst [vmem:[#allocation3 + $0x48] sm:$0xff] %v6583
          %6600 = vst [vmem:[#allocation3 + $0x50] sm:$0xff] %v6584
          %6601 = vst [vmem:[#allocation3 + $0x58] sm:$0xff] %v6585
          %6602 = vst [vmem:[#allocation3 + $0x60] sm:$0xff] %v6586
          %6603 = vst [vmem:[#allocation3 + $0x68] sm:$0xff] %v6587
          %6604 = vst [vmem:[#allocation3 + $0x70] sm:$0xff] %v6588
          %6605 = vst [vmem:[#allocation3 + $0x78] sm:$0xff] %v6589
        $region60: #{tpu_custom_call.1} parent=51 // pred_fallthru
          _
        // Predicated region
        $region61: #{tpu_custom_call.1} parent=51 // pred_check
          %p6606 = pneg %p248
        $region62: #{tpu_custom_call.1} parent=51 // pred_check_branch
          %6608 = sbr.rel (%p6606) target = $region64
        $region63: #{tpu_custom_call.1} parent=51 // pred_region
          %s6610 = ssub.s32 2048, 2048
          %6611 = vsyncadd [#allocation4], %s6610
          %s6612 = smul.addr %s24, 128
          %s6613 = scalar_lea.hbm %s8, %s6612
          %s6614 = sshll.u32 [#allocation3], 4
          %s6615 = int_to_ptr.vmem [resolvable:$true] %s6614
          %6620 = dma.vmem_to_hbm [thread:$0]  %s6615, 2048, %s6613, [#allocation4], 128, 128, 8
        $region64: #{tpu_custom_call.1} parent=51 // pred_fallthru
          _
        // Predicated region
        $region65: #{tpu_custom_call.1} parent=51 // pred_check
          %p6621 = pneg %p248
        $region66: #{tpu_custom_call.1} parent=51 // pred_check_branch
          %6623 = sbr.rel (%p6621) target = $region68
        $region67: #{tpu_custom_call.1} parent=51 // pred_region
          %6624 = dma.done [#allocation4], 2048
        $region68: #{tpu_custom_call.1} parent=51 // pred_fallthru
          _
      $region52: #{tpu_custom_call.1} parent=5 // pred_fallthru
        _
      %p6625 = scmp.le.s32.totalorder 2, %s15
      // Predicated region
      $region69: #{tpu_custom_call.1} parent=5 // pred_check
        %p6626 = pneg %p6625
      $region70: #{tpu_custom_call.1} parent=5 // pred_check_branch
        %6628 = sbr.rel (%p6626) target = $region72
      $region71: #{tpu_custom_call.1} parent=5 // pred_region
        %s6629 = ssub.s32 %s15, 2
      $region72: #{tpu_custom_call.1} parent=5 // pred_fallthru
        _
    $region6: #{tpu_custom_call.1} parent=1 // loop_footer
      %s19 = sadd.s32 1, %s15
    $region7: #{tpu_custom_call.1} parent=1 // loop_footer_branch
      %14 = sbr.rel target = $region3
    $region8: #{tpu_custom_call.1} parent=1 // loop_exit
      _
    %6630 = vsyncpa [#allocation4], 1
    %s6631 = scalar_lea.sflag [#allocation4], 1
    %6632 = vsyncpa %s6631, 1

</llo_original>
